<compile_context>
chip_gen: v6e
topology: v6e:2x2x1
jax: 0.10.0
libtpu: 0.0.40
codegen_flags: <defaults>
</compile_context>

<pallas_src>
import functools

import numpy as np

import jax
import jax.numpy as jnp
from jax import lax
from jax.experimental import pallas as pl
from jax.experimental.pallas import tpu as pltpu


NULL_TOKEN = 0

CFG = dict(
    q_vocab=20, a_vocab=10,
    wordvec_dim=16, rnn_dim=32,
    feat_c=8, feat_h=8, feat_w=8,
    stem_dim=16, sa_dim=32, num_sa=2, fc_dim=64,
)


def _rep_spec(shape):
    """BlockSpec for a weight that is replicated (same full block) at every grid step."""
    return pl.BlockSpec(shape, lambda i: (0,) * len(shape))


# ---------------------------------------------------------------------------
# Kernel 1: fused image path  (stem conv3x3+ReLU x2  ->  image_proj 1x1 conv)
# ---------------------------------------------------------------------------
def _conv3x3_relu(x2d, w_ref, b_ref, mask_ref, width):
    """3x3 'same' conv + ReLU on a channels-last (H*W, Cin) VMEM-resident tile.

    9 accumulated MXU dots over row-rotated + boundary-masked copies of the
    flattened feature map; no padded / im2col buffer leaves VMEM.
    """
    hw, _ = x2d.shape
    cout = w_ref.shape[-1]
    acc = jnp.zeros((hw, cout), jnp.float32)
    for dh in range(3):
        for dw in range(3):
            delta = (dh - 1) * width + (dw - 1)          # flat row shift of this tap
            if delta == 0:
                shifted = x2d
            else:
                # want shifted[r] = x2d[r + delta]  (np.roll convention, shift = -delta)
                shifted = pltpu.roll(x2d, (-delta) % hw, 0)
            shifted = shifted * mask_ref[dh * 3 + dw]    # zero out-of-image taps
            acc = acc + jnp.dot(shifted, w_ref[dh, dw],
                                preferred_element_type=jnp.float32)
    return jnp.maximum(acc + b_ref[...], 0.0)


def _image_path_kernel(x_ref, mask_ref, w0_ref, b0_ref, w1_ref, b1_ref,
                       wi_ref, bi_ref, v_ref, *, width):
    x = x_ref[0]                                             # (H*W, Cin)
    t = _conv3x3_relu(x, w0_ref, b0_ref, mask_ref, width)    # stem conv 0
    t = _conv3x3_relu(t, w1_ref, b1_ref, mask_ref, width)    # stem conv 1
    v = (jnp.dot(t, wi_ref[...], preferred_element_type=jnp.float32)
         + bi_ref[...])                                      # image_proj (1x1 conv)
    v_ref[0] = v


def _make_conv_masks(h, w):
    """(9, H*W, 1) float32 validity masks for the 9 taps of a 3x3 'same' conv."""
    yy, xx = np.meshgrid(np.arange(h), np.arange(w), indexing='ij')
    yy = yy.reshape(-1)
    xx = xx.reshape(-1)
    masks = []
    for dh in range(3):
        for dw in range(3):
            sy, sx = dh - 1, dw - 1
            valid = ((yy + sy >= 0) & (yy + sy < h) &
                     (xx + sx >= 0) & (xx + sx < w))
            masks.append(valid.astype(np.float32).reshape(h * w, 1))
    return jnp.asarray(np.stack(masks, axis=0))


def image_path(feats_nchw, p):
    n, c, h, w = feats_nchw.shape
    cs = p['stem0_w'].shape[-1]
    k = p['img_w'].shape[-1]
    hw = h * w
    x = jnp.transpose(feats_nchw, (0, 2, 3, 1)).reshape(n, hw, c)   # NCHW -> (N, HW, C)
    conv_mask = _make_conv_masks(h, w)
    return pl.pallas_call(
        functools.partial(_image_path_kernel, width=w),
        out_shape=jax.ShapeDtypeStruct((n, hw, k), jnp.float32),
        grid=(n,),
        in_specs=[
            pl.BlockSpec((1, hw, c), lambda i: (i, 0, 0)),
            _rep_spec((9, hw, 1)),
            _rep_spec((3, 3, c, cs)), _rep_spec((1, cs)),
            _rep_spec((3, 3, cs, cs)), _rep_spec((1, cs)),
            _rep_spec((cs, k)), _rep_spec((1, k)),
        ],
        out_specs=pl.BlockSpec((1, hw, k), lambda i: (i, 0, 0)),
        compiler_params=pltpu.CompilerParams(
            dimension_semantics=("parallel",),
            vmem_limit_bytes=32 * 1024 * 1024),
    )(x, conv_mask, p['stem0_w'], p['stem0_b'], p['stem1_w'], p['stem1_b'],
      p['img_w'], p['img_b'])


# ---------------------------------------------------------------------------
# Kernel 2: 2-layer LSTM encoder + last-token gather + ques_proj, fused
# ---------------------------------------------------------------------------
def _lstm_qproj_kernel(x_ref, idx_ref, wih0_ref, whh0_ref, b0_ref,
                       wih1_ref, whh1_ref, b1_ref, qpw_ref, qpb_ref, u_ref,
                       *, seq_len):
    tn, _ = x_ref.shape
    n = tn // seq_len
    hdim = whh0_ref.shape[0]
    idx = idx_ref[...]                                       # (N, 1) int32

    whh0 = whh0_ref[...]
    wih1 = wih1_ref[...]
    whh1 = whh1_ref[...]
    b1 = b1_ref[...]

    # Hoist the layer-0 input projection out of the serial recurrence:
    # one (T*N, Dw) @ (Dw, 4H) MXU dot instead of T tiny ones on the critical path.
    gx0 = (jnp.dot(x_ref[...], wih0_ref[...], preferred_element_type=jnp.float32)
           + b0_ref[...])                                    # (T*N, 4H), time-major

    def act(gates):
        # gate order (i, f, o, g): one batched sigmoid + one tanh per cell.
        ifo = jax.nn.sigmoid(gates[:, :3 * hdim])
        g = jnp.tanh(gates[:, 3 * hdim:])
        return ifo[:, :hdim], ifo[:, hdim:2 * hdim], ifo[:, 2 * hdim:], g

    z = jnp.zeros((n, hdim), jnp.float32)
    h0, c0, h1, c1, u = z, z, z, z, z
    for t in range(seq_len):                                 # static unroll (T fixed & small)
        g0 = gx0[t * n:(t + 1) * n, :] + jnp.dot(
            h0, whh0, preferred_element_type=jnp.float32)
        i0, f0, o0, gg0 = act(g0)
        c0 = f0 * c0 + i0 * gg0
        h0 = o0 * jnp.tanh(c0)

        g1 = (jnp.dot(h0, wih1, preferred_element_type=jnp.float32)
              + jnp.dot(h1, whh1, preferred_element_type=jnp.float32) + b1)
        i1, f1, o1, gg1 = act(g1)
        c1 = f1 * c1 + i1 * gg1
        h1 = o1 * jnp.tanh(c1)

        u = jnp.where(idx == t, h1, u)                       # top-layer hidden at idx[n]

    # fused ques_proj
    u_ref[...] = (jnp.dot(u, qpw_ref[...], preferred_element_type=jnp.float32)
                  + qpb_ref[...])


def lstm_ques_encode(emb, idx, p):
    n, t, dw = emb.shape
    k = p['qp_w'].shape[1]
    x2d = jnp.transpose(emb, (1, 0, 2)).reshape(t * n, dw)   # time-major, flattened
    vmem = pl.BlockSpec(memory_space=pltpu.MemorySpace.VMEM)
    return pl.pallas_call(
        functools.partial(_lstm_qproj_kernel, seq_len=t),
        out_shape=jax.ShapeDtypeStruct((n, k), jnp.float32),
        in_specs=[vmem] * 10,
        out_specs=vmem,
    )(x2d, idx.reshape(n, 1), p['wih0'], p['whh0'], p['b0'],
      p['wih1'], p['whh1'], p['b1'], p['qp_w'], p['qp_b'])


# ---------------------------------------------------------------------------
# Kernel 3: both StackedAttention blocks + classifier (fc1 -> ReLU -> fc2), fused
# ---------------------------------------------------------------------------
def _sa_cls_kernel(v_ref, u_ref, wv_ref, bv_ref, wu_ref, bu_ref, wp_ref, bp_ref,
                   w1_ref, b1_ref, w2_ref, b2_ref, o_ref, *, num_sa):
    v = v_ref[0]                                             # (HW, D), VMEM-resident
    u = u_ref[0]                                             # (1, D)
    for s in range(num_sa):
        v_proj = (jnp.dot(v, wv_ref[s], preferred_element_type=jnp.float32)
                  + bv_ref[s])                               # Wv (1x1 conv)
        u_proj = (jnp.dot(u, wu_ref[s], preferred_element_type=jnp.float32)
                  + bu_ref[s])                               # Wu (linear)
        h = jnp.tanh(v_proj + u_proj)                        # (HW, K)
        # Wp (K -> 1) as a VPU multiply + lane reduce instead of a width-1 MXU matmul.
        logits = jnp.sum(h * wp_ref[s], axis=-1, keepdims=True) + bp_ref[s]   # (HW, 1)
        m = jnp.max(logits, axis=0, keepdims=True)
        e = jnp.exp(logits - m)
        att = e / jnp.sum(e, axis=0, keepdims=True)          # softmax over spatial pos.
        v_tilde = jnp.sum(att * v, axis=0, keepdims=True)    # (1, D) attention pooling
        u = u + v_tilde
    # classifier: Linear -> ReLU -> Linear
    hcl = jnp.maximum(
        jnp.dot(u, w1_ref[...], preferred_element_type=jnp.float32) + b1_ref[...], 0.0)
    o_ref[0] = (jnp.dot(hcl, w2_ref[...], preferred_element_type=jnp.float32)
                + b2_ref[...])


def sa_classifier(v, u, p, num_sa):
    n, hw, d = v.shape
    s = p['sa_wv'].shape[0]
    k = p['sa_wv'].shape[-1]
    f = p['fc1_w'].shape[1]
    a = p['fc2_w'].shape[1]
    out = pl.pallas_call(
        functools.partial(_sa_cls_kernel, num_sa=num_sa),
        out_shape=jax.ShapeDtypeStruct((n, 1, a), jnp.float32),
        grid=(n,),
        in_specs=[
            pl.BlockSpec((1, hw, d), lambda i: (i, 0, 0)),
            pl.BlockSpec((1, 1, k), lambda i: (i, 0, 0)),
            _rep_spec((s, k, k)), _rep_spec((s, 1, k)),
            _rep_spec((s, k, k)), _rep_spec((s, 1, k)),
            _rep_spec((s, 1, k)), _rep_spec((s, 1, 1)),
            _rep_spec((k, f)), _rep_spec((1, f)),
            _rep_spec((f, a)), _rep_spec((1, a)),
        ],
        out_specs=pl.BlockSpec((1, 1, a), lambda i: (i, 0, 0)),
        compiler_params=pltpu.CompilerParams(
            dimension_semantics=("parallel",),
            vmem_limit_bytes=32 * 1024 * 1024),
    )(v, u.reshape(n, 1, k), p['sa_wv'], p['sa_bv'], p['sa_wu'], p['sa_bu'],
      p['sa_wp'], p['sa_bp'], p['fc1_w'], p['fc1_b'], p['fc2_w'], p['fc2_b'])
    return out.reshape(n, a)


# ---------------------------------------------------------------------------
# Parameters (deterministic synthetic init) and forward pass
# ---------------------------------------------------------------------------
def init_params(key, cfg):
    def nrm(k, shape, std=0.1):
        return std * jax.random.normal(k, shape, jnp.float32)

    keys = iter(jax.random.split(key, 64))
    h, dw, k, s = cfg['rnn_dim'], cfg['wordvec_dim'], cfg['sa_dim'], cfg['num_sa']
    p = {
        'embed': nrm(next(keys), (cfg['q_vocab'], dw)),
        # LSTM weights stored transposed (in, 4H) with gate order (i, f, o, g).
        # TODO(synk): to load real PyTorch nn.LSTM weights, transpose, permute gate
        # blocks from (i,f,g,o) to (i,f,o,g) and sum b_ih + b_hh per layer.
        'wih0': nrm(next(keys), (dw, 4 * h)), 'whh0': nrm(next(keys), (h, 4 * h)),
        'b0': nrm(next(keys), (1, 4 * h)),
        'wih1': nrm(next(keys), (h, 4 * h)), 'whh1': nrm(next(keys), (h, 4 * h)),
        'b1': nrm(next(keys), (1, 4 * h)),
        # stem: two 3x3 convs + ReLU (HWIO layout)
        'stem0_w': nrm(next(keys), (3, 3, cfg['feat_c'], cfg['stem_dim'])),
        'stem0_b': nrm(next(keys), (1, cfg['stem_dim'])),
        'stem1_w': nrm(next(keys), (3, 3, cfg['stem_dim'], cfg['stem_dim'])),
        'stem1_b': nrm(next(keys), (1, cfg['stem_dim'])),
        # image_proj (1x1 conv) and ques_proj (linear)
        'img_w': nrm(next(keys), (cfg['stem_dim'], k)), 'img_b': nrm(next(keys), (1, k)),
        'qp_w': nrm(next(keys), (h, k)), 'qp_b': nrm(next(keys), (1, k)),
        # stacked attention parameters, stacked over the num_sa blocks
        'sa_wv': nrm(next(keys), (s, k, k)), 'sa_bv': nrm(next(keys), (s, 1, k)),
        'sa_wu': nrm(next(keys), (s, k, k)), 'sa_bu': nrm(next(keys), (s, 1, k)),
        'sa_wp': nrm(next(keys), (s, 1, k)), 'sa_bp': nrm(next(keys), (s, 1, 1)),
        # classifier: Linear -> ReLU -> Linear
        'fc1_w': nrm(next(keys), (k, cfg['fc_dim'])),
        'fc1_b': nrm(next(keys), (1, cfg['fc_dim'])),
        'fc2_w': nrm(next(keys), (cfg['fc_dim'], cfg['a_vocab'])),
        'fc2_b': nrm(next(keys), (1, cfg['a_vocab'])),
    }
    return p


def forward(params, questions, feats_nchw, cfg=CFG):
    n, t = questions.shape

    # --- LstmEncoder + ques_proj (fused kernel 2) --------------------------
    emb = params['embed'][questions]                                  # (N, T, Dw)
    cond = (questions[:, :-1] != NULL_TOKEN) & (questions[:, 1:] == NULL_TOKEN)
    idx = jnp.where(cond.any(axis=1),
                    jnp.argmax(cond.astype(jnp.int32), axis=1),
                    t - 1).astype(jnp.int32)                          # last non-NULL token
    u = lstm_ques_encode(emb, idx, params)                            # (N, sa_dim)

    # --- stem conv x2 + image_proj (fused kernel 1) ------------------------
    v = image_path(feats_nchw, params)                                # (N, HW, sa_dim)

    # --- stacked attention x num_sa + classifier (fused kernel 3) ----------
    return sa_classifier(v, u, params, cfg['num_sa'])                 # (N, a_vocab)


if __name__ == "__main__":
    key = jax.random.PRNGKey(0)
    k_param, k_feat, k_q = jax.random.split(key, 3)

    params = init_params(k_param, CFG)

    N, T = 2, 8
    feats = jax.random.normal(
        k_feat, (N, CFG['feat_c'], CFG['feat_h'], CFG['feat_w']), jnp.float32)
    q_rand = jax.random.randint(k_q, (N, T), 1, CFG['q_vocab'], jnp.int32)
    lengths = jnp.array([5, 7], jnp.int32)            # trailing <NULL>=0 padding
    mask = jnp.arange(T)[None, :] < lengths[:, None]
    questions = jnp.where(mask, q_rand, 0).astype(jnp.int32)

    scores = jax.jit(forward)(params, questions, feats)
    jax.block_until_ready(scores)
    assert scores.shape == (N, CFG['a_vocab'])
    print("KERNEL_OK")
</pallas_src>

<mosaic_0001>
module attributes {stable_mosaic.version = 11 : i64} {
  func.func @_image_path_kernel(%arg0: i32, %arg1: memref<1x64x8xf32, #tpu.memory_space<vmem>>, %arg2: memref<9x64x1xf32, #tpu.memory_space<vmem>>, %arg3: memref<3x3x8x16xf32, #tpu.memory_space<vmem>>, %arg4: memref<1x16xf32, #tpu.memory_space<vmem>>, %arg5: memref<3x3x16x16xf32, #tpu.memory_space<vmem>>, %arg6: memref<1x16xf32, #tpu.memory_space<vmem>>, %arg7: memref<16x32xf32, #tpu.memory_space<vmem>>, %arg8: memref<1x32xf32, #tpu.memory_space<vmem>>, %arg9: memref<1x64x32xf32, #tpu.memory_space<vmem>>) attributes {dimension_semantics = [#tpu.dimension_semantics<parallel>], iteration_bounds = array<i64: 2>, scalar_prefetch = 0 : i64, scratch_operands = 0 : i64, tpu.core_type = #tpu.core_type<tc>, window_params = [{transform_indices = @transform_0, window_bounds = array<i64: 1, 64, 8>}, {pipeline_mode = #tpu.pipeline_mode<synchronous>, transform_indices = @transform_1, window_bounds = array<i64: 9, 64, 1>}, {pipeline_mode = #tpu.pipeline_mode<synchronous>, transform_indices = @transform_2, window_bounds = array<i64: 3, 3, 8, 16>}, {pipeline_mode = #tpu.pipeline_mode<synchronous>, transform_indices = @transform_3, window_bounds = array<i64: 1, 16>}, {pipeline_mode = #tpu.pipeline_mode<synchronous>, transform_indices = @transform_4, window_bounds = array<i64: 3, 3, 16, 16>}, {pipeline_mode = #tpu.pipeline_mode<synchronous>, transform_indices = @transform_5, window_bounds = array<i64: 1, 16>}, {pipeline_mode = #tpu.pipeline_mode<synchronous>, transform_indices = @transform_6, window_bounds = array<i64: 16, 32>}, {pipeline_mode = #tpu.pipeline_mode<synchronous>, transform_indices = @transform_7, window_bounds = array<i64: 1, 32>}, {transform_indices = @transform_8, window_bounds = array<i64: 1, 64, 32>}]} {
    %c0 = arith.constant 0 : index
    %c0_0 = arith.constant 0 : index
    %c0_1 = arith.constant 0 : index
    %0 = vector.load %arg1[%c0, %c0_0, %c0_1] : memref<1x64x8xf32, #tpu.memory_space<vmem>>, vector<1x64x8xf32>
    %1 = vector.shape_cast %0 : vector<1x64x8xf32> to vector<64x8xf32>
    %cst = arith.constant 0.000000e+00 : f32
    %2 = vector.broadcast %cst : f32 to vector<64x16xf32>
    %c9_i32 = arith.constant 9 : i32
    %3 = tpu.dynamic_rotate %1 by %c9_i32 dim 0 : vector<64x8xf32>, i32 -> vector<64x8xf32>
    %c0_2 = arith.constant 0 : index
    %c0_3 = arith.constant 0 : index
    %c0_4 = arith.constant 0 : index
    %4 = vector.load %arg2[%c0_2, %c0_3, %c0_4] : memref<9x64x1xf32, #tpu.memory_space<vmem>>, vector<1x64x1xf32>
    %5 = vector.shape_cast %4 : vector<1x64x1xf32> to vector<64x1xf32>
    %6 = vector.broadcast %5 : vector<64x1xf32> to vector<64x8xf32>
    %7 = arith.mulf %3, %6 : vector<64x8xf32>
    %c0_5 = arith.constant 0 : index
    %c0_6 = arith.constant 0 : index
    %c0_7 = arith.constant 0 : index
    %c0_8 = arith.constant 0 : index
    %8 = vector.load %arg3[%c0_5, %c0_6, %c0_7, %c0_8] : memref<3x3x8x16xf32, #tpu.memory_space<vmem>>, vector<1x1x8x16xf32>
    %9 = vector.shape_cast %8 : vector<1x1x8x16xf32> to vector<8x16xf32>
    %cst_9 = arith.constant dense<0.000000e+00> : vector<64x16xf32>
    %10 = tpu.matmul %7, %9, %cst_9 {dimension_numbers = #tpu.dot_dimension_numbers<[1], [0], [0], [1], [0, 0, 1, 1], [], []>} : vector<64x8xf32>, vector<8x16xf32>, vector<64x16xf32> -> vector<64x16xf32>
    %11 = arith.addf %2, %10 : vector<64x16xf32>
    %c8_i32 = arith.constant 8 : i32
    %12 = tpu.dynamic_rotate %1 by %c8_i32 dim 0 : vector<64x8xf32>, i32 -> vector<64x8xf32>
    %c1 = arith.constant 1 : index
    %c0_10 = arith.constant 0 : index
    %c0_11 = arith.constant 0 : index
    %13 = vector.load %arg2[%c1, %c0_10, %c0_11] : memref<9x64x1xf32, #tpu.memory_space<vmem>>, vector<1x64x1xf32>
    %14 = vector.shape_cast %13 : vector<1x64x1xf32> to vector<64x1xf32>
    %15 = vector.broadcast %14 : vector<64x1xf32> to vector<64x8xf32>
    %16 = arith.mulf %12, %15 : vector<64x8xf32>
    %c0_12 = arith.constant 0 : index
    %c1_13 = arith.constant 1 : index
    %c0_14 = arith.constant 0 : index
    %c0_15 = arith.constant 0 : index
    %17 = vector.load %arg3[%c0_12, %c1_13, %c0_14, %c0_15] : memref<3x3x8x16xf32, #tpu.memory_space<vmem>>, vector<1x1x8x16xf32>
    %18 = vector.shape_cast %17 : vector<1x1x8x16xf32> to vector<8x16xf32>
    %cst_16 = arith.constant dense<0.000000e+00> : vector<64x16xf32>
    %19 = tpu.matmul %16, %18, %cst_16 {dimension_numbers = #tpu.dot_dimension_numbers<[1], [0], [0], [1], [0, 0, 1, 1], [], []>} : vector<64x8xf32>, vector<8x16xf32>, vector<64x16xf32> -> vector<64x16xf32>
    %20 = arith.addf %11, %19 : vector<64x16xf32>
    %c7_i32 = arith.constant 7 : i32
    %21 = tpu.dynamic_rotate %1 by %c7_i32 dim 0 : vector<64x8xf32>, i32 -> vector<64x8xf32>
    %c2 = arith.constant 2 : index
    %c0_17 = arith.constant 0 : index
    %c0_18 = arith.constant 0 : index
    %22 = vector.load %arg2[%c2, %c0_17, %c0_18] : memref<9x64x1xf32, #tpu.memory_space<vmem>>, vector<1x64x1xf32>
    %23 = vector.shape_cast %22 : vector<1x64x1xf32> to vector<64x1xf32>
    %24 = vector.broadcast %23 : vector<64x1xf32> to vector<64x8xf32>
    %25 = arith.mulf %21, %24 : vector<64x8xf32>
    %c0_19 = arith.constant 0 : index
    %c2_20 = arith.constant 2 : index
    %c0_21 = arith.constant 0 : index
    %c0_22 = arith.constant 0 : index
    %26 = vector.load %arg3[%c0_19, %c2_20, %c0_21, %c0_22] : memref<3x3x8x16xf32, #tpu.memory_space<vmem>>, vector<1x1x8x16xf32>
    %27 = vector.shape_cast %26 : vector<1x1x8x16xf32> to vector<8x16xf32>
    %cst_23 = arith.constant dense<0.000000e+00> : vector<64x16xf32>
    %28 = tpu.matmul %25, %27, %cst_23 {dimension_numbers = #tpu.dot_dimension_numbers<[1], [0], [0], [1], [0, 0, 1, 1], [], []>} : vector<64x8xf32>, vector<8x16xf32>, vector<64x16xf32> -> vector<64x16xf32>
    %29 = arith.addf %20, %28 : vector<64x16xf32>
    %c1_i32 = arith.constant 1 : i32
    %30 = tpu.dynamic_rotate %1 by %c1_i32 dim 0 : vector<64x8xf32>, i32 -> vector<64x8xf32>
    %c3 = arith.constant 3 : index
    %c0_24 = arith.constant 0 : index
    %c0_25 = arith.constant 0 : index
    %31 = vector.load %arg2[%c3, %c0_24, %c0_25] : memref<9x64x1xf32, #tpu.memory_space<vmem>>, vector<1x64x1xf32>
    %32 = vector.shape_cast %31 : vector<1x64x1xf32> to vector<64x1xf32>
    %33 = vector.broadcast %32 : vector<64x1xf32> to vector<64x8xf32>
    %34 = arith.mulf %30, %33 : vector<64x8xf32>
    %c1_26 = arith.constant 1 : index
    %c0_27 = arith.constant 0 : index
    %c0_28 = arith.constant 0 : index
    %c0_29 = arith.constant 0 : index
    %35 = vector.load %arg3[%c1_26, %c0_27, %c0_28, %c0_29] : memref<3x3x8x16xf32, #tpu.memory_space<vmem>>, vector<1x1x8x16xf32>
    %36 = vector.shape_cast %35 : vector<1x1x8x16xf32> to vector<8x16xf32>
    %cst_30 = arith.constant dense<0.000000e+00> : vector<64x16xf32>
    %37 = tpu.matmul %34, %36, %cst_30 {dimension_numbers = #tpu.dot_dimension_numbers<[1], [0], [0], [1], [0, 0, 1, 1], [], []>} : vector<64x8xf32>, vector<8x16xf32>, vector<64x16xf32> -> vector<64x16xf32>
    %38 = arith.addf %29, %37 : vector<64x16xf32>
    %c4 = arith.constant 4 : index
    %c0_31 = arith.constant 0 : index
    %c0_32 = arith.constant 0 : index
    %39 = vector.load %arg2[%c4, %c0_31, %c0_32] : memref<9x64x1xf32, #tpu.memory_space<vmem>>, vector<1x64x1xf32>
    %40 = vector.shape_cast %39 : vector<1x64x1xf32> to vector<64x1xf32>
    %41 = vector.broadcast %40 : vector<64x1xf32> to vector<64x8xf32>
    %42 = arith.mulf %1, %41 : vector<64x8xf32>
    %c1_33 = arith.constant 1 : index
    %c1_34 = arith.constant 1 : index
    %c0_35 = arith.constant 0 : index
    %c0_36 = arith.constant 0 : index
    %43 = vector.load %arg3[%c1_33, %c1_34, %c0_35, %c0_36] : memref<3x3x8x16xf32, #tpu.memory_space<vmem>>, vector<1x1x8x16xf32>
    %44 = vector.shape_cast %43 : vector<1x1x8x16xf32> to vector<8x16xf32>
    %cst_37 = arith.constant dense<0.000000e+00> : vector<64x16xf32>
    %45 = tpu.matmul %42, %44, %cst_37 {dimension_numbers = #tpu.dot_dimension_numbers<[1], [0], [0], [1], [0, 0, 1, 1], [], []>} : vector<64x8xf32>, vector<8x16xf32>, vector<64x16xf32> -> vector<64x16xf32>
    %46 = arith.addf %38, %45 : vector<64x16xf32>
    %c63_i32 = arith.constant 63 : i32
    %47 = tpu.dynamic_rotate %1 by %c63_i32 dim 0 : vector<64x8xf32>, i32 -> vector<64x8xf32>
    %c5 = arith.constant 5 : index
    %c0_38 = arith.constant 0 : index
    %c0_39 = arith.constant 0 : index
    %48 = vector.load %arg2[%c5, %c0_38, %c0_39] : memref<9x64x1xf32, #tpu.memory_space<vmem>>, vector<1x64x1xf32>
    %49 = vector.shape_cast %48 : vector<1x64x1xf32> to vector<64x1xf32>
    %50 = vector.broadcast %49 : vector<64x1xf32> to vector<64x8xf32>
    %51 = arith.mulf %47, %50 : vector<64x8xf32>
    %c1_40 = arith.constant 1 : index
    %c2_41 = arith.constant 2 : index
    %c0_42 = arith.constant 0 : index
    %c0_43 = arith.constant 0 : index
    %52 = vector.load %arg3[%c1_40, %c2_41, %c0_42, %c0_43] : memref<3x3x8x16xf32, #tpu.memory_space<vmem>>, vector<1x1x8x16xf32>
    %53 = vector.shape_cast %52 : vector<1x1x8x16xf32> to vector<8x16xf32>
    %cst_44 = arith.constant dense<0.000000e+00> : vector<64x16xf32>
    %54 = tpu.matmul %51, %53, %cst_44 {dimension_numbers = #tpu.dot_dimension_numbers<[1], [0], [0], [1], [0, 0, 1, 1], [], []>} : vector<64x8xf32>, vector<8x16xf32>, vector<64x16xf32> -> vector<64x16xf32>
    %55 = arith.addf %46, %54 : vector<64x16xf32>
    %c57_i32 = arith.constant 57 : i32
    %56 = tpu.dynamic_rotate %1 by %c57_i32 dim 0 : vector<64x8xf32>, i32 -> vector<64x8xf32>
    %c6 = arith.constant 6 : index
    %c0_45 = arith.constant 0 : index
    %c0_46 = arith.constant 0 : index
    %57 = vector.load %arg2[%c6, %c0_45, %c0_46] : memref<9x64x1xf32, #tpu.memory_space<vmem>>, vector<1x64x1xf32>
    %58 = vector.shape_cast %57 : vector<1x64x1xf32> to vector<64x1xf32>
    %59 = vector.broadcast %58 : vector<64x1xf32> to vector<64x8xf32>
    %60 = arith.mulf %56, %59 : vector<64x8xf32>
    %c2_47 = arith.constant 2 : index
    %c0_48 = arith.constant 0 : index
    %c0_49 = arith.constant 0 : index
    %c0_50 = arith.constant 0 : index
    %61 = vector.load %arg3[%c2_47, %c0_48, %c0_49, %c0_50] : memref<3x3x8x16xf32, #tpu.memory_space<vmem>>, vector<1x1x8x16xf32>
    %62 = vector.shape_cast %61 : vector<1x1x8x16xf32> to vector<8x16xf32>
    %cst_51 = arith.constant dense<0.000000e+00> : vector<64x16xf32>
    %63 = tpu.matmul %60, %62, %cst_51 {dimension_numbers = #tpu.dot_dimension_numbers<[1], [0], [0], [1], [0, 0, 1, 1], [], []>} : vector<64x8xf32>, vector<8x16xf32>, vector<64x16xf32> -> vector<64x16xf32>
    %64 = arith.addf %55, %63 : vector<64x16xf32>
    %c56_i32 = arith.constant 56 : i32
    %65 = tpu.dynamic_rotate %1 by %c56_i32 dim 0 : vector<64x8xf32>, i32 -> vector<64x8xf32>
    %c7 = arith.constant 7 : index
    %c0_52 = arith.constant 0 : index
    %c0_53 = arith.constant 0 : index
    %66 = vector.load %arg2[%c7, %c0_52, %c0_53] : memref<9x64x1xf32, #tpu.memory_space<vmem>>, vector<1x64x1xf32>
    %67 = vector.shape_cast %66 : vector<1x64x1xf32> to vector<64x1xf32>
    %68 = vector.broadcast %67 : vector<64x1xf32> to vector<64x8xf32>
    %69 = arith.mulf %65, %68 : vector<64x8xf32>
    %c2_54 = arith.constant 2 : index
    %c1_55 = arith.constant 1 : index
    %c0_56 = arith.constant 0 : index
    %c0_57 = arith.constant 0 : index
    %70 = vector.load %arg3[%c2_54, %c1_55, %c0_56, %c0_57] : memref<3x3x8x16xf32, #tpu.memory_space<vmem>>, vector<1x1x8x16xf32>
    %71 = vector.shape_cast %70 : vector<1x1x8x16xf32> to vector<8x16xf32>
    %cst_58 = arith.constant dense<0.000000e+00> : vector<64x16xf32>
    %72 = tpu.matmul %69, %71, %cst_58 {dimension_numbers = #tpu.dot_dimension_numbers<[1], [0], [0], [1], [0, 0, 1, 1], [], []>} : vector<64x8xf32>, vector<8x16xf32>, vector<64x16xf32> -> vector<64x16xf32>
    %73 = arith.addf %64, %72 : vector<64x16xf32>
    %c55_i32 = arith.constant 55 : i32
    %74 = tpu.dynamic_rotate %1 by %c55_i32 dim 0 : vector<64x8xf32>, i32 -> vector<64x8xf32>
    %c8 = arith.constant 8 : index
    %c0_59 = arith.constant 0 : index
    %c0_60 = arith.constant 0 : index
    %75 = vector.load %arg2[%c8, %c0_59, %c0_60] : memref<9x64x1xf32, #tpu.memory_space<vmem>>, vector<1x64x1xf32>
    %76 = vector.shape_cast %75 : vector<1x64x1xf32> to vector<64x1xf32>
    %77 = vector.broadcast %76 : vector<64x1xf32> to vector<64x8xf32>
    %78 = arith.mulf %74, %77 : vector<64x8xf32>
    %c2_61 = arith.constant 2 : index
    %c2_62 = arith.constant 2 : index
    %c0_63 = arith.constant 0 : index
    %c0_64 = arith.constant 0 : index
    %79 = vector.load %arg3[%c2_61, %c2_62, %c0_63, %c0_64] : memref<3x3x8x16xf32, #tpu.memory_space<vmem>>, vector<1x1x8x16xf32>
    %80 = vector.shape_cast %79 : vector<1x1x8x16xf32> to vector<8x16xf32>
    %cst_65 = arith.constant dense<0.000000e+00> : vector<64x16xf32>
    %81 = tpu.matmul %78, %80, %cst_65 {dimension_numbers = #tpu.dot_dimension_numbers<[1], [0], [0], [1], [0, 0, 1, 1], [], []>} : vector<64x8xf32>, vector<8x16xf32>, vector<64x16xf32> -> vector<64x16xf32>
    %82 = arith.addf %73, %81 : vector<64x16xf32>
    %c0_66 = arith.constant 0 : index
    %c0_67 = arith.constant 0 : index
    %83 = vector.load %arg4[%c0_66, %c0_67] : memref<1x16xf32, #tpu.memory_space<vmem>>, vector<1x16xf32>
    %84 = vector.broadcast %83 : vector<1x16xf32> to vector<64x16xf32>
    %85 = arith.addf %82, %84 : vector<64x16xf32>
    %cst_68 = arith.constant 0.000000e+00 : f32
    %86 = vector.broadcast %cst_68 : f32 to vector<64x16xf32>
    %87 = arith.maximumf %85, %86 : vector<64x16xf32>
    %cst_69 = arith.constant 0.000000e+00 : f32
    %88 = vector.broadcast %cst_69 : f32 to vector<64x16xf32>
    %c9_i32_70 = arith.constant 9 : i32
    %89 = tpu.dynamic_rotate %87 by %c9_i32_70 dim 0 : vector<64x16xf32>, i32 -> vector<64x16xf32>
    %c0_71 = arith.constant 0 : index
    %c0_72 = arith.constant 0 : index
    %c0_73 = arith.constant 0 : index
    %90 = vector.load %arg2[%c0_71, %c0_72, %c0_73] : memref<9x64x1xf32, #tpu.memory_space<vmem>>, vector<1x64x1xf32>
    %91 = vector.shape_cast %90 : vector<1x64x1xf32> to vector<64x1xf32>
    %92 = vector.broadcast %91 : vector<64x1xf32> to vector<64x16xf32>
    %93 = arith.mulf %89, %92 : vector<64x16xf32>
    %c0_74 = arith.constant 0 : index
    %c0_75 = arith.constant 0 : index
    %c0_76 = arith.constant 0 : index
    %c0_77 = arith.constant 0 : index
    %94 = vector.load %arg5[%c0_74, %c0_75, %c0_76, %c0_77] : memref<3x3x16x16xf32, #tpu.memory_space<vmem>>, vector<1x1x16x16xf32>
    %95 = vector.shape_cast %94 : vector<1x1x16x16xf32> to vector<16x16xf32>
    %cst_78 = arith.constant dense<0.000000e+00> : vector<64x16xf32>
    %96 = tpu.matmul %93, %95, %cst_78 {dimension_numbers = #tpu.dot_dimension_numbers<[1], [0], [0], [1], [0, 0, 1, 1], [], []>} : vector<64x16xf32>, vector<16x16xf32>, vector<64x16xf32> -> vector<64x16xf32>
    %97 = arith.addf %88, %96 : vector<64x16xf32>
    %c8_i32_79 = arith.constant 8 : i32
    %98 = tpu.dynamic_rotate %87 by %c8_i32_79 dim 0 : vector<64x16xf32>, i32 -> vector<64x16xf32>
    %c1_80 = arith.constant 1 : index
    %c0_81 = arith.constant 0 : index
    %c0_82 = arith.constant 0 : index
    %99 = vector.load %arg2[%c1_80, %c0_81, %c0_82] : memref<9x64x1xf32, #tpu.memory_space<vmem>>, vector<1x64x1xf32>
    %100 = vector.shape_cast %99 : vector<1x64x1xf32> to vector<64x1xf32>
    %101 = vector.broadcast %100 : vector<64x1xf32> to vector<64x16xf32>
    %102 = arith.mulf %98, %101 : vector<64x16xf32>
    %c0_83 = arith.constant 0 : index
    %c1_84 = arith.constant 1 : index
    %c0_85 = arith.constant 0 : index
    %c0_86 = arith.constant 0 : index
    %103 = vector.load %arg5[%c0_83, %c1_84, %c0_85, %c0_86] : memref<3x3x16x16xf32, #tpu.memory_space<vmem>>, vector<1x1x16x16xf32>
    %104 = vector.shape_cast %103 : vector<1x1x16x16xf32> to vector<16x16xf32>
    %cst_87 = arith.constant dense<0.000000e+00> : vector<64x16xf32>
    %105 = tpu.matmul %102, %104, %cst_87 {dimension_numbers = #tpu.dot_dimension_numbers<[1], [0], [0], [1], [0, 0, 1, 1], [], []>} : vector<64x16xf32>, vector<16x16xf32>, vector<64x16xf32> -> vector<64x16xf32>
    %106 = arith.addf %97, %105 : vector<64x16xf32>
    %c7_i32_88 = arith.constant 7 : i32
    %107 = tpu.dynamic_rotate %87 by %c7_i32_88 dim 0 : vector<64x16xf32>, i32 -> vector<64x16xf32>
    %c2_89 = arith.constant 2 : index
    %c0_90 = arith.constant 0 : index
    %c0_91 = arith.constant 0 : index
    %108 = vector.load %arg2[%c2_89, %c0_90, %c0_91] : memref<9x64x1xf32, #tpu.memory_space<vmem>>, vector<1x64x1xf32>
    %109 = vector.shape_cast %108 : vector<1x64x1xf32> to vector<64x1xf32>
    %110 = vector.broadcast %109 : vector<64x1xf32> to vector<64x16xf32>
    %111 = arith.mulf %107, %110 : vector<64x16xf32>
    %c0_92 = arith.constant 0 : index
    %c2_93 = arith.constant 2 : index
    %c0_94 = arith.constant 0 : index
    %c0_95 = arith.constant 0 : index
    %112 = vector.load %arg5[%c0_92, %c2_93, %c0_94, %c0_95] : memref<3x3x16x16xf32, #tpu.memory_space<vmem>>, vector<1x1x16x16xf32>
    %113 = vector.shape_cast %112 : vector<1x1x16x16xf32> to vector<16x16xf32>
    %cst_96 = arith.constant dense<0.000000e+00> : vector<64x16xf32>
    %114 = tpu.matmul %111, %113, %cst_96 {dimension_numbers = #tpu.dot_dimension_numbers<[1], [0], [0], [1], [0, 0, 1, 1], [], []>} : vector<64x16xf32>, vector<16x16xf32>, vector<64x16xf32> -> vector<64x16xf32>
    %115 = arith.addf %106, %114 : vector<64x16xf32>
    %c1_i32_97 = arith.constant 1 : i32
    %116 = tpu.dynamic_rotate %87 by %c1_i32_97 dim 0 : vector<64x16xf32>, i32 -> vector<64x16xf32>
    %c3_98 = arith.constant 3 : index
    %c0_99 = arith.constant 0 : index
    %c0_100 = arith.constant 0 : index
    %117 = vector.load %arg2[%c3_98, %c0_99, %c0_100] : memref<9x64x1xf32, #tpu.memory_space<vmem>>, vector<1x64x1xf32>
    %118 = vector.shape_cast %117 : vector<1x64x1xf32> to vector<64x1xf32>
    %119 = vector.broadcast %118 : vector<64x1xf32> to vector<64x16xf32>
    %120 = arith.mulf %116, %119 : vector<64x16xf32>
    %c1_101 = arith.constant 1 : index
    %c0_102 = arith.constant 0 : index
    %c0_103 = arith.constant 0 : index
    %c0_104 = arith.constant 0 : index
    %121 = vector.load %arg5[%c1_101, %c0_102, %c0_103, %c0_104] : memref<3x3x16x16xf32, #tpu.memory_space<vmem>>, vector<1x1x16x16xf32>
    %122 = vector.shape_cast %121 : vector<1x1x16x16xf32> to vector<16x16xf32>
    %cst_105 = arith.constant dense<0.000000e+00> : vector<64x16xf32>
    %123 = tpu.matmul %120, %122, %cst_105 {dimension_numbers = #tpu.dot_dimension_numbers<[1], [0], [0], [1], [0, 0, 1, 1], [], []>} : vector<64x16xf32>, vector<16x16xf32>, vector<64x16xf32> -> vector<64x16xf32>
    %124 = arith.addf %115, %123 : vector<64x16xf32>
    %c4_106 = arith.constant 4 : index
    %c0_107 = arith.constant 0 : index
    %c0_108 = arith.constant 0 : index
    %125 = vector.load %arg2[%c4_106, %c0_107, %c0_108] : memref<9x64x1xf32, #tpu.memory_space<vmem>>, vector<1x64x1xf32>
    %126 = vector.shape_cast %125 : vector<1x64x1xf32> to vector<64x1xf32>
    %127 = vector.broadcast %126 : vector<64x1xf32> to vector<64x16xf32>
    %128 = arith.mulf %87, %127 : vector<64x16xf32>
    %c1_109 = arith.constant 1 : index
    %c1_110 = arith.constant 1 : index
    %c0_111 = arith.constant 0 : index
    %c0_112 = arith.constant 0 : index
    %129 = vector.load %arg5[%c1_109, %c1_110, %c0_111, %c0_112] : memref<3x3x16x16xf32, #tpu.memory_space<vmem>>, vector<1x1x16x16xf32>
    %130 = vector.shape_cast %129 : vector<1x1x16x16xf32> to vector<16x16xf32>
    %cst_113 = arith.constant dense<0.000000e+00> : vector<64x16xf32>
    %131 = tpu.matmul %128, %130, %cst_113 {dimension_numbers = #tpu.dot_dimension_numbers<[1], [0], [0], [1], [0, 0, 1, 1], [], []>} : vector<64x16xf32>, vector<16x16xf32>, vector<64x16xf32> -> vector<64x16xf32>
    %132 = arith.addf %124, %131 : vector<64x16xf32>
    %c63_i32_114 = arith.constant 63 : i32
    %133 = tpu.dynamic_rotate %87 by %c63_i32_114 dim 0 : vector<64x16xf32>, i32 -> vector<64x16xf32>
    %c5_115 = arith.constant 5 : index
    %c0_116 = arith.constant 0 : index
    %c0_117 = arith.constant 0 : index
    %134 = vector.load %arg2[%c5_115, %c0_116, %c0_117] : memref<9x64x1xf32, #tpu.memory_space<vmem>>, vector<1x64x1xf32>
    %135 = vector.shape_cast %134 : vector<1x64x1xf32> to vector<64x1xf32>
    %136 = vector.broadcast %135 : vector<64x1xf32> to vector<64x16xf32>
    %137 = arith.mulf %133, %136 : vector<64x16xf32>
    %c1_118 = arith.constant 1 : index
    %c2_119 = arith.constant 2 : index
    %c0_120 = arith.constant 0 : index
    %c0_121 = arith.constant 0 : index
    %138 = vector.load %arg5[%c1_118, %c2_119, %c0_120, %c0_121] : memref<3x3x16x16xf32, #tpu.memory_space<vmem>>, vector<1x1x16x16xf32>
    %139 = vector.shape_cast %138 : vector<1x1x16x16xf32> to vector<16x16xf32>
    %cst_122 = arith.constant dense<0.000000e+00> : vector<64x16xf32>
    %140 = tpu.matmul %137, %139, %cst_122 {dimension_numbers = #tpu.dot_dimension_numbers<[1], [0], [0], [1], [0, 0, 1, 1], [], []>} : vector<64x16xf32>, vector<16x16xf32>, vector<64x16xf32> -> vector<64x16xf32>
    %141 = arith.addf %132, %140 : vector<64x16xf32>
    %c57_i32_123 = arith.constant 57 : i32
    %142 = tpu.dynamic_rotate %87 by %c57_i32_123 dim 0 : vector<64x16xf32>, i32 -> vector<64x16xf32>
    %c6_124 = arith.constant 6 : index
    %c0_125 = arith.constant 0 : index
    %c0_126 = arith.constant 0 : index
    %143 = vector.load %arg2[%c6_124, %c0_125, %c0_126] : memref<9x64x1xf32, #tpu.memory_space<vmem>>, vector<1x64x1xf32>
    %144 = vector.shape_cast %143 : vector<1x64x1xf32> to vector<64x1xf32>
    %145 = vector.broadcast %144 : vector<64x1xf32> to vector<64x16xf32>
    %146 = arith.mulf %142, %145 : vector<64x16xf32>
    %c2_127 = arith.constant 2 : index
    %c0_128 = arith.constant 0 : index
    %c0_129 = arith.constant 0 : index
    %c0_130 = arith.constant 0 : index
    %147 = vector.load %arg5[%c2_127, %c0_128, %c0_129, %c0_130] : memref<3x3x16x16xf32, #tpu.memory_space<vmem>>, vector<1x1x16x16xf32>
    %148 = vector.shape_cast %147 : vector<1x1x16x16xf32> to vector<16x16xf32>
    %cst_131 = arith.constant dense<0.000000e+00> : vector<64x16xf32>
    %149 = tpu.matmul %146, %148, %cst_131 {dimension_numbers = #tpu.dot_dimension_numbers<[1], [0], [0], [1], [0, 0, 1, 1], [], []>} : vector<64x16xf32>, vector<16x16xf32>, vector<64x16xf32> -> vector<64x16xf32>
    %150 = arith.addf %141, %149 : vector<64x16xf32>
    %c56_i32_132 = arith.constant 56 : i32
    %151 = tpu.dynamic_rotate %87 by %c56_i32_132 dim 0 : vector<64x16xf32>, i32 -> vector<64x16xf32>
    %c7_133 = arith.constant 7 : index
    %c0_134 = arith.constant 0 : index
    %c0_135 = arith.constant 0 : index
    %152 = vector.load %arg2[%c7_133, %c0_134, %c0_135] : memref<9x64x1xf32, #tpu.memory_space<vmem>>, vector<1x64x1xf32>
    %153 = vector.shape_cast %152 : vector<1x64x1xf32> to vector<64x1xf32>
    %154 = vector.broadcast %153 : vector<64x1xf32> to vector<64x16xf32>
    %155 = arith.mulf %151, %154 : vector<64x16xf32>
    %c2_136 = arith.constant 2 : index
    %c1_137 = arith.constant 1 : index
    %c0_138 = arith.constant 0 : index
    %c0_139 = arith.constant 0 : index
    %156 = vector.load %arg5[%c2_136, %c1_137, %c0_138, %c0_139] : memref<3x3x16x16xf32, #tpu.memory_space<vmem>>, vector<1x1x16x16xf32>
    %157 = vector.shape_cast %156 : vector<1x1x16x16xf32> to vector<16x16xf32>
    %cst_140 = arith.constant dense<0.000000e+00> : vector<64x16xf32>
    %158 = tpu.matmul %155, %157, %cst_140 {dimension_numbers = #tpu.dot_dimension_numbers<[1], [0], [0], [1], [0, 0, 1, 1], [], []>} : vector<64x16xf32>, vector<16x16xf32>, vector<64x16xf32> -> vector<64x16xf32>
    %159 = arith.addf %150, %158 : vector<64x16xf32>
    %c55_i32_141 = arith.constant 55 : i32
    %160 = tpu.dynamic_rotate %87 by %c55_i32_141 dim 0 : vector<64x16xf32>, i32 -> vector<64x16xf32>
    %c8_142 = arith.constant 8 : index
    %c0_143 = arith.constant 0 : index
    %c0_144 = arith.constant 0 : index
    %161 = vector.load %arg2[%c8_142, %c0_143, %c0_144] : memref<9x64x1xf32, #tpu.memory_space<vmem>>, vector<1x64x1xf32>
    %162 = vector.shape_cast %161 : vector<1x64x1xf32> to vector<64x1xf32>
    %163 = vector.broadcast %162 : vector<64x1xf32> to vector<64x16xf32>
    %164 = arith.mulf %160, %163 : vector<64x16xf32>
    %c2_145 = arith.constant 2 : index
    %c2_146 = arith.constant 2 : index
    %c0_147 = arith.constant 0 : index
    %c0_148 = arith.constant 0 : index
    %165 = vector.load %arg5[%c2_145, %c2_146, %c0_147, %c0_148] : memref<3x3x16x16xf32, #tpu.memory_space<vmem>>, vector<1x1x16x16xf32>
    %166 = vector.shape_cast %165 : vector<1x1x16x16xf32> to vector<16x16xf32>
    %cst_149 = arith.constant dense<0.000000e+00> : vector<64x16xf32>
    %167 = tpu.matmul %164, %166, %cst_149 {dimension_numbers = #tpu.dot_dimension_numbers<[1], [0], [0], [1], [0, 0, 1, 1], [], []>} : vector<64x16xf32>, vector<16x16xf32>, vector<64x16xf32> -> vector<64x16xf32>
    %168 = arith.addf %159, %167 : vector<64x16xf32>
    %c0_150 = arith.constant 0 : index
    %c0_151 = arith.constant 0 : index
    %169 = vector.load %arg6[%c0_150, %c0_151] : memref<1x16xf32, #tpu.memory_space<vmem>>, vector<1x16xf32>
    %170 = vector.broadcast %169 : vector<1x16xf32> to vector<64x16xf32>
    %171 = arith.addf %168, %170 : vector<64x16xf32>
    %cst_152 = arith.constant 0.000000e+00 : f32
    %172 = vector.broadcast %cst_152 : f32 to vector<64x16xf32>
    %173 = arith.maximumf %171, %172 : vector<64x16xf32>
    %c0_153 = arith.constant 0 : index
    %c0_154 = arith.constant 0 : index
    %174 = vector.load %arg7[%c0_153, %c0_154] : memref<16x32xf32, #tpu.memory_space<vmem>>, vector<16x32xf32>
    %cst_155 = arith.constant dense<0.000000e+00> : vector<64x32xf32>
    %175 = tpu.matmul %173, %174, %cst_155 {dimension_numbers = #tpu.dot_dimension_numbers<[1], [0], [0], [1], [0, 0, 1, 1], [], []>} : vector<64x16xf32>, vector<16x32xf32>, vector<64x32xf32> -> vector<64x32xf32>
    %c0_156 = arith.constant 0 : index
    %c0_157 = arith.constant 0 : index
    %176 = vector.load %arg8[%c0_156, %c0_157] : memref<1x32xf32, #tpu.memory_space<vmem>>, vector<1x32xf32>
    %177 = vector.broadcast %176 : vector<1x32xf32> to vector<64x32xf32>
    %178 = arith.addf %175, %177 : vector<64x32xf32>
    %c0_158 = arith.constant 0 : index
    %c0_159 = arith.constant 0 : index
    %c0_160 = arith.constant 0 : index
    %179 = vector.load %arg9[%c0_158, %c0_159, %c0_160] : memref<1x64x32xf32, #tpu.memory_space<vmem>>, vector<1x64x32xf32>
    %180 = vector.shape_cast %179 : vector<1x64x32xf32> to vector<64x32xf32>
    %181 = vector.shape_cast %178 : vector<64x32xf32> to vector<1x64x32xf32>
    tpu.vector_store %arg9[%c0_158, %c0_159, %c0_160], %181 {strides = array<i32>} : memref<1x64x32xf32, #tpu.memory_space<vmem>>, vector<1x64x32xf32>,
    return
  }
  func.func @transform_0(%arg0: i32) -> (i32, i32, i32) {
    %c0_i32 = arith.constant 0 : i32
    %c0_i32_0 = arith.constant 0 : i32
    %c0_i32_1 = arith.constant 0 : i32
    return %arg0, %c0_i32, %c0_i32_0 : i32, i32, i32
  }
  func.func @transform_1(%arg0: i32) -> (i32, i32, i32) {
    %c0_i32 = arith.constant 0 : i32
    %c0_i32_0 = arith.constant 0 : i32
    %c0_i32_1 = arith.constant 0 : i32
    %c0_i32_2 = arith.constant 0 : i32
    return %c0_i32, %c0_i32_0, %c0_i32_1 : i32, i32, i32
  }
  func.func @transform_2(%arg0: i32) -> (i32, i32, i32, i32) {
    %c0_i32 = arith.constant 0 : i32
    %c0_i32_0 = arith.constant 0 : i32
    %c0_i32_1 = arith.constant 0 : i32
    %c0_i32_2 = arith.constant 0 : i32
    %c0_i32_3 = arith.constant 0 : i32
    return %c0_i32, %c0_i32_0, %c0_i32_1, %c0_i32_2 : i32, i32, i32, i32
  }
  func.func @transform_3(%arg0: i32) -> (i32, i32) {
    %c0_i32 = arith.constant 0 : i32
    %c0_i32_0 = arith.constant 0 : i32
    %c0_i32_1 = arith.constant 0 : i32
    return %c0_i32, %c0_i32_0 : i32, i32
  }
  func.func @transform_4(%arg0: i32) -> (i32, i32, i32, i32) {
    %c0_i32 = arith.constant 0 : i32
    %c0_i32_0 = arith.constant 0 : i32
    %c0_i32_1 = arith.constant 0 : i32
    %c0_i32_2 = arith.constant 0 : i32
    %c0_i32_3 = arith.constant 0 : i32
    return %c0_i32, %c0_i32_0, %c0_i32_1, %c0_i32_2 : i32, i32, i32, i32
  }
  func.func @transform_5(%arg0: i32) -> (i32, i32) {
    %c0_i32 = arith.constant 0 : i32
    %c0_i32_0 = arith.constant 0 : i32
    %c0_i32_1 = arith.constant 0 : i32
    return %c0_i32, %c0_i32_0 : i32, i32
  }
  func.func @transform_6(%arg0: i32) -> (i32, i32) {
    %c0_i32 = arith.constant 0 : i32
    %c0_i32_0 = arith.constant 0 : i32
    %c0_i32_1 = arith.constant 0 : i32
    return %c0_i32, %c0_i32_0 : i32, i32
  }
  func.func @transform_7(%arg0: i32) -> (i32, i32) {
    %c0_i32 = arith.constant 0 : i32
    %c0_i32_0 = arith.constant 0 : i32
    %c0_i32_1 = arith.constant 0 : i32
    return %c0_i32, %c0_i32_0 : i32, i32
  }
  func.func @transform_8(%arg0: i32) -> (i32, i32, i32) {
    %c0_i32 = arith.constant 0 : i32
    %c0_i32_0 = arith.constant 0 : i32
    %c0_i32_1 = arith.constant 0 : i32
    return %arg0, %c0_i32, %c0_i32_0 : i32, i32, i32
  }
}

module attributes {stable_mosaic.version = 11 : i64} {
  func.func @_lstm_qproj_kernel(%arg0: memref<16x16xf32, #tpu.memory_space<vmem>>, %arg1: memref<2x1xi32, #tpu.memory_space<vmem>>, %arg2: memref<16x128xf32, #tpu.memory_space<vmem>>, %arg3: memref<32x128xf32, #tpu.memory_space<vmem>>, %arg4: memref<1x128xf32, #tpu.memory_space<vmem>>, %arg5: memref<32x128xf32, #tpu.memory_space<vmem>>, %arg6: memref<32x128xf32, #tpu.memory_space<vmem>>, %arg7: memref<1x128xf32, #tpu.memory_space<vmem>>, %arg8: memref<32x32xf32, #tpu.memory_space<vmem>>, %arg9: memref<1x32xf32, #tpu.memory_space<vmem>>, %arg10: memref<2x32xf32, #tpu.memory_space<vmem>>) attributes {dimension_semantics = [], scalar_prefetch = 0 : i64, scratch_operands = 0 : i64, tpu.core_type = #tpu.core_type<tc>} {
    %c0 = arith.constant 0 : index
    %c0_0 = arith.constant 0 : index
    %0 = vector.load %arg1[%c0, %c0_0] : memref<2x1xi32, #tpu.memory_space<vmem>>, vector<2x1xi32>
    %c0_1 = arith.constant 0 : index
    %c0_2 = arith.constant 0 : index
    %1 = vector.load %arg3[%c0_1, %c0_2] : memref<32x128xf32, #tpu.memory_space<vmem>>, vector<32x128xf32>
    %c0_3 = arith.constant 0 : index
    %c0_4 = arith.constant 0 : index
    %2 = vector.load %arg5[%c0_3, %c0_4] : memref<32x128xf32, #tpu.memory_space<vmem>>, vector<32x128xf32>
    %c0_5 = arith.constant 0 : index
    %c0_6 = arith.constant 0 : index
    %3 = vector.load %arg6[%c0_5, %c0_6] : memref<32x128xf32, #tpu.memory_space<vmem>>, vector<32x128xf32>
    %c0_7 = arith.constant 0 : index
    %c0_8 = arith.constant 0 : index
    %4 = vector.load %arg7[%c0_7, %c0_8] : memref<1x128xf32, #tpu.memory_space<vmem>>, vector<1x128xf32>
    %c0_9 = arith.constant 0 : index
    %c0_10 = arith.constant 0 : index
    %5 = vector.load %arg0[%c0_9, %c0_10] : memref<16x16xf32, #tpu.memory_space<vmem>>, vector<16x16xf32>
    %c0_11 = arith.constant 0 : index
    %c0_12 = arith.constant 0 : index
    %6 = vector.load %arg2[%c0_11, %c0_12] : memref<16x128xf32, #tpu.memory_space<vmem>>, vector<16x128xf32>
    %cst = arith.constant dense<0.000000e+00> : vector<16x128xf32>
    %7 = tpu.matmul %5, %6, %cst {dimension_numbers = #tpu.dot_dimension_numbers<[1], [0], [0], [1], [0, 0, 1, 1], [], []>} : vector<16x16xf32>, vector<16x128xf32>, vector<16x128xf32> -> vector<16x128xf32>
    %c0_13 = arith.constant 0 : index
    %c0_14 = arith.constant 0 : index
    %8 = vector.load %arg4[%c0_13, %c0_14] : memref<1x128xf32, #tpu.memory_space<vmem>>, vector<1x128xf32>
    %9 = vector.broadcast %8 : vector<1x128xf32> to vector<16x128xf32>
    %10 = arith.addf %7, %9 : vector<16x128xf32>
    %cst_15 = arith.constant 0.000000e+00 : f32
    %11 = vector.broadcast %cst_15 : f32 to vector<2x32xf32>
    %12 = vector.extract_strided_slice %10 {offsets = [0, 0], sizes = [2, 128], strides = [1, 1]} : vector<16x128xf32> to vector<2x128xf32>
    %cst_16 = arith.constant dense<0.000000e+00> : vector<2x128xf32>
    %13 = tpu.matmul %11, %1, %cst_16 {dimension_numbers = #tpu.dot_dimension_numbers<[1], [0], [0], [1], [0, 0, 1, 1], [], []>} : vector<2x32xf32>, vector<32x128xf32>, vector<2x128xf32> -> vector<2x128xf32>
    %14 = arith.addf %12, %13 : vector<2x128xf32>
    %15 = vector.extract_strided_slice %14 {offsets = [0, 0], sizes = [2, 96], strides = [1, 1]} : vector<2x128xf32> to vector<2x96xf32>
    %16 = arith.negf %15 : vector<2x96xf32>
    %17 = math.exp %16 : vector<2x96xf32>
    %cst_17 = arith.constant 1.000000e+00 : f32
    %18 = vector.broadcast %cst_17 : f32 to vector<2x96xf32>
    %19 = arith.addf %18, %17 : vector<2x96xf32>
    %20 = arith.divf %18, %19 : vector<2x96xf32>
    %21 = vector.extract_strided_slice %14 {offsets = [0, 96], sizes = [2, 32], strides = [1, 1]} : vector<2x128xf32> to vector<2x32xf32>
    %22 = math.tanh %21 : vector<2x32xf32>
    %23 = vector.extract_strided_slice %20 {offsets = [0, 0], sizes = [2, 32], strides = [1, 1]} : vector<2x96xf32> to vector<2x32xf32>
    %24 = vector.extract_strided_slice %20 {offsets = [0, 32], sizes = [2, 32], strides = [1, 1]} : vector<2x96xf32> to vector<2x32xf32>
    %25 = vector.extract_strided_slice %20 {offsets = [0, 64], sizes = [2, 32], strides = [1, 1]} : vector<2x96xf32> to vector<2x32xf32>
    %26 = arith.mulf %24, %11 : vector<2x32xf32>
    %27 = arith.mulf %23, %22 : vector<2x32xf32>
    %28 = arith.addf %26, %27 : vector<2x32xf32>
    %29 = math.tanh %28 : vector<2x32xf32>
    %30 = arith.mulf %25, %29 : vector<2x32xf32>
    %cst_18 = arith.constant dense<0.000000e+00> : vector<2x128xf32>
    %31 = tpu.matmul %30, %2, %cst_18 {dimension_numbers = #tpu.dot_dimension_numbers<[1], [0], [0], [1], [0, 0, 1, 1], [], []>} : vector<2x32xf32>, vector<32x128xf32>, vector<2x128xf32> -> vector<2x128xf32>
    %cst_19 = arith.constant dense<0.000000e+00> : vector<2x128xf32>
    %32 = tpu.matmul %11, %3, %cst_19 {dimension_numbers = #tpu.dot_dimension_numbers<[1], [0], [0], [1], [0, 0, 1, 1], [], []>} : vector<2x32xf32>, vector<32x128xf32>, vector<2x128xf32> -> vector<2x128xf32>
    %33 = arith.addf %31, %32 : vector<2x128xf32>
    %34 = vector.broadcast %4 : vector<1x128xf32> to vector<2x128xf32>
    %35 = arith.addf %33, %34 : vector<2x128xf32>
    %36 = vector.extract_strided_slice %35 {offsets = [0, 0], sizes = [2, 96], strides = [1, 1]} : vector<2x128xf32> to vector<2x96xf32>
    %37 = arith.negf %36 : vector<2x96xf32>
    %38 = math.exp %37 : vector<2x96xf32>
    %cst_20 = arith.constant 1.000000e+00 : f32
    %39 = vector.broadcast %cst_20 : f32 to vector<2x96xf32>
    %40 = arith.addf %39, %38 : vector<2x96xf32>
    %41 = arith.divf %39, %40 : vector<2x96xf32>
    %42 = vector.extract_strided_slice %35 {offsets = [0, 96], sizes = [2, 32], strides = [1, 1]} : vector<2x128xf32> to vector<2x32xf32>
    %43 = math.tanh %42 : vector<2x32xf32>
    %44 = vector.extract_strided_slice %41 {offsets = [0, 0], sizes = [2, 32], strides = [1, 1]} : vector<2x96xf32> to vector<2x32xf32>
    %45 = vector.extract_strided_slice %41 {offsets = [0, 32], sizes = [2, 32], strides = [1, 1]} : vector<2x96xf32> to vector<2x32xf32>
    %46 = vector.extract_strided_slice %41 {offsets = [0, 64], sizes = [2, 32], strides = [1, 1]} : vector<2x96xf32> to vector<2x32xf32>
    %47 = arith.mulf %45, %11 : vector<2x32xf32>
    %48 = arith.mulf %44, %43 : vector<2x32xf32>
    %49 = arith.addf %47, %48 : vector<2x32xf32>
    %50 = math.tanh %49 : vector<2x32xf32>
    %51 = arith.mulf %46, %50 : vector<2x32xf32>
    %c0_i32 = arith.constant 0 : i32
    %52 = vector.broadcast %c0_i32 : i32 to vector<2x1xi32>
    %53 = arith.cmpi eq, %0, %52 : vector<2x1xi32>
    %54 = vector.shape_cast %53 : vector<2x1xi1> to vector<2x1xi1>
    %55 = vector.broadcast %54 : vector<2x1xi1> to vector<2x32xi1>
    %56 = arith.select %55, %51, %11 : vector<2x32xi1>, vector<2x32xf32>
    %57 = vector.extract_strided_slice %10 {offsets = [2, 0], sizes = [2, 128], strides = [1, 1]} : vector<16x128xf32> to vector<2x128xf32>
    %cst_21 = arith.constant dense<0.000000e+00> : vector<2x128xf32>
    %58 = tpu.matmul %30, %1, %cst_21 {dimension_numbers = #tpu.dot_dimension_numbers<[1], [0], [0], [1], [0, 0, 1, 1], [], []>} : vector<2x32xf32>, vector<32x128xf32>, vector<2x128xf32> -> vector<2x128xf32>
    %59 = arith.addf %57, %58 : vector<2x128xf32>
    %60 = vector.extract_strided_slice %59 {offsets = [0, 0], sizes = [2, 96], strides = [1, 1]} : vector<2x128xf32> to vector<2x96xf32>
    %61 = arith.negf %60 : vector<2x96xf32>
    %62 = math.exp %61 : vector<2x96xf32>
    %cst_22 = arith.constant 1.000000e+00 : f32
    %63 = vector.broadcast %cst_22 : f32 to vector<2x96xf32>
    %64 = arith.addf %63, %62 : vector<2x96xf32>
    %65 = arith.divf %63, %64 : vector<2x96xf32>
    %66 = vector.extract_strided_slice %59 {offsets = [0, 96], sizes = [2, 32], strides = [1, 1]} : vector<2x128xf32> to vector<2x32xf32>
    %67 = math.tanh %66 : vector<2x32xf32>
    %68 = vector.extract_strided_slice %65 {offsets = [0, 0], sizes = [2, 32], strides = [1, 1]} : vector<2x96xf32> to vector<2x32xf32>
    %69 = vector.extract_strided_slice %65 {offsets = [0, 32], sizes = [2, 32], strides = [1, 1]} : vector<2x96xf32> to vector<2x32xf32>
    %70 = vector.extract_strided_slice %65 {offsets = [0, 64], sizes = [2, 32], strides = [1, 1]} : vector<2x96xf32> to vector<2x32xf32>
    %71 = arith.mulf %69, %28 : vector<2x32xf32>
    %72 = arith.mulf %68, %67 : vector<2x32xf32>
    %73 = arith.addf %71, %72 : vector<2x32xf32>
    %74 = math.tanh %73 : vector<2x32xf32>
    %75 = arith.mulf %70, %74 : vector<2x32xf32>
    %cst_23 = arith.constant dense<0.000000e+00> : vector<2x128xf32>
    %76 = tpu.matmul %75, %2, %cst_23 {dimension_numbers = #tpu.dot_dimension_numbers<[1], [0], [0], [1], [0, 0, 1, 1], [], []>} : vector<2x32xf32>, vector<32x128xf32>, vector<2x128xf32> -> vector<2x128xf32>
    %cst_24 = arith.constant dense<0.000000e+00> : vector<2x128xf32>
    %77 = tpu.matmul %51, %3, %cst_24 {dimension_numbers = #tpu.dot_dimension_numbers<[1], [0], [0], [1], [0, 0, 1, 1], [], []>} : vector<2x32xf32>, vector<32x128xf32>, vector<2x128xf32> -> vector<2x128xf32>
    %78 = arith.addf %76, %77 : vector<2x128xf32>
    %79 = vector.broadcast %4 : vector<1x128xf32> to vector<2x128xf32>
    %80 = arith.addf %78, %79 : vector<2x128xf32>
    %81 = vector.extract_strided_slice %80 {offsets = [0, 0], sizes = [2, 96], strides = [1, 1]} : vector<2x128xf32> to vector<2x96xf32>
    %82 = arith.negf %81 : vector<2x96xf32>
    %83 = math.exp %82 : vector<2x96xf32>
    %cst_25 = arith.constant 1.000000e+00 : f32
    %84 = vector.broadcast %cst_25 : f32 to vector<2x96xf32>
    %85 = arith.addf %84, %83 : vector<2x96xf32>
    %86 = arith.divf %84, %85 : vector<2x96xf32>
    %87 = vector.extract_strided_slice %80 {offsets = [0, 96], sizes = [2, 32], strides = [1, 1]} : vector<2x128xf32> to vector<2x32xf32>
    %88 = math.tanh %87 : vector<2x32xf32>
    %89 = vector.extract_strided_slice %86 {offsets = [0, 0], sizes = [2, 32], strides = [1, 1]} : vector<2x96xf32> to vector<2x32xf32>
    %90 = vector.extract_strided_slice %86 {offsets = [0, 32], sizes = [2, 32], strides = [1, 1]} : vector<2x96xf32> to vector<2x32xf32>
    %91 = vector.extract_strided_slice %86 {offsets = [0, 64], sizes = [2, 32], strides = [1, 1]} : vector<2x96xf32> to vector<2x32xf32>
    %92 = arith.mulf %90, %49 : vector<2x32xf32>
    %93 = arith.mulf %89, %88 : vector<2x32xf32>
    %94 = arith.addf %92, %93 : vector<2x32xf32>
    %95 = math.tanh %94 : vector<2x32xf32>
    %96 = arith.mulf %91, %95 : vector<2x32xf32>
    %c1_i32 = arith.constant 1 : i32
    %97 = vector.broadcast %c1_i32 : i32 to vector<2x1xi32>
    %98 = arith.cmpi eq, %0, %97 : vector<2x1xi32>
    %99 = vector.shape_cast %98 : vector<2x1xi1> to vector<2x1xi1>
    %100 = vector.broadcast %99 : vector<2x1xi1> to vector<2x32xi1>
    %101 = arith.select %100, %96, %56 : vector<2x32xi1>, vector<2x32xf32>
    %102 = vector.extract_strided_slice %10 {offsets = [4, 0], sizes = [2, 128], strides = [1, 1]} : vector<16x128xf32> to vector<2x128xf32>
    %cst_26 = arith.constant dense<0.000000e+00> : vector<2x128xf32>
    %103 = tpu.matmul %75, %1, %cst_26 {dimension_numbers = #tpu.dot_dimension_numbers<[1], [0], [0], [1], [0, 0, 1, 1], [], []>} : vector<2x32xf32>, vector<32x128xf32>, vector<2x128xf32> -> vector<2x128xf32>
    %104 = arith.addf %102, %103 : vector<2x128xf32>
    %105 = vector.extract_strided_slice %104 {offsets = [0, 0], sizes = [2, 96], strides = [1, 1]} : vector<2x128xf32> to vector<2x96xf32>
    %106 = arith.negf %105 : vector<2x96xf32>
    %107 = math.exp %106 : vector<2x96xf32>
    %cst_27 = arith.constant 1.000000e+00 : f32
    %108 = vector.broadcast %cst_27 : f32 to vector<2x96xf32>
    %109 = arith.addf %108, %107 : vector<2x96xf32>
    %110 = arith.divf %108, %109 : vector<2x96xf32>
    %111 = vector.extract_strided_slice %104 {offsets = [0, 96], sizes = [2, 32], strides = [1, 1]} : vector<2x128xf32> to vector<2x32xf32>
    %112 = math.tanh %111 : vector<2x32xf32>
    %113 = vector.extract_strided_slice %110 {offsets = [0, 0], sizes = [2, 32], strides = [1, 1]} : vector<2x96xf32> to vector<2x32xf32>
    %114 = vector.extract_strided_slice %110 {offsets = [0, 32], sizes = [2, 32], strides = [1, 1]} : vector<2x96xf32> to vector<2x32xf32>
    %115 = vector.extract_strided_slice %110 {offsets = [0, 64], sizes = [2, 32], strides = [1, 1]} : vector<2x96xf32> to vector<2x32xf32>
    %116 = arith.mulf %114, %73 : vector<2x32xf32>
    %117 = arith.mulf %113, %112 : vector<2x32xf32>
    %118 = arith.addf %116, %117 : vector<2x32xf32>
    %119 = math.tanh %118 : vector<2x32xf32>
    %120 = arith.mulf %115, %119 : vector<2x32xf32>
    %cst_28 = arith.constant dense<0.000000e+00> : vector<2x128xf32>
    %121 = tpu.matmul %120, %2, %cst_28 {dimension_numbers = #tpu.dot_dimension_numbers<[1], [0], [0], [1], [0, 0, 1, 1], [], []>} : vector<2x32xf32>, vector<32x128xf32>, vector<2x128xf32> -> vector<2x128xf32>
    %cst_29 = arith.constant dense<0.000000e+00> : vector<2x128xf32>
    %122 = tpu.matmul %96, %3, %cst_29 {dimension_numbers = #tpu.dot_dimension_numbers<[1], [0], [0], [1], [0, 0, 1, 1], [], []>} : vector<2x32xf32>, vector<32x128xf32>, vector<2x128xf32> -> vector<2x128xf32>
    %123 = arith.addf %121, %122 : vector<2x128xf32>
    %124 = vector.broadcast %4 : vector<1x128xf32> to vector<2x128xf32>
    %125 = arith.addf %123, %124 : vector<2x128xf32>
    %126 = vector.extract_strided_slice %125 {offsets = [0, 0], sizes = [2, 96], strides = [1, 1]} : vector<2x128xf32> to vector<2x96xf32>
    %127 = arith.negf %126 : vector<2x96xf32>
    %128 = math.exp %127 : vector<2x96xf32>
    %cst_30 = arith.constant 1.000000e+00 : f32
    %129 = vector.broadcast %cst_30 : f32 to vector<2x96xf32>
    %130 = arith.addf %129, %128 : vector<2x96xf32>
    %131 = arith.divf %129, %130 : vector<2x96xf32>
    %132 = vector.extract_strided_slice %125 {offsets = [0, 96], sizes = [2, 32], strides = [1, 1]} : vector<2x128xf32> to vector<2x32xf32>
    %133 = math.tanh %132 : vector<2x32xf32>
    %134 = vector.extract_strided_slice %131 {offsets = [0, 0], sizes = [2, 32], strides = [1, 1]} : vector<2x96xf32> to vector<2x32xf32>
    %135 = vector.extract_strided_slice %131 {offsets = [0, 32], sizes = [2, 32], strides = [1, 1]} : vector<2x96xf32> to vector<2x32xf32>
    %136 = vector.extract_strided_slice %131 {offsets = [0, 64], sizes = [2, 32], strides = [1, 1]} : vector<2x96xf32> to vector<2x32xf32>
    %137 = arith.mulf %135, %94 : vector<2x32xf32>
    %138 = arith.mulf %134, %133 : vector<2x32xf32>
    %139 = arith.addf %137, %138 : vector<2x32xf32>
    %140 = math.tanh %139 : vector<2x32xf32>
    %141 = arith.mulf %136, %140 : vector<2x32xf32>
    %c2_i32 = arith.constant 2 : i32
    %142 = vector.broadcast %c2_i32 : i32 to vector<2x1xi32>
    %143 = arith.cmpi eq, %0, %142 : vector<2x1xi32>
    %144 = vector.shape_cast %143 : vector<2x1xi1> to vector<2x1xi1>
    %145 = vector.broadcast %144 : vector<2x1xi1> to vector<2x32xi1>
    %146 = arith.select %145, %141, %101 : vector<2x32xi1>, vector<2x32xf32>
    %147 = vector.extract_strided_slice %10 {offsets = [6, 0], sizes = [2, 128], strides = [1, 1]} : vector<16x128xf32> to vector<2x128xf32>
    %cst_31 = arith.constant dense<0.000000e+00> : vector<2x128xf32>
    %148 = tpu.matmul %120, %1, %cst_31 {dimension_numbers = #tpu.dot_dimension_numbers<[1], [0], [0], [1], [0, 0, 1, 1], [], []>} : vector<2x32xf32>, vector<32x128xf32>, vector<2x128xf32> -> vector<2x128xf32>
    %149 = arith.addf %147, %148 : vector<2x128xf32>
    %150 = vector.extract_strided_slice %149 {offsets = [0, 0], sizes = [2, 96], strides = [1, 1]} : vector<2x128xf32> to vector<2x96xf32>
    %151 = arith.negf %150 : vector<2x96xf32>
    %152 = math.exp %151 : vector<2x96xf32>
    %cst_32 = arith.constant 1.000000e+00 : f32
    %153 = vector.broadcast %cst_32 : f32 to vector<2x96xf32>
    %154 = arith.addf %153, %152 : vector<2x96xf32>
    %155 = arith.divf %153, %154 : vector<2x96xf32>
    %156 = vector.extract_strided_slice %149 {offsets = [0, 96], sizes = [2, 32], strides = [1, 1]} : vector<2x128xf32> to vector<2x32xf32>
    %157 = math.tanh %156 : vector<2x32xf32>
    %158 = vector.extract_strided_slice %155 {offsets = [0, 0], sizes = [2, 32], strides = [1, 1]} : vector<2x96xf32> to vector<2x32xf32>
    %159 = vector.extract_strided_slice %155 {offsets = [0, 32], sizes = [2, 32], strides = [1, 1]} : vector<2x96xf32> to vector<2x32xf32>
    %160 = vector.extract_strided_slice %155 {offsets = [0, 64], sizes = [2, 32], strides = [1, 1]} : vector<2x96xf32> to vector<2x32xf32>
    %161 = arith.mulf %159, %118 : vector<2x32xf32>
    %162 = arith.mulf %158, %157 : vector<2x32xf32>
    %163 = arith.addf %161, %162 : vector<2x32xf32>
    %164 = math.tanh %163 : vector<2x32xf32>
    %165 = arith.mulf %160, %164 : vector<2x32xf32>
    %cst_33 = arith.constant dense<0.000000e+00> : vector<2x128xf32>
    %166 = tpu.matmul %165, %2, %cst_33 {dimension_numbers = #tpu.dot_dimension_numbers<[1], [0], [0], [1], [0, 0, 1, 1], [], []>} : vector<2x32xf32>, vector<32x128xf32>, vector<2x128xf32> -> vector<2x128xf32>
    %cst_34 = arith.constant dense<0.000000e+00> : vector<2x128xf32>
    %167 = tpu.matmul %141, %3, %cst_34 {dimension_numbers = #tpu.dot_dimension_numbers<[1], [0], [0], [1], [0, 0, 1, 1], [], []>} : vector<2x32xf32>, vector<32x128xf32>, vector<2x128xf32> -> vector<2x128xf32>
    %168 = arith.addf %166, %167 : vector<2x128xf32>
    %169 = vector.broadcast %4 : vector<1x128xf32> to vector<2x128xf32>
    %170 = arith.addf %168, %169 : vector<2x128xf32>
    %171 = vector.extract_strided_slice %170 {offsets = [0, 0], sizes = [2, 96], strides = [1, 1]} : vector<2x128xf32> to vector<2x96xf32>
    %172 = arith.negf %171 : vector<2x96xf32>
    %173 = math.exp %172 : vector<2x96xf32>
    %cst_35 = arith.constant 1.000000e+00 : f32
    %174 = vector.broadcast %cst_35 : f32 to vector<2x96xf32>
    %175 = arith.addf %174, %173 : vector<2x96xf32>
    %176 = arith.divf %174, %175 : vector<2x96xf32>
    %177 = vector.extract_strided_slice %170 {offsets = [0, 96], sizes = [2, 32], strides = [1, 1]} : vector<2x128xf32> to vector<2x32xf32>
    %178 = math.tanh %177 : vector<2x32xf32>
    %179 = vector.extract_strided_slice %176 {offsets = [0, 0], sizes = [2, 32], strides = [1, 1]} : vector<2x96xf32> to vector<2x32xf32>
    %180 = vector.extract_strided_slice %176 {offsets = [0, 32], sizes = [2, 32], strides = [1, 1]} : vector<2x96xf32> to vector<2x32xf32>
    %181 = vector.extract_strided_slice %176 {offsets = [0, 64], sizes = [2, 32], strides = [1, 1]} : vector<2x96xf32> to vector<2x32xf32>
    %182 = arith.mulf %180, %139 : vector<2x32xf32>
    %183 = arith.mulf %179, %178 : vector<2x32xf32>
    %184 = arith.addf %182, %183 : vector<2x32xf32>
    %185 = math.tanh %184 : vector<2x32xf32>
    %186 = arith.mulf %181, %185 : vector<2x32xf32>
    %c3_i32 = arith.constant 3 : i32
    %187 = vector.broadcast %c3_i32 : i32 to vector<2x1xi32>
    %188 = arith.cmpi eq, %0, %187 : vector<2x1xi32>
    %189 = vector.shape_cast %188 : vector<2x1xi1> to vector<2x1xi1>
    %190 = vector.broadcast %189 : vector<2x1xi1> to vector<2x32xi1>
    %191 = arith.select %190, %186, %146 : vector<2x32xi1>, vector<2x32xf32>
    %192 = vector.extract_strided_slice %10 {offsets = [8, 0], sizes = [2, 128], strides = [1, 1]} : vector<16x128xf32> to vector<2x128xf32>
    %cst_36 = arith.constant dense<0.000000e+00> : vector<2x128xf32>
    %193 = tpu.matmul %165, %1, %cst_36 {dimension_numbers = #tpu.dot_dimension_numbers<[1], [0], [0], [1], [0, 0, 1, 1], [], []>} : vector<2x32xf32>, vector<32x128xf32>, vector<2x128xf32> -> vector<2x128xf32>
    %194 = arith.addf %192, %193 : vector<2x128xf32>
    %195 = vector.extract_strided_slice %194 {offsets = [0, 0], sizes = [2, 96], strides = [1, 1]} : vector<2x128xf32> to vector<2x96xf32>
    %196 = arith.negf %195 : vector<2x96xf32>
    %197 = math.exp %196 : vector<2x96xf32>
    %cst_37 = arith.constant 1.000000e+00 : f32
    %198 = vector.broadcast %cst_37 : f32 to vector<2x96xf32>
    %199 = arith.addf %198, %197 : vector<2x96xf32>
    %200 = arith.divf %198, %199 : vector<2x96xf32>
    %201 = vector.extract_strided_slice %194 {offsets = [0, 96], sizes = [2, 32], strides = [1, 1]} : vector<2x128xf32> to vector<2x32xf32>
    %202 = math.tanh %201 : vector<2x32xf32>
    %203 = vector.extract_strided_slice %200 {offsets = [0, 0], sizes = [2, 32], strides = [1, 1]} : vector<2x96xf32> to vector<2x32xf32>
    %204 = vector.extract_strided_slice %200 {offsets = [0, 32], sizes = [2, 32], strides = [1, 1]} : vector<2x96xf32> to vector<2x32xf32>
    %205 = vector.extract_strided_slice %200 {offsets = [0, 64], sizes = [2, 32], strides = [1, 1]} : vector<2x96xf32> to vector<2x32xf32>
    %206 = arith.mulf %204, %163 : vector<2x32xf32>
    %207 = arith.mulf %203, %202 : vector<2x32xf32>
    %208 = arith.addf %206, %207 : vector<2x32xf32>
    %209 = math.tanh %208 : vector<2x32xf32>
    %210 = arith.mulf %205, %209 : vector<2x32xf32>
    %cst_38 = arith.constant dense<0.000000e+00> : vector<2x128xf32>
    %211 = tpu.matmul %210, %2, %cst_38 {dimension_numbers = #tpu.dot_dimension_numbers<[1], [0], [0], [1], [0, 0, 1, 1], [], []>} : vector<2x32xf32>, vector<32x128xf32>, vector<2x128xf32> -> vector<2x128xf32>
    %cst_39 = arith.constant dense<0.000000e+00> : vector<2x128xf32>
    %212 = tpu.matmul %186, %3, %cst_39 {dimension_numbers = #tpu.dot_dimension_numbers<[1], [0], [0], [1], [0, 0, 1, 1], [], []>} : vector<2x32xf32>, vector<32x128xf32>, vector<2x128xf32> -> vector<2x128xf32>
    %213 = arith.addf %211, %212 : vector<2x128xf32>
    %214 = vector.broadcast %4 : vector<1x128xf32> to vector<2x128xf32>
    %215 = arith.addf %213, %214 : vector<2x128xf32>
    %216 = vector.extract_strided_slice %215 {offsets = [0, 0], sizes = [2, 96], strides = [1, 1]} : vector<2x128xf32> to vector<2x96xf32>
    %217 = arith.negf %216 : vector<2x96xf32>
    %218 = math.exp %217 : vector<2x96xf32>
    %cst_40 = arith.constant 1.000000e+00 : f32
    %219 = vector.broadcast %cst_40 : f32 to vector<2x96xf32>
    %220 = arith.addf %219, %218 : vector<2x96xf32>
    %221 = arith.divf %219, %220 : vector<2x96xf32>
    %222 = vector.extract_strided_slice %215 {offsets = [0, 96], sizes = [2, 32], strides = [1, 1]} : vector<2x128xf32> to vector<2x32xf32>
    %223 = math.tanh %222 : vector<2x32xf32>
    %224 = vector.extract_strided_slice %221 {offsets = [0, 0], sizes = [2, 32], strides = [1, 1]} : vector<2x96xf32> to vector<2x32xf32>
    %225 = vector.extract_strided_slice %221 {offsets = [0, 32], sizes = [2, 32], strides = [1, 1]} : vector<2x96xf32> to vector<2x32xf32>
    %226 = vector.extract_strided_slice %221 {offsets = [0, 64], sizes = [2, 32], strides = [1, 1]} : vector<2x96xf32> to vector<2x32xf32>
    %227 = arith.mulf %225, %184 : vector<2x32xf32>
    %228 = arith.mulf %224, %223 : vector<2x32xf32>
    %229 = arith.addf %227, %228 : vector<2x32xf32>
    %230 = math.tanh %229 : vector<2x32xf32>
    %231 = arith.mulf %226, %230 : vector<2x32xf32>
    %c4_i32 = arith.constant 4 : i32
    %232 = vector.broadcast %c4_i32 : i32 to vector<2x1xi32>
    %233 = arith.cmpi eq, %0, %232 : vector<2x1xi32>
    %234 = vector.shape_cast %233 : vector<2x1xi1> to vector<2x1xi1>
    %235 = vector.broadcast %234 : vector<2x1xi1> to vector<2x32xi1>
    %236 = arith.select %235, %231, %191 : vector<2x32xi1>, vector<2x32xf32>
    %237 = vector.extract_strided_slice %10 {offsets = [10, 0], sizes = [2, 128], strides = [1, 1]} : vector<16x128xf32> to vector<2x128xf32>
    %cst_41 = arith.constant dense<0.000000e+00> : vector<2x128xf32>
    %238 = tpu.matmul %210, %1, %cst_41 {dimension_numbers = #tpu.dot_dimension_numbers<[1], [0], [0], [1], [0, 0, 1, 1], [], []>} : vector<2x32xf32>, vector<32x128xf32>, vector<2x128xf32> -> vector<2x128xf32>
    %239 = arith.addf %237, %238 : vector<2x128xf32>
    %240 = vector.extract_strided_slice %239 {offsets = [0, 0], sizes = [2, 96], strides = [1, 1]} : vector<2x128xf32> to vector<2x96xf32>
    %241 = arith.negf %240 : vector<2x96xf32>
    %242 = math.exp %241 : vector<2x96xf32>
    %cst_42 = arith.constant 1.000000e+00 : f32
    %243 = vector.broadcast %cst_42 : f32 to vector<2x96xf32>
    %244 = arith.addf %243, %242 : vector<2x96xf32>
    %245 = arith.divf %243, %244 : vector<2x96xf32>
    %246 = vector.extract_strided_slice %239 {offsets = [0, 96], sizes = [2, 32], strides = [1, 1]} : vector<2x128xf32> to vector<2x32xf32>
    %247 = math.tanh %246 : vector<2x32xf32>
    %248 = vector.extract_strided_slice %245 {offsets = [0, 0], sizes = [2, 32], strides = [1, 1]} : vector<2x96xf32> to vector<2x32xf32>
    %249 = vector.extract_strided_slice %245 {offsets = [0, 32], sizes = [2, 32], strides = [1, 1]} : vector<2x96xf32> to vector<2x32xf32>
    %250 = vector.extract_strided_slice %245 {offsets = [0, 64], sizes = [2, 32], strides = [1, 1]} : vector<2x96xf32> to vector<2x32xf32>
    %251 = arith.mulf %249, %208 : vector<2x32xf32>
    %252 = arith.mulf %248, %247 : vector<2x32xf32>
    %253 = arith.addf %251, %252 : vector<2x32xf32>
    %254 = math.tanh %253 : vector<2x32xf32>
    %255 = arith.mulf %250, %254 : vector<2x32xf32>
    %cst_43 = arith.constant dense<0.000000e+00> : vector<2x128xf32>
    %256 = tpu.matmul %255, %2, %cst_43 {dimension_numbers = #tpu.dot_dimension_numbers<[1], [0], [0], [1], [0, 0, 1, 1], [], []>} : vector<2x32xf32>, vector<32x128xf32>, vector<2x128xf32> -> vector<2x128xf32>
    %cst_44 = arith.constant dense<0.000000e+00> : vector<2x128xf32>
    %257 = tpu.matmul %231, %3, %cst_44 {dimension_numbers = #tpu.dot_dimension_numbers<[1], [0], [0], [1], [0, 0, 1, 1], [], []>} : vector<2x32xf32>, vector<32x128xf32>, vector<2x128xf32> -> vector<2x128xf32>
    %258 = arith.addf %256, %257 : vector<2x128xf32>
    %259 = vector.broadcast %4 : vector<1x128xf32> to vector<2x128xf32>
    %260 = arith.addf %258, %259 : vector<2x128xf32>
    %261 = vector.extract_strided_slice %260 {offsets = [0, 0], sizes = [2, 96], strides = [1, 1]} : vector<2x128xf32> to vector<2x96xf32>
    %262 = arith.negf %261 : vector<2x96xf32>
    %263 = math.exp %262 : vector<2x96xf32>
    %cst_45 = arith.constant 1.000000e+00 : f32
    %264 = vector.broadcast %cst_45 : f32 to vector<2x96xf32>
    %265 = arith.addf %264, %263 : vector<2x96xf32>
    %266 = arith.divf %264, %265 : vector<2x96xf32>
    %267 = vector.extract_strided_slice %260 {offsets = [0, 96], sizes = [2, 32], strides = [1, 1]} : vector<2x128xf32> to vector<2x32xf32>
    %268 = math.tanh %267 : vector<2x32xf32>
    %269 = vector.extract_strided_slice %266 {offsets = [0, 0], sizes = [2, 32], strides = [1, 1]} : vector<2x96xf32> to vector<2x32xf32>
    %270 = vector.extract_strided_slice %266 {offsets = [0, 32], sizes = [2, 32], strides = [1, 1]} : vector<2x96xf32> to vector<2x32xf32>
    %271 = vector.extract_strided_slice %266 {offsets = [0, 64], sizes = [2, 32], strides = [1, 1]} : vector<2x96xf32> to vector<2x32xf32>
    %272 = arith.mulf %270, %229 : vector<2x32xf32>
    %273 = arith.mulf %269, %268 : vector<2x32xf32>
    %274 = arith.addf %272, %273 : vector<2x32xf32>
    %275 = math.tanh %274 : vector<2x32xf32>
    %276 = arith.mulf %271, %275 : vector<2x32xf32>
    %c5_i32 = arith.constant 5 : i32
    %277 = vector.broadcast %c5_i32 : i32 to vector<2x1xi32>
    %278 = arith.cmpi eq, %0, %277 : vector<2x1xi32>
    %279 = vector.shape_cast %278 : vector<2x1xi1> to vector<2x1xi1>
    %280 = vector.broadcast %279 : vector<2x1xi1> to vector<2x32xi1>
    %281 = arith.select %280, %276, %236 : vector<2x32xi1>, vector<2x32xf32>
    %282 = vector.extract_strided_slice %10 {offsets = [12, 0], sizes = [2, 128], strides = [1, 1]} : vector<16x128xf32> to vector<2x128xf32>
    %cst_46 = arith.constant dense<0.000000e+00> : vector<2x128xf32>
    %283 = tpu.matmul %255, %1, %cst_46 {dimension_numbers = #tpu.dot_dimension_numbers<[1], [0], [0], [1], [0, 0, 1, 1], [], []>} : vector<2x32xf32>, vector<32x128xf32>, vector<2x128xf32> -> vector<2x128xf32>
    %284 = arith.addf %282, %283 : vector<2x128xf32>
    %285 = vector.extract_strided_slice %284 {offsets = [0, 0], sizes = [2, 96], strides = [1, 1]} : vector<2x128xf32> to vector<2x96xf32>
    %286 = arith.negf %285 : vector<2x96xf32>
    %287 = math.exp %286 : vector<2x96xf32>
    %cst_47 = arith.constant 1.000000e+00 : f32
    %288 = vector.broadcast %cst_47 : f32 to vector<2x96xf32>
    %289 = arith.addf %288, %287 : vector<2x96xf32>
    %290 = arith.divf %288, %289 : vector<2x96xf32>
    %291 = vector.extract_strided_slice %284 {offsets = [0, 96], sizes = [2, 32], strides = [1, 1]} : vector<2x128xf32> to vector<2x32xf32>
    %292 = math.tanh %291 : vector<2x32xf32>
    %293 = vector.extract_strided_slice %290 {offsets = [0, 0], sizes = [2, 32], strides = [1, 1]} : vector<2x96xf32> to vector<2x32xf32>
    %294 = vector.extract_strided_slice %290 {offsets = [0, 32], sizes = [2, 32], strides = [1, 1]} : vector<2x96xf32> to vector<2x32xf32>
    %295 = vector.extract_strided_slice %290 {offsets = [0, 64], sizes = [2, 32], strides = [1, 1]} : vector<2x96xf32> to vector<2x32xf32>
    %296 = arith.mulf %294, %253 : vector<2x32xf32>
    %297 = arith.mulf %293, %292 : vector<2x32xf32>
    %298 = arith.addf %296, %297 : vector<2x32xf32>
    %299 = math.tanh %298 : vector<2x32xf32>
    %300 = arith.mulf %295, %299 : vector<2x32xf32>
    %cst_48 = arith.constant dense<0.000000e+00> : vector<2x128xf32>
    %301 = tpu.matmul %300, %2, %cst_48 {dimension_numbers = #tpu.dot_dimension_numbers<[1], [0], [0], [1], [0, 0, 1, 1], [], []>} : vector<2x32xf32>, vector<32x128xf32>, vector<2x128xf32> -> vector<2x128xf32>
    %cst_49 = arith.constant dense<0.000000e+00> : vector<2x128xf32>
    %302 = tpu.matmul %276, %3, %cst_49 {dimension_numbers = #tpu.dot_dimension_numbers<[1], [0], [0], [1], [0, 0, 1, 1], [], []>} : vector<2x32xf32>, vector<32x128xf32>, vector<2x128xf32> -> vector<2x128xf32>
    %303 = arith.addf %301, %302 : vector<2x128xf32>
    %304 = vector.broadcast %4 : vector<1x128xf32> to vector<2x128xf32>
    %305 = arith.addf %303, %304 : vector<2x128xf32>
    %306 = vector.extract_strided_slice %305 {offsets = [0, 0], sizes = [2, 96], strides = [1, 1]} : vector<2x128xf32> to vector<2x96xf32>
    %307 = arith.negf %306 : vector<2x96xf32>
    %308 = math.exp %307 : vector<2x96xf32>
    %cst_50 = arith.constant 1.000000e+00 : f32
    %309 = vector.broadcast %cst_50 : f32 to vector<2x96xf32>
    %310 = arith.addf %309, %308 : vector<2x96xf32>
    %311 = arith.divf %309, %310 : vector<2x96xf32>
    %312 = vector.extract_strided_slice %305 {offsets = [0, 96], sizes = [2, 32], strides = [1, 1]} : vector<2x128xf32> to vector<2x32xf32>
    %313 = math.tanh %312 : vector<2x32xf32>
    %314 = vector.extract_strided_slice %311 {offsets = [0, 0], sizes = [2, 32], strides = [1, 1]} : vector<2x96xf32> to vector<2x32xf32>
    %315 = vector.extract_strided_slice %311 {offsets = [0, 32], sizes = [2, 32], strides = [1, 1]} : vector<2x96xf32> to vector<2x32xf32>
    %316 = vector.extract_strided_slice %311 {offsets = [0, 64], sizes = [2, 32], strides = [1, 1]} : vector<2x96xf32> to vector<2x32xf32>
    %317 = arith.mulf %315, %274 : vector<2x32xf32>
    %318 = arith.mulf %314, %313 : vector<2x32xf32>
    %319 = arith.addf %317, %318 : vector<2x32xf32>
    %320 = math.tanh %319 : vector<2x32xf32>
    %321 = arith.mulf %316, %320 : vector<2x32xf32>
    %c6_i32 = arith.constant 6 : i32
    %322 = vector.broadcast %c6_i32 : i32 to vector<2x1xi32>
    %323 = arith.cmpi eq, %0, %322 : vector<2x1xi32>
    %324 = vector.shape_cast %323 : vector<2x1xi1> to vector<2x1xi1>
    %325 = vector.broadcast %324 : vector<2x1xi1> to vector<2x32xi1>
    %326 = arith.select %325, %321, %281 : vector<2x32xi1>, vector<2x32xf32>
    %327 = vector.extract_strided_slice %10 {offsets = [14, 0], sizes = [2, 128], strides = [1, 1]} : vector<16x128xf32> to vector<2x128xf32>
    %cst_51 = arith.constant dense<0.000000e+00> : vector<2x128xf32>
    %328 = tpu.matmul %300, %1, %cst_51 {dimension_numbers = #tpu.dot_dimension_numbers<[1], [0], [0], [1], [0, 0, 1, 1], [], []>} : vector<2x32xf32>, vector<32x128xf32>, vector<2x128xf32> -> vector<2x128xf32>
    %329 = arith.addf %327, %328 : vector<2x128xf32>
    %330 = vector.extract_strided_slice %329 {offsets = [0, 0], sizes = [2, 96], strides = [1, 1]} : vector<2x128xf32> to vector<2x96xf32>
    %331 = arith.negf %330 : vector<2x96xf32>
    %332 = math.exp %331 : vector<2x96xf32>
    %cst_52 = arith.constant 1.000000e+00 : f32
    %333 = vector.broadcast %cst_52 : f32 to vector<2x96xf32>
    %334 = arith.addf %333, %332 : vector<2x96xf32>
    %335 = arith.divf %333, %334 : vector<2x96xf32>
    %336 = vector.extract_strided_slice %329 {offsets = [0, 96], sizes = [2, 32], strides = [1, 1]} : vector<2x128xf32> to vector<2x32xf32>
    %337 = math.tanh %336 : vector<2x32xf32>
    %338 = vector.extract_strided_slice %335 {offsets = [0, 0], sizes = [2, 32], strides = [1, 1]} : vector<2x96xf32> to vector<2x32xf32>
    %339 = vector.extract_strided_slice %335 {offsets = [0, 32], sizes = [2, 32], strides = [1, 1]} : vector<2x96xf32> to vector<2x32xf32>
    %340 = vector.extract_strided_slice %335 {offsets = [0, 64], sizes = [2, 32], strides = [1, 1]} : vector<2x96xf32> to vector<2x32xf32>
    %341 = arith.mulf %339, %298 : vector<2x32xf32>
    %342 = arith.mulf %338, %337 : vector<2x32xf32>
    %343 = arith.addf %341, %342 : vector<2x32xf32>
    %344 = math.tanh %343 : vector<2x32xf32>
    %345 = arith.mulf %340, %344 : vector<2x32xf32>
    %cst_53 = arith.constant dense<0.000000e+00> : vector<2x128xf32>
    %346 = tpu.matmul %345, %2, %cst_53 {dimension_numbers = #tpu.dot_dimension_numbers<[1], [0], [0], [1], [0, 0, 1, 1], [], []>} : vector<2x32xf32>, vector<32x128xf32>, vector<2x128xf32> -> vector<2x128xf32>
    %cst_54 = arith.constant dense<0.000000e+00> : vector<2x128xf32>
    %347 = tpu.matmul %321, %3, %cst_54 {dimension_numbers = #tpu.dot_dimension_numbers<[1], [0], [0], [1], [0, 0, 1, 1], [], []>} : vector<2x32xf32>, vector<32x128xf32>, vector<2x128xf32> -> vector<2x128xf32>
    %348 = arith.addf %346, %347 : vector<2x128xf32>
    %349 = vector.broadcast %4 : vector<1x128xf32> to vector<2x128xf32>
    %350 = arith.addf %348, %349 : vector<2x128xf32>
    %351 = vector.extract_strided_slice %350 {offsets = [0, 0], sizes = [2, 96], strides = [1, 1]} : vector<2x128xf32> to vector<2x96xf32>
    %352 = arith.negf %351 : vector<2x96xf32>
    %353 = math.exp %352 : vector<2x96xf32>
    %cst_55 = arith.constant 1.000000e+00 : f32
    %354 = vector.broadcast %cst_55 : f32 to vector<2x96xf32>
    %355 = arith.addf %354, %353 : vector<2x96xf32>
    %356 = arith.divf %354, %355 : vector<2x96xf32>
    %357 = vector.extract_strided_slice %350 {offsets = [0, 96], sizes = [2, 32], strides = [1, 1]} : vector<2x128xf32> to vector<2x32xf32>
    %358 = math.tanh %357 : vector<2x32xf32>
    %359 = vector.extract_strided_slice %356 {offsets = [0, 0], sizes = [2, 32], strides = [1, 1]} : vector<2x96xf32> to vector<2x32xf32>
    %360 = vector.extract_strided_slice %356 {offsets = [0, 32], sizes = [2, 32], strides = [1, 1]} : vector<2x96xf32> to vector<2x32xf32>
    %361 = vector.extract_strided_slice %356 {offsets = [0, 64], sizes = [2, 32], strides = [1, 1]} : vector<2x96xf32> to vector<2x32xf32>
    %362 = arith.mulf %360, %319 : vector<2x32xf32>
    %363 = arith.mulf %359, %358 : vector<2x32xf32>
    %364 = arith.addf %362, %363 : vector<2x32xf32>
    %365 = math.tanh %364 : vector<2x32xf32>
    %366 = arith.mulf %361, %365 : vector<2x32xf32>
    %c7_i32 = arith.constant 7 : i32
    %367 = vector.broadcast %c7_i32 : i32 to vector<2x1xi32>
    %368 = arith.cmpi eq, %0, %367 : vector<2x1xi32>
    %369 = vector.shape_cast %368 : vector<2x1xi1> to vector<2x1xi1>
    %370 = vector.broadcast %369 : vector<2x1xi1> to vector<2x32xi1>
    %371 = arith.select %370, %366, %326 : vector<2x32xi1>, vector<2x32xf32>
    %c0_56 = arith.constant 0 : index
    %c0_57 = arith.constant 0 : index
    %372 = vector.load %arg8[%c0_56, %c0_57] : memref<32x32xf32, #tpu.memory_space<vmem>>, vector<32x32xf32>
    %cst_58 = arith.constant dense<0.000000e+00> : vector<2x32xf32>
    %373 = tpu.matmul %371, %372, %cst_58 {dimension_numbers = #tpu.dot_dimension_numbers<[1], [0], [0], [1], [0, 0, 1, 1], [], []>} : vector<2x32xf32>, vector<32x32xf32>, vector<2x32xf32> -> vector<2x32xf32>
    %c0_59 = arith.constant 0 : index
    %c0_60 = arith.constant 0 : index
    %374 = vector.load %arg9[%c0_59, %c0_60] : memref<1x32xf32, #tpu.memory_space<vmem>>, vector<1x32xf32>
    %375 = vector.broadcast %374 : vector<1x32xf32> to vector<2x32xf32>
    %376 = arith.addf %373, %375 : vector<2x32xf32>
    %c0_61 = arith.constant 0 : index
    %c0_62 = arith.constant 0 : index
    %377 = vector.load %arg10[%c0_61, %c0_62] : memref<2x32xf32, #tpu.memory_space<vmem>>, vector<2x32xf32>
    tpu.vector_store %arg10[%c0_61, %c0_62], %376 {strides = array<i32>} : memref<2x32xf32, #tpu.memory_space<vmem>>, vector<2x32xf32>,
    return
  }
}

module attributes {stable_mosaic.version = 11 : i64} {
  func.func @_sa_cls_kernel(%arg0: i32, %arg1: memref<1x64x32xf32, #tpu.memory_space<vmem>>, %arg2: memref<1x1x32xf32, #tpu.memory_space<vmem>>, %arg3: memref<2x32x32xf32, #tpu.memory_space<vmem>>, %arg4: memref<2x1x32xf32, #tpu.memory_space<vmem>>, %arg5: memref<2x32x32xf32, #tpu.memory_space<vmem>>, %arg6: memref<2x1x32xf32, #tpu.memory_space<vmem>>, %arg7: memref<2x1x32xf32, #tpu.memory_space<vmem>>, %arg8: memref<2x1x1xf32, #tpu.memory_space<vmem>>, %arg9: memref<32x64xf32, #tpu.memory_space<vmem>>, %arg10: memref<1x64xf32, #tpu.memory_space<vmem>>, %arg11: memref<64x10xf32, #tpu.memory_space<vmem>>, %arg12: memref<1x10xf32, #tpu.memory_space<vmem>>, %arg13: memref<1x1x10xf32, #tpu.memory_space<vmem>>) attributes {dimension_semantics = [#tpu.dimension_semantics<parallel>], iteration_bounds = array<i64: 2>, scalar_prefetch = 0 : i64, scratch_operands = 0 : i64, tpu.core_type = #tpu.core_type<tc>, window_params = [{transform_indices = @transform_0, window_bounds = array<i64: 1, 64, 32>}, {transform_indices = @transform_1, window_bounds = array<i64: 1, 1, 32>}, {pipeline_mode = #tpu.pipeline_mode<synchronous>, transform_indices = @transform_2, window_bounds = array<i64: 2, 32, 32>}, {pipeline_mode = #tpu.pipeline_mode<synchronous>, transform_indices = @transform_3, window_bounds = array<i64: 2, 1, 32>}, {pipeline_mode = #tpu.pipeline_mode<synchronous>, transform_indices = @transform_4, window_bounds = array<i64: 2, 32, 32>}, {pipeline_mode = #tpu.pipeline_mode<synchronous>, transform_indices = @transform_5, window_bounds = array<i64: 2, 1, 32>}, {pipeline_mode = #tpu.pipeline_mode<synchronous>, transform_indices = @transform_6, window_bounds = array<i64: 2, 1, 32>}, {pipeline_mode = #tpu.pipeline_mode<synchronous>, transform_indices = @transform_7, window_bounds = array<i64: 2, 1, 1>}, {pipeline_mode = #tpu.pipeline_mode<synchronous>, transform_indices = @transform_8, window_bounds = array<i64: 32, 64>}, {pipeline_mode = #tpu.pipeline_mode<synchronous>, transform_indices = @transform_9, window_bounds = array<i64: 1, 64>}, {pipeline_mode = #tpu.pipeline_mode<synchronous>, transform_indices = @transform_10, window_bounds = array<i64: 64, 10>}, {pipeline_mode = #tpu.pipeline_mode<synchronous>, transform_indices = @transform_11, window_bounds = array<i64: 1, 10>}, {transform_indices = @transform_12, window_bounds = array<i64: 1, 1, 10>}]} {
    %c0 = arith.constant 0 : index
    %c0_0 = arith.constant 0 : index
    %c0_1 = arith.constant 0 : index
    %0 = vector.load %arg1[%c0, %c0_0, %c0_1] : memref<1x64x32xf32, #tpu.memory_space<vmem>>, vector<1x64x32xf32>
    %1 = vector.shape_cast %0 : vector<1x64x32xf32> to vector<64x32xf32>
    %c0_2 = arith.constant 0 : index
    %c0_3 = arith.constant 0 : index
    %c0_4 = arith.constant 0 : index
    %2 = vector.load %arg2[%c0_2, %c0_3, %c0_4] : memref<1x1x32xf32, #tpu.memory_space<vmem>>, vector<1x1x32xf32>
    %3 = vector.shape_cast %2 : vector<1x1x32xf32> to vector<1x32xf32>
    %c0_5 = arith.constant 0 : index
    %c0_6 = arith.constant 0 : index
    %c0_7 = arith.constant 0 : index
    %4 = vector.load %arg3[%c0_5, %c0_6, %c0_7] : memref<2x32x32xf32, #tpu.memory_space<vmem>>, vector<1x32x32xf32>
    %5 = vector.shape_cast %4 : vector<1x32x32xf32> to vector<32x32xf32>
    %cst = arith.constant dense<0.000000e+00> : vector<64x32xf32>
    %6 = tpu.matmul %1, %5, %cst {dimension_numbers = #tpu.dot_dimension_numbers<[1], [0], [0], [1], [0, 0, 1, 1], [], []>} : vector<64x32xf32>, vector<32x32xf32>, vector<64x32xf32> -> vector<64x32xf32>
    %c0_8 = arith.constant 0 : index
    %c0_9 = arith.constant 0 : index
    %c0_10 = arith.constant 0 : index
    %7 = vector.load %arg4[%c0_8, %c0_9, %c0_10] : memref<2x1x32xf32, #tpu.memory_space<vmem>>, vector<1x1x32xf32>
    %8 = vector.shape_cast %7 : vector<1x1x32xf32> to vector<1x32xf32>
    %9 = vector.broadcast %8 : vector<1x32xf32> to vector<64x32xf32>
    %10 = arith.addf %6, %9 : vector<64x32xf32>
    %c0_11 = arith.constant 0 : index
    %c0_12 = arith.constant 0 : index
    %c0_13 = arith.constant 0 : index
    %11 = vector.load %arg5[%c0_11, %c0_12, %c0_13] : memref<2x32x32xf32, #tpu.memory_space<vmem>>, vector<1x32x32xf32>
    %12 = vector.shape_cast %11 : vector<1x32x32xf32> to vector<32x32xf32>
    %cst_14 = arith.constant dense<0.000000e+00> : vector<1x32xf32>
    %13 = tpu.matmul %3, %12, %cst_14 {dimension_numbers = #tpu.dot_dimension_numbers<[1], [0], [0], [1], [0, 0, 1, 1], [], []>} : vector<1x32xf32>, vector<32x32xf32>, vector<1x32xf32> -> vector<1x32xf32>
    %c0_15 = arith.constant 0 : index
    %c0_16 = arith.constant 0 : index
    %c0_17 = arith.constant 0 : index
    %14 = vector.load %arg6[%c0_15, %c0_16, %c0_17] : memref<2x1x32xf32, #tpu.memory_space<vmem>>, vector<1x1x32xf32>
    %15 = vector.shape_cast %14 : vector<1x1x32xf32> to vector<1x32xf32>
    %16 = arith.addf %13, %15 : vector<1x32xf32>
    %17 = vector.broadcast %16 : vector<1x32xf32> to vector<64x32xf32>
    %18 = arith.addf %10, %17 : vector<64x32xf32>
    %19 = math.tanh %18 : vector<64x32xf32>
    %c0_18 = arith.constant 0 : index
    %c0_19 = arith.constant 0 : index
    %c0_20 = arith.constant 0 : index
    %20 = vector.load %arg7[%c0_18, %c0_19, %c0_20] : memref<2x1x32xf32, #tpu.memory_space<vmem>>, vector<1x1x32xf32>
    %21 = vector.shape_cast %20 : vector<1x1x32xf32> to vector<1x32xf32>
    %22 = vector.broadcast %21 : vector<1x32xf32> to vector<64x32xf32>
    %23 = arith.mulf %19, %22 : vector<64x32xf32>
    %cst_21 = arith.constant dense<0.000000e+00> : vector<64xf32>
    %24 = vector.multi_reduction <add>, %23, %cst_21 [1] : vector<64x32xf32> to vector<64xf32>
    %25 = vector.shape_cast %24 : vector<64xf32> to vector<64x1xf32>
    %c0_22 = arith.constant 0 : index
    %c0_23 = arith.constant 0 : index
    %c0_24 = arith.constant 0 : index
    %26 = vector.load %arg8[%c0_22, %c0_23, %c0_24] : memref<2x1x1xf32, #tpu.memory_space<vmem>>, vector<1x1x1xf32>
    %27 = vector.shape_cast %26 : vector<1x1x1xf32> to vector<1x1xf32>
    %28 = vector.broadcast %27 : vector<1x1xf32> to vector<64x1xf32>
    %29 = arith.addf %25, %28 : vector<64x1xf32>
    %cst_25 = arith.constant dense<0xFF800000> : vector<1xf32>
    %30 = vector.multi_reduction <maximumf>, %29, %cst_25 [0] : vector<64x1xf32> to vector<1xf32>
    %31 = vector.shape_cast %30 : vector<1xf32> to vector<1x1xf32>
    %32 = vector.broadcast %31 : vector<1x1xf32> to vector<64x1xf32>
    %33 = arith.subf %29, %32 : vector<64x1xf32>
    %34 = math.exp %33 : vector<64x1xf32>
    %cst_26 = arith.constant dense<0.000000e+00> : vector<1xf32>
    %35 = vector.multi_reduction <add>, %34, %cst_26 [0] : vector<64x1xf32> to vector<1xf32>
    %36 = vector.shape_cast %35 : vector<1xf32> to vector<1x1xf32>
    %37 = vector.broadcast %36 : vector<1x1xf32> to vector<64x1xf32>
    %38 = arith.divf %34, %37 : vector<64x1xf32>
    %39 = vector.broadcast %38 : vector<64x1xf32> to vector<64x32xf32>
    %40 = arith.mulf %39, %1 : vector<64x32xf32>
    %cst_27 = arith.constant dense<0.000000e+00> : vector<32xf32>
    %41 = vector.multi_reduction <add>, %40, %cst_27 [0] : vector<64x32xf32> to vector<32xf32>
    %42 = vector.shape_cast %41 : vector<32xf32> to vector<1x32xf32>
    %43 = arith.addf %3, %42 : vector<1x32xf32>
    %c1 = arith.constant 1 : index
    %c0_28 = arith.constant 0 : index
    %c0_29 = arith.constant 0 : index
    %44 = vector.load %arg3[%c1, %c0_28, %c0_29] : memref<2x32x32xf32, #tpu.memory_space<vmem>>, vector<1x32x32xf32>
    %45 = vector.shape_cast %44 : vector<1x32x32xf32> to vector<32x32xf32>
    %cst_30 = arith.constant dense<0.000000e+00> : vector<64x32xf32>
    %46 = tpu.matmul %1, %45, %cst_30 {dimension_numbers = #tpu.dot_dimension_numbers<[1], [0], [0], [1], [0, 0, 1, 1], [], []>} : vector<64x32xf32>, vector<32x32xf32>, vector<64x32xf32> -> vector<64x32xf32>
    %c1_31 = arith.constant 1 : index
    %c0_32 = arith.constant 0 : index
    %c0_33 = arith.constant 0 : index
    %47 = vector.load %arg4[%c1_31, %c0_32, %c0_33] : memref<2x1x32xf32, #tpu.memory_space<vmem>>, vector<1x1x32xf32>
    %48 = vector.shape_cast %47 : vector<1x1x32xf32> to vector<1x32xf32>
    %49 = vector.broadcast %48 : vector<1x32xf32> to vector<64x32xf32>
    %50 = arith.addf %46, %49 : vector<64x32xf32>
    %c1_34 = arith.constant 1 : index
    %c0_35 = arith.constant 0 : index
    %c0_36 = arith.constant 0 : index
    %51 = vector.load %arg5[%c1_34, %c0_35, %c0_36] : memref<2x32x32xf32, #tpu.memory_space<vmem>>, vector<1x32x32xf32>
    %52 = vector.shape_cast %51 : vector<1x32x32xf32> to vector<32x32xf32>
    %cst_37 = arith.constant dense<0.000000e+00> : vector<1x32xf32>
    %53 = tpu.matmul %43, %52, %cst_37 {dimension_numbers = #tpu.dot_dimension_numbers<[1], [0], [0], [1], [0, 0, 1, 1], [], []>} : vector<1x32xf32>, vector<32x32xf32>, vector<1x32xf32> -> vector<1x32xf32>
    %c1_38 = arith.constant 1 : index
    %c0_39 = arith.constant 0 : index
    %c0_40 = arith.constant 0 : index
    %54 = vector.load %arg6[%c1_38, %c0_39, %c0_40] : memref<2x1x32xf32, #tpu.memory_space<vmem>>, vector<1x1x32xf32>
    %55 = vector.shape_cast %54 : vector<1x1x32xf32> to vector<1x32xf32>
    %56 = arith.addf %53, %55 : vector<1x32xf32>
    %57 = vector.broadcast %56 : vector<1x32xf32> to vector<64x32xf32>
    %58 = arith.addf %50, %57 : vector<64x32xf32>
    %59 = math.tanh %58 : vector<64x32xf32>
    %c1_41 = arith.constant 1 : index
    %c0_42 = arith.constant 0 : index
    %c0_43 = arith.constant 0 : index
    %60 = vector.load %arg7[%c1_41, %c0_42, %c0_43] : memref<2x1x32xf32, #tpu.memory_space<vmem>>, vector<1x1x32xf32>
    %61 = vector.shape_cast %60 : vector<1x1x32xf32> to vector<1x32xf32>
    %62 = vector.broadcast %61 : vector<1x32xf32> to vector<64x32xf32>
    %63 = arith.mulf %59, %62 : vector<64x32xf32>
    %cst_44 = arith.constant dense<0.000000e+00> : vector<64xf32>
    %64 = vector.multi_reduction <add>, %63, %cst_44 [1] : vector<64x32xf32> to vector<64xf32>
    %65 = vector.shape_cast %64 : vector<64xf32> to vector<64x1xf32>
    %c1_45 = arith.constant 1 : index
    %c0_46 = arith.constant 0 : index
    %c0_47 = arith.constant 0 : index
    %66 = vector.load %arg8[%c1_45, %c0_46, %c0_47] : memref<2x1x1xf32, #tpu.memory_space<vmem>>, vector<1x1x1xf32>
    %67 = vector.shape_cast %66 : vector<1x1x1xf32> to vector<1x1xf32>
    %68 = vector.broadcast %67 : vector<1x1xf32> to vector<64x1xf32>
    %69 = arith.addf %65, %68 : vector<64x1xf32>
    %cst_48 = arith.constant dense<0xFF800000> : vector<1xf32>
    %70 = vector.multi_reduction <maximumf>, %69, %cst_48 [0] : vector<64x1xf32> to vector<1xf32>
    %71 = vector.shape_cast %70 : vector<1xf32> to vector<1x1xf32>
    %72 = vector.broadcast %71 : vector<1x1xf32> to vector<64x1xf32>
    %73 = arith.subf %69, %72 : vector<64x1xf32>
    %74 = math.exp %73 : vector<64x1xf32>
    %cst_49 = arith.constant dense<0.000000e+00> : vector<1xf32>
    %75 = vector.multi_reduction <add>, %74, %cst_49 [0] : vector<64x1xf32> to vector<1xf32>
    %76 = vector.shape_cast %75 : vector<1xf32> to vector<1x1xf32>
    %77 = vector.broadcast %76 : vector<1x1xf32> to vector<64x1xf32>
    %78 = arith.divf %74, %77 : vector<64x1xf32>
    %79 = vector.broadcast %78 : vector<64x1xf32> to vector<64x32xf32>
    %80 = arith.mulf %79, %1 : vector<64x32xf32>
    %cst_50 = arith.constant dense<0.000000e+00> : vector<32xf32>
    %81 = vector.multi_reduction <add>, %80, %cst_50 [0] : vector<64x32xf32> to vector<32xf32>
    %82 = vector.shape_cast %81 : vector<32xf32> to vector<1x32xf32>
    %83 = arith.addf %43, %82 : vector<1x32xf32>
    %c0_51 = arith.constant 0 : index
    %c0_52 = arith.constant 0 : index
    %84 = vector.load %arg9[%c0_51, %c0_52] : memref<32x64xf32, #tpu.memory_space<vmem>>, vector<32x64xf32>
    %cst_53 = arith.constant dense<0.000000e+00> : vector<1x64xf32>
    %85 = tpu.matmul %83, %84, %cst_53 {dimension_numbers = #tpu.dot_dimension_numbers<[1], [0], [0], [1], [0, 0, 1, 1], [], []>} : vector<1x32xf32>, vector<32x64xf32>, vector<1x64xf32> -> vector<1x64xf32>
    %c0_54 = arith.constant 0 : index
    %c0_55 = arith.constant 0 : index
    %86 = vector.load %arg10[%c0_54, %c0_55] : memref<1x64xf32, #tpu.memory_space<vmem>>, vector<1x64xf32>
    %87 = arith.addf %85, %86 : vector<1x64xf32>
    %cst_56 = arith.constant 0.000000e+00 : f32
    %88 = vector.broadcast %cst_56 : f32 to vector<1x64xf32>
    %89 = arith.maximumf %87, %88 : vector<1x64xf32>
    %c0_57 = arith.constant 0 : index
    %c0_58 = arith.constant 0 : index
    %90 = vector.load %arg11[%c0_57, %c0_58] : memref<64x10xf32, #tpu.memory_space<vmem>>, vector<64x10xf32>
    %cst_59 = arith.constant dense<0.000000e+00> : vector<1x10xf32>
    %91 = tpu.matmul %89, %90, %cst_59 {dimension_numbers = #tpu.dot_dimension_numbers<[1], [0], [0], [1], [0, 0, 1, 1], [], []>} : vector<1x64xf32>, vector<64x10xf32>, vector<1x10xf32> -> vector<1x10xf32>
    %c0_60 = arith.constant 0 : index
    %c0_61 = arith.constant 0 : index
    %92 = vector.load %arg12[%c0_60, %c0_61] : memref<1x10xf32, #tpu.memory_space<vmem>>, vector<1x10xf32>
    %93 = arith.addf %91, %92 : vector<1x10xf32>
    %c0_62 = arith.constant 0 : index
    %c0_63 = arith.constant 0 : index
    %c0_64 = arith.constant 0 : index
    %94 = vector.load %arg13[%c0_62, %c0_63, %c0_64] : memref<1x1x10xf32, #tpu.memory_space<vmem>>, vector<1x1x10xf32>
    %95 = vector.shape_cast %94 : vector<1x1x10xf32> to vector<1x10xf32>
    %96 = vector.shape_cast %93 : vector<1x10xf32> to vector<1x1x10xf32>
    tpu.vector_store %arg13[%c0_62, %c0_63, %c0_64], %96 {strides = array<i32>} : memref<1x1x10xf32, #tpu.memory_space<vmem>>, vector<1x1x10xf32>,
    return
  }
  func.func @transform_0(%arg0: i32) -> (i32, i32, i32) {
    %c0_i32 = arith.constant 0 : i32
    %c0_i32_0 = arith.constant 0 : i32
    %c0_i32_1 = arith.constant 0 : i32
    return %arg0, %c0_i32, %c0_i32_0 : i32, i32, i32
  }
  func.func @transform_1(%arg0: i32) -> (i32, i32, i32) {
    %c0_i32 = arith.constant 0 : i32
    %c0_i32_0 = arith.constant 0 : i32
    %c0_i32_1 = arith.constant 0 : i32
    return %arg0, %c0_i32, %c0_i32_0 : i32, i32, i32
  }
  func.func @transform_2(%arg0: i32) -> (i32, i32, i32) {
    %c0_i32 = arith.constant 0 : i32
    %c0_i32_0 = arith.constant 0 : i32
    %c0_i32_1 = arith.constant 0 : i32
    %c0_i32_2 = arith.constant 0 : i32
    return %c0_i32, %c0_i32_0, %c0_i32_1 : i32, i32, i32
  }
  func.func @transform_3(%arg0: i32) -> (i32, i32, i32) {
    %c0_i32 = arith.constant 0 : i32
    %c0_i32_0 = arith.constant 0 : i32
    %c0_i32_1 = arith.constant 0 : i32
    %c0_i32_2 = arith.constant 0 : i32
    return %c0_i32, %c0_i32_0, %c0_i32_1 : i32, i32, i32
  }
  func.func @transform_4(%arg0: i32) -> (i32, i32, i32) {
    %c0_i32 = arith.constant 0 : i32
    %c0_i32_0 = arith.constant 0 : i32
    %c0_i32_1 = arith.constant 0 : i32
    %c0_i32_2 = arith.constant 0 : i32
    return %c0_i32, %c0_i32_0, %c0_i32_1 : i32, i32, i32
  }
  func.func @transform_5(%arg0: i32) -> (i32, i32, i32) {
    %c0_i32 = arith.constant 0 : i32
    %c0_i32_0 = arith.constant 0 : i32
    %c0_i32_1 = arith.constant 0 : i32
    %c0_i32_2 = arith.constant 0 : i32
    return %c0_i32, %c0_i32_0, %c0_i32_1 : i32, i32, i32
  }
  func.func @transform_6(%arg0: i32) -> (i32, i32, i32) {
    %c0_i32 = arith.constant 0 : i32
    %c0_i32_0 = arith.constant 0 : i32
    %c0_i32_1 = arith.constant 0 : i32
    %c0_i32_2 = arith.constant 0 : i32
    return %c0_i32, %c0_i32_0, %c0_i32_1 : i32, i32, i32
  }
  func.func @transform_7(%arg0: i32) -> (i32, i32, i32) {
    %c0_i32 = arith.constant 0 : i32
    %c0_i32_0 = arith.constant 0 : i32
    %c0_i32_1 = arith.constant 0 : i32
    %c0_i32_2 = arith.constant 0 : i32
    return %c0_i32, %c0_i32_0, %c0_i32_1 : i32, i32, i32
  }
  func.func @transform_8(%arg0: i32) -> (i32, i32) {
    %c0_i32 = arith.constant 0 : i32
    %c0_i32_0 = arith.constant 0 : i32
    %c0_i32_1 = arith.constant 0 : i32
    return %c0_i32, %c0_i32_0 : i32, i32
  }
  func.func @transform_9(%arg0: i32) -> (i32, i32) {
    %c0_i32 = arith.constant 0 : i32
    %c0_i32_0 = arith.constant 0 : i32
    %c0_i32_1 = arith.constant 0 : i32
    return %c0_i32, %c0_i32_0 : i32, i32
  }
  func.func @transform_10(%arg0: i32) -> (i32, i32) {
    %c0_i32 = arith.constant 0 : i32
    %c0_i32_0 = arith.constant 0 : i32
    %c0_i32_1 = arith.constant 0 : i32
    return %c0_i32, %c0_i32_0 : i32, i32
  }
  func.func @transform_11(%arg0: i32) -> (i32, i32) {
    %c0_i32 = arith.constant 0 : i32
    %c0_i32_0 = arith.constant 0 : i32
    %c0_i32_1 = arith.constant 0 : i32
    return %c0_i32, %c0_i32_0 : i32, i32
  }
  func.func @transform_12(%arg0: i32) -> (i32, i32, i32) {
    %c0_i32 = arith.constant 0 : i32
    %c0_i32_0 = arith.constant 0 : i32
    %c0_i32_1 = arith.constant 0 : i32
    return %arg0, %c0_i32, %c0_i32_0 : i32, i32, i32
  }
}

</mosaic_0001>

<llo_original>
// kernel: forward.5
$region0: #{forward.5}
  #allocation0 [shape = 'u32[]', space=smem, size = 0x4, offset = 0x4, fixed_abs, tag = 'smem constant byte address 0x4 - core index']
  #allocation1 [shape = 'u32[144,128]{1,0:T(1,128)}', space=vmem, size = 0x12000, scoped, tag = 'internal scratch']
  %s0 = inlined_call_operand.vmem [shape: f32[2,64,32], index: 0, kind: input, shape index: {}]
  %s1 = inlined_call_operand.vmem [shape: f32[2,1,32], index: 1, kind: input, shape index: {}]
  %s2 = inlined_call_operand.vmem [shape: f32[2,32,32], index: 2, kind: input, shape index: {}]
  %s3 = inlined_call_operand.vmem [shape: f32[2,1,32], index: 3, kind: input, shape index: {}]
  %s4 = inlined_call_operand.vmem [shape: f32[2,32,32], index: 4, kind: input, shape index: {}]
  %s5 = inlined_call_operand.vmem [shape: f32[2,1,32], index: 5, kind: input, shape index: {}]
  %s6 = inlined_call_operand.vmem [shape: f32[2,1,32], index: 6, kind: input, shape index: {}]
  %s7 = inlined_call_operand.vmem [shape: f32[2,1,1], index: 7, kind: input, shape index: {}]
  %s8 = inlined_call_operand.vmem [shape: f32[32,64], index: 8, kind: input, shape index: {}]
  %s9 = inlined_call_operand.vmem [shape: f32[1,64], index: 9, kind: input, shape index: {}]
  %s10 = inlined_call_operand.vmem [shape: f32[64,10], index: 10, kind: input, shape index: {}]
  %s11 = inlined_call_operand.vmem [shape: f32[1,10], index: 11, kind: input, shape index: {}]
  %s12 = inlined_call_operand.hbm [shape: f32[2,1,10], index: 12, kind: output, shape index: {}]
  %s13 = sld [smem:[#allocation0]]
  $region81: #{forward.5} parent=0
    _
  %s15 = ssub.s32 1, %s13
  %s16 = scalar_select 0, %s15, %s13
  $region1: #{forward.5} parent=0
    #allocation2 [shape = 'u8[1024]{0}', space=vmem, size = 0x400, scoped, tag = 'output window, operand 0']
    #allocation3 [shape = 's32[2]{0}', space=sflag, size = 0x8, scoped, tag = 'scoped memory for forward.5']
    %17 = vsyncpa [#allocation3], 0
    %s18 = scalar_lea.sflag [#allocation3], 1
    %19 = vsyncpa %s18, 0
    loop: start=0, step=1, limit=4
    $region2: #{forward.5} parent=1 // loop_pre_header
      _
    $region3: #{forward.5} parent=1 // loop_header
      %s21 = sphi 0, %s25
      %p22 = scmp.ge.s32.totalorder %s21, 4
      %s31 = sphi 0, %s33
      %s34 = sphi 0, %s31
      %s35 = sphi 0, %s34
      %s51 = sphi 0, %s35
      %s57 = sphi 0, %s59
      %s60 = sphi 0, %s57
      %s61 = sphi 0, %s60
      %s77 = sphi 0, %s61
      %s81 = sphi 0, %s81
      %s83 = sphi 0, %s81
      %s84 = sphi 0, %s83
      %s98 = sphi 0, %s84
      %s102 = sphi 0, %s102
      %s104 = sphi 0, %s102
      %s105 = sphi 0, %s104
      %s119 = sphi 0, %s105
      %s123 = sphi 0, %s123
      %s125 = sphi 0, %s123
      %s126 = sphi 0, %s125
      %s140 = sphi 0, %s126
      %s144 = sphi 0, %s144
      %s146 = sphi 0, %s144
      %s147 = sphi 0, %s146
      %s161 = sphi 0, %s147
      %s165 = sphi 0, %s165
      %s167 = sphi 0, %s165
      %s168 = sphi 0, %s167
      %s182 = sphi 0, %s168
      %s186 = sphi 0, %s186
      %s188 = sphi 0, %s186
      %s189 = sphi 0, %s188
      %s203 = sphi 0, %s189
      %s207 = sphi 0, %s207
      %s209 = sphi 0, %s207
      %s210 = sphi 0, %s209
      %s224 = sphi 0, %s210
      %s228 = sphi 0, %s228
      %s230 = sphi 0, %s228
      %s231 = sphi 0, %s230
      %s245 = sphi 0, %s231
      %s249 = sphi 0, %s249
      %s251 = sphi 0, %s249
      %s252 = sphi 0, %s251
      %s266 = sphi 0, %s252
      %s270 = sphi 0, %s270
      %s272 = sphi 0, %s270
      %s273 = sphi 0, %s272
      %s287 = sphi 0, %s273
      %s293 = sphi 0, %s295
      %s296 = sphi 0, %s293
      %s297 = sphi 0, %s296
      %s313 = sphi 0, %s297
    $region4: #{forward.5} parent=1 // loop_header_branch
      %24 = sbr.rel (%p22) target = $region8
    $region5: #{forward.5} parent=1 // loop_body
      %s26 = ssub.s32 %s21, 1
      %s27 = ssub.s32 %s21, 2
      %s28 = sadd.s32 %s21, 1
      %s29 = ssub.s32 %s21, %s28
      %p30 = scmp.eq.s32.totalorder %s29, 0
      %s32 = sadd.s32 %s31, 1
      %s33 = scalar_select %p30, %s31, %s32
      %p36 = pneg %p30
      %p37 = scmp.eq.s32.totalorder %s21, 1
      %p38 = por %p36, %p37
      %p39 = scmp.ne.s32.totalorder %s31, %s34
      %p40 = scmp.eq.s32.totalorder %s21, 0
      %p41 = por %p39, %p40
      %p42 = scmp.ne.s32.totalorder %s31, %s34
      %p43 = scmp.eq.s32.totalorder %s26, 1
      %p44 = por %p42, %p43
      %p45 = scmp.ne.s32.totalorder %s34, %s35
      %p46 = scmp.eq.s32.totalorder %s26, 0
      %p47 = por %p45, %p46
      %p48 = scmp.ne.s32.totalorder %s34, %s35
      %p49 = scmp.eq.s32.totalorder %s27, 1
      %p50 = por %p48, %p49
      %p52 = scmp.ne.s32.totalorder %s35, %s51
      %p53 = scmp.eq.s32.totalorder %s27, 0
      %p54 = por %p52, %p53
      %s55 = ssub.s32 %s21, %s28
      %p56 = scmp.eq.s32.totalorder %s55, 0
      %s58 = sadd.s32 %s57, 1
      %s59 = scalar_select %p56, %s57, %s58
      %p62 = pneg %p56
      %p63 = scmp.eq.s32.totalorder %s21, 1
      %p64 = por %p62, %p63
      %p65 = scmp.ne.s32.totalorder %s57, %s60
      %p66 = scmp.eq.s32.totalorder %s21, 0
      %p67 = por %p65, %p66
      %p68 = scmp.ne.s32.totalorder %s57, %s60
      %p69 = scmp.eq.s32.totalorder %s26, 1
      %p70 = por %p68, %p69
      %p71 = scmp.ne.s32.totalorder %s60, %s61
      %p72 = scmp.eq.s32.totalorder %s26, 0
      %p73 = por %p71, %p72
      %p74 = scmp.ne.s32.totalorder %s60, %s61
      %p75 = scmp.eq.s32.totalorder %s27, 1
      %p76 = por %p74, %p75
      %p78 = scmp.ne.s32.totalorder %s61, %s77
      %p79 = scmp.eq.s32.totalorder %s27, 0
      %p80 = por %p78, %p79
      %s82 = sadd.s32 %s81, 1
      %p85 = scmp.eq.s32.totalorder %s21, 1
      %p86 = scmp.ne.s32.totalorder %s81, %s83
      %p87 = scmp.eq.s32.totalorder %s21, 0
      %p88 = por %p86, %p87
      %p89 = scmp.ne.s32.totalorder %s81, %s83
      %p90 = scmp.eq.s32.totalorder %s26, 1
      %p91 = por %p89, %p90
      %p92 = scmp.ne.s32.totalorder %s83, %s84
      %p93 = scmp.eq.s32.totalorder %s26, 0
      %p94 = por %p92, %p93
      %p95 = scmp.ne.s32.totalorder %s83, %s84
      %p96 = scmp.eq.s32.totalorder %s27, 1
      %p97 = por %p95, %p96
      %p99 = scmp.ne.s32.totalorder %s84, %s98
      %p100 = scmp.eq.s32.totalorder %s27, 0
      %p101 = por %p99, %p100
      %s103 = sadd.s32 %s102, 1
      %p106 = scmp.eq.s32.totalorder %s21, 1
      %p107 = scmp.ne.s32.totalorder %s102, %s104
      %p108 = scmp.eq.s32.totalorder %s21, 0
      %p109 = por %p107, %p108
      %p110 = scmp.ne.s32.totalorder %s102, %s104
      %p111 = scmp.eq.s32.totalorder %s26, 1
      %p112 = por %p110, %p111
      %p113 = scmp.ne.s32.totalorder %s104, %s105
      %p114 = scmp.eq.s32.totalorder %s26, 0
      %p115 = por %p113, %p114
      %p116 = scmp.ne.s32.totalorder %s104, %s105
      %p117 = scmp.eq.s32.totalorder %s27, 1
      %p118 = por %p116, %p117
      %p120 = scmp.ne.s32.totalorder %s105, %s119
      %p121 = scmp.eq.s32.totalorder %s27, 0
      %p122 = por %p120, %p121
      %s124 = sadd.s32 %s123, 1
      %p127 = scmp.eq.s32.totalorder %s21, 1
      %p128 = scmp.ne.s32.totalorder %s123, %s125
      %p129 = scmp.eq.s32.totalorder %s21, 0
      %p130 = por %p128, %p129
      %p131 = scmp.ne.s32.totalorder %s123, %s125
      %p132 = scmp.eq.s32.totalorder %s26, 1
      %p133 = por %p131, %p132
      %p134 = scmp.ne.s32.totalorder %s125, %s126
      %p135 = scmp.eq.s32.totalorder %s26, 0
      %p136 = por %p134, %p135
      %p137 = scmp.ne.s32.totalorder %s125, %s126
      %p138 = scmp.eq.s32.totalorder %s27, 1
      %p139 = por %p137, %p138
      %p141 = scmp.ne.s32.totalorder %s126, %s140
      %p142 = scmp.eq.s32.totalorder %s27, 0
      %p143 = por %p141, %p142
      %s145 = sadd.s32 %s144, 1
      %p148 = scmp.eq.s32.totalorder %s21, 1
      %p149 = scmp.ne.s32.totalorder %s144, %s146
      %p150 = scmp.eq.s32.totalorder %s21, 0
      %p151 = por %p149, %p150
      %p152 = scmp.ne.s32.totalorder %s144, %s146
      %p153 = scmp.eq.s32.totalorder %s26, 1
      %p154 = por %p152, %p153
      %p155 = scmp.ne.s32.totalorder %s146, %s147
      %p156 = scmp.eq.s32.totalorder %s26, 0
      %p157 = por %p155, %p156
      %p158 = scmp.ne.s32.totalorder %s146, %s147
      %p159 = scmp.eq.s32.totalorder %s27, 1
      %p160 = por %p158, %p159
      %p162 = scmp.ne.s32.totalorder %s147, %s161
      %p163 = scmp.eq.s32.totalorder %s27, 0
      %p164 = por %p162, %p163
      %s166 = sadd.s32 %s165, 1
      %p169 = scmp.eq.s32.totalorder %s21, 1
      %p170 = scmp.ne.s32.totalorder %s165, %s167
      %p171 = scmp.eq.s32.totalorder %s21, 0
      %p172 = por %p170, %p171
      %p173 = scmp.ne.s32.totalorder %s165, %s167
      %p174 = scmp.eq.s32.totalorder %s26, 1
      %p175 = por %p173, %p174
      %p176 = scmp.ne.s32.totalorder %s167, %s168
      %p177 = scmp.eq.s32.totalorder %s26, 0
      %p178 = por %p176, %p177
      %p179 = scmp.ne.s32.totalorder %s167, %s168
      %p180 = scmp.eq.s32.totalorder %s27, 1
      %p181 = por %p179, %p180
      %p183 = scmp.ne.s32.totalorder %s168, %s182
      %p184 = scmp.eq.s32.totalorder %s27, 0
      %p185 = por %p183, %p184
      %s187 = sadd.s32 %s186, 1
      %p190 = scmp.eq.s32.totalorder %s21, 1
      %p191 = scmp.ne.s32.totalorder %s186, %s188
      %p192 = scmp.eq.s32.totalorder %s21, 0
      %p193 = por %p191, %p192
      %p194 = scmp.ne.s32.totalorder %s186, %s188
      %p195 = scmp.eq.s32.totalorder %s26, 1
      %p196 = por %p194, %p195
      %p197 = scmp.ne.s32.totalorder %s188, %s189
      %p198 = scmp.eq.s32.totalorder %s26, 0
      %p199 = por %p197, %p198
      %p200 = scmp.ne.s32.totalorder %s188, %s189
      %p201 = scmp.eq.s32.totalorder %s27, 1
      %p202 = por %p200, %p201
      %p204 = scmp.ne.s32.totalorder %s189, %s203
      %p205 = scmp.eq.s32.totalorder %s27, 0
      %p206 = por %p204, %p205
      %s208 = sadd.s32 %s207, 1
      %p211 = scmp.eq.s32.totalorder %s21, 1
      %p212 = scmp.ne.s32.totalorder %s207, %s209
      %p213 = scmp.eq.s32.totalorder %s21, 0
      %p214 = por %p212, %p213
      %p215 = scmp.ne.s32.totalorder %s207, %s209
      %p216 = scmp.eq.s32.totalorder %s26, 1
      %p217 = por %p215, %p216
      %p218 = scmp.ne.s32.totalorder %s209, %s210
      %p219 = scmp.eq.s32.totalorder %s26, 0
      %p220 = por %p218, %p219
      %p221 = scmp.ne.s32.totalorder %s209, %s210
      %p222 = scmp.eq.s32.totalorder %s27, 1
      %p223 = por %p221, %p222
      %p225 = scmp.ne.s32.totalorder %s210, %s224
      %p226 = scmp.eq.s32.totalorder %s27, 0
      %p227 = por %p225, %p226
      %s229 = sadd.s32 %s228, 1
      %p232 = scmp.eq.s32.totalorder %s21, 1
      %p233 = scmp.ne.s32.totalorder %s228, %s230
      %p234 = scmp.eq.s32.totalorder %s21, 0
      %p235 = por %p233, %p234
      %p236 = scmp.ne.s32.totalorder %s228, %s230
      %p237 = scmp.eq.s32.totalorder %s26, 1
      %p238 = por %p236, %p237
      %p239 = scmp.ne.s32.totalorder %s230, %s231
      %p240 = scmp.eq.s32.totalorder %s26, 0
      %p241 = por %p239, %p240
      %p242 = scmp.ne.s32.totalorder %s230, %s231
      %p243 = scmp.eq.s32.totalorder %s27, 1
      %p244 = por %p242, %p243
      %p246 = scmp.ne.s32.totalorder %s231, %s245
      %p247 = scmp.eq.s32.totalorder %s27, 0
      %p248 = por %p246, %p247
      %s250 = sadd.s32 %s249, 1
      %p253 = scmp.eq.s32.totalorder %s21, 1
      %p254 = scmp.ne.s32.totalorder %s249, %s251
      %p255 = scmp.eq.s32.totalorder %s21, 0
      %p256 = por %p254, %p255
      %p257 = scmp.ne.s32.totalorder %s249, %s251
      %p258 = scmp.eq.s32.totalorder %s26, 1
      %p259 = por %p257, %p258
      %p260 = scmp.ne.s32.totalorder %s251, %s252
      %p261 = scmp.eq.s32.totalorder %s26, 0
      %p262 = por %p260, %p261
      %p263 = scmp.ne.s32.totalorder %s251, %s252
      %p264 = scmp.eq.s32.totalorder %s27, 1
      %p265 = por %p263, %p264
      %p267 = scmp.ne.s32.totalorder %s252, %s266
      %p268 = scmp.eq.s32.totalorder %s27, 0
      %p269 = por %p267, %p268
      %s271 = sadd.s32 %s270, 1
      %p274 = scmp.eq.s32.totalorder %s21, 1
      %p275 = scmp.ne.s32.totalorder %s270, %s272
      %p276 = scmp.eq.s32.totalorder %s21, 0
      %p277 = por %p275, %p276
      %p278 = scmp.ne.s32.totalorder %s270, %s272
      %p279 = scmp.eq.s32.totalorder %s26, 1
      %p280 = por %p278, %p279
      %p281 = scmp.ne.s32.totalorder %s272, %s273
      %p282 = scmp.eq.s32.totalorder %s26, 0
      %p283 = por %p281, %p282
      %p284 = scmp.ne.s32.totalorder %s272, %s273
      %p285 = scmp.eq.s32.totalorder %s27, 1
      %p286 = por %p284, %p285
      %p288 = scmp.ne.s32.totalorder %s273, %s287
      %p289 = scmp.eq.s32.totalorder %s27, 0
      %p290 = por %p288, %p289
      %s291 = ssub.s32 %s21, %s28
      %p292 = scmp.eq.s32.totalorder %s291, 0
      %s294 = sadd.s32 %s293, 1
      %s295 = scalar_select %p292, %s293, %s294
      %p298 = pneg %p292
      %p299 = scmp.eq.s32.totalorder %s21, 1
      %p300 = por %p298, %p299
      %p301 = scmp.ne.s32.totalorder %s293, %s296
      %p302 = scmp.eq.s32.totalorder %s21, 0
      %p303 = por %p301, %p302
      %p304 = scmp.ne.s32.totalorder %s293, %s296
      %p305 = scmp.eq.s32.totalorder %s26, 1
      %p306 = por %p304, %p305
      %p307 = scmp.ne.s32.totalorder %s296, %s297
      %p308 = scmp.eq.s32.totalorder %s26, 0
      %p309 = por %p307, %p308
      %p310 = scmp.ne.s32.totalorder %s296, %s297
      %p311 = scmp.eq.s32.totalorder %s27, 1
      %p312 = por %p310, %p311
      %p314 = scmp.ne.s32.totalorder %s297, %s313
      %p315 = scmp.eq.s32.totalorder %s27, 0
      %p316 = por %p314, %p315
      %p317 = scmp.le.s32.totalorder 1, %s21
      %p318 = scmp.lt.s32.totalorder %s21, 3
      %p319 = pnand %p317, %p318
      %p320 = pneg %p319
      // Predicated region
      $region9: #{forward.5} parent=5 // pred_check
        _
      $region10: #{forward.5} parent=5 // pred_check_branch
        %322 = sbr.rel (%p319) target = $region12
      $region11: #{forward.5} parent=5 // pred_region
        %s323 = ssub.s32 %s21, 1
        // Predicated region
        $region13: #{forward.5} parent=11 // pred_check
          %p324 = pneg %p94
        $region14: #{forward.5} parent=11 // pred_check_branch
          %326 = sbr.rel (%p324) target = $region16
        $region15: #{forward.5} parent=11 // pred_region
          _
        $region16: #{forward.5} parent=11 // pred_fallthru
          _
        // Predicated region
        $region17: #{forward.5} parent=11 // pred_check
          %p327 = pneg %p115
        $region18: #{forward.5} parent=11 // pred_check_branch
          %329 = sbr.rel (%p327) target = $region20
        $region19: #{forward.5} parent=11 // pred_region
          _
        $region20: #{forward.5} parent=11 // pred_fallthru
          _
        // Predicated region
        $region21: #{forward.5} parent=11 // pred_check
          %p330 = pneg %p136
        $region22: #{forward.5} parent=11 // pred_check_branch
          %332 = sbr.rel (%p330) target = $region24
        $region23: #{forward.5} parent=11 // pred_region
          _
        $region24: #{forward.5} parent=11 // pred_fallthru
          _
        // Predicated region
        $region25: #{forward.5} parent=11 // pred_check
          %p333 = pneg %p157
        $region26: #{forward.5} parent=11 // pred_check_branch
          %335 = sbr.rel (%p333) target = $region28
        $region27: #{forward.5} parent=11 // pred_region
          _
        $region28: #{forward.5} parent=11 // pred_fallthru
          _
        // Predicated region
        $region29: #{forward.5} parent=11 // pred_check
          %p336 = pneg %p178
        $region30: #{forward.5} parent=11 // pred_check_branch
          %338 = sbr.rel (%p336) target = $region32
        $region31: #{forward.5} parent=11 // pred_region
          _
        $region32: #{forward.5} parent=11 // pred_fallthru
          _
        // Predicated region
        $region33: #{forward.5} parent=11 // pred_check
          %p339 = pneg %p199
        $region34: #{forward.5} parent=11 // pred_check_branch
          %341 = sbr.rel (%p339) target = $region36
        $region35: #{forward.5} parent=11 // pred_region
          _
        $region36: #{forward.5} parent=11 // pred_fallthru
          _
        // Predicated region
        $region37: #{forward.5} parent=11 // pred_check
          %p342 = pneg %p220
        $region38: #{forward.5} parent=11 // pred_check_branch
          %344 = sbr.rel (%p342) target = $region40
        $region39: #{forward.5} parent=11 // pred_region
          _
        $region40: #{forward.5} parent=11 // pred_fallthru
          _
        // Predicated region
        $region41: #{forward.5} parent=11 // pred_check
          %p345 = pneg %p241
        $region42: #{forward.5} parent=11 // pred_check_branch
          %347 = sbr.rel (%p345) target = $region44
        $region43: #{forward.5} parent=11 // pred_region
          _
        $region44: #{forward.5} parent=11 // pred_fallthru
          _
        // Predicated region
        $region45: #{forward.5} parent=11 // pred_check
          %p348 = pneg %p262
        $region46: #{forward.5} parent=11 // pred_check_branch
          %350 = sbr.rel (%p348) target = $region48
        $region47: #{forward.5} parent=11 // pred_region
          _
        $region48: #{forward.5} parent=11 // pred_fallthru
          _
        // Predicated region
        $region49: #{forward.5} parent=11 // pred_check
          %p351 = pneg %p283
        $region50: #{forward.5} parent=11 // pred_check_branch
          %353 = sbr.rel (%p351) target = $region52
        $region51: #{forward.5} parent=11 // pred_region
          _
        $region52: #{forward.5} parent=11 // pred_fallthru
          _
      $region12: #{forward.5} parent=5 // pred_fallthru
        _
      %p354 = scmp.lt.s32.totalorder %s21, 2
      // Predicated region
      $region53: #{forward.5} parent=5 // pred_check
        %p355 = pneg %p354
      $region54: #{forward.5} parent=5 // pred_check_branch
        %357 = sbr.rel (%p355) target = $region56
      $region55: #{forward.5} parent=5 // pred_region
        // Predicated region
        $region57: #{forward.5} parent=55 // pred_check
          %p358 = pneg %p41
        $region58: #{forward.5} parent=55 // pred_check_branch
          %360 = sbr.rel (%p358) target = $region60
        $region59: #{forward.5} parent=55 // pred_region
          %p361 = scmp.lt.s32.totalorder %s21, 1
          %s362 = scalar_select %p361, %s21, 1
          %s363 = smul.addr %s362, 8
          %s364 = smul.addr %s363, 8
          %s365 = scalar_lea.vmem %s0, %s364
        $region60: #{forward.5} parent=55 // pred_fallthru
          _
        // Predicated region
        $region61: #{forward.5} parent=55 // pred_check
          %p366 = pneg %p67
        $region62: #{forward.5} parent=55 // pred_check_branch
          %368 = sbr.rel (%p366) target = $region64
        $region63: #{forward.5} parent=55 // pred_region
          %p369 = scmp.lt.s32.totalorder %s21, 1
          %s370 = scalar_select %p369, %s21, 1
          %s371 = scalar_lea.vmem %s1, %s370
        $region64: #{forward.5} parent=55 // pred_fallthru
          _
      $region56: #{forward.5} parent=5 // pred_fallthru
        _
      %p372 = scmp.le.s32.totalorder 1, %s21
      %p373 = scmp.lt.s32.totalorder %s21, 3
      %p374 = pnand %p372, %p373
      %p375 = pneg %p374
      // Predicated region
      $region65: #{forward.5} parent=5 // pred_check
        _
      $region66: #{forward.5} parent=5 // pred_check_branch
        %377 = sbr.rel (%p374) target = $region68
      $region67: #{forward.5} parent=5 // pred_region
        %s378 = ssub.s32 %s21, 1
        %p379 = scmp.lt.s32.totalorder %s26, 1
        %s380 = scalar_select %p379, %s26, 1
        %s381 = smul.addr %s380, 8
        %s382 = smul.addr %s381, 8
        %s383 = scalar_lea.vmem %s0, %s382
        %p384 = pneg %p47
        %p385 = pneg %p44
        %p386 = scmp.lt.s32.totalorder %s26, 1
        %s387 = scalar_select %p386, %s26, 1
        %s388 = scalar_lea.vmem %s1, %s387
        %p389 = pneg %p73
        %p390 = pneg %p70
        %p391 = pneg %p94
        %p392 = pneg %p91
        %p393 = pneg %p115
        %p394 = pneg %p112
        %p395 = pneg %p136
        %p396 = pneg %p133
        %p397 = pneg %p157
        %p398 = pneg %p154
        %p399 = pneg %p178
        %p400 = pneg %p175
        %p401 = pneg %p199
        %p402 = pneg %p196
        %p403 = pneg %p220
        %p404 = pneg %p217
        %p405 = pneg %p241
        %p406 = pneg %p238
        %p407 = pneg %p262
        %p408 = pneg %p259
        %p409 = pneg %p283
        %p410 = pneg %p280
        %p411 = pneg %p309
        %p412 = pneg %p306
        %s413 = sand.u32 %s296, 1
        %s414 = scalar_lea.sflag [#allocation3], %s413
        %s415 = sand.u32 %s296, 1
        %s416 = scalar_lea.vmem [#allocation2], %s415
        %p417 = scmp.lt.s32.totalorder %s26, 1
        %s418 = scalar_select %p417, %s26, 1
        %s419 = smul.addr %s418, 8
        %s420 = smul.addr %s419, 8
        %s421 = scalar_lea.vmem %s0, %s420
        %p422 = scmp.lt.s32.totalorder %s26, 1
        %s423 = scalar_select %p422, %s26, 1
        %s424 = scalar_lea.vmem %s1, %s423
        %v425 = vld [vmem:[%s421] sm:$0xff]
        %v426 = vld [vmem:[%s421 + $0x8] sm:$0xff]
        %v427 = vld [vmem:[%s421 + $0x10] sm:$0xff]
        %v428 = vld [vmem:[%s421 + $0x18] sm:$0xff]
        %v429 = vld [vmem:[%s421 + $0x20] sm:$0xff]
        %v430 = vld [vmem:[%s421 + $0x28] sm:$0xff]
        %v431 = vld [vmem:[%s421 + $0x30] sm:$0xff]
        %v432 = vld [vmem:[%s421 + $0x38] sm:$0xff]
        %v433 = vld [vmem:[%s424] sm:$0x1]
        %v434 = vld [vmem:[%s2] sm:$0xff]
        %v435 = vld [vmem:[%s2 + $0x8] sm:$0xff]
        %v436 = vld [vmem:[%s2 + $0x10] sm:$0xff]
        %v437 = vld [vmem:[%s2 + $0x18] sm:$0xff]
        %v438 = vld [vmem:[%s3] sm:$0x1]
        %v440 = vlaneseq
        %v441 = vshrl.u32 %v440, 7
        %v442 = vsub.s32 0, %v441
        %v443 = vrot.slane %v438, %v442
        %vm445 = vcmask 261120
        %v447 = vsel %vm445, %v425, 0
        %v450 = vsel %vm445, %v426, 0
        %v453 = vsel %vm445, %v427, 0
        %v456 = vsel %vm445, %v428, 0
        %v459 = vsel %vm445, %v429, 0
        %v462 = vsel %vm445, %v430, 0
        %v465 = vsel %vm445, %v431, 0
        %v468 = vsel %vm445, %v432, 0
        %470 = vmatprep.subr.mxu0 0.0
        %471 = vmatpush1.msra.mxu0 0.0
        %472 = vmatprep.subr.mxu0 0.0
        %473 = vmatpush1.msra.mxu0 0.0
        %474 = vmatprep.subr.mxu0 0.0
        %475 = vmatpush1.msra.mxu0 0.0
        %476 = vmatprep.subr.mxu0 0.0
        %477 = vmatpush1.msra.mxu0 0.0
        %478 = vmatprep.subr.mxu0 0.0
        %479 = vmatpush1.msra.mxu0 0.0
        %480 = vmatprep.subr.mxu0 0.0
        %481 = vmatpush1.msra.mxu0 0.0
        %482 = vmatprep.subr.mxu0 0.0
        %483 = vmatpush1.msra.mxu0 0.0
        %484 = vmatprep.subr.mxu0 0.0
        %485 = vmatpush1.msra.mxu0 0.0
        %486 = vmatprep.subr.mxu0 0.0
        %487 = vmatpush1.msra.mxu0 0.0
        %488 = vmatprep.subr.mxu0 0.0
        %489 = vmatpush1.msra.mxu0 0.0
        %490 = vmatprep.subr.mxu0 0.0
        %491 = vmatpush1.msra.mxu0 0.0
        %492 = vmatprep.subr.mxu0 0.0
        %493 = vmatpush1.msra.mxu0 0.0
        %494 = vmatprep.subr.mxu0 0.0
        %495 = vmatpush1.msra.mxu0 %v437
        %496 = vmatprep.subr.mxu0 0.0
        %497 = vmatpush1.msra.mxu0 %v436
        %498 = vmatprep.subr.mxu0 0.0
        %499 = vmatpush1.msra.mxu0 %v435
        %500 = vmatprep.subr.mxu0 0.0
        %501 = vmatpush1.msra.mxu0 %v434
        %502 = vmatprep.subr.mxu0 0.0
        %503 = vmatpush2.msra.mxu0 0.0
        %504 = vmatprep.subr.mxu0 0.0
        %505 = vmatpush2.msra.mxu0 0.0
        %506 = vmatprep.subr.mxu0 0.0
        %507 = vmatpush2.msra.mxu0 0.0
        %508 = vmatprep.subr.mxu0 0.0
        %509 = vmatpush2.msra.mxu0 0.0
        %510 = vmatprep.subr.mxu0 0.0
        %511 = vmatpush2.msra.mxu0 0.0
        %512 = vmatprep.subr.mxu0 0.0
        %513 = vmatpush2.msra.mxu0 0.0
        %514 = vmatprep.subr.mxu0 0.0
        %515 = vmatpush2.msra.mxu0 0.0
        %516 = vmatprep.subr.mxu0 0.0
        %517 = vmatpush2.msra.mxu0 0.0
        %518 = vmatprep.subr.mxu0 0.0
        %519 = vmatpush2.msra.mxu0 0.0
        %520 = vmatprep.subr.mxu0 0.0
        %521 = vmatpush2.msra.mxu0 0.0
        %522 = vmatprep.subr.mxu0 0.0
        %523 = vmatpush2.msra.mxu0 0.0
        %524 = vmatprep.subr.mxu0 0.0
        %525 = vmatpush2.msra.mxu0 0.0
        %526 = vmatprep.subr.mxu0 0.0
        %527 = vmatpush2.msra.mxu0 0.0
        %528 = vmatprep.subr.mxu0 0.0
        %529 = vmatpush2.msra.mxu0 0.0
        %530 = vmatprep.subr.mxu0 0.0
        %531 = vmatpush2.msra.mxu0 0.0
        %532 = vmatprep.subr.mxu0 0.0
        %533 = vmatpush2.msra.mxu0 0.0
        %534 = vmatprep.mubr.f32.mxu0 0.0
        %535 = vmatmul.mubr.f32.gmra.mxu0 %v447
        %v536 = vpop.f32.mrf.mxu0
        %v537 = vadd.f32 %v443, %v536
        %v538 = vpop.f32.mrf.mxu0
        %539 = vmatprep.mubr.f32.mxu0 0.0
        %540 = vmatmul.mubr.f32.gmra.mxu0 %v450
        %v541 = vpop.f32.mrf.mxu0
        %v542 = vadd.f32 %v443, %v541
        %v543 = vpop.f32.mrf.mxu0
        %544 = vmatprep.mubr.f32.mxu0 0.0
        %545 = vmatmul.mubr.f32.gmra.mxu0 %v453
        %v546 = vpop.f32.mrf.mxu0
        %v547 = vadd.f32 %v443, %v546
        %v548 = vpop.f32.mrf.mxu0
        %549 = vmatprep.mubr.f32.mxu0 0.0
        %550 = vmatmul.mubr.f32.gmra.mxu0 %v456
        %v551 = vpop.f32.mrf.mxu0
        %v552 = vadd.f32 %v443, %v551
        %v553 = vpop.f32.mrf.mxu0
        %554 = vmatprep.mubr.f32.mxu0 0.0
        %555 = vmatmul.mubr.f32.gmra.mxu0 %v459
        %v556 = vpop.f32.mrf.mxu0
        %v557 = vadd.f32 %v443, %v556
        %v558 = vpop.f32.mrf.mxu0
        %559 = vmatprep.mubr.f32.mxu0 0.0
        %560 = vmatmul.mubr.f32.gmra.mxu0 %v462
        %v561 = vpop.f32.mrf.mxu0
        %v562 = vadd.f32 %v443, %v561
        %v563 = vpop.f32.mrf.mxu0
        %564 = vmatprep.mubr.f32.mxu0 0.0
        %565 = vmatmul.mubr.f32.gmra.mxu0 %v465
        %v566 = vpop.f32.mrf.mxu0
        %v567 = vadd.f32 %v443, %v566
        %v568 = vpop.f32.mrf.mxu0
        %569 = vmatprep.mubr.f32.mxu0 0.0
        %570 = vmatmul.mubr.f32.gmra.mxu0 %v468
        %v571 = vpop.f32.mrf.mxu0
        %v572 = vadd.f32 %v443, %v571
        %v573 = vpop.f32.mrf.mxu0
        %574 = vdwg.mxu0
        %v575 = vld [vmem:[%s4] sm:$0xff]
        %v576 = vld [vmem:[%s4 + $0x8] sm:$0xff]
        %v577 = vld [vmem:[%s4 + $0x10] sm:$0xff]
        %v578 = vld [vmem:[%s4 + $0x18] sm:$0xff]
        %v579 = vld [vmem:[%s5] sm:$0x1]
        %v581 = vsel %vm445, %v433, 0
        %583 = vmatprep.subr.mxu0 0.0
        %584 = vmatpush1.msra.mxu0 0.0
        %585 = vmatprep.subr.mxu0 0.0
        %586 = vmatpush1.msra.mxu0 0.0
        %587 = vmatprep.subr.mxu0 0.0
        %588 = vmatpush1.msra.mxu0 0.0
        %589 = vmatprep.subr.mxu0 0.0
        %590 = vmatpush1.msra.mxu0 0.0
        %591 = vmatprep.subr.mxu0 0.0
        %592 = vmatpush1.msra.mxu0 0.0
        %593 = vmatprep.subr.mxu0 0.0
        %594 = vmatpush1.msra.mxu0 0.0
        %595 = vmatprep.subr.mxu0 0.0
        %596 = vmatpush1.msra.mxu0 0.0
        %597 = vmatprep.subr.mxu0 0.0
        %598 = vmatpush1.msra.mxu0 0.0
        %599 = vmatprep.subr.mxu0 0.0
        %600 = vmatpush1.msra.mxu0 0.0
        %601 = vmatprep.subr.mxu0 0.0
        %602 = vmatpush1.msra.mxu0 0.0
        %603 = vmatprep.subr.mxu0 0.0
        %604 = vmatpush1.msra.mxu0 0.0
        %605 = vmatprep.subr.mxu0 0.0
        %606 = vmatpush1.msra.mxu0 0.0
        %607 = vmatprep.subr.mxu0 0.0
        %608 = vmatpush1.msra.mxu0 %v578
        %609 = vmatprep.subr.mxu0 0.0
        %610 = vmatpush1.msra.mxu0 %v577
        %611 = vmatprep.subr.mxu0 0.0
        %612 = vmatpush1.msra.mxu0 %v576
        %613 = vmatprep.subr.mxu0 0.0
        %614 = vmatpush1.msra.mxu0 %v575
        %615 = vmatprep.subr.mxu0 0.0
        %616 = vmatpush2.msra.mxu0 0.0
        %617 = vmatprep.subr.mxu0 0.0
        %618 = vmatpush2.msra.mxu0 0.0
        %619 = vmatprep.subr.mxu0 0.0
        %620 = vmatpush2.msra.mxu0 0.0
        %621 = vmatprep.subr.mxu0 0.0
        %622 = vmatpush2.msra.mxu0 0.0
        %623 = vmatprep.subr.mxu0 0.0
        %624 = vmatpush2.msra.mxu0 0.0
        %625 = vmatprep.subr.mxu0 0.0
        %626 = vmatpush2.msra.mxu0 0.0
        %627 = vmatprep.subr.mxu0 0.0
        %628 = vmatpush2.msra.mxu0 0.0
        %629 = vmatprep.subr.mxu0 0.0
        %630 = vmatpush2.msra.mxu0 0.0
        %631 = vmatprep.subr.mxu0 0.0
        %632 = vmatpush2.msra.mxu0 0.0
        %633 = vmatprep.subr.mxu0 0.0
        %634 = vmatpush2.msra.mxu0 0.0
        %635 = vmatprep.subr.mxu0 0.0
        %636 = vmatpush2.msra.mxu0 0.0
        %637 = vmatprep.subr.mxu0 0.0
        %638 = vmatpush2.msra.mxu0 0.0
        %639 = vmatprep.subr.mxu0 0.0
        %640 = vmatpush2.msra.mxu0 0.0
        %641 = vmatprep.subr.mxu0 0.0
        %642 = vmatpush2.msra.mxu0 0.0
        %643 = vmatprep.subr.mxu0 0.0
        %644 = vmatpush2.msra.mxu0 0.0
        %645 = vmatprep.subr.mxu0 0.0
        %646 = vmatpush2.msra.mxu0 0.0
        %647 = vmatprep.mubr.f32.mxu0 0.0
        %648 = vmatmul.mubr.f32.gmra.mxu0 %v581
        %v649 = vpop.f32.mrf.mxu0
        %v650 = vadd.f32 %v579, %v649
        %v651 = vpop.f32.mrf.mxu0
        %652 = vdwg.mxu0
        %v653 = vlaneseq
        %v654 = vshrl.u32 %v653, 7
        %v655 = vsub.s32 0, %v654
        %v656 = vrot.slane %v650, %v655
        %v657 = vadd.f32 %v537, %v656
        %v658 = vadd.f32 %v542, %v656
        %v659 = vadd.f32 %v547, %v656
        %v660 = vadd.f32 %v552, %v656
        %v661 = vadd.f32 %v557, %v656
        %v662 = vadd.f32 %v562, %v656
        %v663 = vadd.f32 %v567, %v656
        %v664 = vadd.f32 %v572, %v656
        %v665 = vtanh.pop %v657
        %v666 = vtanh.pop %v658
        %v667 = vtanh.pop %v659
        %v668 = vtanh.pop %v660
        %v669 = vtanh.pop %v661
        %v670 = vtanh.pop %v662
        %v671 = vtanh.pop %v663
        %v672 = vtanh.pop %v664
        %v673 = vld [vmem:[%s6] sm:$0x1]
        %v675 = vlaneseq
        %v676 = vshrl.u32 %v675, 7
        %v677 = vsub.s32 0, %v676
        %v678 = vrot.slane %v673, %v677
        %v680 = vmul.f32 %v665, %v678
        %v681 = vmul.f32 %v666, %v678
        %v682 = vmul.f32 %v667, %v678
        %v683 = vmul.f32 %v668, %v678
        %v684 = vmul.f32 %v669, %v678
        %v685 = vmul.f32 %v670, %v678
        %v686 = vmul.f32 %v671, %v678
        %v687 = vmul.f32 %v672, %v678
        %v688 = vsel %vm445, %v680, 0.0
        %689 = vadd.xlane.f32.xlu0 %v688
        %v690 = vpop.xlane.xlu0 %689
        %v691 = vsel %vm445, %v681, 0.0
        %692 = vadd.xlane.f32.xlu0 %v691
        %v693 = vpop.xlane.xlu0 %692
        %v694 = vsel %vm445, %v682, 0.0
        %695 = vadd.xlane.f32.xlu0 %v694
        %v696 = vpop.xlane.xlu0 %695
        %v697 = vsel %vm445, %v683, 0.0
        %698 = vadd.xlane.f32.xlu0 %v697
        %v699 = vpop.xlane.xlu0 %698
        %v700 = vsel %vm445, %v684, 0.0
        %701 = vadd.xlane.f32.xlu0 %v700
        %v702 = vpop.xlane.xlu0 %701
        %v703 = vsel %vm445, %v685, 0.0
        %704 = vadd.xlane.f32.xlu0 %v703
        %v705 = vpop.xlane.xlu0 %704
        %v706 = vsel %vm445, %v686, 0.0
        %707 = vadd.xlane.f32.xlu0 %v706
        %v708 = vpop.xlane.xlu0 %707
        %v709 = vsel %vm445, %v687, 0.0
        %710 = vadd.xlane.f32.xlu0 %v709
        %v711 = vpop.xlane.xlu0 %710
        %v712 = vld [vmem:[%s7] sm:$0x1]
        %v714 = vlaneseq
        %v715 = vshrl.u32 %v714, 7
        %v716 = vsub.s32 0, %v715
        %v717 = vrot.slane %v712, %v716
        %v719 = vadd.f32 %v690, %v717
        %v720 = vadd.f32 %v693, %v717
        %v721 = vadd.f32 %v696, %v717
        %v722 = vadd.f32 %v699, %v717
        %v723 = vadd.f32 %v702, %v717
        %v724 = vadd.f32 %v705, %v717
        %v725 = vadd.f32 %v708, %v717
        %v726 = vadd.f32 %v711, %v717
        %vm727 = vcmask 7168
        %v728 = vsel %vm727, %v719, -inf
        %v729 = vsel %vm727, %v720, -inf
        %v730 = vsel %vm727, %v721, -inf
        %v731 = vsel %vm727, %v722, -inf
        %v732 = vsel %vm727, %v723, -inf
        %v733 = vmax.f32 %v728, %v732
        %v734 = vsel %vm727, %v724, -inf
        %v735 = vmax.f32 %v729, %v734
        %v736 = vsel %vm727, %v725, -inf
        %v737 = vmax.f32 %v730, %v736
        %v738 = vsel %vm727, %v726, -inf
        %v739 = vmax.f32 %v731, %v738
        %v740 = vmax.f32 %v733, %v735
        %v741 = vmax.f32 %v737, %v739
        %v742 = vmax.f32 %v740, %v741
        %v743 = vrot.slane %v742, 4
        %v744 = vmax.f32 %v742, %v743
        %v745 = vrot.slane %v744, 2
        %v746 = vmax.f32 %v744, %v745
        %v747 = vrot.slane %v746, 1
        %v748 = vmax.f32 %v746, %v747
        %v749 = vsub.f32 %v719, %v748
        %v750 = vsub.f32 %v720, %v748
        %v751 = vsub.f32 %v721, %v748
        %v752 = vsub.f32 %v722, %v748
        %v753 = vsub.f32 %v723, %v748
        %v754 = vsub.f32 %v724, %v748
        %v755 = vsub.f32 %v725, %v748
        %v756 = vsub.f32 %v726, %v748
        %v757 = vmul.f32 %v749, 1.442695
        %v758 = vpow.pop %v757
        %v759 = vmul.f32 %v750, 1.442695
        %v760 = vpow.pop %v759
        %v761 = vmul.f32 %v751, 1.442695
        %v762 = vpow.pop %v761
        %v763 = vmul.f32 %v752, 1.442695
        %v764 = vpow.pop %v763
        %v765 = vmul.f32 %v753, 1.442695
        %v766 = vpow.pop %v765
        %v767 = vmul.f32 %v754, 1.442695
        %v768 = vpow.pop %v767
        %v769 = vmul.f32 %v755, 1.442695
        %v770 = vpow.pop %v769
        %v771 = vmul.f32 %v756, 1.442695
        %v772 = vpow.pop %v771
        %v773 = vsel %vm727, %v758, 0.0
        %v774 = vsel %vm727, %v760, 0.0
        %v775 = vadd.f32 %v773, %v774
        %v776 = vsel %vm727, %v762, 0.0
        %v777 = vadd.f32 %v775, %v776
        %v778 = vsel %vm727, %v764, 0.0
        %v779 = vadd.f32 %v777, %v778
        %v780 = vsel %vm727, %v766, 0.0
        %v781 = vadd.f32 %v779, %v780
        %v782 = vsel %vm727, %v768, 0.0
        %v783 = vadd.f32 %v781, %v782
        %v784 = vsel %vm727, %v770, 0.0
        %v785 = vadd.f32 %v783, %v784
        %v786 = vsel %vm727, %v772, 0.0
        %v787 = vadd.f32 %v785, %v786
        %v788 = vrot.slane %v787, 4
        %v789 = vadd.f32 %v787, %v788
        %v790 = vrot.slane %v789, 2
        %v791 = vadd.f32 %v789, %v790
        %v792 = vrot.slane %v791, 1
        %v793 = vadd.f32 %v791, %v792
        %v794 = vrcp.pop %v793
        %v795 = vmul.f32 %v758, %v794
        %v796 = vmul.f32 %v760, %v794
        %v797 = vmul.f32 %v762, %v794
        %v798 = vmul.f32 %v764, %v794
        %v799 = vmul.f32 %v766, %v794
        %v800 = vmul.f32 %v768, %v794
        %v801 = vmul.f32 %v770, %v794
        %v802 = vmul.f32 %v772, %v794
        %804 = vset.pattern.permute.xlu0 0
        %805 = vperm.xlu0 %804, %v795
        %v806 = vpop.permute.xlu0 %805
        %809 = vset.pattern.permute.xlu0 0
        %810 = vperm.xlu0 %809, %v796
        %v811 = vpop.permute.xlu0 %810
        %814 = vset.pattern.permute.xlu0 0
        %815 = vperm.xlu0 %814, %v797
        %v816 = vpop.permute.xlu0 %815
        %819 = vset.pattern.permute.xlu0 0
        %820 = vperm.xlu0 %819, %v798
        %v821 = vpop.permute.xlu0 %820
        %824 = vset.pattern.permute.xlu0 0
        %825 = vperm.xlu0 %824, %v799
        %v826 = vpop.permute.xlu0 %825
        %829 = vset.pattern.permute.xlu0 0
        %830 = vperm.xlu0 %829, %v800
        %v831 = vpop.permute.xlu0 %830
        %834 = vset.pattern.permute.xlu0 0
        %835 = vperm.xlu0 %834, %v801
        %v836 = vpop.permute.xlu0 %835
        %839 = vset.pattern.permute.xlu0 0
        %840 = vperm.xlu0 %839, %v802
        %v841 = vpop.permute.xlu0 %840
        %v843 = vmul.f32 %v806, %v425
        %v844 = vmul.f32 %v811, %v426
        %v845 = vmul.f32 %v816, %v427
        %v846 = vmul.f32 %v821, %v428
        %v847 = vmul.f32 %v826, %v429
        %v848 = vmul.f32 %v831, %v430
        %v849 = vmul.f32 %v836, %v431
        %v850 = vmul.f32 %v841, %v432
        %v851 = vsel %vm445, %v843, 0.0
        %v852 = vsel %vm445, %v844, 0.0
        %v853 = vadd.f32 %v851, %v852
        %v854 = vsel %vm445, %v845, 0.0
        %v855 = vadd.f32 %v853, %v854
        %v856 = vsel %vm445, %v846, 0.0
        %v857 = vadd.f32 %v855, %v856
        %v858 = vsel %vm445, %v847, 0.0
        %v859 = vadd.f32 %v857, %v858
        %v860 = vsel %vm445, %v848, 0.0
        %v861 = vadd.f32 %v859, %v860
        %v862 = vsel %vm445, %v849, 0.0
        %v863 = vadd.f32 %v861, %v862
        %v864 = vsel %vm445, %v850, 0.0
        %v865 = vadd.f32 %v863, %v864
        %v866 = vrot.slane %v865, 4
        %v867 = vadd.f32 %v865, %v866
        %v868 = vrot.slane %v867, 2
        %v869 = vadd.f32 %v867, %v868
        %v870 = vrot.slane %v869, 1
        %v871 = vadd.f32 %v869, %v870
        %v872 = vadd.f32 %v433, %v871
        %s873 = scalar_lea.vmem %s2, 32
        %v874 = vld [vmem:[%s873] sm:$0xff]
        %v875 = vld [vmem:[%s873 + $0x8] sm:$0xff]
        %v876 = vld [vmem:[%s873 + $0x10] sm:$0xff]
        %v877 = vld [vmem:[%s873 + $0x18] sm:$0xff]
        %s878 = scalar_lea.vmem %s3, 1
        %v879 = vld [vmem:[%s878] sm:$0x1]
        %v881 = vlaneseq
        %v882 = vshrl.u32 %v881, 7
        %v883 = vsub.s32 0, %v882
        %v884 = vrot.slane %v879, %v883
        %886 = vmatprep.subr.mxu0 0.0
        %887 = vmatpush1.msra.mxu0 0.0
        %888 = vmatprep.subr.mxu0 0.0
        %889 = vmatpush1.msra.mxu0 0.0
        %890 = vmatprep.subr.mxu0 0.0
        %891 = vmatpush1.msra.mxu0 0.0
        %892 = vmatprep.subr.mxu0 0.0
        %893 = vmatpush1.msra.mxu0 0.0
        %894 = vmatprep.subr.mxu0 0.0
        %895 = vmatpush1.msra.mxu0 0.0
        %896 = vmatprep.subr.mxu0 0.0
        %897 = vmatpush1.msra.mxu0 0.0
        %898 = vmatprep.subr.mxu0 0.0
        %899 = vmatpush1.msra.mxu0 0.0
        %900 = vmatprep.subr.mxu0 0.0
        %901 = vmatpush1.msra.mxu0 0.0
        %902 = vmatprep.subr.mxu0 0.0
        %903 = vmatpush1.msra.mxu0 0.0
        %904 = vmatprep.subr.mxu0 0.0
        %905 = vmatpush1.msra.mxu0 0.0
        %906 = vmatprep.subr.mxu0 0.0
        %907 = vmatpush1.msra.mxu0 0.0
        %908 = vmatprep.subr.mxu0 0.0
        %909 = vmatpush1.msra.mxu0 0.0
        %910 = vmatprep.subr.mxu0 0.0
        %911 = vmatpush1.msra.mxu0 %v877
        %912 = vmatprep.subr.mxu0 0.0
        %913 = vmatpush1.msra.mxu0 %v876
        %914 = vmatprep.subr.mxu0 0.0
        %915 = vmatpush1.msra.mxu0 %v875
        %916 = vmatprep.subr.mxu0 0.0
        %917 = vmatpush1.msra.mxu0 %v874
        %918 = vmatprep.subr.mxu0 0.0
        %919 = vmatpush2.msra.mxu0 0.0
        %920 = vmatprep.subr.mxu0 0.0
        %921 = vmatpush2.msra.mxu0 0.0
        %922 = vmatprep.subr.mxu0 0.0
        %923 = vmatpush2.msra.mxu0 0.0
        %924 = vmatprep.subr.mxu0 0.0
        %925 = vmatpush2.msra.mxu0 0.0
        %926 = vmatprep.subr.mxu0 0.0
        %927 = vmatpush2.msra.mxu0 0.0
        %928 = vmatprep.subr.mxu0 0.0
        %929 = vmatpush2.msra.mxu0 0.0
        %930 = vmatprep.subr.mxu0 0.0
        %931 = vmatpush2.msra.mxu0 0.0
        %932 = vmatprep.subr.mxu0 0.0
        %933 = vmatpush2.msra.mxu0 0.0
        %934 = vmatprep.subr.mxu0 0.0
        %935 = vmatpush2.msra.mxu0 0.0
        %936 = vmatprep.subr.mxu0 0.0
        %937 = vmatpush2.msra.mxu0 0.0
        %938 = vmatprep.subr.mxu0 0.0
        %939 = vmatpush2.msra.mxu0 0.0
        %940 = vmatprep.subr.mxu0 0.0
        %941 = vmatpush2.msra.mxu0 0.0
        %942 = vmatprep.subr.mxu0 0.0
        %943 = vmatpush2.msra.mxu0 0.0
        %944 = vmatprep.subr.mxu0 0.0
        %945 = vmatpush2.msra.mxu0 0.0
        %946 = vmatprep.subr.mxu0 0.0
        %947 = vmatpush2.msra.mxu0 0.0
        %948 = vmatprep.subr.mxu0 0.0
        %949 = vmatpush2.msra.mxu0 0.0
        %950 = vmatprep.mubr.f32.mxu0 0.0
        %951 = vmatmul.mubr.f32.gmra.mxu0 %v447
        %v952 = vpop.f32.mrf.mxu0
        %v953 = vadd.f32 %v884, %v952
        %v954 = vpop.f32.mrf.mxu0
        %955 = vmatprep.mubr.f32.mxu0 0.0
        %956 = vmatmul.mubr.f32.gmra.mxu0 %v450
        %v957 = vpop.f32.mrf.mxu0
        %v958 = vadd.f32 %v884, %v957
        %v959 = vpop.f32.mrf.mxu0
        %960 = vmatprep.mubr.f32.mxu0 0.0
        %961 = vmatmul.mubr.f32.gmra.mxu0 %v453
        %v962 = vpop.f32.mrf.mxu0
        %v963 = vadd.f32 %v884, %v962
        %v964 = vpop.f32.mrf.mxu0
        %965 = vmatprep.mubr.f32.mxu0 0.0
        %966 = vmatmul.mubr.f32.gmra.mxu0 %v456
        %v967 = vpop.f32.mrf.mxu0
        %v968 = vadd.f32 %v884, %v967
        %v969 = vpop.f32.mrf.mxu0
        %970 = vmatprep.mubr.f32.mxu0 0.0
        %971 = vmatmul.mubr.f32.gmra.mxu0 %v459
        %v972 = vpop.f32.mrf.mxu0
        %v973 = vadd.f32 %v884, %v972
        %v974 = vpop.f32.mrf.mxu0
        %975 = vmatprep.mubr.f32.mxu0 0.0
        %976 = vmatmul.mubr.f32.gmra.mxu0 %v462
        %v977 = vpop.f32.mrf.mxu0
        %v978 = vadd.f32 %v884, %v977
        %v979 = vpop.f32.mrf.mxu0
        %980 = vmatprep.mubr.f32.mxu0 0.0
        %981 = vmatmul.mubr.f32.gmra.mxu0 %v465
        %v982 = vpop.f32.mrf.mxu0
        %v983 = vadd.f32 %v884, %v982
        %v984 = vpop.f32.mrf.mxu0
        %985 = vmatprep.mubr.f32.mxu0 0.0
        %986 = vmatmul.mubr.f32.gmra.mxu0 %v468
        %v987 = vpop.f32.mrf.mxu0
        %v988 = vadd.f32 %v884, %v987
        %v989 = vpop.f32.mrf.mxu0
        %990 = vdwg.mxu0
        %s991 = scalar_lea.vmem %s4, 32
        %v992 = vld [vmem:[%s991] sm:$0xff]
        %v993 = vld [vmem:[%s991 + $0x8] sm:$0xff]
        %v994 = vld [vmem:[%s991 + $0x10] sm:$0xff]
        %v995 = vld [vmem:[%s991 + $0x18] sm:$0xff]
        %s996 = scalar_lea.vmem %s5, 1
        %v997 = vld [vmem:[%s996] sm:$0x1]
        %v999 = vsel %vm445, %v872, 0
        %1001 = vmatprep.subr.mxu0 0.0
        %1002 = vmatpush1.msra.mxu0 0.0
        %1003 = vmatprep.subr.mxu0 0.0
        %1004 = vmatpush1.msra.mxu0 0.0
        %1005 = vmatprep.subr.mxu0 0.0
        %1006 = vmatpush1.msra.mxu0 0.0
        %1007 = vmatprep.subr.mxu0 0.0
        %1008 = vmatpush1.msra.mxu0 0.0
        %1009 = vmatprep.subr.mxu0 0.0
        %1010 = vmatpush1.msra.mxu0 0.0
        %1011 = vmatprep.subr.mxu0 0.0
        %1012 = vmatpush1.msra.mxu0 0.0
        %1013 = vmatprep.subr.mxu0 0.0
        %1014 = vmatpush1.msra.mxu0 0.0
        %1015 = vmatprep.subr.mxu0 0.0
        %1016 = vmatpush1.msra.mxu0 0.0
        %1017 = vmatprep.subr.mxu0 0.0
        %1018 = vmatpush1.msra.mxu0 0.0
        %1019 = vmatprep.subr.mxu0 0.0
        %1020 = vmatpush1.msra.mxu0 0.0
        %1021 = vmatprep.subr.mxu0 0.0
        %1022 = vmatpush1.msra.mxu0 0.0
        %1023 = vmatprep.subr.mxu0 0.0
        %1024 = vmatpush1.msra.mxu0 0.0
        %1025 = vmatprep.subr.mxu0 0.0
        %1026 = vmatpush1.msra.mxu0 %v995
        %1027 = vmatprep.subr.mxu0 0.0
        %1028 = vmatpush1.msra.mxu0 %v994
        %1029 = vmatprep.subr.mxu0 0.0
        %1030 = vmatpush1.msra.mxu0 %v993
        %1031 = vmatprep.subr.mxu0 0.0
        %1032 = vmatpush1.msra.mxu0 %v992
        %1033 = vmatprep.subr.mxu0 0.0
        %1034 = vmatpush2.msra.mxu0 0.0
        %1035 = vmatprep.subr.mxu0 0.0
        %1036 = vmatpush2.msra.mxu0 0.0
        %1037 = vmatprep.subr.mxu0 0.0
        %1038 = vmatpush2.msra.mxu0 0.0
        %1039 = vmatprep.subr.mxu0 0.0
        %1040 = vmatpush2.msra.mxu0 0.0
        %1041 = vmatprep.subr.mxu0 0.0
        %1042 = vmatpush2.msra.mxu0 0.0
        %1043 = vmatprep.subr.mxu0 0.0
        %1044 = vmatpush2.msra.mxu0 0.0
        %1045 = vmatprep.subr.mxu0 0.0
        %1046 = vmatpush2.msra.mxu0 0.0
        %1047 = vmatprep.subr.mxu0 0.0
        %1048 = vmatpush2.msra.mxu0 0.0
        %1049 = vmatprep.subr.mxu0 0.0
        %1050 = vmatpush2.msra.mxu0 0.0
        %1051 = vmatprep.subr.mxu0 0.0
        %1052 = vmatpush2.msra.mxu0 0.0
        %1053 = vmatprep.subr.mxu0 0.0
        %1054 = vmatpush2.msra.mxu0 0.0
        %1055 = vmatprep.subr.mxu0 0.0
        %1056 = vmatpush2.msra.mxu0 0.0
        %1057 = vmatprep.subr.mxu0 0.0
        %1058 = vmatpush2.msra.mxu0 0.0
        %1059 = vmatprep.subr.mxu0 0.0
        %1060 = vmatpush2.msra.mxu0 0.0
        %1061 = vmatprep.subr.mxu0 0.0
        %1062 = vmatpush2.msra.mxu0 0.0
        %1063 = vmatprep.subr.mxu0 0.0
        %1064 = vmatpush2.msra.mxu0 0.0
        %1065 = vmatprep.mubr.f32.mxu0 0.0
        %1066 = vmatmul.mubr.f32.gmra.mxu0 %v999
        %v1067 = vpop.f32.mrf.mxu0
        %v1068 = vadd.f32 %v997, %v1067
        %v1069 = vpop.f32.mrf.mxu0
        %1070 = vdwg.mxu0
        %v1071 = vlaneseq
        %v1072 = vshrl.u32 %v1071, 7
        %v1073 = vsub.s32 0, %v1072
        %v1074 = vrot.slane %v1068, %v1073
        %v1075 = vadd.f32 %v953, %v1074
        %v1076 = vadd.f32 %v958, %v1074
        %v1077 = vadd.f32 %v963, %v1074
        %v1078 = vadd.f32 %v968, %v1074
        %v1079 = vadd.f32 %v973, %v1074
        %v1080 = vadd.f32 %v978, %v1074
        %v1081 = vadd.f32 %v983, %v1074
        %v1082 = vadd.f32 %v988, %v1074
        %v1083 = vtanh.pop %v1075
        %v1084 = vtanh.pop %v1076
        %v1085 = vtanh.pop %v1077
        %v1086 = vtanh.pop %v1078
        %v1087 = vtanh.pop %v1079
        %v1088 = vtanh.pop %v1080
        %v1089 = vtanh.pop %v1081
        %v1090 = vtanh.pop %v1082
        %s1091 = scalar_lea.vmem %s6, 1
        %v1092 = vld [vmem:[%s1091] sm:$0x1]
        %v1094 = vlaneseq
        %v1095 = vshrl.u32 %v1094, 7
        %v1096 = vsub.s32 0, %v1095
        %v1097 = vrot.slane %v1092, %v1096
        %v1099 = vmul.f32 %v1083, %v1097
        %v1100 = vmul.f32 %v1084, %v1097
        %v1101 = vmul.f32 %v1085, %v1097
        %v1102 = vmul.f32 %v1086, %v1097
        %v1103 = vmul.f32 %v1087, %v1097
        %v1104 = vmul.f32 %v1088, %v1097
        %v1105 = vmul.f32 %v1089, %v1097
        %v1106 = vmul.f32 %v1090, %v1097
        %v1107 = vsel %vm445, %v1099, 0.0
        %1108 = vadd.xlane.f32.xlu0 %v1107
        %v1109 = vpop.xlane.xlu0 %1108
        %v1110 = vsel %vm445, %v1100, 0.0
        %1111 = vadd.xlane.f32.xlu0 %v1110
        %v1112 = vpop.xlane.xlu0 %1111
        %v1113 = vsel %vm445, %v1101, 0.0
        %1114 = vadd.xlane.f32.xlu0 %v1113
        %v1115 = vpop.xlane.xlu0 %1114
        %v1116 = vsel %vm445, %v1102, 0.0
        %1117 = vadd.xlane.f32.xlu0 %v1116
        %v1118 = vpop.xlane.xlu0 %1117
        %v1119 = vsel %vm445, %v1103, 0.0
        %1120 = vadd.xlane.f32.xlu0 %v1119
        %v1121 = vpop.xlane.xlu0 %1120
        %v1122 = vsel %vm445, %v1104, 0.0
        %1123 = vadd.xlane.f32.xlu0 %v1122
        %v1124 = vpop.xlane.xlu0 %1123
        %v1125 = vsel %vm445, %v1105, 0.0
        %1126 = vadd.xlane.f32.xlu0 %v1125
        %v1127 = vpop.xlane.xlu0 %1126
        %v1128 = vsel %vm445, %v1106, 0.0
        %1129 = vadd.xlane.f32.xlu0 %v1128
        %v1130 = vpop.xlane.xlu0 %1129
        %s1131 = scalar_lea.vmem %s7, 1
        %v1132 = vld [vmem:[%s1131] sm:$0x1]
        %v1134 = vlaneseq
        %v1135 = vshrl.u32 %v1134, 7
        %v1136 = vsub.s32 0, %v1135
        %v1137 = vrot.slane %v1132, %v1136
        %v1139 = vadd.f32 %v1109, %v1137
        %v1140 = vadd.f32 %v1112, %v1137
        %v1141 = vadd.f32 %v1115, %v1137
        %v1142 = vadd.f32 %v1118, %v1137
        %v1143 = vadd.f32 %v1121, %v1137
        %v1144 = vadd.f32 %v1124, %v1137
        %v1145 = vadd.f32 %v1127, %v1137
        %v1146 = vadd.f32 %v1130, %v1137
        %v1147 = vsel %vm727, %v1139, -inf
        %v1148 = vsel %vm727, %v1140, -inf
        %v1149 = vsel %vm727, %v1141, -inf
        %v1150 = vsel %vm727, %v1142, -inf
        %v1151 = vsel %vm727, %v1143, -inf
        %v1152 = vmax.f32 %v1147, %v1151
        %v1153 = vsel %vm727, %v1144, -inf
        %v1154 = vmax.f32 %v1148, %v1153
        %v1155 = vsel %vm727, %v1145, -inf
        %v1156 = vmax.f32 %v1149, %v1155
        %v1157 = vsel %vm727, %v1146, -inf
        %v1158 = vmax.f32 %v1150, %v1157
        %v1159 = vmax.f32 %v1152, %v1154
        %v1160 = vmax.f32 %v1156, %v1158
        %v1161 = vmax.f32 %v1159, %v1160
        %v1162 = vrot.slane %v1161, 4
        %v1163 = vmax.f32 %v1161, %v1162
        %v1164 = vrot.slane %v1163, 2
        %v1165 = vmax.f32 %v1163, %v1164
        %v1166 = vrot.slane %v1165, 1
        %v1167 = vmax.f32 %v1165, %v1166
        %v1168 = vsub.f32 %v1139, %v1167
        %v1169 = vsub.f32 %v1140, %v1167
        %v1170 = vsub.f32 %v1141, %v1167
        %v1171 = vsub.f32 %v1142, %v1167
        %v1172 = vsub.f32 %v1143, %v1167
        %v1173 = vsub.f32 %v1144, %v1167
        %v1174 = vsub.f32 %v1145, %v1167
        %v1175 = vsub.f32 %v1146, %v1167
        %v1176 = vmul.f32 %v1168, 1.442695
        %v1177 = vpow.pop %v1176
        %v1178 = vmul.f32 %v1169, 1.442695
        %v1179 = vpow.pop %v1178
        %v1180 = vmul.f32 %v1170, 1.442695
        %v1181 = vpow.pop %v1180
        %v1182 = vmul.f32 %v1171, 1.442695
        %v1183 = vpow.pop %v1182
        %v1184 = vmul.f32 %v1172, 1.442695
        %v1185 = vpow.pop %v1184
        %v1186 = vmul.f32 %v1173, 1.442695
        %v1187 = vpow.pop %v1186
        %v1188 = vmul.f32 %v1174, 1.442695
        %v1189 = vpow.pop %v1188
        %v1190 = vmul.f32 %v1175, 1.442695
        %v1191 = vpow.pop %v1190
        %v1192 = vsel %vm727, %v1177, 0.0
        %v1193 = vsel %vm727, %v1179, 0.0
        %v1194 = vadd.f32 %v1192, %v1193
        %v1195 = vsel %vm727, %v1181, 0.0
        %v1196 = vadd.f32 %v1194, %v1195
        %v1197 = vsel %vm727, %v1183, 0.0
        %v1198 = vadd.f32 %v1196, %v1197
        %v1199 = vsel %vm727, %v1185, 0.0
        %v1200 = vadd.f32 %v1198, %v1199
        %v1201 = vsel %vm727, %v1187, 0.0
        %v1202 = vadd.f32 %v1200, %v1201
        %v1203 = vsel %vm727, %v1189, 0.0
        %v1204 = vadd.f32 %v1202, %v1203
        %v1205 = vsel %vm727, %v1191, 0.0
        %v1206 = vadd.f32 %v1204, %v1205
        %v1207 = vrot.slane %v1206, 4
        %v1208 = vadd.f32 %v1206, %v1207
        %v1209 = vrot.slane %v1208, 2
        %v1210 = vadd.f32 %v1208, %v1209
        %v1211 = vrot.slane %v1210, 1
        %v1212 = vadd.f32 %v1210, %v1211
        %v1213 = vrcp.pop %v1212
        %v1214 = vmul.f32 %v1177, %v1213
        %v1215 = vmul.f32 %v1179, %v1213
        %v1216 = vmul.f32 %v1181, %v1213
        %v1217 = vmul.f32 %v1183, %v1213
        %v1218 = vmul.f32 %v1185, %v1213
        %v1219 = vmul.f32 %v1187, %v1213
        %v1220 = vmul.f32 %v1189, %v1213
        %v1221 = vmul.f32 %v1191, %v1213
        %1223 = vset.pattern.permute.xlu0 0
        %1224 = vperm.xlu0 %1223, %v1214
        %v1225 = vpop.permute.xlu0 %1224
        %1228 = vset.pattern.permute.xlu0 0
        %1229 = vperm.xlu0 %1228, %v1215
        %v1230 = vpop.permute.xlu0 %1229
        %1233 = vset.pattern.permute.xlu0 0
        %1234 = vperm.xlu0 %1233, %v1216
        %v1235 = vpop.permute.xlu0 %1234
        %1238 = vset.pattern.permute.xlu0 0
        %1239 = vperm.xlu0 %1238, %v1217
        %v1240 = vpop.permute.xlu0 %1239
        %1243 = vset.pattern.permute.xlu0 0
        %1244 = vperm.xlu0 %1243, %v1218
        %v1245 = vpop.permute.xlu0 %1244
        %1248 = vset.pattern.permute.xlu0 0
        %1249 = vperm.xlu0 %1248, %v1219
        %v1250 = vpop.permute.xlu0 %1249
        %1253 = vset.pattern.permute.xlu0 0
        %1254 = vperm.xlu0 %1253, %v1220
        %v1255 = vpop.permute.xlu0 %1254
        %1258 = vset.pattern.permute.xlu0 0
        %1259 = vperm.xlu0 %1258, %v1221
        %v1260 = vpop.permute.xlu0 %1259
        %v1262 = vmul.f32 %v1225, %v425
        %v1263 = vmul.f32 %v1230, %v426
        %v1264 = vmul.f32 %v1235, %v427
        %v1265 = vmul.f32 %v1240, %v428
        %v1266 = vmul.f32 %v1245, %v429
        %v1267 = vmul.f32 %v1250, %v430
        %v1268 = vmul.f32 %v1255, %v431
        %v1269 = vmul.f32 %v1260, %v432
        %v1270 = vsel %vm445, %v1262, 0.0
        %v1271 = vsel %vm445, %v1263, 0.0
        %v1272 = vadd.f32 %v1270, %v1271
        %v1273 = vsel %vm445, %v1264, 0.0
        %v1274 = vadd.f32 %v1272, %v1273
        %v1275 = vsel %vm445, %v1265, 0.0
        %v1276 = vadd.f32 %v1274, %v1275
        %v1277 = vsel %vm445, %v1266, 0.0
        %v1278 = vadd.f32 %v1276, %v1277
        %v1279 = vsel %vm445, %v1267, 0.0
        %v1280 = vadd.f32 %v1278, %v1279
        %v1281 = vsel %vm445, %v1268, 0.0
        %v1282 = vadd.f32 %v1280, %v1281
        %v1283 = vsel %vm445, %v1269, 0.0
        %v1284 = vadd.f32 %v1282, %v1283
        %v1285 = vrot.slane %v1284, 4
        %v1286 = vadd.f32 %v1284, %v1285
        %v1287 = vrot.slane %v1286, 2
        %v1288 = vadd.f32 %v1286, %v1287
        %v1289 = vrot.slane %v1288, 1
        %v1290 = vadd.f32 %v1288, %v1289
        %v1291 = vadd.f32 %v872, %v1290
        %v1292 = vld [vmem:[%s8] sm:$0xff]
        %v1293 = vld [vmem:[%s8 + $0x8] sm:$0xff]
        %v1294 = vld [vmem:[%s8 + $0x10] sm:$0xff]
        %v1295 = vld [vmem:[%s8 + $0x18] sm:$0xff]
        %v1296 = vld [vmem:[%s9] sm:$0x1]
        %v1298 = vsel %vm445, %v1291, 0
        %1300 = vmatprep.subr.mxu0 0.0
        %1301 = vmatpush1.msra.mxu0 0.0
        %1302 = vmatprep.subr.mxu0 0.0
        %1303 = vmatpush1.msra.mxu0 0.0
        %1304 = vmatprep.subr.mxu0 0.0
        %1305 = vmatpush1.msra.mxu0 0.0
        %1306 = vmatprep.subr.mxu0 0.0
        %1307 = vmatpush1.msra.mxu0 0.0
        %1308 = vmatprep.subr.mxu0 0.0
        %1309 = vmatpush1.msra.mxu0 0.0
        %1310 = vmatprep.subr.mxu0 0.0
        %1311 = vmatpush1.msra.mxu0 0.0
        %1312 = vmatprep.subr.mxu0 0.0
        %1313 = vmatpush1.msra.mxu0 0.0
        %1314 = vmatprep.subr.mxu0 0.0
        %1315 = vmatpush1.msra.mxu0 0.0
        %1316 = vmatprep.subr.mxu0 0.0
        %1317 = vmatpush1.msra.mxu0 0.0
        %1318 = vmatprep.subr.mxu0 0.0
        %1319 = vmatpush1.msra.mxu0 0.0
        %1320 = vmatprep.subr.mxu0 0.0
        %1321 = vmatpush1.msra.mxu0 0.0
        %1322 = vmatprep.subr.mxu0 0.0
        %1323 = vmatpush1.msra.mxu0 0.0
        %1324 = vmatprep.subr.mxu0 0.0
        %1325 = vmatpush1.msra.mxu0 %v1295
        %1326 = vmatprep.subr.mxu0 0.0
        %1327 = vmatpush1.msra.mxu0 %v1294
        %1328 = vmatprep.subr.mxu0 0.0
        %1329 = vmatpush1.msra.mxu0 %v1293
        %1330 = vmatprep.subr.mxu0 0.0
        %1331 = vmatpush1.msra.mxu0 %v1292
        %1332 = vmatprep.subr.mxu0 0.0
        %1333 = vmatpush2.msra.mxu0 0.0
        %1334 = vmatprep.subr.mxu0 0.0
        %1335 = vmatpush2.msra.mxu0 0.0
        %1336 = vmatprep.subr.mxu0 0.0
        %1337 = vmatpush2.msra.mxu0 0.0
        %1338 = vmatprep.subr.mxu0 0.0
        %1339 = vmatpush2.msra.mxu0 0.0
        %1340 = vmatprep.subr.mxu0 0.0
        %1341 = vmatpush2.msra.mxu0 0.0
        %1342 = vmatprep.subr.mxu0 0.0
        %1343 = vmatpush2.msra.mxu0 0.0
        %1344 = vmatprep.subr.mxu0 0.0
        %1345 = vmatpush2.msra.mxu0 0.0
        %1346 = vmatprep.subr.mxu0 0.0
        %1347 = vmatpush2.msra.mxu0 0.0
        %1348 = vmatprep.subr.mxu0 0.0
        %1349 = vmatpush2.msra.mxu0 0.0
        %1350 = vmatprep.subr.mxu0 0.0
        %1351 = vmatpush2.msra.mxu0 0.0
        %1352 = vmatprep.subr.mxu0 0.0
        %1353 = vmatpush2.msra.mxu0 0.0
        %1354 = vmatprep.subr.mxu0 0.0
        %1355 = vmatpush2.msra.mxu0 0.0
        %1356 = vmatprep.subr.mxu0 0.0
        %1357 = vmatpush2.msra.mxu0 0.0
        %1358 = vmatprep.subr.mxu0 0.0
        %1359 = vmatpush2.msra.mxu0 0.0
        %1360 = vmatprep.subr.mxu0 0.0
        %1361 = vmatpush2.msra.mxu0 0.0
        %1362 = vmatprep.subr.mxu0 0.0
        %1363 = vmatpush2.msra.mxu0 0.0
        %1364 = vmatprep.mubr.f32.mxu0 0.0
        %1365 = vmatmul.mubr.f32.gmra.mxu0 %v1298
        %v1366 = vpop.f32.mrf.mxu0
        %v1367 = vadd.f32 %v1296, %v1366
        %v1368 = vpop.f32.mrf.mxu0
        %1369 = vdwg.mxu0
        %v1370 = vmax.f32 %v1367, 0.0
        %v1371 = vld [vmem:[%s10] sm:$0xff]
        %v1372 = vld [vmem:[%s10 + $0x8] sm:$0xff]
        %v1373 = vld [vmem:[%s10 + $0x10] sm:$0xff]
        %v1374 = vld [vmem:[%s10 + $0x18] sm:$0xff]
        %v1375 = vld [vmem:[%s10 + $0x20] sm:$0xff]
        %v1376 = vld [vmem:[%s10 + $0x28] sm:$0xff]
        %v1377 = vld [vmem:[%s10 + $0x30] sm:$0xff]
        %v1378 = vld [vmem:[%s10 + $0x38] sm:$0xff]
        %v1379 = vld [vmem:[%s11] sm:$0x1]
        %vm1380 = vcmask 523264
        %v1382 = vsel %vm1380, %v1370, 0
        %1384 = vmatprep.subr.mxu0 0.0
        %1385 = vmatpush1.msra.mxu0 0.0
        %1386 = vmatprep.subr.mxu0 0.0
        %1387 = vmatpush1.msra.mxu0 0.0
        %1388 = vmatprep.subr.mxu0 0.0
        %1389 = vmatpush1.msra.mxu0 0.0
        %1390 = vmatprep.subr.mxu0 0.0
        %1391 = vmatpush1.msra.mxu0 0.0
        %1392 = vmatprep.subr.mxu0 0.0
        %1393 = vmatpush1.msra.mxu0 0.0
        %1394 = vmatprep.subr.mxu0 0.0
        %1395 = vmatpush1.msra.mxu0 0.0
        %1396 = vmatprep.subr.mxu0 0.0
        %1397 = vmatpush1.msra.mxu0 0.0
        %1398 = vmatprep.subr.mxu0 0.0
        %1399 = vmatpush1.msra.mxu0 0.0
        %1400 = vmatprep.subr.mxu0 0.0
        %1401 = vmatpush1.msra.mxu0 %v1378
        %1402 = vmatprep.subr.mxu0 0.0
        %1403 = vmatpush1.msra.mxu0 %v1377
        %1404 = vmatprep.subr.mxu0 0.0
        %1405 = vmatpush1.msra.mxu0 %v1376
        %1406 = vmatprep.subr.mxu0 0.0
        %1407 = vmatpush1.msra.mxu0 %v1375
        %1408 = vmatprep.subr.mxu0 0.0
        %1409 = vmatpush1.msra.mxu0 %v1374
        %1410 = vmatprep.subr.mxu0 0.0
        %1411 = vmatpush1.msra.mxu0 %v1373
        %1412 = vmatprep.subr.mxu0 0.0
        %1413 = vmatpush1.msra.mxu0 %v1372
        %1414 = vmatprep.subr.mxu0 0.0
        %1415 = vmatpush1.msra.mxu0 %v1371
        %1416 = vmatprep.subr.mxu0 0.0
        %1417 = vmatpush2.msra.mxu0 0.0
        %1418 = vmatprep.subr.mxu0 0.0
        %1419 = vmatpush2.msra.mxu0 0.0
        %1420 = vmatprep.subr.mxu0 0.0
        %1421 = vmatpush2.msra.mxu0 0.0
        %1422 = vmatprep.subr.mxu0 0.0
        %1423 = vmatpush2.msra.mxu0 0.0
        %1424 = vmatprep.subr.mxu0 0.0
        %1425 = vmatpush2.msra.mxu0 0.0
        %1426 = vmatprep.subr.mxu0 0.0
        %1427 = vmatpush2.msra.mxu0 0.0
        %1428 = vmatprep.subr.mxu0 0.0
        %1429 = vmatpush2.msra.mxu0 0.0
        %1430 = vmatprep.subr.mxu0 0.0
        %1431 = vmatpush2.msra.mxu0 0.0
        %1432 = vmatprep.subr.mxu0 0.0
        %1433 = vmatpush2.msra.mxu0 0.0
        %1434 = vmatprep.subr.mxu0 0.0
        %1435 = vmatpush2.msra.mxu0 0.0
        %1436 = vmatprep.subr.mxu0 0.0
        %1437 = vmatpush2.msra.mxu0 0.0
        %1438 = vmatprep.subr.mxu0 0.0
        %1439 = vmatpush2.msra.mxu0 0.0
        %1440 = vmatprep.subr.mxu0 0.0
        %1441 = vmatpush2.msra.mxu0 0.0
        %1442 = vmatprep.subr.mxu0 0.0
        %1443 = vmatpush2.msra.mxu0 0.0
        %1444 = vmatprep.subr.mxu0 0.0
        %1445 = vmatpush2.msra.mxu0 0.0
        %1446 = vmatprep.subr.mxu0 0.0
        %1447 = vmatpush2.msra.mxu0 0.0
        %1448 = vmatprep.mubr.f32.mxu0 0.0
        %1449 = vmatmul.mubr.f32.gmra.mxu0 %v1382
        %v1450 = vpop.f32.mrf.mxu0
        %v1451 = vadd.f32 %v1379, %v1450
        %v1452 = vpop.f32.mrf.mxu0
        %1453 = vdwg.mxu0
        %vm1454 = vcmask 73728
        %1455 = vst.msk [vmem:[%s416] sm:$0x1] %vm1454, %v1451
        %s1456 = sand.u32 %s296, 1
        %s1457 = scalar_lea.sflag [#allocation3], %s1456
        %s1458 = sand.u32 %s296, 1
        %s1459 = scalar_lea.vmem [#allocation2], %s1458
        // Predicated region
        $region69: #{forward.5} parent=67 // pred_check
          %p1460 = pneg %p306
        $region70: #{forward.5} parent=67 // pred_check_branch
          %1462 = sbr.rel (%p1460) target = $region72
        $region71: #{forward.5} parent=67 // pred_region
          %s1464 = ssub.s32 16, 16
          %1465 = vsyncadd %s1457, %s1464
          %s1466 = smul.addr %s26, 16
          %s1467 = scalar_lea.hbm %s12, %s1466
          %s1469 = sshll.u32 %s1459, 4
          %s1470 = int_to_ptr.vmem [resolvable:$true] %s1469
          %1472 = dma.vmem_to_hbm [thread:$0]  %s1470, 16, %s1467, %s1457
        $region72: #{forward.5} parent=67 // pred_fallthru
          _
      $region68: #{forward.5} parent=5 // pred_fallthru
        _
      %p1473 = scmp.le.s32.totalorder 2, %s21
      // Predicated region
      $region73: #{forward.5} parent=5 // pred_check
        %p1474 = pneg %p1473
      $region74: #{forward.5} parent=5 // pred_check_branch
        %1476 = sbr.rel (%p1474) target = $region76
      $region75: #{forward.5} parent=5 // pred_region
        %s1477 = ssub.s32 %s21, 2
        // Predicated region
        $region77: #{forward.5} parent=75 // pred_check
          %p1478 = pneg %p312
        $region78: #{forward.5} parent=75 // pred_check_branch
          %1480 = sbr.rel (%p1478) target = $region80
        $region79: #{forward.5} parent=75 // pred_region
          %s1481 = sand.u32 %s297, 1
          %s1482 = scalar_lea.sflag [#allocation3], %s1481
          %s1483 = sand.u32 %s297, 1
          %s1484 = scalar_lea.vmem [#allocation2], %s1483
          %1485 = dma.done %s1482, 16
        $region80: #{forward.5} parent=75 // pred_fallthru
          _
      $region76: #{forward.5} parent=5 // pred_fallthru
        _
    $region6: #{forward.5} parent=1 // loop_footer
      %s25 = sadd.s32 1, %s21
    $region7: #{forward.5} parent=1 // loop_footer_branch
      %20 = sbr.rel target = $region3
    $region8: #{forward.5} parent=1 // loop_exit
      _
    %1486 = vsyncpa [#allocation3], 1
    %s1487 = scalar_lea.sflag [#allocation3], 1
    %1488 = vsyncpa %s1487, 1

// kernel: forward.4
$region0: #{forward.4}
  #allocation0 [shape = 'u32[]', space=smem, size = 0x4, offset = 0x4, fixed_abs, tag = 'smem constant byte address 0x4 - core index']
  #allocation1 [shape = 'u32[144,128]{1,0:T(1,128)}', space=vmem, size = 0x12000, scoped, tag = 'internal scratch']
  %s0 = inlined_call_operand.vmem [shape: f32[2,64,8], index: 0, kind: input, shape index: {}]
  %s1 = inlined_call_operand.hbm [shape: f32[9,64,1], index: 1, kind: input, shape index: {}]
  %s2 = inlined_call_operand.vmem [shape: f32[3,3,8,16], index: 2, kind: input, shape index: {}]
  %s3 = inlined_call_operand.vmem [shape: f32[1,16], index: 3, kind: input, shape index: {}]
  %s4 = inlined_call_operand.vmem [shape: f32[3,3,16,16], index: 4, kind: input, shape index: {}]
  %s5 = inlined_call_operand.vmem [shape: f32[1,16], index: 5, kind: input, shape index: {}]
  %s6 = inlined_call_operand.vmem [shape: f32[16,32], index: 6, kind: input, shape index: {}]
  %s7 = inlined_call_operand.vmem [shape: f32[1,32], index: 7, kind: input, shape index: {}]
  %s8 = inlined_call_operand.vmem [shape: f32[2,64,32], index: 8, kind: output, shape index: {}]
  %s9 = sld [smem:[#allocation0]]
  $region69: #{forward.4} parent=0
    _
  %s11 = ssub.s32 1, %s9
  %s12 = scalar_select 0, %s11, %s9
  $region1: #{forward.4} parent=0
    #allocation2 [shape = 'u8[294912]{0}', space=vmem, size = 0x48000, scoped, tag = 'input window, operand 1, single buffered']
    #allocation3 [shape = 's32[2]{0}', space=sflag, size = 0x8, scoped, tag = 'scoped memory for forward.4']
    %13 = vsyncpa [#allocation3], 0
    loop: start=0, step=1, limit=4
    $region2: #{forward.4} parent=1 // loop_pre_header
      _
    $region3: #{forward.4} parent=1 // loop_header
      %s15 = sphi 0, %s19
      %p16 = scmp.ge.s32.totalorder %s15, 4
      %s25 = sphi 0, %s27
      %s28 = sphi 0, %s25
      %s29 = sphi 0, %s28
      %s45 = sphi 0, %s29
      %s49 = sphi 0, %s49
      %s51 = sphi 0, %s49
      %s52 = sphi 0, %s51
      %s66 = sphi 0, %s52
      %s70 = sphi 0, %s70
      %s72 = sphi 0, %s70
      %s73 = sphi 0, %s72
      %s87 = sphi 0, %s73
      %s91 = sphi 0, %s91
      %s93 = sphi 0, %s91
      %s94 = sphi 0, %s93
      %s108 = sphi 0, %s94
      %s112 = sphi 0, %s112
      %s114 = sphi 0, %s112
      %s115 = sphi 0, %s114
      %s129 = sphi 0, %s115
      %s133 = sphi 0, %s133
      %s135 = sphi 0, %s133
      %s136 = sphi 0, %s135
      %s150 = sphi 0, %s136
      %s154 = sphi 0, %s154
      %s156 = sphi 0, %s154
      %s157 = sphi 0, %s156
      %s171 = sphi 0, %s157
      %s175 = sphi 0, %s175
      %s177 = sphi 0, %s175
      %s178 = sphi 0, %s177
      %s192 = sphi 0, %s178
      %s198 = sphi 0, %s200
      %s201 = sphi 0, %s198
      %s202 = sphi 0, %s201
      %s218 = sphi 0, %s202
    $region4: #{forward.4} parent=1 // loop_header_branch
      %18 = sbr.rel (%p16) target = $region8
    $region5: #{forward.4} parent=1 // loop_body
      %s20 = ssub.s32 %s15, 1
      %s21 = ssub.s32 %s15, 2
      %s22 = sadd.s32 %s15, 1
      %s23 = ssub.s32 %s15, %s22
      %p24 = scmp.eq.s32.totalorder %s23, 0
      %s26 = sadd.s32 %s25, 1
      %s27 = scalar_select %p24, %s25, %s26
      %p30 = pneg %p24
      %p31 = scmp.eq.s32.totalorder %s15, 1
      %p32 = por %p30, %p31
      %p33 = scmp.ne.s32.totalorder %s25, %s28
      %p34 = scmp.eq.s32.totalorder %s15, 0
      %p35 = por %p33, %p34
      %p36 = scmp.ne.s32.totalorder %s25, %s28
      %p37 = scmp.eq.s32.totalorder %s20, 1
      %p38 = por %p36, %p37
      %p39 = scmp.ne.s32.totalorder %s28, %s29
      %p40 = scmp.eq.s32.totalorder %s20, 0
      %p41 = por %p39, %p40
      %p42 = scmp.ne.s32.totalorder %s28, %s29
      %p43 = scmp.eq.s32.totalorder %s21, 1
      %p44 = por %p42, %p43
      %p46 = scmp.ne.s32.totalorder %s29, %s45
      %p47 = scmp.eq.s32.totalorder %s21, 0
      %p48 = por %p46, %p47
      %s50 = sadd.s32 %s49, 1
      %p53 = scmp.eq.s32.totalorder %s15, 1
      %p54 = scmp.ne.s32.totalorder %s49, %s51
      %p55 = scmp.eq.s32.totalorder %s15, 0
      %p56 = por %p54, %p55
      %p57 = scmp.ne.s32.totalorder %s49, %s51
      %p58 = scmp.eq.s32.totalorder %s20, 1
      %p59 = por %p57, %p58
      %p60 = scmp.ne.s32.totalorder %s51, %s52
      %p61 = scmp.eq.s32.totalorder %s20, 0
      %p62 = por %p60, %p61
      %p63 = scmp.ne.s32.totalorder %s51, %s52
      %p64 = scmp.eq.s32.totalorder %s21, 1
      %p65 = por %p63, %p64
      %p67 = scmp.ne.s32.totalorder %s52, %s66
      %p68 = scmp.eq.s32.totalorder %s21, 0
      %p69 = por %p67, %p68
      %s71 = sadd.s32 %s70, 1
      %p74 = scmp.eq.s32.totalorder %s15, 1
      %p75 = scmp.ne.s32.totalorder %s70, %s72
      %p76 = scmp.eq.s32.totalorder %s15, 0
      %p77 = por %p75, %p76
      %p78 = scmp.ne.s32.totalorder %s70, %s72
      %p79 = scmp.eq.s32.totalorder %s20, 1
      %p80 = por %p78, %p79
      %p81 = scmp.ne.s32.totalorder %s72, %s73
      %p82 = scmp.eq.s32.totalorder %s20, 0
      %p83 = por %p81, %p82
      %p84 = scmp.ne.s32.totalorder %s72, %s73
      %p85 = scmp.eq.s32.totalorder %s21, 1
      %p86 = por %p84, %p85
      %p88 = scmp.ne.s32.totalorder %s73, %s87
      %p89 = scmp.eq.s32.totalorder %s21, 0
      %p90 = por %p88, %p89
      %s92 = sadd.s32 %s91, 1
      %p95 = scmp.eq.s32.totalorder %s15, 1
      %p96 = scmp.ne.s32.totalorder %s91, %s93
      %p97 = scmp.eq.s32.totalorder %s15, 0
      %p98 = por %p96, %p97
      %p99 = scmp.ne.s32.totalorder %s91, %s93
      %p100 = scmp.eq.s32.totalorder %s20, 1
      %p101 = por %p99, %p100
      %p102 = scmp.ne.s32.totalorder %s93, %s94
      %p103 = scmp.eq.s32.totalorder %s20, 0
      %p104 = por %p102, %p103
      %p105 = scmp.ne.s32.totalorder %s93, %s94
      %p106 = scmp.eq.s32.totalorder %s21, 1
      %p107 = por %p105, %p106
      %p109 = scmp.ne.s32.totalorder %s94, %s108
      %p110 = scmp.eq.s32.totalorder %s21, 0
      %p111 = por %p109, %p110
      %s113 = sadd.s32 %s112, 1
      %p116 = scmp.eq.s32.totalorder %s15, 1
      %p117 = scmp.ne.s32.totalorder %s112, %s114
      %p118 = scmp.eq.s32.totalorder %s15, 0
      %p119 = por %p117, %p118
      %p120 = scmp.ne.s32.totalorder %s112, %s114
      %p121 = scmp.eq.s32.totalorder %s20, 1
      %p122 = por %p120, %p121
      %p123 = scmp.ne.s32.totalorder %s114, %s115
      %p124 = scmp.eq.s32.totalorder %s20, 0
      %p125 = por %p123, %p124
      %p126 = scmp.ne.s32.totalorder %s114, %s115
      %p127 = scmp.eq.s32.totalorder %s21, 1
      %p128 = por %p126, %p127
      %p130 = scmp.ne.s32.totalorder %s115, %s129
      %p131 = scmp.eq.s32.totalorder %s21, 0
      %p132 = por %p130, %p131
      %s134 = sadd.s32 %s133, 1
      %p137 = scmp.eq.s32.totalorder %s15, 1
      %p138 = scmp.ne.s32.totalorder %s133, %s135
      %p139 = scmp.eq.s32.totalorder %s15, 0
      %p140 = por %p138, %p139
      %p141 = scmp.ne.s32.totalorder %s133, %s135
      %p142 = scmp.eq.s32.totalorder %s20, 1
      %p143 = por %p141, %p142
      %p144 = scmp.ne.s32.totalorder %s135, %s136
      %p145 = scmp.eq.s32.totalorder %s20, 0
      %p146 = por %p144, %p145
      %p147 = scmp.ne.s32.totalorder %s135, %s136
      %p148 = scmp.eq.s32.totalorder %s21, 1
      %p149 = por %p147, %p148
      %p151 = scmp.ne.s32.totalorder %s136, %s150
      %p152 = scmp.eq.s32.totalorder %s21, 0
      %p153 = por %p151, %p152
      %s155 = sadd.s32 %s154, 1
      %p158 = scmp.eq.s32.totalorder %s15, 1
      %p159 = scmp.ne.s32.totalorder %s154, %s156
      %p160 = scmp.eq.s32.totalorder %s15, 0
      %p161 = por %p159, %p160
      %p162 = scmp.ne.s32.totalorder %s154, %s156
      %p163 = scmp.eq.s32.totalorder %s20, 1
      %p164 = por %p162, %p163
      %p165 = scmp.ne.s32.totalorder %s156, %s157
      %p166 = scmp.eq.s32.totalorder %s20, 0
      %p167 = por %p165, %p166
      %p168 = scmp.ne.s32.totalorder %s156, %s157
      %p169 = scmp.eq.s32.totalorder %s21, 1
      %p170 = por %p168, %p169
      %p172 = scmp.ne.s32.totalorder %s157, %s171
      %p173 = scmp.eq.s32.totalorder %s21, 0
      %p174 = por %p172, %p173
      %s176 = sadd.s32 %s175, 1
      %p179 = scmp.eq.s32.totalorder %s15, 1
      %p180 = scmp.ne.s32.totalorder %s175, %s177
      %p181 = scmp.eq.s32.totalorder %s15, 0
      %p182 = por %p180, %p181
      %p183 = scmp.ne.s32.totalorder %s175, %s177
      %p184 = scmp.eq.s32.totalorder %s20, 1
      %p185 = por %p183, %p184
      %p186 = scmp.ne.s32.totalorder %s177, %s178
      %p187 = scmp.eq.s32.totalorder %s20, 0
      %p188 = por %p186, %p187
      %p189 = scmp.ne.s32.totalorder %s177, %s178
      %p190 = scmp.eq.s32.totalorder %s21, 1
      %p191 = por %p189, %p190
      %p193 = scmp.ne.s32.totalorder %s178, %s192
      %p194 = scmp.eq.s32.totalorder %s21, 0
      %p195 = por %p193, %p194
      %s196 = ssub.s32 %s15, %s22
      %p197 = scmp.eq.s32.totalorder %s196, 0
      %s199 = sadd.s32 %s198, 1
      %s200 = scalar_select %p197, %s198, %s199
      %p203 = pneg %p197
      %p204 = scmp.eq.s32.totalorder %s15, 1
      %p205 = por %p203, %p204
      %p206 = scmp.ne.s32.totalorder %s198, %s201
      %p207 = scmp.eq.s32.totalorder %s15, 0
      %p208 = por %p206, %p207
      %p209 = scmp.ne.s32.totalorder %s198, %s201
      %p210 = scmp.eq.s32.totalorder %s20, 1
      %p211 = por %p209, %p210
      %p212 = scmp.ne.s32.totalorder %s201, %s202
      %p213 = scmp.eq.s32.totalorder %s20, 0
      %p214 = por %p212, %p213
      %p215 = scmp.ne.s32.totalorder %s201, %s202
      %p216 = scmp.eq.s32.totalorder %s21, 1
      %p217 = por %p215, %p216
      %p219 = scmp.ne.s32.totalorder %s202, %s218
      %p220 = scmp.eq.s32.totalorder %s21, 0
      %p221 = por %p219, %p220
      %p222 = scmp.le.s32.totalorder 1, %s15
      %p223 = scmp.lt.s32.totalorder %s15, 3
      %p224 = pnand %p222, %p223
      %p225 = pneg %p224
      // Predicated region
      $region9: #{forward.4} parent=5 // pred_check
        _
      $region10: #{forward.4} parent=5 // pred_check_branch
        %227 = sbr.rel (%p224) target = $region12
      $region11: #{forward.4} parent=5 // pred_region
        %s228 = ssub.s32 %s15, 1
        // Predicated region
        $region13: #{forward.4} parent=11 // pred_check
          %p229 = pneg %p62
        $region14: #{forward.4} parent=11 // pred_check_branch
          %231 = sbr.rel (%p229) target = $region16
        $region15: #{forward.4} parent=11 // pred_region
          %s233 = ssub.s32 9216, 9216
          %234 = vsyncadd [#allocation3], %s233
          %s235 = sshll.u32 [#allocation2], 4
          %s236 = int_to_ptr.vmem [resolvable:$true] %s235
          %241 = dma.hbm_to_vmem [thread:$0]  %s1, 9216, %s236, [#allocation3], 128, 128, 8
        $region16: #{forward.4} parent=11 // pred_fallthru
          _
        // Predicated region
        $region17: #{forward.4} parent=11 // pred_check
          %p242 = pneg %p83
        $region18: #{forward.4} parent=11 // pred_check_branch
          %244 = sbr.rel (%p242) target = $region20
        $region19: #{forward.4} parent=11 // pred_region
          _
        $region20: #{forward.4} parent=11 // pred_fallthru
          _
        // Predicated region
        $region21: #{forward.4} parent=11 // pred_check
          %p245 = pneg %p104
        $region22: #{forward.4} parent=11 // pred_check_branch
          %247 = sbr.rel (%p245) target = $region24
        $region23: #{forward.4} parent=11 // pred_region
          _
        $region24: #{forward.4} parent=11 // pred_fallthru
          _
        // Predicated region
        $region25: #{forward.4} parent=11 // pred_check
          %p248 = pneg %p125
        $region26: #{forward.4} parent=11 // pred_check_branch
          %250 = sbr.rel (%p248) target = $region28
        $region27: #{forward.4} parent=11 // pred_region
          _
        $region28: #{forward.4} parent=11 // pred_fallthru
          _
        // Predicated region
        $region29: #{forward.4} parent=11 // pred_check
          %p251 = pneg %p146
        $region30: #{forward.4} parent=11 // pred_check_branch
          %253 = sbr.rel (%p251) target = $region32
        $region31: #{forward.4} parent=11 // pred_region
          _
        $region32: #{forward.4} parent=11 // pred_fallthru
          _
        // Predicated region
        $region33: #{forward.4} parent=11 // pred_check
          %p254 = pneg %p167
        $region34: #{forward.4} parent=11 // pred_check_branch
          %256 = sbr.rel (%p254) target = $region36
        $region35: #{forward.4} parent=11 // pred_region
          _
        $region36: #{forward.4} parent=11 // pred_fallthru
          _
        // Predicated region
        $region37: #{forward.4} parent=11 // pred_check
          %p257 = pneg %p188
        $region38: #{forward.4} parent=11 // pred_check_branch
          %259 = sbr.rel (%p257) target = $region40
        $region39: #{forward.4} parent=11 // pred_region
          _
        $region40: #{forward.4} parent=11 // pred_fallthru
          _
      $region12: #{forward.4} parent=5 // pred_fallthru
        _
      %p260 = scmp.lt.s32.totalorder %s15, 2
      // Predicated region
      $region41: #{forward.4} parent=5 // pred_check
        %p261 = pneg %p260
      $region42: #{forward.4} parent=5 // pred_check_branch
        %263 = sbr.rel (%p261) target = $region44
      $region43: #{forward.4} parent=5 // pred_region
        // Predicated region
        $region45: #{forward.4} parent=43 // pred_check
          %p264 = pneg %p35
        $region46: #{forward.4} parent=43 // pred_check_branch
          %266 = sbr.rel (%p264) target = $region48
        $region47: #{forward.4} parent=43 // pred_region
          %p267 = scmp.lt.s32.totalorder %s15, 1
          %s268 = scalar_select %p267, %s15, 1
          %s269 = smul.addr %s268, 8
          %s270 = smul.addr %s269, 8
          %s271 = scalar_lea.vmem %s0, %s270
        $region48: #{forward.4} parent=43 // pred_fallthru
          _
      $region44: #{forward.4} parent=5 // pred_fallthru
        _
      %p272 = scmp.le.s32.totalorder 1, %s15
      %p273 = scmp.lt.s32.totalorder %s15, 3
      %p274 = pnand %p272, %p273
      %p275 = pneg %p274
      // Predicated region
      $region49: #{forward.4} parent=5 // pred_check
        _
      $region50: #{forward.4} parent=5 // pred_check_branch
        %277 = sbr.rel (%p274) target = $region52
      $region51: #{forward.4} parent=5 // pred_region
        %s278 = ssub.s32 %s15, 1
        // Predicated region
        $region53: #{forward.4} parent=51 // pred_check
          %p279 = pneg %p62
        $region54: #{forward.4} parent=51 // pred_check_branch
          %281 = sbr.rel (%p279) target = $region56
        $region55: #{forward.4} parent=51 // pred_region
          %282 = dma.done [#allocation3], 9216
        $region56: #{forward.4} parent=51 // pred_fallthru
          _
        %p283 = scmp.lt.s32.totalorder %s20, 1
        %s284 = scalar_select %p283, %s20, 1
        %s285 = smul.addr %s284, 8
        %s286 = smul.addr %s285, 8
        %s287 = scalar_lea.vmem %s0, %s286
        %p288 = pneg %p41
        %p289 = pneg %p38
        %p290 = pneg %p62
        %p291 = pneg %p59
        %p292 = pneg %p83
        %p293 = pneg %p80
        %p294 = pneg %p104
        %p295 = pneg %p101
        %p296 = pneg %p125
        %p297 = pneg %p122
        %p298 = pneg %p146
        %p299 = pneg %p143
        %p300 = pneg %p167
        %p301 = pneg %p164
        %p302 = pneg %p188
        %p303 = pneg %p185
        %p304 = pneg %p214
        %p305 = pneg %p211
        %p306 = scmp.lt.s32.totalorder %s20, 1
        %s307 = scalar_select %p306, %s20, 1
        %s308 = smul.addr %s307, 8
        %s309 = smul.addr %s308, 8
        %s310 = scalar_lea.vmem %s8, %s309
        %p311 = scmp.lt.s32.totalorder %s20, 1
        %s312 = scalar_select %p311, %s20, 1
        %s313 = smul.addr %s312, 8
        %s314 = smul.addr %s313, 8
        %s315 = scalar_lea.vmem %s0, %s314
        %p316 = scmp.lt.s32.totalorder %s20, 1
        %s317 = scalar_select %p316, %s20, 1
        %s318 = smul.addr %s317, 8
        %s319 = smul.addr %s318, 8
        %s320 = scalar_lea.vmem %s8, %s319
        %v321 = vld [vmem:[%s315] sm:$0xff]
        %v322 = vld [vmem:[%s315 + $0x8] sm:$0xff]
        %v323 = vld [vmem:[%s315 + $0x10] sm:$0xff]
        %v324 = vld [vmem:[%s315 + $0x18] sm:$0xff]
        %v325 = vld [vmem:[%s315 + $0x20] sm:$0xff]
        %v326 = vld [vmem:[%s315 + $0x28] sm:$0xff]
        %v327 = vld [vmem:[%s315 + $0x30] sm:$0xff]
        %v328 = vld [vmem:[%s315 + $0x38] sm:$0xff]
        %v329 = vrot.slane %v321, 7
        %v330 = vrot.slane %v322, 7
        %v331 = vrot.slane %v323, 7
        %v332 = vrot.slane %v324, 7
        %v333 = vrot.slane %v325, 7
        %v334 = vrot.slane %v326, 7
        %v335 = vrot.slane %v327, 7
        %v336 = vrot.slane %v328, 7
        %v337 = vlaneseq
        %v338 = vshrl.u32 %v337, 7
        %vm339 = vcmp.lt.s32.totalorder %v338, 1
        %v340 = vsel %vm339, %v335, %v336
        %v341 = vsel %vm339, %v334, %v335
        %v342 = vsel %vm339, %v333, %v334
        %v343 = vsel %vm339, %v332, %v333
        %v344 = vsel %vm339, %v331, %v332
        %v345 = vsel %vm339, %v330, %v331
        %v346 = vsel %vm339, %v329, %v330
        %v347 = vsel %vm339, %v336, %v329
        %v348 = vld [vmem:[#allocation2] sm:$0xff]
        %v349 = vld [vmem:[#allocation2 + $0x8] sm:$0xff]
        %v350 = vld [vmem:[#allocation2 + $0x10] sm:$0xff]
        %v351 = vld [vmem:[#allocation2 + $0x18] sm:$0xff]
        %v352 = vld [vmem:[#allocation2 + $0x20] sm:$0xff]
        %v353 = vld [vmem:[#allocation2 + $0x28] sm:$0xff]
        %v354 = vld [vmem:[#allocation2 + $0x30] sm:$0xff]
        %v355 = vld [vmem:[#allocation2 + $0x38] sm:$0xff]
        %357 = vset.pattern.permute.xlu0 0
        %358 = vperm.xlu0 %357, %v348
        %v359 = vpop.permute.xlu0 %358
        %362 = vset.pattern.permute.xlu0 0
        %363 = vperm.xlu0 %362, %v349
        %v364 = vpop.permute.xlu0 %363
        %367 = vset.pattern.permute.xlu0 0
        %368 = vperm.xlu0 %367, %v350
        %v369 = vpop.permute.xlu0 %368
        %372 = vset.pattern.permute.xlu0 0
        %373 = vperm.xlu0 %372, %v351
        %v374 = vpop.permute.xlu0 %373
        %377 = vset.pattern.permute.xlu0 0
        %378 = vperm.xlu0 %377, %v352
        %v379 = vpop.permute.xlu0 %378
        %382 = vset.pattern.permute.xlu0 0
        %383 = vperm.xlu0 %382, %v353
        %v384 = vpop.permute.xlu0 %383
        %387 = vset.pattern.permute.xlu0 0
        %388 = vperm.xlu0 %387, %v354
        %v389 = vpop.permute.xlu0 %388
        %392 = vset.pattern.permute.xlu0 0
        %393 = vperm.xlu0 %392, %v355
        %v394 = vpop.permute.xlu0 %393
        %v396 = vmul.f32 %v340, %v359
        %v397 = vmul.f32 %v347, %v364
        %v398 = vmul.f32 %v346, %v369
        %v399 = vmul.f32 %v345, %v374
        %v400 = vmul.f32 %v344, %v379
        %v401 = vmul.f32 %v343, %v384
        %v402 = vmul.f32 %v342, %v389
        %v403 = vmul.f32 %v341, %v394
        %v404 = vld [vmem:[%s2] sm:$0xff]
        %s405 = scalar_lea.vmem [#allocation2], 64
        %v406 = vld [vmem:[%s405] sm:$0xff]
        %v407 = vld [vmem:[%s405 + $0x8] sm:$0xff]
        %v408 = vld [vmem:[%s405 + $0x10] sm:$0xff]
        %v409 = vld [vmem:[%s405 + $0x18] sm:$0xff]
        %v410 = vld [vmem:[%s405 + $0x20] sm:$0xff]
        %v411 = vld [vmem:[%s405 + $0x28] sm:$0xff]
        %v412 = vld [vmem:[%s405 + $0x30] sm:$0xff]
        %v413 = vld [vmem:[%s405 + $0x38] sm:$0xff]
        %415 = vset.pattern.permute.xlu0 0
        %416 = vperm.xlu0 %415, %v406
        %v417 = vpop.permute.xlu0 %416
        %420 = vset.pattern.permute.xlu0 0
        %421 = vperm.xlu0 %420, %v407
        %v422 = vpop.permute.xlu0 %421
        %425 = vset.pattern.permute.xlu0 0
        %426 = vperm.xlu0 %425, %v408
        %v427 = vpop.permute.xlu0 %426
        %430 = vset.pattern.permute.xlu0 0
        %431 = vperm.xlu0 %430, %v409
        %v432 = vpop.permute.xlu0 %431
        %435 = vset.pattern.permute.xlu0 0
        %436 = vperm.xlu0 %435, %v410
        %v437 = vpop.permute.xlu0 %436
        %440 = vset.pattern.permute.xlu0 0
        %441 = vperm.xlu0 %440, %v411
        %v442 = vpop.permute.xlu0 %441
        %445 = vset.pattern.permute.xlu0 0
        %446 = vperm.xlu0 %445, %v412
        %v447 = vpop.permute.xlu0 %446
        %450 = vset.pattern.permute.xlu0 0
        %451 = vperm.xlu0 %450, %v413
        %v452 = vpop.permute.xlu0 %451
        %v454 = vmul.f32 %v328, %v417
        %v455 = vmul.f32 %v321, %v422
        %v456 = vmul.f32 %v322, %v427
        %v457 = vmul.f32 %v323, %v432
        %v458 = vmul.f32 %v324, %v437
        %v459 = vmul.f32 %v325, %v442
        %v460 = vmul.f32 %v326, %v447
        %v461 = vmul.f32 %v327, %v452
        %s462 = scalar_lea.vmem %s2, 8
        %v463 = vld [vmem:[%s462] sm:$0xff]
        %vm464 = vcmask 64512
        %v466 = vsel %vm464, %v454, 0
        %v469 = vsel %vm464, %v455, 0
        %v472 = vsel %vm464, %v456, 0
        %v475 = vsel %vm464, %v457, 0
        %v478 = vsel %vm464, %v458, 0
        %v481 = vsel %vm464, %v459, 0
        %v484 = vsel %vm464, %v460, 0
        %v487 = vsel %vm464, %v461, 0
        %489 = vmatprep.subr.mxu0 0.0
        %490 = vmatpush1.msra.mxu0 0.0
        %491 = vmatprep.subr.mxu0 0.0
        %492 = vmatpush1.msra.mxu0 0.0
        %493 = vmatprep.subr.mxu0 0.0
        %494 = vmatpush1.msra.mxu0 0.0
        %495 = vmatprep.subr.mxu0 0.0
        %496 = vmatpush1.msra.mxu0 0.0
        %497 = vmatprep.subr.mxu0 0.0
        %498 = vmatpush1.msra.mxu0 0.0
        %499 = vmatprep.subr.mxu0 0.0
        %500 = vmatpush1.msra.mxu0 0.0
        %501 = vmatprep.subr.mxu0 0.0
        %502 = vmatpush1.msra.mxu0 0.0
        %503 = vmatprep.subr.mxu0 0.0
        %504 = vmatpush1.msra.mxu0 0.0
        %505 = vmatprep.subr.mxu0 0.0
        %506 = vmatpush1.msra.mxu0 0.0
        %507 = vmatprep.subr.mxu0 0.0
        %508 = vmatpush1.msra.mxu0 0.0
        %509 = vmatprep.subr.mxu0 0.0
        %510 = vmatpush1.msra.mxu0 0.0
        %511 = vmatprep.subr.mxu0 0.0
        %512 = vmatpush1.msra.mxu0 0.0
        %513 = vmatprep.subr.mxu0 0.0
        %514 = vmatpush1.msra.mxu0 0.0
        %515 = vmatprep.subr.mxu0 0.0
        %516 = vmatpush1.msra.mxu0 0.0
        %517 = vmatprep.subr.mxu0 0.0
        %518 = vmatpush1.msra.mxu0 0.0
        %519 = vmatprep.subr.mxu0 0.0
        %520 = vmatpush1.msra.mxu0 %v463
        %521 = vmatprep.subr.mxu0 0.0
        %522 = vmatpush2.msra.mxu0 0.0
        %523 = vmatprep.subr.mxu0 0.0
        %524 = vmatpush2.msra.mxu0 0.0
        %525 = vmatprep.subr.mxu0 0.0
        %526 = vmatpush2.msra.mxu0 0.0
        %527 = vmatprep.subr.mxu0 0.0
        %528 = vmatpush2.msra.mxu0 0.0
        %529 = vmatprep.subr.mxu0 0.0
        %530 = vmatpush2.msra.mxu0 0.0
        %531 = vmatprep.subr.mxu0 0.0
        %532 = vmatpush2.msra.mxu0 0.0
        %533 = vmatprep.subr.mxu0 0.0
        %534 = vmatpush2.msra.mxu0 0.0
        %535 = vmatprep.subr.mxu0 0.0
        %536 = vmatpush2.msra.mxu0 0.0
        %537 = vmatprep.subr.mxu0 0.0
        %538 = vmatpush2.msra.mxu0 0.0
        %539 = vmatprep.subr.mxu0 0.0
        %540 = vmatpush2.msra.mxu0 0.0
        %541 = vmatprep.subr.mxu0 0.0
        %542 = vmatpush2.msra.mxu0 0.0
        %543 = vmatprep.subr.mxu0 0.0
        %544 = vmatpush2.msra.mxu0 0.0
        %545 = vmatprep.subr.mxu0 0.0
        %546 = vmatpush2.msra.mxu0 0.0
        %547 = vmatprep.subr.mxu0 0.0
        %548 = vmatpush2.msra.mxu0 0.0
        %549 = vmatprep.subr.mxu0 0.0
        %550 = vmatpush2.msra.mxu0 0.0
        %551 = vmatprep.subr.mxu0 0.0
        %552 = vmatpush2.msra.mxu0 0.0
        %553 = vmatprep.mubr.f32.mxu0 0.0
        %554 = vmatmul.mubr.f32.gmra.mxu0 %v466
        %v555 = vpop.f32.mrf.mxu0
        %v556 = vadd.f32 0.0, %v555
        %v557 = vpop.f32.mrf.mxu0
        %558 = vmatprep.mubr.f32.mxu0 0.0
        %559 = vmatmul.mubr.f32.gmra.mxu0 %v469
        %v560 = vpop.f32.mrf.mxu0
        %v561 = vadd.f32 0.0, %v560
        %v562 = vpop.f32.mrf.mxu0
        %563 = vmatprep.mubr.f32.mxu0 0.0
        %564 = vmatmul.mubr.f32.gmra.mxu0 %v472
        %v565 = vpop.f32.mrf.mxu0
        %v566 = vadd.f32 0.0, %v565
        %v567 = vpop.f32.mrf.mxu0
        %568 = vmatprep.mubr.f32.mxu0 0.0
        %569 = vmatmul.mubr.f32.gmra.mxu0 %v475
        %v570 = vpop.f32.mrf.mxu0
        %v571 = vadd.f32 0.0, %v570
        %v572 = vpop.f32.mrf.mxu0
        %573 = vmatprep.mubr.f32.mxu0 0.0
        %574 = vmatmul.mubr.f32.gmra.mxu0 %v478
        %v575 = vpop.f32.mrf.mxu0
        %v576 = vadd.f32 0.0, %v575
        %v577 = vpop.f32.mrf.mxu0
        %578 = vmatprep.mubr.f32.mxu0 0.0
        %579 = vmatmul.mubr.f32.gmra.mxu0 %v481
        %v580 = vpop.f32.mrf.mxu0
        %v581 = vadd.f32 0.0, %v580
        %v582 = vpop.f32.mrf.mxu0
        %583 = vmatprep.mubr.f32.mxu0 0.0
        %584 = vmatmul.mubr.f32.gmra.mxu0 %v484
        %v585 = vpop.f32.mrf.mxu0
        %v586 = vadd.f32 0.0, %v585
        %v587 = vpop.f32.mrf.mxu0
        %588 = vmatprep.mubr.f32.mxu0 0.0
        %589 = vmatmul.mubr.f32.gmra.mxu0 %v487
        %v590 = vpop.f32.mrf.mxu0
        %v591 = vadd.f32 0.0, %v590
        %v592 = vpop.f32.mrf.mxu0
        %593 = vdwg.mxu0
        %v595 = vsel %vm464, %v396, 0
        %v598 = vsel %vm464, %v397, 0
        %v601 = vsel %vm464, %v398, 0
        %v604 = vsel %vm464, %v399, 0
        %v607 = vsel %vm464, %v400, 0
        %v610 = vsel %vm464, %v401, 0
        %v613 = vsel %vm464, %v402, 0
        %v616 = vsel %vm464, %v403, 0
        %618 = vmatprep.subr.mxu0 0.0
        %619 = vmatpush1.msra.mxu0 0.0
        %620 = vmatprep.subr.mxu0 0.0
        %621 = vmatpush1.msra.mxu0 0.0
        %622 = vmatprep.subr.mxu0 0.0
        %623 = vmatpush1.msra.mxu0 0.0
        %624 = vmatprep.subr.mxu0 0.0
        %625 = vmatpush1.msra.mxu0 0.0
        %626 = vmatprep.subr.mxu0 0.0
        %627 = vmatpush1.msra.mxu0 0.0
        %628 = vmatprep.subr.mxu0 0.0
        %629 = vmatpush1.msra.mxu0 0.0
        %630 = vmatprep.subr.mxu0 0.0
        %631 = vmatpush1.msra.mxu0 0.0
        %632 = vmatprep.subr.mxu0 0.0
        %633 = vmatpush1.msra.mxu0 0.0
        %634 = vmatprep.subr.mxu0 0.0
        %635 = vmatpush1.msra.mxu0 0.0
        %636 = vmatprep.subr.mxu0 0.0
        %637 = vmatpush1.msra.mxu0 0.0
        %638 = vmatprep.subr.mxu0 0.0
        %639 = vmatpush1.msra.mxu0 0.0
        %640 = vmatprep.subr.mxu0 0.0
        %641 = vmatpush1.msra.mxu0 0.0
        %642 = vmatprep.subr.mxu0 0.0
        %643 = vmatpush1.msra.mxu0 0.0
        %644 = vmatprep.subr.mxu0 0.0
        %645 = vmatpush1.msra.mxu0 0.0
        %646 = vmatprep.subr.mxu0 0.0
        %647 = vmatpush1.msra.mxu0 0.0
        %648 = vmatprep.subr.mxu0 0.0
        %649 = vmatpush1.msra.mxu0 %v404
        %650 = vmatprep.subr.mxu0 0.0
        %651 = vmatpush2.msra.mxu0 0.0
        %652 = vmatprep.subr.mxu0 0.0
        %653 = vmatpush2.msra.mxu0 0.0
        %654 = vmatprep.subr.mxu0 0.0
        %655 = vmatpush2.msra.mxu0 0.0
        %656 = vmatprep.subr.mxu0 0.0
        %657 = vmatpush2.msra.mxu0 0.0
        %658 = vmatprep.subr.mxu0 0.0
        %659 = vmatpush2.msra.mxu0 0.0
        %660 = vmatprep.subr.mxu0 0.0
        %661 = vmatpush2.msra.mxu0 0.0
        %662 = vmatprep.subr.mxu0 0.0
        %663 = vmatpush2.msra.mxu0 0.0
        %664 = vmatprep.subr.mxu0 0.0
        %665 = vmatpush2.msra.mxu0 0.0
        %666 = vmatprep.subr.mxu0 0.0
        %667 = vmatpush2.msra.mxu0 0.0
        %668 = vmatprep.subr.mxu0 0.0
        %669 = vmatpush2.msra.mxu0 0.0
        %670 = vmatprep.subr.mxu0 0.0
        %671 = vmatpush2.msra.mxu0 0.0
        %672 = vmatprep.subr.mxu0 0.0
        %673 = vmatpush2.msra.mxu0 0.0
        %674 = vmatprep.subr.mxu0 0.0
        %675 = vmatpush2.msra.mxu0 0.0
        %676 = vmatprep.subr.mxu0 0.0
        %677 = vmatpush2.msra.mxu0 0.0
        %678 = vmatprep.subr.mxu0 0.0
        %679 = vmatpush2.msra.mxu0 0.0
        %680 = vmatprep.subr.mxu0 0.0
        %681 = vmatpush2.msra.mxu0 0.0
        %682 = vmatprep.mubr.f32.mxu0 0.0
        %683 = vmatmul.mubr.f32.gmra.mxu0 %v595
        %v684 = vpop.f32.mrf.mxu0
        %v685 = vadd.f32 %v556, %v684
        %v686 = vpop.f32.mrf.mxu0
        %687 = vmatprep.mubr.f32.mxu0 0.0
        %688 = vmatmul.mubr.f32.gmra.mxu0 %v598
        %v689 = vpop.f32.mrf.mxu0
        %v690 = vadd.f32 %v561, %v689
        %v691 = vpop.f32.mrf.mxu0
        %692 = vmatprep.mubr.f32.mxu0 0.0
        %693 = vmatmul.mubr.f32.gmra.mxu0 %v601
        %v694 = vpop.f32.mrf.mxu0
        %v695 = vadd.f32 %v566, %v694
        %v696 = vpop.f32.mrf.mxu0
        %697 = vmatprep.mubr.f32.mxu0 0.0
        %698 = vmatmul.mubr.f32.gmra.mxu0 %v604
        %v699 = vpop.f32.mrf.mxu0
        %v700 = vadd.f32 %v571, %v699
        %v701 = vpop.f32.mrf.mxu0
        %702 = vmatprep.mubr.f32.mxu0 0.0
        %703 = vmatmul.mubr.f32.gmra.mxu0 %v607
        %v704 = vpop.f32.mrf.mxu0
        %v705 = vadd.f32 %v576, %v704
        %v706 = vpop.f32.mrf.mxu0
        %707 = vmatprep.mubr.f32.mxu0 0.0
        %708 = vmatmul.mubr.f32.gmra.mxu0 %v610
        %v709 = vpop.f32.mrf.mxu0
        %v710 = vadd.f32 %v581, %v709
        %v711 = vpop.f32.mrf.mxu0
        %712 = vmatprep.mubr.f32.mxu0 0.0
        %713 = vmatmul.mubr.f32.gmra.mxu0 %v613
        %v714 = vpop.f32.mrf.mxu0
        %v715 = vadd.f32 %v586, %v714
        %v716 = vpop.f32.mrf.mxu0
        %717 = vmatprep.mubr.f32.mxu0 0.0
        %718 = vmatmul.mubr.f32.gmra.mxu0 %v616
        %v719 = vpop.f32.mrf.mxu0
        %v720 = vadd.f32 %v591, %v719
        %v721 = vpop.f32.mrf.mxu0
        %722 = vdwg.mxu0
        %v723 = vrot.slane %v321, 1
        %v724 = vrot.slane %v322, 1
        %v725 = vrot.slane %v323, 1
        %v726 = vrot.slane %v324, 1
        %v727 = vrot.slane %v325, 1
        %v728 = vrot.slane %v326, 1
        %v729 = vrot.slane %v327, 1
        %v730 = vrot.slane %v328, 1
        %vm731 = vcmp.lt.s32.totalorder %v338, 7
        %v732 = vsel %vm731, %v729, %v730
        %v733 = vsel %vm731, %v728, %v729
        %v734 = vsel %vm731, %v727, %v728
        %v735 = vsel %vm731, %v726, %v727
        %v736 = vsel %vm731, %v725, %v726
        %v737 = vsel %vm731, %v724, %v725
        %v738 = vsel %vm731, %v723, %v724
        %v739 = vsel %vm731, %v730, %v723
        %s740 = scalar_lea.vmem [#allocation2], 128
        %v741 = vld [vmem:[%s740] sm:$0xff]
        %v742 = vld [vmem:[%s740 + $0x8] sm:$0xff]
        %v743 = vld [vmem:[%s740 + $0x10] sm:$0xff]
        %v744 = vld [vmem:[%s740 + $0x18] sm:$0xff]
        %v745 = vld [vmem:[%s740 + $0x20] sm:$0xff]
        %v746 = vld [vmem:[%s740 + $0x28] sm:$0xff]
        %v747 = vld [vmem:[%s740 + $0x30] sm:$0xff]
        %v748 = vld [vmem:[%s740 + $0x38] sm:$0xff]
        %750 = vset.pattern.permute.xlu0 0
        %751 = vperm.xlu0 %750, %v741
        %v752 = vpop.permute.xlu0 %751
        %755 = vset.pattern.permute.xlu0 0
        %756 = vperm.xlu0 %755, %v742
        %v757 = vpop.permute.xlu0 %756
        %760 = vset.pattern.permute.xlu0 0
        %761 = vperm.xlu0 %760, %v743
        %v762 = vpop.permute.xlu0 %761
        %765 = vset.pattern.permute.xlu0 0
        %766 = vperm.xlu0 %765, %v744
        %v767 = vpop.permute.xlu0 %766
        %770 = vset.pattern.permute.xlu0 0
        %771 = vperm.xlu0 %770, %v745
        %v772 = vpop.permute.xlu0 %771
        %775 = vset.pattern.permute.xlu0 0
        %776 = vperm.xlu0 %775, %v746
        %v777 = vpop.permute.xlu0 %776
        %780 = vset.pattern.permute.xlu0 0
        %781 = vperm.xlu0 %780, %v747
        %v782 = vpop.permute.xlu0 %781
        %785 = vset.pattern.permute.xlu0 0
        %786 = vperm.xlu0 %785, %v748
        %v787 = vpop.permute.xlu0 %786
        %v789 = vmul.f32 %v739, %v752
        %v790 = vmul.f32 %v738, %v757
        %v791 = vmul.f32 %v737, %v762
        %v792 = vmul.f32 %v736, %v767
        %v793 = vmul.f32 %v735, %v772
        %v794 = vmul.f32 %v734, %v777
        %v795 = vmul.f32 %v733, %v782
        %v796 = vmul.f32 %v732, %v787
        %s797 = scalar_lea.vmem %s2, 16
        %v798 = vld [vmem:[%s797] sm:$0xff]
        %v800 = vsel %vm464, %v789, 0
        %v803 = vsel %vm464, %v790, 0
        %v806 = vsel %vm464, %v791, 0
        %v809 = vsel %vm464, %v792, 0
        %v812 = vsel %vm464, %v793, 0
        %v815 = vsel %vm464, %v794, 0
        %v818 = vsel %vm464, %v795, 0
        %v821 = vsel %vm464, %v796, 0
        %823 = vmatprep.subr.mxu0 0.0
        %824 = vmatpush1.msra.mxu0 0.0
        %825 = vmatprep.subr.mxu0 0.0
        %826 = vmatpush1.msra.mxu0 0.0
        %827 = vmatprep.subr.mxu0 0.0
        %828 = vmatpush1.msra.mxu0 0.0
        %829 = vmatprep.subr.mxu0 0.0
        %830 = vmatpush1.msra.mxu0 0.0
        %831 = vmatprep.subr.mxu0 0.0
        %832 = vmatpush1.msra.mxu0 0.0
        %833 = vmatprep.subr.mxu0 0.0
        %834 = vmatpush1.msra.mxu0 0.0
        %835 = vmatprep.subr.mxu0 0.0
        %836 = vmatpush1.msra.mxu0 0.0
        %837 = vmatprep.subr.mxu0 0.0
        %838 = vmatpush1.msra.mxu0 0.0
        %839 = vmatprep.subr.mxu0 0.0
        %840 = vmatpush1.msra.mxu0 0.0
        %841 = vmatprep.subr.mxu0 0.0
        %842 = vmatpush1.msra.mxu0 0.0
        %843 = vmatprep.subr.mxu0 0.0
        %844 = vmatpush1.msra.mxu0 0.0
        %845 = vmatprep.subr.mxu0 0.0
        %846 = vmatpush1.msra.mxu0 0.0
        %847 = vmatprep.subr.mxu0 0.0
        %848 = vmatpush1.msra.mxu0 0.0
        %849 = vmatprep.subr.mxu0 0.0
        %850 = vmatpush1.msra.mxu0 0.0
        %851 = vmatprep.subr.mxu0 0.0
        %852 = vmatpush1.msra.mxu0 0.0
        %853 = vmatprep.subr.mxu0 0.0
        %854 = vmatpush1.msra.mxu0 %v798
        %855 = vmatprep.subr.mxu0 0.0
        %856 = vmatpush2.msra.mxu0 0.0
        %857 = vmatprep.subr.mxu0 0.0
        %858 = vmatpush2.msra.mxu0 0.0
        %859 = vmatprep.subr.mxu0 0.0
        %860 = vmatpush2.msra.mxu0 0.0
        %861 = vmatprep.subr.mxu0 0.0
        %862 = vmatpush2.msra.mxu0 0.0
        %863 = vmatprep.subr.mxu0 0.0
        %864 = vmatpush2.msra.mxu0 0.0
        %865 = vmatprep.subr.mxu0 0.0
        %866 = vmatpush2.msra.mxu0 0.0
        %867 = vmatprep.subr.mxu0 0.0
        %868 = vmatpush2.msra.mxu0 0.0
        %869 = vmatprep.subr.mxu0 0.0
        %870 = vmatpush2.msra.mxu0 0.0
        %871 = vmatprep.subr.mxu0 0.0
        %872 = vmatpush2.msra.mxu0 0.0
        %873 = vmatprep.subr.mxu0 0.0
        %874 = vmatpush2.msra.mxu0 0.0
        %875 = vmatprep.subr.mxu0 0.0
        %876 = vmatpush2.msra.mxu0 0.0
        %877 = vmatprep.subr.mxu0 0.0
        %878 = vmatpush2.msra.mxu0 0.0
        %879 = vmatprep.subr.mxu0 0.0
        %880 = vmatpush2.msra.mxu0 0.0
        %881 = vmatprep.subr.mxu0 0.0
        %882 = vmatpush2.msra.mxu0 0.0
        %883 = vmatprep.subr.mxu0 0.0
        %884 = vmatpush2.msra.mxu0 0.0
        %885 = vmatprep.subr.mxu0 0.0
        %886 = vmatpush2.msra.mxu0 0.0
        %887 = vmatprep.mubr.f32.mxu0 0.0
        %888 = vmatmul.mubr.f32.gmra.mxu0 %v800
        %v889 = vpop.f32.mrf.mxu0
        %v890 = vadd.f32 0.0, %v889
        %v891 = vpop.f32.mrf.mxu0
        %892 = vmatprep.mubr.f32.mxu0 0.0
        %893 = vmatmul.mubr.f32.gmra.mxu0 %v803
        %v894 = vpop.f32.mrf.mxu0
        %v895 = vadd.f32 0.0, %v894
        %v896 = vpop.f32.mrf.mxu0
        %897 = vmatprep.mubr.f32.mxu0 0.0
        %898 = vmatmul.mubr.f32.gmra.mxu0 %v806
        %v899 = vpop.f32.mrf.mxu0
        %v900 = vadd.f32 0.0, %v899
        %v901 = vpop.f32.mrf.mxu0
        %902 = vmatprep.mubr.f32.mxu0 0.0
        %903 = vmatmul.mubr.f32.gmra.mxu0 %v809
        %v904 = vpop.f32.mrf.mxu0
        %v905 = vadd.f32 0.0, %v904
        %v906 = vpop.f32.mrf.mxu0
        %907 = vmatprep.mubr.f32.mxu0 0.0
        %908 = vmatmul.mubr.f32.gmra.mxu0 %v812
        %v909 = vpop.f32.mrf.mxu0
        %v910 = vadd.f32 0.0, %v909
        %v911 = vpop.f32.mrf.mxu0
        %912 = vmatprep.mubr.f32.mxu0 0.0
        %913 = vmatmul.mubr.f32.gmra.mxu0 %v815
        %v914 = vpop.f32.mrf.mxu0
        %v915 = vadd.f32 0.0, %v914
        %v916 = vpop.f32.mrf.mxu0
        %917 = vmatprep.mubr.f32.mxu0 0.0
        %918 = vmatmul.mubr.f32.gmra.mxu0 %v818
        %v919 = vpop.f32.mrf.mxu0
        %v920 = vadd.f32 0.0, %v919
        %v921 = vpop.f32.mrf.mxu0
        %922 = vmatprep.mubr.f32.mxu0 0.0
        %923 = vmatmul.mubr.f32.gmra.mxu0 %v821
        %v924 = vpop.f32.mrf.mxu0
        %v925 = vadd.f32 0.0, %v924
        %v926 = vpop.f32.mrf.mxu0
        %927 = vdwg.mxu0
        %v928 = vadd.f32 %v685, %v890
        %v929 = vadd.f32 %v690, %v895
        %v930 = vadd.f32 %v695, %v900
        %v931 = vadd.f32 %v700, %v905
        %v932 = vadd.f32 %v705, %v910
        %v933 = vadd.f32 %v710, %v915
        %v934 = vadd.f32 %v715, %v920
        %v935 = vadd.f32 %v720, %v925
        %s936 = scalar_lea.vmem [#allocation2], 192
        %v937 = vld [vmem:[%s936] sm:$0xff]
        %v938 = vld [vmem:[%s936 + $0x8] sm:$0xff]
        %v939 = vld [vmem:[%s936 + $0x10] sm:$0xff]
        %v940 = vld [vmem:[%s936 + $0x18] sm:$0xff]
        %v941 = vld [vmem:[%s936 + $0x20] sm:$0xff]
        %v942 = vld [vmem:[%s936 + $0x28] sm:$0xff]
        %v943 = vld [vmem:[%s936 + $0x30] sm:$0xff]
        %v944 = vld [vmem:[%s936 + $0x38] sm:$0xff]
        %946 = vset.pattern.permute.xlu0 0
        %947 = vperm.xlu0 %946, %v937
        %v948 = vpop.permute.xlu0 %947
        %951 = vset.pattern.permute.xlu0 0
        %952 = vperm.xlu0 %951, %v938
        %v953 = vpop.permute.xlu0 %952
        %956 = vset.pattern.permute.xlu0 0
        %957 = vperm.xlu0 %956, %v939
        %v958 = vpop.permute.xlu0 %957
        %961 = vset.pattern.permute.xlu0 0
        %962 = vperm.xlu0 %961, %v940
        %v963 = vpop.permute.xlu0 %962
        %966 = vset.pattern.permute.xlu0 0
        %967 = vperm.xlu0 %966, %v941
        %v968 = vpop.permute.xlu0 %967
        %971 = vset.pattern.permute.xlu0 0
        %972 = vperm.xlu0 %971, %v942
        %v973 = vpop.permute.xlu0 %972
        %976 = vset.pattern.permute.xlu0 0
        %977 = vperm.xlu0 %976, %v943
        %v978 = vpop.permute.xlu0 %977
        %981 = vset.pattern.permute.xlu0 0
        %982 = vperm.xlu0 %981, %v944
        %v983 = vpop.permute.xlu0 %982
        %v985 = vmul.f32 %v347, %v948
        %v986 = vmul.f32 %v346, %v953
        %v987 = vmul.f32 %v345, %v958
        %v988 = vmul.f32 %v344, %v963
        %v989 = vmul.f32 %v343, %v968
        %v990 = vmul.f32 %v342, %v973
        %v991 = vmul.f32 %v341, %v978
        %v992 = vmul.f32 %v340, %v983
        %s993 = scalar_lea.vmem %s2, 24
        %v994 = vld [vmem:[%s993] sm:$0xff]
        %v996 = vsel %vm464, %v985, 0
        %v999 = vsel %vm464, %v986, 0
        %v1002 = vsel %vm464, %v987, 0
        %v1005 = vsel %vm464, %v988, 0
        %v1008 = vsel %vm464, %v989, 0
        %v1011 = vsel %vm464, %v990, 0
        %v1014 = vsel %vm464, %v991, 0
        %v1017 = vsel %vm464, %v992, 0
        %1019 = vmatprep.subr.mxu0 0.0
        %1020 = vmatpush1.msra.mxu0 0.0
        %1021 = vmatprep.subr.mxu0 0.0
        %1022 = vmatpush1.msra.mxu0 0.0
        %1023 = vmatprep.subr.mxu0 0.0
        %1024 = vmatpush1.msra.mxu0 0.0
        %1025 = vmatprep.subr.mxu0 0.0
        %1026 = vmatpush1.msra.mxu0 0.0
        %1027 = vmatprep.subr.mxu0 0.0
        %1028 = vmatpush1.msra.mxu0 0.0
        %1029 = vmatprep.subr.mxu0 0.0
        %1030 = vmatpush1.msra.mxu0 0.0
        %1031 = vmatprep.subr.mxu0 0.0
        %1032 = vmatpush1.msra.mxu0 0.0
        %1033 = vmatprep.subr.mxu0 0.0
        %1034 = vmatpush1.msra.mxu0 0.0
        %1035 = vmatprep.subr.mxu0 0.0
        %1036 = vmatpush1.msra.mxu0 0.0
        %1037 = vmatprep.subr.mxu0 0.0
        %1038 = vmatpush1.msra.mxu0 0.0
        %1039 = vmatprep.subr.mxu0 0.0
        %1040 = vmatpush1.msra.mxu0 0.0
        %1041 = vmatprep.subr.mxu0 0.0
        %1042 = vmatpush1.msra.mxu0 0.0
        %1043 = vmatprep.subr.mxu0 0.0
        %1044 = vmatpush1.msra.mxu0 0.0
        %1045 = vmatprep.subr.mxu0 0.0
        %1046 = vmatpush1.msra.mxu0 0.0
        %1047 = vmatprep.subr.mxu0 0.0
        %1048 = vmatpush1.msra.mxu0 0.0
        %1049 = vmatprep.subr.mxu0 0.0
        %1050 = vmatpush1.msra.mxu0 %v994
        %1051 = vmatprep.subr.mxu0 0.0
        %1052 = vmatpush2.msra.mxu0 0.0
        %1053 = vmatprep.subr.mxu0 0.0
        %1054 = vmatpush2.msra.mxu0 0.0
        %1055 = vmatprep.subr.mxu0 0.0
        %1056 = vmatpush2.msra.mxu0 0.0
        %1057 = vmatprep.subr.mxu0 0.0
        %1058 = vmatpush2.msra.mxu0 0.0
        %1059 = vmatprep.subr.mxu0 0.0
        %1060 = vmatpush2.msra.mxu0 0.0
        %1061 = vmatprep.subr.mxu0 0.0
        %1062 = vmatpush2.msra.mxu0 0.0
        %1063 = vmatprep.subr.mxu0 0.0
        %1064 = vmatpush2.msra.mxu0 0.0
        %1065 = vmatprep.subr.mxu0 0.0
        %1066 = vmatpush2.msra.mxu0 0.0
        %1067 = vmatprep.subr.mxu0 0.0
        %1068 = vmatpush2.msra.mxu0 0.0
        %1069 = vmatprep.subr.mxu0 0.0
        %1070 = vmatpush2.msra.mxu0 0.0
        %1071 = vmatprep.subr.mxu0 0.0
        %1072 = vmatpush2.msra.mxu0 0.0
        %1073 = vmatprep.subr.mxu0 0.0
        %1074 = vmatpush2.msra.mxu0 0.0
        %1075 = vmatprep.subr.mxu0 0.0
        %1076 = vmatpush2.msra.mxu0 0.0
        %1077 = vmatprep.subr.mxu0 0.0
        %1078 = vmatpush2.msra.mxu0 0.0
        %1079 = vmatprep.subr.mxu0 0.0
        %1080 = vmatpush2.msra.mxu0 0.0
        %1081 = vmatprep.subr.mxu0 0.0
        %1082 = vmatpush2.msra.mxu0 0.0
        %1083 = vmatprep.mubr.f32.mxu0 0.0
        %1084 = vmatmul.mubr.f32.gmra.mxu0 %v996
        %v1085 = vpop.f32.mrf.mxu0
        %v1086 = vadd.f32 0.0, %v1085
        %v1087 = vpop.f32.mrf.mxu0
        %1088 = vmatprep.mubr.f32.mxu0 0.0
        %1089 = vmatmul.mubr.f32.gmra.mxu0 %v999
        %v1090 = vpop.f32.mrf.mxu0
        %v1091 = vadd.f32 0.0, %v1090
        %v1092 = vpop.f32.mrf.mxu0
        %1093 = vmatprep.mubr.f32.mxu0 0.0
        %1094 = vmatmul.mubr.f32.gmra.mxu0 %v1002
        %v1095 = vpop.f32.mrf.mxu0
        %v1096 = vadd.f32 0.0, %v1095
        %v1097 = vpop.f32.mrf.mxu0
        %1098 = vmatprep.mubr.f32.mxu0 0.0
        %1099 = vmatmul.mubr.f32.gmra.mxu0 %v1005
        %v1100 = vpop.f32.mrf.mxu0
        %v1101 = vadd.f32 0.0, %v1100
        %v1102 = vpop.f32.mrf.mxu0
        %1103 = vmatprep.mubr.f32.mxu0 0.0
        %1104 = vmatmul.mubr.f32.gmra.mxu0 %v1008
        %v1105 = vpop.f32.mrf.mxu0
        %v1106 = vadd.f32 0.0, %v1105
        %v1107 = vpop.f32.mrf.mxu0
        %1108 = vmatprep.mubr.f32.mxu0 0.0
        %1109 = vmatmul.mubr.f32.gmra.mxu0 %v1011
        %v1110 = vpop.f32.mrf.mxu0
        %v1111 = vadd.f32 0.0, %v1110
        %v1112 = vpop.f32.mrf.mxu0
        %1113 = vmatprep.mubr.f32.mxu0 0.0
        %1114 = vmatmul.mubr.f32.gmra.mxu0 %v1014
        %v1115 = vpop.f32.mrf.mxu0
        %v1116 = vadd.f32 0.0, %v1115
        %v1117 = vpop.f32.mrf.mxu0
        %1118 = vmatprep.mubr.f32.mxu0 0.0
        %1119 = vmatmul.mubr.f32.gmra.mxu0 %v1017
        %v1120 = vpop.f32.mrf.mxu0
        %v1121 = vadd.f32 0.0, %v1120
        %v1122 = vpop.f32.mrf.mxu0
        %1123 = vdwg.mxu0
        %v1124 = vadd.f32 %v928, %v1086
        %v1125 = vadd.f32 %v929, %v1091
        %v1126 = vadd.f32 %v930, %v1096
        %v1127 = vadd.f32 %v931, %v1101
        %v1128 = vadd.f32 %v932, %v1106
        %v1129 = vadd.f32 %v933, %v1111
        %v1130 = vadd.f32 %v934, %v1116
        %v1131 = vadd.f32 %v935, %v1121
        %s1132 = scalar_lea.vmem [#allocation2], 256
        %v1133 = vld [vmem:[%s1132] sm:$0xff]
        %v1134 = vld [vmem:[%s1132 + $0x8] sm:$0xff]
        %v1135 = vld [vmem:[%s1132 + $0x10] sm:$0xff]
        %v1136 = vld [vmem:[%s1132 + $0x18] sm:$0xff]
        %v1137 = vld [vmem:[%s1132 + $0x20] sm:$0xff]
        %v1138 = vld [vmem:[%s1132 + $0x28] sm:$0xff]
        %v1139 = vld [vmem:[%s1132 + $0x30] sm:$0xff]
        %v1140 = vld [vmem:[%s1132 + $0x38] sm:$0xff]
        %1142 = vset.pattern.permute.xlu0 0
        %1143 = vperm.xlu0 %1142, %v1133
        %v1144 = vpop.permute.xlu0 %1143
        %1147 = vset.pattern.permute.xlu0 0
        %1148 = vperm.xlu0 %1147, %v1134
        %v1149 = vpop.permute.xlu0 %1148
        %1152 = vset.pattern.permute.xlu0 0
        %1153 = vperm.xlu0 %1152, %v1135
        %v1154 = vpop.permute.xlu0 %1153
        %1157 = vset.pattern.permute.xlu0 0
        %1158 = vperm.xlu0 %1157, %v1136
        %v1159 = vpop.permute.xlu0 %1158
        %1162 = vset.pattern.permute.xlu0 0
        %1163 = vperm.xlu0 %1162, %v1137
        %v1164 = vpop.permute.xlu0 %1163
        %1167 = vset.pattern.permute.xlu0 0
        %1168 = vperm.xlu0 %1167, %v1138
        %v1169 = vpop.permute.xlu0 %1168
        %1172 = vset.pattern.permute.xlu0 0
        %1173 = vperm.xlu0 %1172, %v1139
        %v1174 = vpop.permute.xlu0 %1173
        %1177 = vset.pattern.permute.xlu0 0
        %1178 = vperm.xlu0 %1177, %v1140
        %v1179 = vpop.permute.xlu0 %1178
        %v1181 = vmul.f32 %v321, %v1144
        %v1182 = vmul.f32 %v322, %v1149
        %v1183 = vmul.f32 %v323, %v1154
        %v1184 = vmul.f32 %v324, %v1159
        %v1185 = vmul.f32 %v325, %v1164
        %v1186 = vmul.f32 %v326, %v1169
        %v1187 = vmul.f32 %v327, %v1174
        %v1188 = vmul.f32 %v328, %v1179
        %s1189 = scalar_lea.vmem %s2, 32
        %v1190 = vld [vmem:[%s1189] sm:$0xff]
        %v1192 = vsel %vm464, %v1181, 0
        %v1195 = vsel %vm464, %v1182, 0
        %v1198 = vsel %vm464, %v1183, 0
        %v1201 = vsel %vm464, %v1184, 0
        %v1204 = vsel %vm464, %v1185, 0
        %v1207 = vsel %vm464, %v1186, 0
        %v1210 = vsel %vm464, %v1187, 0
        %v1213 = vsel %vm464, %v1188, 0
        %1215 = vmatprep.subr.mxu0 0.0
        %1216 = vmatpush1.msra.mxu0 0.0
        %1217 = vmatprep.subr.mxu0 0.0
        %1218 = vmatpush1.msra.mxu0 0.0
        %1219 = vmatprep.subr.mxu0 0.0
        %1220 = vmatpush1.msra.mxu0 0.0
        %1221 = vmatprep.subr.mxu0 0.0
        %1222 = vmatpush1.msra.mxu0 0.0
        %1223 = vmatprep.subr.mxu0 0.0
        %1224 = vmatpush1.msra.mxu0 0.0
        %1225 = vmatprep.subr.mxu0 0.0
        %1226 = vmatpush1.msra.mxu0 0.0
        %1227 = vmatprep.subr.mxu0 0.0
        %1228 = vmatpush1.msra.mxu0 0.0
        %1229 = vmatprep.subr.mxu0 0.0
        %1230 = vmatpush1.msra.mxu0 0.0
        %1231 = vmatprep.subr.mxu0 0.0
        %1232 = vmatpush1.msra.mxu0 0.0
        %1233 = vmatprep.subr.mxu0 0.0
        %1234 = vmatpush1.msra.mxu0 0.0
        %1235 = vmatprep.subr.mxu0 0.0
        %1236 = vmatpush1.msra.mxu0 0.0
        %1237 = vmatprep.subr.mxu0 0.0
        %1238 = vmatpush1.msra.mxu0 0.0
        %1239 = vmatprep.subr.mxu0 0.0
        %1240 = vmatpush1.msra.mxu0 0.0
        %1241 = vmatprep.subr.mxu0 0.0
        %1242 = vmatpush1.msra.mxu0 0.0
        %1243 = vmatprep.subr.mxu0 0.0
        %1244 = vmatpush1.msra.mxu0 0.0
        %1245 = vmatprep.subr.mxu0 0.0
        %1246 = vmatpush1.msra.mxu0 %v1190
        %1247 = vmatprep.subr.mxu0 0.0
        %1248 = vmatpush2.msra.mxu0 0.0
        %1249 = vmatprep.subr.mxu0 0.0
        %1250 = vmatpush2.msra.mxu0 0.0
        %1251 = vmatprep.subr.mxu0 0.0
        %1252 = vmatpush2.msra.mxu0 0.0
        %1253 = vmatprep.subr.mxu0 0.0
        %1254 = vmatpush2.msra.mxu0 0.0
        %1255 = vmatprep.subr.mxu0 0.0
        %1256 = vmatpush2.msra.mxu0 0.0
        %1257 = vmatprep.subr.mxu0 0.0
        %1258 = vmatpush2.msra.mxu0 0.0
        %1259 = vmatprep.subr.mxu0 0.0
        %1260 = vmatpush2.msra.mxu0 0.0
        %1261 = vmatprep.subr.mxu0 0.0
        %1262 = vmatpush2.msra.mxu0 0.0
        %1263 = vmatprep.subr.mxu0 0.0
        %1264 = vmatpush2.msra.mxu0 0.0
        %1265 = vmatprep.subr.mxu0 0.0
        %1266 = vmatpush2.msra.mxu0 0.0
        %1267 = vmatprep.subr.mxu0 0.0
        %1268 = vmatpush2.msra.mxu0 0.0
        %1269 = vmatprep.subr.mxu0 0.0
        %1270 = vmatpush2.msra.mxu0 0.0
        %1271 = vmatprep.subr.mxu0 0.0
        %1272 = vmatpush2.msra.mxu0 0.0
        %1273 = vmatprep.subr.mxu0 0.0
        %1274 = vmatpush2.msra.mxu0 0.0
        %1275 = vmatprep.subr.mxu0 0.0
        %1276 = vmatpush2.msra.mxu0 0.0
        %1277 = vmatprep.subr.mxu0 0.0
        %1278 = vmatpush2.msra.mxu0 0.0
        %1279 = vmatprep.mubr.f32.mxu0 0.0
        %1280 = vmatmul.mubr.f32.gmra.mxu0 %v1192
        %v1281 = vpop.f32.mrf.mxu0
        %v1282 = vadd.f32 0.0, %v1281
        %v1283 = vpop.f32.mrf.mxu0
        %1284 = vmatprep.mubr.f32.mxu0 0.0
        %1285 = vmatmul.mubr.f32.gmra.mxu0 %v1195
        %v1286 = vpop.f32.mrf.mxu0
        %v1287 = vadd.f32 0.0, %v1286
        %v1288 = vpop.f32.mrf.mxu0
        %1289 = vmatprep.mubr.f32.mxu0 0.0
        %1290 = vmatmul.mubr.f32.gmra.mxu0 %v1198
        %v1291 = vpop.f32.mrf.mxu0
        %v1292 = vadd.f32 0.0, %v1291
        %v1293 = vpop.f32.mrf.mxu0
        %1294 = vmatprep.mubr.f32.mxu0 0.0
        %1295 = vmatmul.mubr.f32.gmra.mxu0 %v1201
        %v1296 = vpop.f32.mrf.mxu0
        %v1297 = vadd.f32 0.0, %v1296
        %v1298 = vpop.f32.mrf.mxu0
        %1299 = vmatprep.mubr.f32.mxu0 0.0
        %1300 = vmatmul.mubr.f32.gmra.mxu0 %v1204
        %v1301 = vpop.f32.mrf.mxu0
        %v1302 = vadd.f32 0.0, %v1301
        %v1303 = vpop.f32.mrf.mxu0
        %1304 = vmatprep.mubr.f32.mxu0 0.0
        %1305 = vmatmul.mubr.f32.gmra.mxu0 %v1207
        %v1306 = vpop.f32.mrf.mxu0
        %v1307 = vadd.f32 0.0, %v1306
        %v1308 = vpop.f32.mrf.mxu0
        %1309 = vmatprep.mubr.f32.mxu0 0.0
        %1310 = vmatmul.mubr.f32.gmra.mxu0 %v1210
        %v1311 = vpop.f32.mrf.mxu0
        %v1312 = vadd.f32 0.0, %v1311
        %v1313 = vpop.f32.mrf.mxu0
        %1314 = vmatprep.mubr.f32.mxu0 0.0
        %1315 = vmatmul.mubr.f32.gmra.mxu0 %v1213
        %v1316 = vpop.f32.mrf.mxu0
        %v1317 = vadd.f32 0.0, %v1316
        %v1318 = vpop.f32.mrf.mxu0
        %1319 = vdwg.mxu0
        %v1320 = vadd.f32 %v1124, %v1282
        %v1321 = vadd.f32 %v1125, %v1287
        %v1322 = vadd.f32 %v1126, %v1292
        %v1323 = vadd.f32 %v1127, %v1297
        %v1324 = vadd.f32 %v1128, %v1302
        %v1325 = vadd.f32 %v1129, %v1307
        %v1326 = vadd.f32 %v1130, %v1312
        %v1327 = vadd.f32 %v1131, %v1317
        %s1328 = scalar_lea.vmem [#allocation2], 320
        %v1329 = vld [vmem:[%s1328] sm:$0xff]
        %v1330 = vld [vmem:[%s1328 + $0x8] sm:$0xff]
        %v1331 = vld [vmem:[%s1328 + $0x10] sm:$0xff]
        %v1332 = vld [vmem:[%s1328 + $0x18] sm:$0xff]
        %v1333 = vld [vmem:[%s1328 + $0x20] sm:$0xff]
        %v1334 = vld [vmem:[%s1328 + $0x28] sm:$0xff]
        %v1335 = vld [vmem:[%s1328 + $0x30] sm:$0xff]
        %v1336 = vld [vmem:[%s1328 + $0x38] sm:$0xff]
        %1338 = vset.pattern.permute.xlu0 0
        %1339 = vperm.xlu0 %1338, %v1329
        %v1340 = vpop.permute.xlu0 %1339
        %1343 = vset.pattern.permute.xlu0 0
        %1344 = vperm.xlu0 %1343, %v1330
        %v1345 = vpop.permute.xlu0 %1344
        %1348 = vset.pattern.permute.xlu0 0
        %1349 = vperm.xlu0 %1348, %v1331
        %v1350 = vpop.permute.xlu0 %1349
        %1353 = vset.pattern.permute.xlu0 0
        %1354 = vperm.xlu0 %1353, %v1332
        %v1355 = vpop.permute.xlu0 %1354
        %1358 = vset.pattern.permute.xlu0 0
        %1359 = vperm.xlu0 %1358, %v1333
        %v1360 = vpop.permute.xlu0 %1359
        %1363 = vset.pattern.permute.xlu0 0
        %1364 = vperm.xlu0 %1363, %v1334
        %v1365 = vpop.permute.xlu0 %1364
        %1368 = vset.pattern.permute.xlu0 0
        %1369 = vperm.xlu0 %1368, %v1335
        %v1370 = vpop.permute.xlu0 %1369
        %1373 = vset.pattern.permute.xlu0 0
        %1374 = vperm.xlu0 %1373, %v1336
        %v1375 = vpop.permute.xlu0 %1374
        %v1377 = vmul.f32 %v738, %v1340
        %v1378 = vmul.f32 %v737, %v1345
        %v1379 = vmul.f32 %v736, %v1350
        %v1380 = vmul.f32 %v735, %v1355
        %v1381 = vmul.f32 %v734, %v1360
        %v1382 = vmul.f32 %v733, %v1365
        %v1383 = vmul.f32 %v732, %v1370
        %v1384 = vmul.f32 %v739, %v1375
        %s1385 = scalar_lea.vmem %s2, 40
        %v1386 = vld [vmem:[%s1385] sm:$0xff]
        %v1388 = vsel %vm464, %v1377, 0
        %v1391 = vsel %vm464, %v1378, 0
        %v1394 = vsel %vm464, %v1379, 0
        %v1397 = vsel %vm464, %v1380, 0
        %v1400 = vsel %vm464, %v1381, 0
        %v1403 = vsel %vm464, %v1382, 0
        %v1406 = vsel %vm464, %v1383, 0
        %v1409 = vsel %vm464, %v1384, 0
        %1411 = vmatprep.subr.mxu0 0.0
        %1412 = vmatpush1.msra.mxu0 0.0
        %1413 = vmatprep.subr.mxu0 0.0
        %1414 = vmatpush1.msra.mxu0 0.0
        %1415 = vmatprep.subr.mxu0 0.0
        %1416 = vmatpush1.msra.mxu0 0.0
        %1417 = vmatprep.subr.mxu0 0.0
        %1418 = vmatpush1.msra.mxu0 0.0
        %1419 = vmatprep.subr.mxu0 0.0
        %1420 = vmatpush1.msra.mxu0 0.0
        %1421 = vmatprep.subr.mxu0 0.0
        %1422 = vmatpush1.msra.mxu0 0.0
        %1423 = vmatprep.subr.mxu0 0.0
        %1424 = vmatpush1.msra.mxu0 0.0
        %1425 = vmatprep.subr.mxu0 0.0
        %1426 = vmatpush1.msra.mxu0 0.0
        %1427 = vmatprep.subr.mxu0 0.0
        %1428 = vmatpush1.msra.mxu0 0.0
        %1429 = vmatprep.subr.mxu0 0.0
        %1430 = vmatpush1.msra.mxu0 0.0
        %1431 = vmatprep.subr.mxu0 0.0
        %1432 = vmatpush1.msra.mxu0 0.0
        %1433 = vmatprep.subr.mxu0 0.0
        %1434 = vmatpush1.msra.mxu0 0.0
        %1435 = vmatprep.subr.mxu0 0.0
        %1436 = vmatpush1.msra.mxu0 0.0
        %1437 = vmatprep.subr.mxu0 0.0
        %1438 = vmatpush1.msra.mxu0 0.0
        %1439 = vmatprep.subr.mxu0 0.0
        %1440 = vmatpush1.msra.mxu0 0.0
        %1441 = vmatprep.subr.mxu0 0.0
        %1442 = vmatpush1.msra.mxu0 %v1386
        %1443 = vmatprep.subr.mxu0 0.0
        %1444 = vmatpush2.msra.mxu0 0.0
        %1445 = vmatprep.subr.mxu0 0.0
        %1446 = vmatpush2.msra.mxu0 0.0
        %1447 = vmatprep.subr.mxu0 0.0
        %1448 = vmatpush2.msra.mxu0 0.0
        %1449 = vmatprep.subr.mxu0 0.0
        %1450 = vmatpush2.msra.mxu0 0.0
        %1451 = vmatprep.subr.mxu0 0.0
        %1452 = vmatpush2.msra.mxu0 0.0
        %1453 = vmatprep.subr.mxu0 0.0
        %1454 = vmatpush2.msra.mxu0 0.0
        %1455 = vmatprep.subr.mxu0 0.0
        %1456 = vmatpush2.msra.mxu0 0.0
        %1457 = vmatprep.subr.mxu0 0.0
        %1458 = vmatpush2.msra.mxu0 0.0
        %1459 = vmatprep.subr.mxu0 0.0
        %1460 = vmatpush2.msra.mxu0 0.0
        %1461 = vmatprep.subr.mxu0 0.0
        %1462 = vmatpush2.msra.mxu0 0.0
        %1463 = vmatprep.subr.mxu0 0.0
        %1464 = vmatpush2.msra.mxu0 0.0
        %1465 = vmatprep.subr.mxu0 0.0
        %1466 = vmatpush2.msra.mxu0 0.0
        %1467 = vmatprep.subr.mxu0 0.0
        %1468 = vmatpush2.msra.mxu0 0.0
        %1469 = vmatprep.subr.mxu0 0.0
        %1470 = vmatpush2.msra.mxu0 0.0
        %1471 = vmatprep.subr.mxu0 0.0
        %1472 = vmatpush2.msra.mxu0 0.0
        %1473 = vmatprep.subr.mxu0 0.0
        %1474 = vmatpush2.msra.mxu0 0.0
        %1475 = vmatprep.mubr.f32.mxu0 0.0
        %1476 = vmatmul.mubr.f32.gmra.mxu0 %v1388
        %v1477 = vpop.f32.mrf.mxu0
        %v1478 = vadd.f32 0.0, %v1477
        %v1479 = vpop.f32.mrf.mxu0
        %1480 = vmatprep.mubr.f32.mxu0 0.0
        %1481 = vmatmul.mubr.f32.gmra.mxu0 %v1391
        %v1482 = vpop.f32.mrf.mxu0
        %v1483 = vadd.f32 0.0, %v1482
        %v1484 = vpop.f32.mrf.mxu0
        %1485 = vmatprep.mubr.f32.mxu0 0.0
        %1486 = vmatmul.mubr.f32.gmra.mxu0 %v1394
        %v1487 = vpop.f32.mrf.mxu0
        %v1488 = vadd.f32 0.0, %v1487
        %v1489 = vpop.f32.mrf.mxu0
        %1490 = vmatprep.mubr.f32.mxu0 0.0
        %1491 = vmatmul.mubr.f32.gmra.mxu0 %v1397
        %v1492 = vpop.f32.mrf.mxu0
        %v1493 = vadd.f32 0.0, %v1492
        %v1494 = vpop.f32.mrf.mxu0
        %1495 = vmatprep.mubr.f32.mxu0 0.0
        %1496 = vmatmul.mubr.f32.gmra.mxu0 %v1400
        %v1497 = vpop.f32.mrf.mxu0
        %v1498 = vadd.f32 0.0, %v1497
        %v1499 = vpop.f32.mrf.mxu0
        %1500 = vmatprep.mubr.f32.mxu0 0.0
        %1501 = vmatmul.mubr.f32.gmra.mxu0 %v1403
        %v1502 = vpop.f32.mrf.mxu0
        %v1503 = vadd.f32 0.0, %v1502
        %v1504 = vpop.f32.mrf.mxu0
        %1505 = vmatprep.mubr.f32.mxu0 0.0
        %1506 = vmatmul.mubr.f32.gmra.mxu0 %v1406
        %v1507 = vpop.f32.mrf.mxu0
        %v1508 = vadd.f32 0.0, %v1507
        %v1509 = vpop.f32.mrf.mxu0
        %1510 = vmatprep.mubr.f32.mxu0 0.0
        %1511 = vmatmul.mubr.f32.gmra.mxu0 %v1409
        %v1512 = vpop.f32.mrf.mxu0
        %v1513 = vadd.f32 0.0, %v1512
        %v1514 = vpop.f32.mrf.mxu0
        %1515 = vdwg.mxu0
        %v1516 = vadd.f32 %v1320, %v1478
        %v1517 = vadd.f32 %v1321, %v1483
        %v1518 = vadd.f32 %v1322, %v1488
        %v1519 = vadd.f32 %v1323, %v1493
        %v1520 = vadd.f32 %v1324, %v1498
        %v1521 = vadd.f32 %v1325, %v1503
        %v1522 = vadd.f32 %v1326, %v1508
        %v1523 = vadd.f32 %v1327, %v1513
        %s1524 = scalar_lea.vmem [#allocation2], 384
        %v1525 = vld [vmem:[%s1524] sm:$0xff]
        %v1526 = vld [vmem:[%s1524 + $0x8] sm:$0xff]
        %v1527 = vld [vmem:[%s1524 + $0x10] sm:$0xff]
        %v1528 = vld [vmem:[%s1524 + $0x18] sm:$0xff]
        %v1529 = vld [vmem:[%s1524 + $0x20] sm:$0xff]
        %v1530 = vld [vmem:[%s1524 + $0x28] sm:$0xff]
        %v1531 = vld [vmem:[%s1524 + $0x30] sm:$0xff]
        %v1532 = vld [vmem:[%s1524 + $0x38] sm:$0xff]
        %1534 = vset.pattern.permute.xlu0 0
        %1535 = vperm.xlu0 %1534, %v1525
        %v1536 = vpop.permute.xlu0 %1535
        %1539 = vset.pattern.permute.xlu0 0
        %1540 = vperm.xlu0 %1539, %v1526
        %v1541 = vpop.permute.xlu0 %1540
        %1544 = vset.pattern.permute.xlu0 0
        %1545 = vperm.xlu0 %1544, %v1527
        %v1546 = vpop.permute.xlu0 %1545
        %1549 = vset.pattern.permute.xlu0 0
        %1550 = vperm.xlu0 %1549, %v1528
        %v1551 = vpop.permute.xlu0 %1550
        %1554 = vset.pattern.permute.xlu0 0
        %1555 = vperm.xlu0 %1554, %v1529
        %v1556 = vpop.permute.xlu0 %1555
        %1559 = vset.pattern.permute.xlu0 0
        %1560 = vperm.xlu0 %1559, %v1530
        %v1561 = vpop.permute.xlu0 %1560
        %1564 = vset.pattern.permute.xlu0 0
        %1565 = vperm.xlu0 %1564, %v1531
        %v1566 = vpop.permute.xlu0 %1565
        %1569 = vset.pattern.permute.xlu0 0
        %1570 = vperm.xlu0 %1569, %v1532
        %v1571 = vpop.permute.xlu0 %1570
        %v1573 = vmul.f32 %v346, %v1536
        %v1574 = vmul.f32 %v345, %v1541
        %v1575 = vmul.f32 %v344, %v1546
        %v1576 = vmul.f32 %v343, %v1551
        %v1577 = vmul.f32 %v342, %v1556
        %v1578 = vmul.f32 %v341, %v1561
        %v1579 = vmul.f32 %v340, %v1566
        %v1580 = vmul.f32 %v347, %v1571
        %s1581 = scalar_lea.vmem %s2, 48
        %v1582 = vld [vmem:[%s1581] sm:$0xff]
        %v1584 = vsel %vm464, %v1573, 0
        %v1587 = vsel %vm464, %v1574, 0
        %v1590 = vsel %vm464, %v1575, 0
        %v1593 = vsel %vm464, %v1576, 0
        %v1596 = vsel %vm464, %v1577, 0
        %v1599 = vsel %vm464, %v1578, 0
        %v1602 = vsel %vm464, %v1579, 0
        %v1605 = vsel %vm464, %v1580, 0
        %1607 = vmatprep.subr.mxu0 0.0
        %1608 = vmatpush1.msra.mxu0 0.0
        %1609 = vmatprep.subr.mxu0 0.0
        %1610 = vmatpush1.msra.mxu0 0.0
        %1611 = vmatprep.subr.mxu0 0.0
        %1612 = vmatpush1.msra.mxu0 0.0
        %1613 = vmatprep.subr.mxu0 0.0
        %1614 = vmatpush1.msra.mxu0 0.0
        %1615 = vmatprep.subr.mxu0 0.0
        %1616 = vmatpush1.msra.mxu0 0.0
        %1617 = vmatprep.subr.mxu0 0.0
        %1618 = vmatpush1.msra.mxu0 0.0
        %1619 = vmatprep.subr.mxu0 0.0
        %1620 = vmatpush1.msra.mxu0 0.0
        %1621 = vmatprep.subr.mxu0 0.0
        %1622 = vmatpush1.msra.mxu0 0.0
        %1623 = vmatprep.subr.mxu0 0.0
        %1624 = vmatpush1.msra.mxu0 0.0
        %1625 = vmatprep.subr.mxu0 0.0
        %1626 = vmatpush1.msra.mxu0 0.0
        %1627 = vmatprep.subr.mxu0 0.0
        %1628 = vmatpush1.msra.mxu0 0.0
        %1629 = vmatprep.subr.mxu0 0.0
        %1630 = vmatpush1.msra.mxu0 0.0
        %1631 = vmatprep.subr.mxu0 0.0
        %1632 = vmatpush1.msra.mxu0 0.0
        %1633 = vmatprep.subr.mxu0 0.0
        %1634 = vmatpush1.msra.mxu0 0.0
        %1635 = vmatprep.subr.mxu0 0.0
        %1636 = vmatpush1.msra.mxu0 0.0
        %1637 = vmatprep.subr.mxu0 0.0
        %1638 = vmatpush1.msra.mxu0 %v1582
        %1639 = vmatprep.subr.mxu0 0.0
        %1640 = vmatpush2.msra.mxu0 0.0
        %1641 = vmatprep.subr.mxu0 0.0
        %1642 = vmatpush2.msra.mxu0 0.0
        %1643 = vmatprep.subr.mxu0 0.0
        %1644 = vmatpush2.msra.mxu0 0.0
        %1645 = vmatprep.subr.mxu0 0.0
        %1646 = vmatpush2.msra.mxu0 0.0
        %1647 = vmatprep.subr.mxu0 0.0
        %1648 = vmatpush2.msra.mxu0 0.0
        %1649 = vmatprep.subr.mxu0 0.0
        %1650 = vmatpush2.msra.mxu0 0.0
        %1651 = vmatprep.subr.mxu0 0.0
        %1652 = vmatpush2.msra.mxu0 0.0
        %1653 = vmatprep.subr.mxu0 0.0
        %1654 = vmatpush2.msra.mxu0 0.0
        %1655 = vmatprep.subr.mxu0 0.0
        %1656 = vmatpush2.msra.mxu0 0.0
        %1657 = vmatprep.subr.mxu0 0.0
        %1658 = vmatpush2.msra.mxu0 0.0
        %1659 = vmatprep.subr.mxu0 0.0
        %1660 = vmatpush2.msra.mxu0 0.0
        %1661 = vmatprep.subr.mxu0 0.0
        %1662 = vmatpush2.msra.mxu0 0.0
        %1663 = vmatprep.subr.mxu0 0.0
        %1664 = vmatpush2.msra.mxu0 0.0
        %1665 = vmatprep.subr.mxu0 0.0
        %1666 = vmatpush2.msra.mxu0 0.0
        %1667 = vmatprep.subr.mxu0 0.0
        %1668 = vmatpush2.msra.mxu0 0.0
        %1669 = vmatprep.subr.mxu0 0.0
        %1670 = vmatpush2.msra.mxu0 0.0
        %1671 = vmatprep.mubr.f32.mxu0 0.0
        %1672 = vmatmul.mubr.f32.gmra.mxu0 %v1584
        %v1673 = vpop.f32.mrf.mxu0
        %v1674 = vadd.f32 0.0, %v1673
        %v1675 = vpop.f32.mrf.mxu0
        %1676 = vmatprep.mubr.f32.mxu0 0.0
        %1677 = vmatmul.mubr.f32.gmra.mxu0 %v1587
        %v1678 = vpop.f32.mrf.mxu0
        %v1679 = vadd.f32 0.0, %v1678
        %v1680 = vpop.f32.mrf.mxu0
        %1681 = vmatprep.mubr.f32.mxu0 0.0
        %1682 = vmatmul.mubr.f32.gmra.mxu0 %v1590
        %v1683 = vpop.f32.mrf.mxu0
        %v1684 = vadd.f32 0.0, %v1683
        %v1685 = vpop.f32.mrf.mxu0
        %1686 = vmatprep.mubr.f32.mxu0 0.0
        %1687 = vmatmul.mubr.f32.gmra.mxu0 %v1593
        %v1688 = vpop.f32.mrf.mxu0
        %v1689 = vadd.f32 0.0, %v1688
        %v1690 = vpop.f32.mrf.mxu0
        %1691 = vmatprep.mubr.f32.mxu0 0.0
        %1692 = vmatmul.mubr.f32.gmra.mxu0 %v1596
        %v1693 = vpop.f32.mrf.mxu0
        %v1694 = vadd.f32 0.0, %v1693
        %v1695 = vpop.f32.mrf.mxu0
        %1696 = vmatprep.mubr.f32.mxu0 0.0
        %1697 = vmatmul.mubr.f32.gmra.mxu0 %v1599
        %v1698 = vpop.f32.mrf.mxu0
        %v1699 = vadd.f32 0.0, %v1698
        %v1700 = vpop.f32.mrf.mxu0
        %1701 = vmatprep.mubr.f32.mxu0 0.0
        %1702 = vmatmul.mubr.f32.gmra.mxu0 %v1602
        %v1703 = vpop.f32.mrf.mxu0
        %v1704 = vadd.f32 0.0, %v1703
        %v1705 = vpop.f32.mrf.mxu0
        %1706 = vmatprep.mubr.f32.mxu0 0.0
        %1707 = vmatmul.mubr.f32.gmra.mxu0 %v1605
        %v1708 = vpop.f32.mrf.mxu0
        %v1709 = vadd.f32 0.0, %v1708
        %v1710 = vpop.f32.mrf.mxu0
        %1711 = vdwg.mxu0
        %v1712 = vadd.f32 %v1516, %v1674
        %v1713 = vadd.f32 %v1517, %v1679
        %v1714 = vadd.f32 %v1518, %v1684
        %v1715 = vadd.f32 %v1519, %v1689
        %v1716 = vadd.f32 %v1520, %v1694
        %v1717 = vadd.f32 %v1521, %v1699
        %v1718 = vadd.f32 %v1522, %v1704
        %v1719 = vadd.f32 %v1523, %v1709
        %s1720 = scalar_lea.vmem [#allocation2], 448
        %v1721 = vld [vmem:[%s1720] sm:$0xff]
        %v1722 = vld [vmem:[%s1720 + $0x8] sm:$0xff]
        %v1723 = vld [vmem:[%s1720 + $0x10] sm:$0xff]
        %v1724 = vld [vmem:[%s1720 + $0x18] sm:$0xff]
        %v1725 = vld [vmem:[%s1720 + $0x20] sm:$0xff]
        %v1726 = vld [vmem:[%s1720 + $0x28] sm:$0xff]
        %v1727 = vld [vmem:[%s1720 + $0x30] sm:$0xff]
        %v1728 = vld [vmem:[%s1720 + $0x38] sm:$0xff]
        %1730 = vset.pattern.permute.xlu0 0
        %1731 = vperm.xlu0 %1730, %v1721
        %v1732 = vpop.permute.xlu0 %1731
        %1735 = vset.pattern.permute.xlu0 0
        %1736 = vperm.xlu0 %1735, %v1722
        %v1737 = vpop.permute.xlu0 %1736
        %1740 = vset.pattern.permute.xlu0 0
        %1741 = vperm.xlu0 %1740, %v1723
        %v1742 = vpop.permute.xlu0 %1741
        %1745 = vset.pattern.permute.xlu0 0
        %1746 = vperm.xlu0 %1745, %v1724
        %v1747 = vpop.permute.xlu0 %1746
        %1750 = vset.pattern.permute.xlu0 0
        %1751 = vperm.xlu0 %1750, %v1725
        %v1752 = vpop.permute.xlu0 %1751
        %1755 = vset.pattern.permute.xlu0 0
        %1756 = vperm.xlu0 %1755, %v1726
        %v1757 = vpop.permute.xlu0 %1756
        %1760 = vset.pattern.permute.xlu0 0
        %1761 = vperm.xlu0 %1760, %v1727
        %v1762 = vpop.permute.xlu0 %1761
        %1765 = vset.pattern.permute.xlu0 0
        %1766 = vperm.xlu0 %1765, %v1728
        %v1767 = vpop.permute.xlu0 %1766
        %v1769 = vmul.f32 %v322, %v1732
        %v1770 = vmul.f32 %v323, %v1737
        %v1771 = vmul.f32 %v324, %v1742
        %v1772 = vmul.f32 %v325, %v1747
        %v1773 = vmul.f32 %v326, %v1752
        %v1774 = vmul.f32 %v327, %v1757
        %v1775 = vmul.f32 %v328, %v1762
        %v1776 = vmul.f32 %v321, %v1767
        %s1777 = scalar_lea.vmem %s2, 56
        %v1778 = vld [vmem:[%s1777] sm:$0xff]
        %v1780 = vsel %vm464, %v1769, 0
        %v1783 = vsel %vm464, %v1770, 0
        %v1786 = vsel %vm464, %v1771, 0
        %v1789 = vsel %vm464, %v1772, 0
        %v1792 = vsel %vm464, %v1773, 0
        %v1795 = vsel %vm464, %v1774, 0
        %v1798 = vsel %vm464, %v1775, 0
        %v1801 = vsel %vm464, %v1776, 0
        %1803 = vmatprep.subr.mxu0 0.0
        %1804 = vmatpush1.msra.mxu0 0.0
        %1805 = vmatprep.subr.mxu0 0.0
        %1806 = vmatpush1.msra.mxu0 0.0
        %1807 = vmatprep.subr.mxu0 0.0
        %1808 = vmatpush1.msra.mxu0 0.0
        %1809 = vmatprep.subr.mxu0 0.0
        %1810 = vmatpush1.msra.mxu0 0.0
        %1811 = vmatprep.subr.mxu0 0.0
        %1812 = vmatpush1.msra.mxu0 0.0
        %1813 = vmatprep.subr.mxu0 0.0
        %1814 = vmatpush1.msra.mxu0 0.0
        %1815 = vmatprep.subr.mxu0 0.0
        %1816 = vmatpush1.msra.mxu0 0.0
        %1817 = vmatprep.subr.mxu0 0.0
        %1818 = vmatpush1.msra.mxu0 0.0
        %1819 = vmatprep.subr.mxu0 0.0
        %1820 = vmatpush1.msra.mxu0 0.0
        %1821 = vmatprep.subr.mxu0 0.0
        %1822 = vmatpush1.msra.mxu0 0.0
        %1823 = vmatprep.subr.mxu0 0.0
        %1824 = vmatpush1.msra.mxu0 0.0
        %1825 = vmatprep.subr.mxu0 0.0
        %1826 = vmatpush1.msra.mxu0 0.0
        %1827 = vmatprep.subr.mxu0 0.0
        %1828 = vmatpush1.msra.mxu0 0.0
        %1829 = vmatprep.subr.mxu0 0.0
        %1830 = vmatpush1.msra.mxu0 0.0
        %1831 = vmatprep.subr.mxu0 0.0
        %1832 = vmatpush1.msra.mxu0 0.0
        %1833 = vmatprep.subr.mxu0 0.0
        %1834 = vmatpush1.msra.mxu0 %v1778
        %1835 = vmatprep.subr.mxu0 0.0
        %1836 = vmatpush2.msra.mxu0 0.0
        %1837 = vmatprep.subr.mxu0 0.0
        %1838 = vmatpush2.msra.mxu0 0.0
        %1839 = vmatprep.subr.mxu0 0.0
        %1840 = vmatpush2.msra.mxu0 0.0
        %1841 = vmatprep.subr.mxu0 0.0
        %1842 = vmatpush2.msra.mxu0 0.0
        %1843 = vmatprep.subr.mxu0 0.0
        %1844 = vmatpush2.msra.mxu0 0.0
        %1845 = vmatprep.subr.mxu0 0.0
        %1846 = vmatpush2.msra.mxu0 0.0
        %1847 = vmatprep.subr.mxu0 0.0
        %1848 = vmatpush2.msra.mxu0 0.0
        %1849 = vmatprep.subr.mxu0 0.0
        %1850 = vmatpush2.msra.mxu0 0.0
        %1851 = vmatprep.subr.mxu0 0.0
        %1852 = vmatpush2.msra.mxu0 0.0
        %1853 = vmatprep.subr.mxu0 0.0
        %1854 = vmatpush2.msra.mxu0 0.0
        %1855 = vmatprep.subr.mxu0 0.0
        %1856 = vmatpush2.msra.mxu0 0.0
        %1857 = vmatprep.subr.mxu0 0.0
        %1858 = vmatpush2.msra.mxu0 0.0
        %1859 = vmatprep.subr.mxu0 0.0
        %1860 = vmatpush2.msra.mxu0 0.0
        %1861 = vmatprep.subr.mxu0 0.0
        %1862 = vmatpush2.msra.mxu0 0.0
        %1863 = vmatprep.subr.mxu0 0.0
        %1864 = vmatpush2.msra.mxu0 0.0
        %1865 = vmatprep.subr.mxu0 0.0
        %1866 = vmatpush2.msra.mxu0 0.0
        %1867 = vmatprep.mubr.f32.mxu0 0.0
        %1868 = vmatmul.mubr.f32.gmra.mxu0 %v1780
        %v1869 = vpop.f32.mrf.mxu0
        %v1870 = vadd.f32 0.0, %v1869
        %v1871 = vpop.f32.mrf.mxu0
        %1872 = vmatprep.mubr.f32.mxu0 0.0
        %1873 = vmatmul.mubr.f32.gmra.mxu0 %v1783
        %v1874 = vpop.f32.mrf.mxu0
        %v1875 = vadd.f32 0.0, %v1874
        %v1876 = vpop.f32.mrf.mxu0
        %1877 = vmatprep.mubr.f32.mxu0 0.0
        %1878 = vmatmul.mubr.f32.gmra.mxu0 %v1786
        %v1879 = vpop.f32.mrf.mxu0
        %v1880 = vadd.f32 0.0, %v1879
        %v1881 = vpop.f32.mrf.mxu0
        %1882 = vmatprep.mubr.f32.mxu0 0.0
        %1883 = vmatmul.mubr.f32.gmra.mxu0 %v1789
        %v1884 = vpop.f32.mrf.mxu0
        %v1885 = vadd.f32 0.0, %v1884
        %v1886 = vpop.f32.mrf.mxu0
        %1887 = vmatprep.mubr.f32.mxu0 0.0
        %1888 = vmatmul.mubr.f32.gmra.mxu0 %v1792
        %v1889 = vpop.f32.mrf.mxu0
        %v1890 = vadd.f32 0.0, %v1889
        %v1891 = vpop.f32.mrf.mxu0
        %1892 = vmatprep.mubr.f32.mxu0 0.0
        %1893 = vmatmul.mubr.f32.gmra.mxu0 %v1795
        %v1894 = vpop.f32.mrf.mxu0
        %v1895 = vadd.f32 0.0, %v1894
        %v1896 = vpop.f32.mrf.mxu0
        %1897 = vmatprep.mubr.f32.mxu0 0.0
        %1898 = vmatmul.mubr.f32.gmra.mxu0 %v1798
        %v1899 = vpop.f32.mrf.mxu0
        %v1900 = vadd.f32 0.0, %v1899
        %v1901 = vpop.f32.mrf.mxu0
        %1902 = vmatprep.mubr.f32.mxu0 0.0
        %1903 = vmatmul.mubr.f32.gmra.mxu0 %v1801
        %v1904 = vpop.f32.mrf.mxu0
        %v1905 = vadd.f32 0.0, %v1904
        %v1906 = vpop.f32.mrf.mxu0
        %1907 = vdwg.mxu0
        %v1908 = vadd.f32 %v1712, %v1870
        %v1909 = vadd.f32 %v1713, %v1875
        %v1910 = vadd.f32 %v1714, %v1880
        %v1911 = vadd.f32 %v1715, %v1885
        %v1912 = vadd.f32 %v1716, %v1890
        %v1913 = vadd.f32 %v1717, %v1895
        %v1914 = vadd.f32 %v1718, %v1900
        %v1915 = vadd.f32 %v1719, %v1905
        %s1916 = scalar_lea.vmem [#allocation2], 512
        %v1917 = vld [vmem:[%s1916] sm:$0xff]
        %v1918 = vld [vmem:[%s1916 + $0x8] sm:$0xff]
        %v1919 = vld [vmem:[%s1916 + $0x10] sm:$0xff]
        %v1920 = vld [vmem:[%s1916 + $0x18] sm:$0xff]
        %v1921 = vld [vmem:[%s1916 + $0x20] sm:$0xff]
        %v1922 = vld [vmem:[%s1916 + $0x28] sm:$0xff]
        %v1923 = vld [vmem:[%s1916 + $0x30] sm:$0xff]
        %v1924 = vld [vmem:[%s1916 + $0x38] sm:$0xff]
        %1926 = vset.pattern.permute.xlu0 0
        %1927 = vperm.xlu0 %1926, %v1917
        %v1928 = vpop.permute.xlu0 %1927
        %1931 = vset.pattern.permute.xlu0 0
        %1932 = vperm.xlu0 %1931, %v1918
        %v1933 = vpop.permute.xlu0 %1932
        %1936 = vset.pattern.permute.xlu0 0
        %1937 = vperm.xlu0 %1936, %v1919
        %v1938 = vpop.permute.xlu0 %1937
        %1941 = vset.pattern.permute.xlu0 0
        %1942 = vperm.xlu0 %1941, %v1920
        %v1943 = vpop.permute.xlu0 %1942
        %1946 = vset.pattern.permute.xlu0 0
        %1947 = vperm.xlu0 %1946, %v1921
        %v1948 = vpop.permute.xlu0 %1947
        %1951 = vset.pattern.permute.xlu0 0
        %1952 = vperm.xlu0 %1951, %v1922
        %v1953 = vpop.permute.xlu0 %1952
        %1956 = vset.pattern.permute.xlu0 0
        %1957 = vperm.xlu0 %1956, %v1923
        %v1958 = vpop.permute.xlu0 %1957
        %1961 = vset.pattern.permute.xlu0 0
        %1962 = vperm.xlu0 %1961, %v1924
        %v1963 = vpop.permute.xlu0 %1962
        %v1965 = vmul.f32 %v737, %v1928
        %v1966 = vmul.f32 %v736, %v1933
        %v1967 = vmul.f32 %v735, %v1938
        %v1968 = vmul.f32 %v734, %v1943
        %v1969 = vmul.f32 %v733, %v1948
        %v1970 = vmul.f32 %v732, %v1953
        %v1971 = vmul.f32 %v739, %v1958
        %v1972 = vmul.f32 %v738, %v1963
        %s1973 = scalar_lea.vmem %s2, 64
        %v1974 = vld [vmem:[%s1973] sm:$0xff]
        %v1976 = vsel %vm464, %v1965, 0
        %v1979 = vsel %vm464, %v1966, 0
        %v1982 = vsel %vm464, %v1967, 0
        %v1985 = vsel %vm464, %v1968, 0
        %v1988 = vsel %vm464, %v1969, 0
        %v1991 = vsel %vm464, %v1970, 0
        %v1994 = vsel %vm464, %v1971, 0
        %v1997 = vsel %vm464, %v1972, 0
        %1999 = vmatprep.subr.mxu0 0.0
        %2000 = vmatpush1.msra.mxu0 0.0
        %2001 = vmatprep.subr.mxu0 0.0
        %2002 = vmatpush1.msra.mxu0 0.0
        %2003 = vmatprep.subr.mxu0 0.0
        %2004 = vmatpush1.msra.mxu0 0.0
        %2005 = vmatprep.subr.mxu0 0.0
        %2006 = vmatpush1.msra.mxu0 0.0
        %2007 = vmatprep.subr.mxu0 0.0
        %2008 = vmatpush1.msra.mxu0 0.0
        %2009 = vmatprep.subr.mxu0 0.0
        %2010 = vmatpush1.msra.mxu0 0.0
        %2011 = vmatprep.subr.mxu0 0.0
        %2012 = vmatpush1.msra.mxu0 0.0
        %2013 = vmatprep.subr.mxu0 0.0
        %2014 = vmatpush1.msra.mxu0 0.0
        %2015 = vmatprep.subr.mxu0 0.0
        %2016 = vmatpush1.msra.mxu0 0.0
        %2017 = vmatprep.subr.mxu0 0.0
        %2018 = vmatpush1.msra.mxu0 0.0
        %2019 = vmatprep.subr.mxu0 0.0
        %2020 = vmatpush1.msra.mxu0 0.0
        %2021 = vmatprep.subr.mxu0 0.0
        %2022 = vmatpush1.msra.mxu0 0.0
        %2023 = vmatprep.subr.mxu0 0.0
        %2024 = vmatpush1.msra.mxu0 0.0
        %2025 = vmatprep.subr.mxu0 0.0
        %2026 = vmatpush1.msra.mxu0 0.0
        %2027 = vmatprep.subr.mxu0 0.0
        %2028 = vmatpush1.msra.mxu0 0.0
        %2029 = vmatprep.subr.mxu0 0.0
        %2030 = vmatpush1.msra.mxu0 %v1974
        %2031 = vmatprep.subr.mxu0 0.0
        %2032 = vmatpush2.msra.mxu0 0.0
        %2033 = vmatprep.subr.mxu0 0.0
        %2034 = vmatpush2.msra.mxu0 0.0
        %2035 = vmatprep.subr.mxu0 0.0
        %2036 = vmatpush2.msra.mxu0 0.0
        %2037 = vmatprep.subr.mxu0 0.0
        %2038 = vmatpush2.msra.mxu0 0.0
        %2039 = vmatprep.subr.mxu0 0.0
        %2040 = vmatpush2.msra.mxu0 0.0
        %2041 = vmatprep.subr.mxu0 0.0
        %2042 = vmatpush2.msra.mxu0 0.0
        %2043 = vmatprep.subr.mxu0 0.0
        %2044 = vmatpush2.msra.mxu0 0.0
        %2045 = vmatprep.subr.mxu0 0.0
        %2046 = vmatpush2.msra.mxu0 0.0
        %2047 = vmatprep.subr.mxu0 0.0
        %2048 = vmatpush2.msra.mxu0 0.0
        %2049 = vmatprep.subr.mxu0 0.0
        %2050 = vmatpush2.msra.mxu0 0.0
        %2051 = vmatprep.subr.mxu0 0.0
        %2052 = vmatpush2.msra.mxu0 0.0
        %2053 = vmatprep.subr.mxu0 0.0
        %2054 = vmatpush2.msra.mxu0 0.0
        %2055 = vmatprep.subr.mxu0 0.0
        %2056 = vmatpush2.msra.mxu0 0.0
        %2057 = vmatprep.subr.mxu0 0.0
        %2058 = vmatpush2.msra.mxu0 0.0
        %2059 = vmatprep.subr.mxu0 0.0
        %2060 = vmatpush2.msra.mxu0 0.0
        %2061 = vmatprep.subr.mxu0 0.0
        %2062 = vmatpush2.msra.mxu0 0.0
        %2063 = vmatprep.mubr.f32.mxu0 0.0
        %2064 = vmatmul.mubr.f32.gmra.mxu0 %v1976
        %v2065 = vpop.f32.mrf.mxu0
        %v2066 = vadd.f32 0.0, %v2065
        %v2067 = vpop.f32.mrf.mxu0
        %2068 = vmatprep.mubr.f32.mxu0 0.0
        %2069 = vmatmul.mubr.f32.gmra.mxu0 %v1979
        %v2070 = vpop.f32.mrf.mxu0
        %v2071 = vadd.f32 0.0, %v2070
        %v2072 = vpop.f32.mrf.mxu0
        %2073 = vmatprep.mubr.f32.mxu0 0.0
        %2074 = vmatmul.mubr.f32.gmra.mxu0 %v1982
        %v2075 = vpop.f32.mrf.mxu0
        %v2076 = vadd.f32 0.0, %v2075
        %v2077 = vpop.f32.mrf.mxu0
        %2078 = vmatprep.mubr.f32.mxu0 0.0
        %2079 = vmatmul.mubr.f32.gmra.mxu0 %v1985
        %v2080 = vpop.f32.mrf.mxu0
        %v2081 = vadd.f32 0.0, %v2080
        %v2082 = vpop.f32.mrf.mxu0
        %2083 = vmatprep.mubr.f32.mxu0 0.0
        %2084 = vmatmul.mubr.f32.gmra.mxu0 %v1988
        %v2085 = vpop.f32.mrf.mxu0
        %v2086 = vadd.f32 0.0, %v2085
        %v2087 = vpop.f32.mrf.mxu0
        %2088 = vmatprep.mubr.f32.mxu0 0.0
        %2089 = vmatmul.mubr.f32.gmra.mxu0 %v1991
        %v2090 = vpop.f32.mrf.mxu0
        %v2091 = vadd.f32 0.0, %v2090
        %v2092 = vpop.f32.mrf.mxu0
        %2093 = vmatprep.mubr.f32.mxu0 0.0
        %2094 = vmatmul.mubr.f32.gmra.mxu0 %v1994
        %v2095 = vpop.f32.mrf.mxu0
        %v2096 = vadd.f32 0.0, %v2095
        %v2097 = vpop.f32.mrf.mxu0
        %2098 = vmatprep.mubr.f32.mxu0 0.0
        %2099 = vmatmul.mubr.f32.gmra.mxu0 %v1997
        %v2100 = vpop.f32.mrf.mxu0
        %v2101 = vadd.f32 0.0, %v2100
        %v2102 = vpop.f32.mrf.mxu0
        %2103 = vdwg.mxu0
        %v2104 = vadd.f32 %v1908, %v2066
        %v2105 = vadd.f32 %v1909, %v2071
        %v2106 = vadd.f32 %v1910, %v2076
        %v2107 = vadd.f32 %v1911, %v2081
        %v2108 = vadd.f32 %v1912, %v2086
        %v2109 = vadd.f32 %v1913, %v2091
        %v2110 = vadd.f32 %v1914, %v2096
        %v2111 = vadd.f32 %v1915, %v2101
        %v2112 = vld [vmem:[%s3] sm:$0x1]
        %v2114 = vlaneseq
        %v2115 = vshrl.u32 %v2114, 7
        %v2116 = vsub.s32 0, %v2115
        %v2117 = vrot.slane %v2112, %v2116
        %v2119 = vadd.f32 %v2104, %v2117
        %v2120 = vadd.f32 %v2105, %v2117
        %v2121 = vadd.f32 %v2106, %v2117
        %v2122 = vadd.f32 %v2107, %v2117
        %v2123 = vadd.f32 %v2108, %v2117
        %v2124 = vadd.f32 %v2109, %v2117
        %v2125 = vadd.f32 %v2110, %v2117
        %v2126 = vadd.f32 %v2111, %v2117
        %v2127 = vmax.f32 %v2119, 0.0
        %v2128 = vmax.f32 %v2120, 0.0
        %v2129 = vmax.f32 %v2121, 0.0
        %v2130 = vmax.f32 %v2122, 0.0
        %v2131 = vmax.f32 %v2123, 0.0
        %v2132 = vmax.f32 %v2124, 0.0
        %v2133 = vmax.f32 %v2125, 0.0
        %v2134 = vmax.f32 %v2126, 0.0
        %v2135 = vrot.slane %v2127, 7
        %v2136 = vrot.slane %v2128, 7
        %v2137 = vrot.slane %v2129, 7
        %v2138 = vrot.slane %v2130, 7
        %v2139 = vrot.slane %v2131, 7
        %v2140 = vrot.slane %v2132, 7
        %v2141 = vrot.slane %v2133, 7
        %v2142 = vrot.slane %v2134, 7
        %v2143 = vsel %vm339, %v2141, %v2142
        %v2144 = vsel %vm339, %v2140, %v2141
        %v2145 = vsel %vm339, %v2139, %v2140
        %v2146 = vsel %vm339, %v2138, %v2139
        %v2147 = vsel %vm339, %v2137, %v2138
        %v2148 = vsel %vm339, %v2136, %v2137
        %v2149 = vsel %vm339, %v2135, %v2136
        %v2150 = vsel %vm339, %v2142, %v2135
        %v2151 = vmul.f32 %v2143, %v359
        %v2152 = vmul.f32 %v2150, %v364
        %v2153 = vmul.f32 %v2149, %v369
        %v2154 = vmul.f32 %v2148, %v374
        %v2155 = vmul.f32 %v2147, %v379
        %v2156 = vmul.f32 %v2146, %v384
        %v2157 = vmul.f32 %v2145, %v389
        %v2158 = vmul.f32 %v2144, %v394
        %v2159 = vld [vmem:[%s4] sm:$0xff]
        %v2160 = vld [vmem:[%s4 + $0x8] sm:$0xff]
        %v2161 = vmul.f32 %v2134, %v417
        %v2162 = vmul.f32 %v2127, %v422
        %v2163 = vmul.f32 %v2128, %v427
        %v2164 = vmul.f32 %v2129, %v432
        %v2165 = vmul.f32 %v2130, %v437
        %v2166 = vmul.f32 %v2131, %v442
        %v2167 = vmul.f32 %v2132, %v447
        %v2168 = vmul.f32 %v2133, %v452
        %s2169 = scalar_lea.vmem %s4, 16
        %v2170 = vld [vmem:[%s2169] sm:$0xff]
        %v2171 = vld [vmem:[%s2169 + $0x8] sm:$0xff]
        %vm2172 = vcmask 130048
        %v2174 = vsel %vm2172, %v2161, 0
        %v2177 = vsel %vm2172, %v2162, 0
        %v2180 = vsel %vm2172, %v2163, 0
        %v2183 = vsel %vm2172, %v2164, 0
        %v2186 = vsel %vm2172, %v2165, 0
        %v2189 = vsel %vm2172, %v2166, 0
        %v2192 = vsel %vm2172, %v2167, 0
        %v2195 = vsel %vm2172, %v2168, 0
        %2197 = vmatprep.subr.mxu0 0.0
        %2198 = vmatpush1.msra.mxu0 0.0
        %2199 = vmatprep.subr.mxu0 0.0
        %2200 = vmatpush1.msra.mxu0 0.0
        %2201 = vmatprep.subr.mxu0 0.0
        %2202 = vmatpush1.msra.mxu0 0.0
        %2203 = vmatprep.subr.mxu0 0.0
        %2204 = vmatpush1.msra.mxu0 0.0
        %2205 = vmatprep.subr.mxu0 0.0
        %2206 = vmatpush1.msra.mxu0 0.0
        %2207 = vmatprep.subr.mxu0 0.0
        %2208 = vmatpush1.msra.mxu0 0.0
        %2209 = vmatprep.subr.mxu0 0.0
        %2210 = vmatpush1.msra.mxu0 0.0
        %2211 = vmatprep.subr.mxu0 0.0
        %2212 = vmatpush1.msra.mxu0 0.0
        %2213 = vmatprep.subr.mxu0 0.0
        %2214 = vmatpush1.msra.mxu0 0.0
        %2215 = vmatprep.subr.mxu0 0.0
        %2216 = vmatpush1.msra.mxu0 0.0
        %2217 = vmatprep.subr.mxu0 0.0
        %2218 = vmatpush1.msra.mxu0 0.0
        %2219 = vmatprep.subr.mxu0 0.0
        %2220 = vmatpush1.msra.mxu0 0.0
        %2221 = vmatprep.subr.mxu0 0.0
        %2222 = vmatpush1.msra.mxu0 0.0
        %2223 = vmatprep.subr.mxu0 0.0
        %2224 = vmatpush1.msra.mxu0 0.0
        %2225 = vmatprep.subr.mxu0 0.0
        %2226 = vmatpush1.msra.mxu0 %v2171
        %2227 = vmatprep.subr.mxu0 0.0
        %2228 = vmatpush1.msra.mxu0 %v2170
        %2229 = vmatprep.subr.mxu0 0.0
        %2230 = vmatpush2.msra.mxu0 0.0
        %2231 = vmatprep.subr.mxu0 0.0
        %2232 = vmatpush2.msra.mxu0 0.0
        %2233 = vmatprep.subr.mxu0 0.0
        %2234 = vmatpush2.msra.mxu0 0.0
        %2235 = vmatprep.subr.mxu0 0.0
        %2236 = vmatpush2.msra.mxu0 0.0
        %2237 = vmatprep.subr.mxu0 0.0
        %2238 = vmatpush2.msra.mxu0 0.0
        %2239 = vmatprep.subr.mxu0 0.0
        %2240 = vmatpush2.msra.mxu0 0.0
        %2241 = vmatprep.subr.mxu0 0.0
        %2242 = vmatpush2.msra.mxu0 0.0
        %2243 = vmatprep.subr.mxu0 0.0
        %2244 = vmatpush2.msra.mxu0 0.0
        %2245 = vmatprep.subr.mxu0 0.0
        %2246 = vmatpush2.msra.mxu0 0.0
        %2247 = vmatprep.subr.mxu0 0.0
        %2248 = vmatpush2.msra.mxu0 0.0
        %2249 = vmatprep.subr.mxu0 0.0
        %2250 = vmatpush2.msra.mxu0 0.0
        %2251 = vmatprep.subr.mxu0 0.0
        %2252 = vmatpush2.msra.mxu0 0.0
        %2253 = vmatprep.subr.mxu0 0.0
        %2254 = vmatpush2.msra.mxu0 0.0
        %2255 = vmatprep.subr.mxu0 0.0
        %2256 = vmatpush2.msra.mxu0 0.0
        %2257 = vmatprep.subr.mxu0 0.0
        %2258 = vmatpush2.msra.mxu0 0.0
        %2259 = vmatprep.subr.mxu0 0.0
        %2260 = vmatpush2.msra.mxu0 0.0
        %2261 = vmatprep.mubr.f32.mxu0 0.0
        %2262 = vmatmul.mubr.f32.gmra.mxu0 %v2174
        %v2263 = vpop.f32.mrf.mxu0
        %v2264 = vadd.f32 0.0, %v2263
        %v2265 = vpop.f32.mrf.mxu0
        %2266 = vmatprep.mubr.f32.mxu0 0.0
        %2267 = vmatmul.mubr.f32.gmra.mxu0 %v2177
        %v2268 = vpop.f32.mrf.mxu0
        %v2269 = vadd.f32 0.0, %v2268
        %v2270 = vpop.f32.mrf.mxu0
        %2271 = vmatprep.mubr.f32.mxu0 0.0
        %2272 = vmatmul.mubr.f32.gmra.mxu0 %v2180
        %v2273 = vpop.f32.mrf.mxu0
        %v2274 = vadd.f32 0.0, %v2273
        %v2275 = vpop.f32.mrf.mxu0
        %2276 = vmatprep.mubr.f32.mxu0 0.0
        %2277 = vmatmul.mubr.f32.gmra.mxu0 %v2183
        %v2278 = vpop.f32.mrf.mxu0
        %v2279 = vadd.f32 0.0, %v2278
        %v2280 = vpop.f32.mrf.mxu0
        %2281 = vmatprep.mubr.f32.mxu0 0.0
        %2282 = vmatmul.mubr.f32.gmra.mxu0 %v2186
        %v2283 = vpop.f32.mrf.mxu0
        %v2284 = vadd.f32 0.0, %v2283
        %v2285 = vpop.f32.mrf.mxu0
        %2286 = vmatprep.mubr.f32.mxu0 0.0
        %2287 = vmatmul.mubr.f32.gmra.mxu0 %v2189
        %v2288 = vpop.f32.mrf.mxu0
        %v2289 = vadd.f32 0.0, %v2288
        %v2290 = vpop.f32.mrf.mxu0
        %2291 = vmatprep.mubr.f32.mxu0 0.0
        %2292 = vmatmul.mubr.f32.gmra.mxu0 %v2192
        %v2293 = vpop.f32.mrf.mxu0
        %v2294 = vadd.f32 0.0, %v2293
        %v2295 = vpop.f32.mrf.mxu0
        %2296 = vmatprep.mubr.f32.mxu0 0.0
        %2297 = vmatmul.mubr.f32.gmra.mxu0 %v2195
        %v2298 = vpop.f32.mrf.mxu0
        %v2299 = vadd.f32 0.0, %v2298
        %v2300 = vpop.f32.mrf.mxu0
        %2301 = vdwg.mxu0
        %v2303 = vsel %vm2172, %v2151, 0
        %v2306 = vsel %vm2172, %v2152, 0
        %v2309 = vsel %vm2172, %v2153, 0
        %v2312 = vsel %vm2172, %v2154, 0
        %v2315 = vsel %vm2172, %v2155, 0
        %v2318 = vsel %vm2172, %v2156, 0
        %v2321 = vsel %vm2172, %v2157, 0
        %v2324 = vsel %vm2172, %v2158, 0
        %2326 = vmatprep.subr.mxu0 0.0
        %2327 = vmatpush1.msra.mxu0 0.0
        %2328 = vmatprep.subr.mxu0 0.0
        %2329 = vmatpush1.msra.mxu0 0.0
        %2330 = vmatprep.subr.mxu0 0.0
        %2331 = vmatpush1.msra.mxu0 0.0
        %2332 = vmatprep.subr.mxu0 0.0
        %2333 = vmatpush1.msra.mxu0 0.0
        %2334 = vmatprep.subr.mxu0 0.0
        %2335 = vmatpush1.msra.mxu0 0.0
        %2336 = vmatprep.subr.mxu0 0.0
        %2337 = vmatpush1.msra.mxu0 0.0
        %2338 = vmatprep.subr.mxu0 0.0
        %2339 = vmatpush1.msra.mxu0 0.0
        %2340 = vmatprep.subr.mxu0 0.0
        %2341 = vmatpush1.msra.mxu0 0.0
        %2342 = vmatprep.subr.mxu0 0.0
        %2343 = vmatpush1.msra.mxu0 0.0
        %2344 = vmatprep.subr.mxu0 0.0
        %2345 = vmatpush1.msra.mxu0 0.0
        %2346 = vmatprep.subr.mxu0 0.0
        %2347 = vmatpush1.msra.mxu0 0.0
        %2348 = vmatprep.subr.mxu0 0.0
        %2349 = vmatpush1.msra.mxu0 0.0
        %2350 = vmatprep.subr.mxu0 0.0
        %2351 = vmatpush1.msra.mxu0 0.0
        %2352 = vmatprep.subr.mxu0 0.0
        %2353 = vmatpush1.msra.mxu0 0.0
        %2354 = vmatprep.subr.mxu0 0.0
        %2355 = vmatpush1.msra.mxu0 %v2160
        %2356 = vmatprep.subr.mxu0 0.0
        %2357 = vmatpush1.msra.mxu0 %v2159
        %2358 = vmatprep.subr.mxu0 0.0
        %2359 = vmatpush2.msra.mxu0 0.0
        %2360 = vmatprep.subr.mxu0 0.0
        %2361 = vmatpush2.msra.mxu0 0.0
        %2362 = vmatprep.subr.mxu0 0.0
        %2363 = vmatpush2.msra.mxu0 0.0
        %2364 = vmatprep.subr.mxu0 0.0
        %2365 = vmatpush2.msra.mxu0 0.0
        %2366 = vmatprep.subr.mxu0 0.0
        %2367 = vmatpush2.msra.mxu0 0.0
        %2368 = vmatprep.subr.mxu0 0.0
        %2369 = vmatpush2.msra.mxu0 0.0
        %2370 = vmatprep.subr.mxu0 0.0
        %2371 = vmatpush2.msra.mxu0 0.0
        %2372 = vmatprep.subr.mxu0 0.0
        %2373 = vmatpush2.msra.mxu0 0.0
        %2374 = vmatprep.subr.mxu0 0.0
        %2375 = vmatpush2.msra.mxu0 0.0
        %2376 = vmatprep.subr.mxu0 0.0
        %2377 = vmatpush2.msra.mxu0 0.0
        %2378 = vmatprep.subr.mxu0 0.0
        %2379 = vmatpush2.msra.mxu0 0.0
        %2380 = vmatprep.subr.mxu0 0.0
        %2381 = vmatpush2.msra.mxu0 0.0
        %2382 = vmatprep.subr.mxu0 0.0
        %2383 = vmatpush2.msra.mxu0 0.0
        %2384 = vmatprep.subr.mxu0 0.0
        %2385 = vmatpush2.msra.mxu0 0.0
        %2386 = vmatprep.subr.mxu0 0.0
        %2387 = vmatpush2.msra.mxu0 0.0
        %2388 = vmatprep.subr.mxu0 0.0
        %2389 = vmatpush2.msra.mxu0 0.0
        %2390 = vmatprep.mubr.f32.mxu0 0.0
        %2391 = vmatmul.mubr.f32.gmra.mxu0 %v2303
        %v2392 = vpop.f32.mrf.mxu0
        %v2393 = vadd.f32 %v2264, %v2392
        %v2394 = vpop.f32.mrf.mxu0
        %2395 = vmatprep.mubr.f32.mxu0 0.0
        %2396 = vmatmul.mubr.f32.gmra.mxu0 %v2306
        %v2397 = vpop.f32.mrf.mxu0
        %v2398 = vadd.f32 %v2269, %v2397
        %v2399 = vpop.f32.mrf.mxu0
        %2400 = vmatprep.mubr.f32.mxu0 0.0
        %2401 = vmatmul.mubr.f32.gmra.mxu0 %v2309
        %v2402 = vpop.f32.mrf.mxu0
        %v2403 = vadd.f32 %v2274, %v2402
        %v2404 = vpop.f32.mrf.mxu0
        %2405 = vmatprep.mubr.f32.mxu0 0.0
        %2406 = vmatmul.mubr.f32.gmra.mxu0 %v2312
        %v2407 = vpop.f32.mrf.mxu0
        %v2408 = vadd.f32 %v2279, %v2407
        %v2409 = vpop.f32.mrf.mxu0
        %2410 = vmatprep.mubr.f32.mxu0 0.0
        %2411 = vmatmul.mubr.f32.gmra.mxu0 %v2315
        %v2412 = vpop.f32.mrf.mxu0
        %v2413 = vadd.f32 %v2284, %v2412
        %v2414 = vpop.f32.mrf.mxu0
        %2415 = vmatprep.mubr.f32.mxu0 0.0
        %2416 = vmatmul.mubr.f32.gmra.mxu0 %v2318
        %v2417 = vpop.f32.mrf.mxu0
        %v2418 = vadd.f32 %v2289, %v2417
        %v2419 = vpop.f32.mrf.mxu0
        %2420 = vmatprep.mubr.f32.mxu0 0.0
        %2421 = vmatmul.mubr.f32.gmra.mxu0 %v2321
        %v2422 = vpop.f32.mrf.mxu0
        %v2423 = vadd.f32 %v2294, %v2422
        %v2424 = vpop.f32.mrf.mxu0
        %2425 = vmatprep.mubr.f32.mxu0 0.0
        %2426 = vmatmul.mubr.f32.gmra.mxu0 %v2324
        %v2427 = vpop.f32.mrf.mxu0
        %v2428 = vadd.f32 %v2299, %v2427
        %v2429 = vpop.f32.mrf.mxu0
        %2430 = vdwg.mxu0
        %v2431 = vrot.slane %v2127, 1
        %v2432 = vrot.slane %v2128, 1
        %v2433 = vrot.slane %v2129, 1
        %v2434 = vrot.slane %v2130, 1
        %v2435 = vrot.slane %v2131, 1
        %v2436 = vrot.slane %v2132, 1
        %v2437 = vrot.slane %v2133, 1
        %v2438 = vrot.slane %v2134, 1
        %v2439 = vsel %vm731, %v2437, %v2438
        %v2440 = vsel %vm731, %v2436, %v2437
        %v2441 = vsel %vm731, %v2435, %v2436
        %v2442 = vsel %vm731, %v2434, %v2435
        %v2443 = vsel %vm731, %v2433, %v2434
        %v2444 = vsel %vm731, %v2432, %v2433
        %v2445 = vsel %vm731, %v2431, %v2432
        %v2446 = vsel %vm731, %v2438, %v2431
        %v2447 = vmul.f32 %v2446, %v752
        %v2448 = vmul.f32 %v2445, %v757
        %v2449 = vmul.f32 %v2444, %v762
        %v2450 = vmul.f32 %v2443, %v767
        %v2451 = vmul.f32 %v2442, %v772
        %v2452 = vmul.f32 %v2441, %v777
        %v2453 = vmul.f32 %v2440, %v782
        %v2454 = vmul.f32 %v2439, %v787
        %s2455 = scalar_lea.vmem %s4, 32
        %v2456 = vld [vmem:[%s2455] sm:$0xff]
        %v2457 = vld [vmem:[%s2455 + $0x8] sm:$0xff]
        %v2459 = vsel %vm2172, %v2447, 0
        %v2462 = vsel %vm2172, %v2448, 0
        %v2465 = vsel %vm2172, %v2449, 0
        %v2468 = vsel %vm2172, %v2450, 0
        %v2471 = vsel %vm2172, %v2451, 0
        %v2474 = vsel %vm2172, %v2452, 0
        %v2477 = vsel %vm2172, %v2453, 0
        %v2480 = vsel %vm2172, %v2454, 0
        %2482 = vmatprep.subr.mxu0 0.0
        %2483 = vmatpush1.msra.mxu0 0.0
        %2484 = vmatprep.subr.mxu0 0.0
        %2485 = vmatpush1.msra.mxu0 0.0
        %2486 = vmatprep.subr.mxu0 0.0
        %2487 = vmatpush1.msra.mxu0 0.0
        %2488 = vmatprep.subr.mxu0 0.0
        %2489 = vmatpush1.msra.mxu0 0.0
        %2490 = vmatprep.subr.mxu0 0.0
        %2491 = vmatpush1.msra.mxu0 0.0
        %2492 = vmatprep.subr.mxu0 0.0
        %2493 = vmatpush1.msra.mxu0 0.0
        %2494 = vmatprep.subr.mxu0 0.0
        %2495 = vmatpush1.msra.mxu0 0.0
        %2496 = vmatprep.subr.mxu0 0.0
        %2497 = vmatpush1.msra.mxu0 0.0
        %2498 = vmatprep.subr.mxu0 0.0
        %2499 = vmatpush1.msra.mxu0 0.0
        %2500 = vmatprep.subr.mxu0 0.0
        %2501 = vmatpush1.msra.mxu0 0.0
        %2502 = vmatprep.subr.mxu0 0.0
        %2503 = vmatpush1.msra.mxu0 0.0
        %2504 = vmatprep.subr.mxu0 0.0
        %2505 = vmatpush1.msra.mxu0 0.0
        %2506 = vmatprep.subr.mxu0 0.0
        %2507 = vmatpush1.msra.mxu0 0.0
        %2508 = vmatprep.subr.mxu0 0.0
        %2509 = vmatpush1.msra.mxu0 0.0
        %2510 = vmatprep.subr.mxu0 0.0
        %2511 = vmatpush1.msra.mxu0 %v2457
        %2512 = vmatprep.subr.mxu0 0.0
        %2513 = vmatpush1.msra.mxu0 %v2456
        %2514 = vmatprep.subr.mxu0 0.0
        %2515 = vmatpush2.msra.mxu0 0.0
        %2516 = vmatprep.subr.mxu0 0.0
        %2517 = vmatpush2.msra.mxu0 0.0
        %2518 = vmatprep.subr.mxu0 0.0
        %2519 = vmatpush2.msra.mxu0 0.0
        %2520 = vmatprep.subr.mxu0 0.0
        %2521 = vmatpush2.msra.mxu0 0.0
        %2522 = vmatprep.subr.mxu0 0.0
        %2523 = vmatpush2.msra.mxu0 0.0
        %2524 = vmatprep.subr.mxu0 0.0
        %2525 = vmatpush2.msra.mxu0 0.0
        %2526 = vmatprep.subr.mxu0 0.0
        %2527 = vmatpush2.msra.mxu0 0.0
        %2528 = vmatprep.subr.mxu0 0.0
        %2529 = vmatpush2.msra.mxu0 0.0
        %2530 = vmatprep.subr.mxu0 0.0
        %2531 = vmatpush2.msra.mxu0 0.0
        %2532 = vmatprep.subr.mxu0 0.0
        %2533 = vmatpush2.msra.mxu0 0.0
        %2534 = vmatprep.subr.mxu0 0.0
        %2535 = vmatpush2.msra.mxu0 0.0
        %2536 = vmatprep.subr.mxu0 0.0
        %2537 = vmatpush2.msra.mxu0 0.0
        %2538 = vmatprep.subr.mxu0 0.0
        %2539 = vmatpush2.msra.mxu0 0.0
        %2540 = vmatprep.subr.mxu0 0.0
        %2541 = vmatpush2.msra.mxu0 0.0
        %2542 = vmatprep.subr.mxu0 0.0
        %2543 = vmatpush2.msra.mxu0 0.0
        %2544 = vmatprep.subr.mxu0 0.0
        %2545 = vmatpush2.msra.mxu0 0.0
        %2546 = vmatprep.mubr.f32.mxu0 0.0
        %2547 = vmatmul.mubr.f32.gmra.mxu0 %v2459
        %v2548 = vpop.f32.mrf.mxu0
        %v2549 = vadd.f32 0.0, %v2548
        %v2550 = vpop.f32.mrf.mxu0
        %2551 = vmatprep.mubr.f32.mxu0 0.0
        %2552 = vmatmul.mubr.f32.gmra.mxu0 %v2462
        %v2553 = vpop.f32.mrf.mxu0
        %v2554 = vadd.f32 0.0, %v2553
        %v2555 = vpop.f32.mrf.mxu0
        %2556 = vmatprep.mubr.f32.mxu0 0.0
        %2557 = vmatmul.mubr.f32.gmra.mxu0 %v2465
        %v2558 = vpop.f32.mrf.mxu0
        %v2559 = vadd.f32 0.0, %v2558
        %v2560 = vpop.f32.mrf.mxu0
        %2561 = vmatprep.mubr.f32.mxu0 0.0
        %2562 = vmatmul.mubr.f32.gmra.mxu0 %v2468
        %v2563 = vpop.f32.mrf.mxu0
        %v2564 = vadd.f32 0.0, %v2563
        %v2565 = vpop.f32.mrf.mxu0
        %2566 = vmatprep.mubr.f32.mxu0 0.0
        %2567 = vmatmul.mubr.f32.gmra.mxu0 %v2471
        %v2568 = vpop.f32.mrf.mxu0
        %v2569 = vadd.f32 0.0, %v2568
        %v2570 = vpop.f32.mrf.mxu0
        %2571 = vmatprep.mubr.f32.mxu0 0.0
        %2572 = vmatmul.mubr.f32.gmra.mxu0 %v2474
        %v2573 = vpop.f32.mrf.mxu0
        %v2574 = vadd.f32 0.0, %v2573
        %v2575 = vpop.f32.mrf.mxu0
        %2576 = vmatprep.mubr.f32.mxu0 0.0
        %2577 = vmatmul.mubr.f32.gmra.mxu0 %v2477
        %v2578 = vpop.f32.mrf.mxu0
        %v2579 = vadd.f32 0.0, %v2578
        %v2580 = vpop.f32.mrf.mxu0
        %2581 = vmatprep.mubr.f32.mxu0 0.0
        %2582 = vmatmul.mubr.f32.gmra.mxu0 %v2480
        %v2583 = vpop.f32.mrf.mxu0
        %v2584 = vadd.f32 0.0, %v2583
        %v2585 = vpop.f32.mrf.mxu0
        %2586 = vdwg.mxu0
        %v2587 = vadd.f32 %v2393, %v2549
        %v2588 = vadd.f32 %v2398, %v2554
        %v2589 = vadd.f32 %v2403, %v2559
        %v2590 = vadd.f32 %v2408, %v2564
        %v2591 = vadd.f32 %v2413, %v2569
        %v2592 = vadd.f32 %v2418, %v2574
        %v2593 = vadd.f32 %v2423, %v2579
        %v2594 = vadd.f32 %v2428, %v2584
        %v2595 = vmul.f32 %v2150, %v948
        %v2596 = vmul.f32 %v2149, %v953
        %v2597 = vmul.f32 %v2148, %v958
        %v2598 = vmul.f32 %v2147, %v963
        %v2599 = vmul.f32 %v2146, %v968
        %v2600 = vmul.f32 %v2145, %v973
        %v2601 = vmul.f32 %v2144, %v978
        %v2602 = vmul.f32 %v2143, %v983
        %s2603 = scalar_lea.vmem %s4, 48
        %v2604 = vld [vmem:[%s2603] sm:$0xff]
        %v2605 = vld [vmem:[%s2603 + $0x8] sm:$0xff]
        %v2607 = vsel %vm2172, %v2595, 0
        %v2610 = vsel %vm2172, %v2596, 0
        %v2613 = vsel %vm2172, %v2597, 0
        %v2616 = vsel %vm2172, %v2598, 0
        %v2619 = vsel %vm2172, %v2599, 0
        %v2622 = vsel %vm2172, %v2600, 0
        %v2625 = vsel %vm2172, %v2601, 0
        %v2628 = vsel %vm2172, %v2602, 0
        %2630 = vmatprep.subr.mxu0 0.0
        %2631 = vmatpush1.msra.mxu0 0.0
        %2632 = vmatprep.subr.mxu0 0.0
        %2633 = vmatpush1.msra.mxu0 0.0
        %2634 = vmatprep.subr.mxu0 0.0
        %2635 = vmatpush1.msra.mxu0 0.0
        %2636 = vmatprep.subr.mxu0 0.0
        %2637 = vmatpush1.msra.mxu0 0.0
        %2638 = vmatprep.subr.mxu0 0.0
        %2639 = vmatpush1.msra.mxu0 0.0
        %2640 = vmatprep.subr.mxu0 0.0
        %2641 = vmatpush1.msra.mxu0 0.0
        %2642 = vmatprep.subr.mxu0 0.0
        %2643 = vmatpush1.msra.mxu0 0.0
        %2644 = vmatprep.subr.mxu0 0.0
        %2645 = vmatpush1.msra.mxu0 0.0
        %2646 = vmatprep.subr.mxu0 0.0
        %2647 = vmatpush1.msra.mxu0 0.0
        %2648 = vmatprep.subr.mxu0 0.0
        %2649 = vmatpush1.msra.mxu0 0.0
        %2650 = vmatprep.subr.mxu0 0.0
        %2651 = vmatpush1.msra.mxu0 0.0
        %2652 = vmatprep.subr.mxu0 0.0
        %2653 = vmatpush1.msra.mxu0 0.0
        %2654 = vmatprep.subr.mxu0 0.0
        %2655 = vmatpush1.msra.mxu0 0.0
        %2656 = vmatprep.subr.mxu0 0.0
        %2657 = vmatpush1.msra.mxu0 0.0
        %2658 = vmatprep.subr.mxu0 0.0
        %2659 = vmatpush1.msra.mxu0 %v2605
        %2660 = vmatprep.subr.mxu0 0.0
        %2661 = vmatpush1.msra.mxu0 %v2604
        %2662 = vmatprep.subr.mxu0 0.0
        %2663 = vmatpush2.msra.mxu0 0.0
        %2664 = vmatprep.subr.mxu0 0.0
        %2665 = vmatpush2.msra.mxu0 0.0
        %2666 = vmatprep.subr.mxu0 0.0
        %2667 = vmatpush2.msra.mxu0 0.0
        %2668 = vmatprep.subr.mxu0 0.0
        %2669 = vmatpush2.msra.mxu0 0.0
        %2670 = vmatprep.subr.mxu0 0.0
        %2671 = vmatpush2.msra.mxu0 0.0
        %2672 = vmatprep.subr.mxu0 0.0
        %2673 = vmatpush2.msra.mxu0 0.0
        %2674 = vmatprep.subr.mxu0 0.0
        %2675 = vmatpush2.msra.mxu0 0.0
        %2676 = vmatprep.subr.mxu0 0.0
        %2677 = vmatpush2.msra.mxu0 0.0
        %2678 = vmatprep.subr.mxu0 0.0
        %2679 = vmatpush2.msra.mxu0 0.0
        %2680 = vmatprep.subr.mxu0 0.0
        %2681 = vmatpush2.msra.mxu0 0.0
        %2682 = vmatprep.subr.mxu0 0.0
        %2683 = vmatpush2.msra.mxu0 0.0
        %2684 = vmatprep.subr.mxu0 0.0
        %2685 = vmatpush2.msra.mxu0 0.0
        %2686 = vmatprep.subr.mxu0 0.0
        %2687 = vmatpush2.msra.mxu0 0.0
        %2688 = vmatprep.subr.mxu0 0.0
        %2689 = vmatpush2.msra.mxu0 0.0
        %2690 = vmatprep.subr.mxu0 0.0
        %2691 = vmatpush2.msra.mxu0 0.0
        %2692 = vmatprep.subr.mxu0 0.0
        %2693 = vmatpush2.msra.mxu0 0.0
        %2694 = vmatprep.mubr.f32.mxu0 0.0
        %2695 = vmatmul.mubr.f32.gmra.mxu0 %v2607
        %v2696 = vpop.f32.mrf.mxu0
        %v2697 = vadd.f32 0.0, %v2696
        %v2698 = vpop.f32.mrf.mxu0
        %2699 = vmatprep.mubr.f32.mxu0 0.0
        %2700 = vmatmul.mubr.f32.gmra.mxu0 %v2610
        %v2701 = vpop.f32.mrf.mxu0
        %v2702 = vadd.f32 0.0, %v2701
        %v2703 = vpop.f32.mrf.mxu0
        %2704 = vmatprep.mubr.f32.mxu0 0.0
        %2705 = vmatmul.mubr.f32.gmra.mxu0 %v2613
        %v2706 = vpop.f32.mrf.mxu0
        %v2707 = vadd.f32 0.0, %v2706
        %v2708 = vpop.f32.mrf.mxu0
        %2709 = vmatprep.mubr.f32.mxu0 0.0
        %2710 = vmatmul.mubr.f32.gmra.mxu0 %v2616
        %v2711 = vpop.f32.mrf.mxu0
        %v2712 = vadd.f32 0.0, %v2711
        %v2713 = vpop.f32.mrf.mxu0
        %2714 = vmatprep.mubr.f32.mxu0 0.0
        %2715 = vmatmul.mubr.f32.gmra.mxu0 %v2619
        %v2716 = vpop.f32.mrf.mxu0
        %v2717 = vadd.f32 0.0, %v2716
        %v2718 = vpop.f32.mrf.mxu0
        %2719 = vmatprep.mubr.f32.mxu0 0.0
        %2720 = vmatmul.mubr.f32.gmra.mxu0 %v2622
        %v2721 = vpop.f32.mrf.mxu0
        %v2722 = vadd.f32 0.0, %v2721
        %v2723 = vpop.f32.mrf.mxu0
        %2724 = vmatprep.mubr.f32.mxu0 0.0
        %2725 = vmatmul.mubr.f32.gmra.mxu0 %v2625
        %v2726 = vpop.f32.mrf.mxu0
        %v2727 = vadd.f32 0.0, %v2726
        %v2728 = vpop.f32.mrf.mxu0
        %2729 = vmatprep.mubr.f32.mxu0 0.0
        %2730 = vmatmul.mubr.f32.gmra.mxu0 %v2628
        %v2731 = vpop.f32.mrf.mxu0
        %v2732 = vadd.f32 0.0, %v2731
        %v2733 = vpop.f32.mrf.mxu0
        %2734 = vdwg.mxu0
        %v2735 = vadd.f32 %v2587, %v2697
        %v2736 = vadd.f32 %v2588, %v2702
        %v2737 = vadd.f32 %v2589, %v2707
        %v2738 = vadd.f32 %v2590, %v2712
        %v2739 = vadd.f32 %v2591, %v2717
        %v2740 = vadd.f32 %v2592, %v2722
        %v2741 = vadd.f32 %v2593, %v2727
        %v2742 = vadd.f32 %v2594, %v2732
        %v2743 = vmul.f32 %v2127, %v1144
        %v2744 = vmul.f32 %v2128, %v1149
        %v2745 = vmul.f32 %v2129, %v1154
        %v2746 = vmul.f32 %v2130, %v1159
        %v2747 = vmul.f32 %v2131, %v1164
        %v2748 = vmul.f32 %v2132, %v1169
        %v2749 = vmul.f32 %v2133, %v1174
        %v2750 = vmul.f32 %v2134, %v1179
        %s2751 = scalar_lea.vmem %s4, 64
        %v2752 = vld [vmem:[%s2751] sm:$0xff]
        %v2753 = vld [vmem:[%s2751 + $0x8] sm:$0xff]
        %v2755 = vsel %vm2172, %v2743, 0
        %v2758 = vsel %vm2172, %v2744, 0
        %v2761 = vsel %vm2172, %v2745, 0
        %v2764 = vsel %vm2172, %v2746, 0
        %v2767 = vsel %vm2172, %v2747, 0
        %v2770 = vsel %vm2172, %v2748, 0
        %v2773 = vsel %vm2172, %v2749, 0
        %v2776 = vsel %vm2172, %v2750, 0
        %2778 = vmatprep.subr.mxu0 0.0
        %2779 = vmatpush1.msra.mxu0 0.0
        %2780 = vmatprep.subr.mxu0 0.0
        %2781 = vmatpush1.msra.mxu0 0.0
        %2782 = vmatprep.subr.mxu0 0.0
        %2783 = vmatpush1.msra.mxu0 0.0
        %2784 = vmatprep.subr.mxu0 0.0
        %2785 = vmatpush1.msra.mxu0 0.0
        %2786 = vmatprep.subr.mxu0 0.0
        %2787 = vmatpush1.msra.mxu0 0.0
        %2788 = vmatprep.subr.mxu0 0.0
        %2789 = vmatpush1.msra.mxu0 0.0
        %2790 = vmatprep.subr.mxu0 0.0
        %2791 = vmatpush1.msra.mxu0 0.0
        %2792 = vmatprep.subr.mxu0 0.0
        %2793 = vmatpush1.msra.mxu0 0.0
        %2794 = vmatprep.subr.mxu0 0.0
        %2795 = vmatpush1.msra.mxu0 0.0
        %2796 = vmatprep.subr.mxu0 0.0
        %2797 = vmatpush1.msra.mxu0 0.0
        %2798 = vmatprep.subr.mxu0 0.0
        %2799 = vmatpush1.msra.mxu0 0.0
        %2800 = vmatprep.subr.mxu0 0.0
        %2801 = vmatpush1.msra.mxu0 0.0
        %2802 = vmatprep.subr.mxu0 0.0
        %2803 = vmatpush1.msra.mxu0 0.0
        %2804 = vmatprep.subr.mxu0 0.0
        %2805 = vmatpush1.msra.mxu0 0.0
        %2806 = vmatprep.subr.mxu0 0.0
        %2807 = vmatpush1.msra.mxu0 %v2753
        %2808 = vmatprep.subr.mxu0 0.0
        %2809 = vmatpush1.msra.mxu0 %v2752
        %2810 = vmatprep.subr.mxu0 0.0
        %2811 = vmatpush2.msra.mxu0 0.0
        %2812 = vmatprep.subr.mxu0 0.0
        %2813 = vmatpush2.msra.mxu0 0.0
        %2814 = vmatprep.subr.mxu0 0.0
        %2815 = vmatpush2.msra.mxu0 0.0
        %2816 = vmatprep.subr.mxu0 0.0
        %2817 = vmatpush2.msra.mxu0 0.0
        %2818 = vmatprep.subr.mxu0 0.0
        %2819 = vmatpush2.msra.mxu0 0.0
        %2820 = vmatprep.subr.mxu0 0.0
        %2821 = vmatpush2.msra.mxu0 0.0
        %2822 = vmatprep.subr.mxu0 0.0
        %2823 = vmatpush2.msra.mxu0 0.0
        %2824 = vmatprep.subr.mxu0 0.0
        %2825 = vmatpush2.msra.mxu0 0.0
        %2826 = vmatprep.subr.mxu0 0.0
        %2827 = vmatpush2.msra.mxu0 0.0
        %2828 = vmatprep.subr.mxu0 0.0
        %2829 = vmatpush2.msra.mxu0 0.0
        %2830 = vmatprep.subr.mxu0 0.0
        %2831 = vmatpush2.msra.mxu0 0.0
        %2832 = vmatprep.subr.mxu0 0.0
        %2833 = vmatpush2.msra.mxu0 0.0
        %2834 = vmatprep.subr.mxu0 0.0
        %2835 = vmatpush2.msra.mxu0 0.0
        %2836 = vmatprep.subr.mxu0 0.0
        %2837 = vmatpush2.msra.mxu0 0.0
        %2838 = vmatprep.subr.mxu0 0.0
        %2839 = vmatpush2.msra.mxu0 0.0
        %2840 = vmatprep.subr.mxu0 0.0
        %2841 = vmatpush2.msra.mxu0 0.0
        %2842 = vmatprep.mubr.f32.mxu0 0.0
        %2843 = vmatmul.mubr.f32.gmra.mxu0 %v2755
        %v2844 = vpop.f32.mrf.mxu0
        %v2845 = vadd.f32 0.0, %v2844
        %v2846 = vpop.f32.mrf.mxu0
        %2847 = vmatprep.mubr.f32.mxu0 0.0
        %2848 = vmatmul.mubr.f32.gmra.mxu0 %v2758
        %v2849 = vpop.f32.mrf.mxu0
        %v2850 = vadd.f32 0.0, %v2849
        %v2851 = vpop.f32.mrf.mxu0
        %2852 = vmatprep.mubr.f32.mxu0 0.0
        %2853 = vmatmul.mubr.f32.gmra.mxu0 %v2761
        %v2854 = vpop.f32.mrf.mxu0
        %v2855 = vadd.f32 0.0, %v2854
        %v2856 = vpop.f32.mrf.mxu0
        %2857 = vmatprep.mubr.f32.mxu0 0.0
        %2858 = vmatmul.mubr.f32.gmra.mxu0 %v2764
        %v2859 = vpop.f32.mrf.mxu0
        %v2860 = vadd.f32 0.0, %v2859
        %v2861 = vpop.f32.mrf.mxu0
        %2862 = vmatprep.mubr.f32.mxu0 0.0
        %2863 = vmatmul.mubr.f32.gmra.mxu0 %v2767
        %v2864 = vpop.f32.mrf.mxu0
        %v2865 = vadd.f32 0.0, %v2864
        %v2866 = vpop.f32.mrf.mxu0
        %2867 = vmatprep.mubr.f32.mxu0 0.0
        %2868 = vmatmul.mubr.f32.gmra.mxu0 %v2770
        %v2869 = vpop.f32.mrf.mxu0
        %v2870 = vadd.f32 0.0, %v2869
        %v2871 = vpop.f32.mrf.mxu0
        %2872 = vmatprep.mubr.f32.mxu0 0.0
        %2873 = vmatmul.mubr.f32.gmra.mxu0 %v2773
        %v2874 = vpop.f32.mrf.mxu0
        %v2875 = vadd.f32 0.0, %v2874
        %v2876 = vpop.f32.mrf.mxu0
        %2877 = vmatprep.mubr.f32.mxu0 0.0
        %2878 = vmatmul.mubr.f32.gmra.mxu0 %v2776
        %v2879 = vpop.f32.mrf.mxu0
        %v2880 = vadd.f32 0.0, %v2879
        %v2881 = vpop.f32.mrf.mxu0
        %2882 = vdwg.mxu0
        %v2883 = vadd.f32 %v2735, %v2845
        %v2884 = vadd.f32 %v2736, %v2850
        %v2885 = vadd.f32 %v2737, %v2855
        %v2886 = vadd.f32 %v2738, %v2860
        %v2887 = vadd.f32 %v2739, %v2865
        %v2888 = vadd.f32 %v2740, %v2870
        %v2889 = vadd.f32 %v2741, %v2875
        %v2890 = vadd.f32 %v2742, %v2880
        %v2891 = vmul.f32 %v2445, %v1340
        %v2892 = vmul.f32 %v2444, %v1345
        %v2893 = vmul.f32 %v2443, %v1350
        %v2894 = vmul.f32 %v2442, %v1355
        %v2895 = vmul.f32 %v2441, %v1360
        %v2896 = vmul.f32 %v2440, %v1365
        %v2897 = vmul.f32 %v2439, %v1370
        %v2898 = vmul.f32 %v2446, %v1375
        %s2899 = scalar_lea.vmem %s4, 80
        %v2900 = vld [vmem:[%s2899] sm:$0xff]
        %v2901 = vld [vmem:[%s2899 + $0x8] sm:$0xff]
        %v2903 = vsel %vm2172, %v2891, 0
        %v2906 = vsel %vm2172, %v2892, 0
        %v2909 = vsel %vm2172, %v2893, 0
        %v2912 = vsel %vm2172, %v2894, 0
        %v2915 = vsel %vm2172, %v2895, 0
        %v2918 = vsel %vm2172, %v2896, 0
        %v2921 = vsel %vm2172, %v2897, 0
        %v2924 = vsel %vm2172, %v2898, 0
        %2926 = vmatprep.subr.mxu0 0.0
        %2927 = vmatpush1.msra.mxu0 0.0
        %2928 = vmatprep.subr.mxu0 0.0
        %2929 = vmatpush1.msra.mxu0 0.0
        %2930 = vmatprep.subr.mxu0 0.0
        %2931 = vmatpush1.msra.mxu0 0.0
        %2932 = vmatprep.subr.mxu0 0.0
        %2933 = vmatpush1.msra.mxu0 0.0
        %2934 = vmatprep.subr.mxu0 0.0
        %2935 = vmatpush1.msra.mxu0 0.0
        %2936 = vmatprep.subr.mxu0 0.0
        %2937 = vmatpush1.msra.mxu0 0.0
        %2938 = vmatprep.subr.mxu0 0.0
        %2939 = vmatpush1.msra.mxu0 0.0
        %2940 = vmatprep.subr.mxu0 0.0
        %2941 = vmatpush1.msra.mxu0 0.0
        %2942 = vmatprep.subr.mxu0 0.0
        %2943 = vmatpush1.msra.mxu0 0.0
        %2944 = vmatprep.subr.mxu0 0.0
        %2945 = vmatpush1.msra.mxu0 0.0
        %2946 = vmatprep.subr.mxu0 0.0
        %2947 = vmatpush1.msra.mxu0 0.0
        %2948 = vmatprep.subr.mxu0 0.0
        %2949 = vmatpush1.msra.mxu0 0.0
        %2950 = vmatprep.subr.mxu0 0.0
        %2951 = vmatpush1.msra.mxu0 0.0
        %2952 = vmatprep.subr.mxu0 0.0
        %2953 = vmatpush1.msra.mxu0 0.0
        %2954 = vmatprep.subr.mxu0 0.0
        %2955 = vmatpush1.msra.mxu0 %v2901
        %2956 = vmatprep.subr.mxu0 0.0
        %2957 = vmatpush1.msra.mxu0 %v2900
        %2958 = vmatprep.subr.mxu0 0.0
        %2959 = vmatpush2.msra.mxu0 0.0
        %2960 = vmatprep.subr.mxu0 0.0
        %2961 = vmatpush2.msra.mxu0 0.0
        %2962 = vmatprep.subr.mxu0 0.0
        %2963 = vmatpush2.msra.mxu0 0.0
        %2964 = vmatprep.subr.mxu0 0.0
        %2965 = vmatpush2.msra.mxu0 0.0
        %2966 = vmatprep.subr.mxu0 0.0
        %2967 = vmatpush2.msra.mxu0 0.0
        %2968 = vmatprep.subr.mxu0 0.0
        %2969 = vmatpush2.msra.mxu0 0.0
        %2970 = vmatprep.subr.mxu0 0.0
        %2971 = vmatpush2.msra.mxu0 0.0
        %2972 = vmatprep.subr.mxu0 0.0
        %2973 = vmatpush2.msra.mxu0 0.0
        %2974 = vmatprep.subr.mxu0 0.0
        %2975 = vmatpush2.msra.mxu0 0.0
        %2976 = vmatprep.subr.mxu0 0.0
        %2977 = vmatpush2.msra.mxu0 0.0
        %2978 = vmatprep.subr.mxu0 0.0
        %2979 = vmatpush2.msra.mxu0 0.0
        %2980 = vmatprep.subr.mxu0 0.0
        %2981 = vmatpush2.msra.mxu0 0.0
        %2982 = vmatprep.subr.mxu0 0.0
        %2983 = vmatpush2.msra.mxu0 0.0
        %2984 = vmatprep.subr.mxu0 0.0
        %2985 = vmatpush2.msra.mxu0 0.0
        %2986 = vmatprep.subr.mxu0 0.0
        %2987 = vmatpush2.msra.mxu0 0.0
        %2988 = vmatprep.subr.mxu0 0.0
        %2989 = vmatpush2.msra.mxu0 0.0
        %2990 = vmatprep.mubr.f32.mxu0 0.0
        %2991 = vmatmul.mubr.f32.gmra.mxu0 %v2903
        %v2992 = vpop.f32.mrf.mxu0
        %v2993 = vadd.f32 0.0, %v2992
        %v2994 = vpop.f32.mrf.mxu0
        %2995 = vmatprep.mubr.f32.mxu0 0.0
        %2996 = vmatmul.mubr.f32.gmra.mxu0 %v2906
        %v2997 = vpop.f32.mrf.mxu0
        %v2998 = vadd.f32 0.0, %v2997
        %v2999 = vpop.f32.mrf.mxu0
        %3000 = vmatprep.mubr.f32.mxu0 0.0
        %3001 = vmatmul.mubr.f32.gmra.mxu0 %v2909
        %v3002 = vpop.f32.mrf.mxu0
        %v3003 = vadd.f32 0.0, %v3002
        %v3004 = vpop.f32.mrf.mxu0
        %3005 = vmatprep.mubr.f32.mxu0 0.0
        %3006 = vmatmul.mubr.f32.gmra.mxu0 %v2912
        %v3007 = vpop.f32.mrf.mxu0
        %v3008 = vadd.f32 0.0, %v3007
        %v3009 = vpop.f32.mrf.mxu0
        %3010 = vmatprep.mubr.f32.mxu0 0.0
        %3011 = vmatmul.mubr.f32.gmra.mxu0 %v2915
        %v3012 = vpop.f32.mrf.mxu0
        %v3013 = vadd.f32 0.0, %v3012
        %v3014 = vpop.f32.mrf.mxu0
        %3015 = vmatprep.mubr.f32.mxu0 0.0
        %3016 = vmatmul.mubr.f32.gmra.mxu0 %v2918
        %v3017 = vpop.f32.mrf.mxu0
        %v3018 = vadd.f32 0.0, %v3017
        %v3019 = vpop.f32.mrf.mxu0
        %3020 = vmatprep.mubr.f32.mxu0 0.0
        %3021 = vmatmul.mubr.f32.gmra.mxu0 %v2921
        %v3022 = vpop.f32.mrf.mxu0
        %v3023 = vadd.f32 0.0, %v3022
        %v3024 = vpop.f32.mrf.mxu0
        %3025 = vmatprep.mubr.f32.mxu0 0.0
        %3026 = vmatmul.mubr.f32.gmra.mxu0 %v2924
        %v3027 = vpop.f32.mrf.mxu0
        %v3028 = vadd.f32 0.0, %v3027
        %v3029 = vpop.f32.mrf.mxu0
        %3030 = vdwg.mxu0
        %v3031 = vadd.f32 %v2883, %v2993
        %v3032 = vadd.f32 %v2884, %v2998
        %v3033 = vadd.f32 %v2885, %v3003
        %v3034 = vadd.f32 %v2886, %v3008
        %v3035 = vadd.f32 %v2887, %v3013
        %v3036 = vadd.f32 %v2888, %v3018
        %v3037 = vadd.f32 %v2889, %v3023
        %v3038 = vadd.f32 %v2890, %v3028
        %v3039 = vmul.f32 %v2149, %v1536
        %v3040 = vmul.f32 %v2148, %v1541
        %v3041 = vmul.f32 %v2147, %v1546
        %v3042 = vmul.f32 %v2146, %v1551
        %v3043 = vmul.f32 %v2145, %v1556
        %v3044 = vmul.f32 %v2144, %v1561
        %v3045 = vmul.f32 %v2143, %v1566
        %v3046 = vmul.f32 %v2150, %v1571
        %s3047 = scalar_lea.vmem %s4, 96
        %v3048 = vld [vmem:[%s3047] sm:$0xff]
        %v3049 = vld [vmem:[%s3047 + $0x8] sm:$0xff]
        %v3051 = vsel %vm2172, %v3039, 0
        %v3054 = vsel %vm2172, %v3040, 0
        %v3057 = vsel %vm2172, %v3041, 0
        %v3060 = vsel %vm2172, %v3042, 0
        %v3063 = vsel %vm2172, %v3043, 0
        %v3066 = vsel %vm2172, %v3044, 0
        %v3069 = vsel %vm2172, %v3045, 0
        %v3072 = vsel %vm2172, %v3046, 0
        %3074 = vmatprep.subr.mxu0 0.0
        %3075 = vmatpush1.msra.mxu0 0.0
        %3076 = vmatprep.subr.mxu0 0.0
        %3077 = vmatpush1.msra.mxu0 0.0
        %3078 = vmatprep.subr.mxu0 0.0
        %3079 = vmatpush1.msra.mxu0 0.0
        %3080 = vmatprep.subr.mxu0 0.0
        %3081 = vmatpush1.msra.mxu0 0.0
        %3082 = vmatprep.subr.mxu0 0.0
        %3083 = vmatpush1.msra.mxu0 0.0
        %3084 = vmatprep.subr.mxu0 0.0
        %3085 = vmatpush1.msra.mxu0 0.0
        %3086 = vmatprep.subr.mxu0 0.0
        %3087 = vmatpush1.msra.mxu0 0.0
        %3088 = vmatprep.subr.mxu0 0.0
        %3089 = vmatpush1.msra.mxu0 0.0
        %3090 = vmatprep.subr.mxu0 0.0
        %3091 = vmatpush1.msra.mxu0 0.0
        %3092 = vmatprep.subr.mxu0 0.0
        %3093 = vmatpush1.msra.mxu0 0.0
        %3094 = vmatprep.subr.mxu0 0.0
        %3095 = vmatpush1.msra.mxu0 0.0
        %3096 = vmatprep.subr.mxu0 0.0
        %3097 = vmatpush1.msra.mxu0 0.0
        %3098 = vmatprep.subr.mxu0 0.0
        %3099 = vmatpush1.msra.mxu0 0.0
        %3100 = vmatprep.subr.mxu0 0.0
        %3101 = vmatpush1.msra.mxu0 0.0
        %3102 = vmatprep.subr.mxu0 0.0
        %3103 = vmatpush1.msra.mxu0 %v3049
        %3104 = vmatprep.subr.mxu0 0.0
        %3105 = vmatpush1.msra.mxu0 %v3048
        %3106 = vmatprep.subr.mxu0 0.0
        %3107 = vmatpush2.msra.mxu0 0.0
        %3108 = vmatprep.subr.mxu0 0.0
        %3109 = vmatpush2.msra.mxu0 0.0
        %3110 = vmatprep.subr.mxu0 0.0
        %3111 = vmatpush2.msra.mxu0 0.0
        %3112 = vmatprep.subr.mxu0 0.0
        %3113 = vmatpush2.msra.mxu0 0.0
        %3114 = vmatprep.subr.mxu0 0.0
        %3115 = vmatpush2.msra.mxu0 0.0
        %3116 = vmatprep.subr.mxu0 0.0
        %3117 = vmatpush2.msra.mxu0 0.0
        %3118 = vmatprep.subr.mxu0 0.0
        %3119 = vmatpush2.msra.mxu0 0.0
        %3120 = vmatprep.subr.mxu0 0.0
        %3121 = vmatpush2.msra.mxu0 0.0
        %3122 = vmatprep.subr.mxu0 0.0
        %3123 = vmatpush2.msra.mxu0 0.0
        %3124 = vmatprep.subr.mxu0 0.0
        %3125 = vmatpush2.msra.mxu0 0.0
        %3126 = vmatprep.subr.mxu0 0.0
        %3127 = vmatpush2.msra.mxu0 0.0
        %3128 = vmatprep.subr.mxu0 0.0
        %3129 = vmatpush2.msra.mxu0 0.0
        %3130 = vmatprep.subr.mxu0 0.0
        %3131 = vmatpush2.msra.mxu0 0.0
        %3132 = vmatprep.subr.mxu0 0.0
        %3133 = vmatpush2.msra.mxu0 0.0
        %3134 = vmatprep.subr.mxu0 0.0
        %3135 = vmatpush2.msra.mxu0 0.0
        %3136 = vmatprep.subr.mxu0 0.0
        %3137 = vmatpush2.msra.mxu0 0.0
        %3138 = vmatprep.mubr.f32.mxu0 0.0
        %3139 = vmatmul.mubr.f32.gmra.mxu0 %v3051
        %v3140 = vpop.f32.mrf.mxu0
        %v3141 = vadd.f32 0.0, %v3140
        %v3142 = vpop.f32.mrf.mxu0
        %3143 = vmatprep.mubr.f32.mxu0 0.0
        %3144 = vmatmul.mubr.f32.gmra.mxu0 %v3054
        %v3145 = vpop.f32.mrf.mxu0
        %v3146 = vadd.f32 0.0, %v3145
        %v3147 = vpop.f32.mrf.mxu0
        %3148 = vmatprep.mubr.f32.mxu0 0.0
        %3149 = vmatmul.mubr.f32.gmra.mxu0 %v3057
        %v3150 = vpop.f32.mrf.mxu0
        %v3151 = vadd.f32 0.0, %v3150
        %v3152 = vpop.f32.mrf.mxu0
        %3153 = vmatprep.mubr.f32.mxu0 0.0
        %3154 = vmatmul.mubr.f32.gmra.mxu0 %v3060
        %v3155 = vpop.f32.mrf.mxu0
        %v3156 = vadd.f32 0.0, %v3155
        %v3157 = vpop.f32.mrf.mxu0
        %3158 = vmatprep.mubr.f32.mxu0 0.0
        %3159 = vmatmul.mubr.f32.gmra.mxu0 %v3063
        %v3160 = vpop.f32.mrf.mxu0
        %v3161 = vadd.f32 0.0, %v3160
        %v3162 = vpop.f32.mrf.mxu0
        %3163 = vmatprep.mubr.f32.mxu0 0.0
        %3164 = vmatmul.mubr.f32.gmra.mxu0 %v3066
        %v3165 = vpop.f32.mrf.mxu0
        %v3166 = vadd.f32 0.0, %v3165
        %v3167 = vpop.f32.mrf.mxu0
        %3168 = vmatprep.mubr.f32.mxu0 0.0
        %3169 = vmatmul.mubr.f32.gmra.mxu0 %v3069
        %v3170 = vpop.f32.mrf.mxu0
        %v3171 = vadd.f32 0.0, %v3170
        %v3172 = vpop.f32.mrf.mxu0
        %3173 = vmatprep.mubr.f32.mxu0 0.0
        %3174 = vmatmul.mubr.f32.gmra.mxu0 %v3072
        %v3175 = vpop.f32.mrf.mxu0
        %v3176 = vadd.f32 0.0, %v3175
        %v3177 = vpop.f32.mrf.mxu0
        %3178 = vdwg.mxu0
        %v3179 = vadd.f32 %v3031, %v3141
        %v3180 = vadd.f32 %v3032, %v3146
        %v3181 = vadd.f32 %v3033, %v3151
        %v3182 = vadd.f32 %v3034, %v3156
        %v3183 = vadd.f32 %v3035, %v3161
        %v3184 = vadd.f32 %v3036, %v3166
        %v3185 = vadd.f32 %v3037, %v3171
        %v3186 = vadd.f32 %v3038, %v3176
        %v3187 = vmul.f32 %v2128, %v1732
        %v3188 = vmul.f32 %v2129, %v1737
        %v3189 = vmul.f32 %v2130, %v1742
        %v3190 = vmul.f32 %v2131, %v1747
        %v3191 = vmul.f32 %v2132, %v1752
        %v3192 = vmul.f32 %v2133, %v1757
        %v3193 = vmul.f32 %v2134, %v1762
        %v3194 = vmul.f32 %v2127, %v1767
        %s3195 = scalar_lea.vmem %s4, 112
        %v3196 = vld [vmem:[%s3195] sm:$0xff]
        %v3197 = vld [vmem:[%s3195 + $0x8] sm:$0xff]
        %v3199 = vsel %vm2172, %v3187, 0
        %v3202 = vsel %vm2172, %v3188, 0
        %v3205 = vsel %vm2172, %v3189, 0
        %v3208 = vsel %vm2172, %v3190, 0
        %v3211 = vsel %vm2172, %v3191, 0
        %v3214 = vsel %vm2172, %v3192, 0
        %v3217 = vsel %vm2172, %v3193, 0
        %v3220 = vsel %vm2172, %v3194, 0
        %3222 = vmatprep.subr.mxu0 0.0
        %3223 = vmatpush1.msra.mxu0 0.0
        %3224 = vmatprep.subr.mxu0 0.0
        %3225 = vmatpush1.msra.mxu0 0.0
        %3226 = vmatprep.subr.mxu0 0.0
        %3227 = vmatpush1.msra.mxu0 0.0
        %3228 = vmatprep.subr.mxu0 0.0
        %3229 = vmatpush1.msra.mxu0 0.0
        %3230 = vmatprep.subr.mxu0 0.0
        %3231 = vmatpush1.msra.mxu0 0.0
        %3232 = vmatprep.subr.mxu0 0.0
        %3233 = vmatpush1.msra.mxu0 0.0
        %3234 = vmatprep.subr.mxu0 0.0
        %3235 = vmatpush1.msra.mxu0 0.0
        %3236 = vmatprep.subr.mxu0 0.0
        %3237 = vmatpush1.msra.mxu0 0.0
        %3238 = vmatprep.subr.mxu0 0.0
        %3239 = vmatpush1.msra.mxu0 0.0
        %3240 = vmatprep.subr.mxu0 0.0
        %3241 = vmatpush1.msra.mxu0 0.0
        %3242 = vmatprep.subr.mxu0 0.0
        %3243 = vmatpush1.msra.mxu0 0.0
        %3244 = vmatprep.subr.mxu0 0.0
        %3245 = vmatpush1.msra.mxu0 0.0
        %3246 = vmatprep.subr.mxu0 0.0
        %3247 = vmatpush1.msra.mxu0 0.0
        %3248 = vmatprep.subr.mxu0 0.0
        %3249 = vmatpush1.msra.mxu0 0.0
        %3250 = vmatprep.subr.mxu0 0.0
        %3251 = vmatpush1.msra.mxu0 %v3197
        %3252 = vmatprep.subr.mxu0 0.0
        %3253 = vmatpush1.msra.mxu0 %v3196
        %3254 = vmatprep.subr.mxu0 0.0
        %3255 = vmatpush2.msra.mxu0 0.0
        %3256 = vmatprep.subr.mxu0 0.0
        %3257 = vmatpush2.msra.mxu0 0.0
        %3258 = vmatprep.subr.mxu0 0.0
        %3259 = vmatpush2.msra.mxu0 0.0
        %3260 = vmatprep.subr.mxu0 0.0
        %3261 = vmatpush2.msra.mxu0 0.0
        %3262 = vmatprep.subr.mxu0 0.0
        %3263 = vmatpush2.msra.mxu0 0.0
        %3264 = vmatprep.subr.mxu0 0.0
        %3265 = vmatpush2.msra.mxu0 0.0
        %3266 = vmatprep.subr.mxu0 0.0
        %3267 = vmatpush2.msra.mxu0 0.0
        %3268 = vmatprep.subr.mxu0 0.0
        %3269 = vmatpush2.msra.mxu0 0.0
        %3270 = vmatprep.subr.mxu0 0.0
        %3271 = vmatpush2.msra.mxu0 0.0
        %3272 = vmatprep.subr.mxu0 0.0
        %3273 = vmatpush2.msra.mxu0 0.0
        %3274 = vmatprep.subr.mxu0 0.0
        %3275 = vmatpush2.msra.mxu0 0.0
        %3276 = vmatprep.subr.mxu0 0.0
        %3277 = vmatpush2.msra.mxu0 0.0
        %3278 = vmatprep.subr.mxu0 0.0
        %3279 = vmatpush2.msra.mxu0 0.0
        %3280 = vmatprep.subr.mxu0 0.0
        %3281 = vmatpush2.msra.mxu0 0.0
        %3282 = vmatprep.subr.mxu0 0.0
        %3283 = vmatpush2.msra.mxu0 0.0
        %3284 = vmatprep.subr.mxu0 0.0
        %3285 = vmatpush2.msra.mxu0 0.0
        %3286 = vmatprep.mubr.f32.mxu0 0.0
        %3287 = vmatmul.mubr.f32.gmra.mxu0 %v3199
        %v3288 = vpop.f32.mrf.mxu0
        %v3289 = vadd.f32 0.0, %v3288
        %v3290 = vpop.f32.mrf.mxu0
        %3291 = vmatprep.mubr.f32.mxu0 0.0
        %3292 = vmatmul.mubr.f32.gmra.mxu0 %v3202
        %v3293 = vpop.f32.mrf.mxu0
        %v3294 = vadd.f32 0.0, %v3293
        %v3295 = vpop.f32.mrf.mxu0
        %3296 = vmatprep.mubr.f32.mxu0 0.0
        %3297 = vmatmul.mubr.f32.gmra.mxu0 %v3205
        %v3298 = vpop.f32.mrf.mxu0
        %v3299 = vadd.f32 0.0, %v3298
        %v3300 = vpop.f32.mrf.mxu0
        %3301 = vmatprep.mubr.f32.mxu0 0.0
        %3302 = vmatmul.mubr.f32.gmra.mxu0 %v3208
        %v3303 = vpop.f32.mrf.mxu0
        %v3304 = vadd.f32 0.0, %v3303
        %v3305 = vpop.f32.mrf.mxu0
        %3306 = vmatprep.mubr.f32.mxu0 0.0
        %3307 = vmatmul.mubr.f32.gmra.mxu0 %v3211
        %v3308 = vpop.f32.mrf.mxu0
        %v3309 = vadd.f32 0.0, %v3308
        %v3310 = vpop.f32.mrf.mxu0
        %3311 = vmatprep.mubr.f32.mxu0 0.0
        %3312 = vmatmul.mubr.f32.gmra.mxu0 %v3214
        %v3313 = vpop.f32.mrf.mxu0
        %v3314 = vadd.f32 0.0, %v3313
        %v3315 = vpop.f32.mrf.mxu0
        %3316 = vmatprep.mubr.f32.mxu0 0.0
        %3317 = vmatmul.mubr.f32.gmra.mxu0 %v3217
        %v3318 = vpop.f32.mrf.mxu0
        %v3319 = vadd.f32 0.0, %v3318
        %v3320 = vpop.f32.mrf.mxu0
        %3321 = vmatprep.mubr.f32.mxu0 0.0
        %3322 = vmatmul.mubr.f32.gmra.mxu0 %v3220
        %v3323 = vpop.f32.mrf.mxu0
        %v3324 = vadd.f32 0.0, %v3323
        %v3325 = vpop.f32.mrf.mxu0
        %3326 = vdwg.mxu0
        %v3327 = vadd.f32 %v3179, %v3289
        %v3328 = vadd.f32 %v3180, %v3294
        %v3329 = vadd.f32 %v3181, %v3299
        %v3330 = vadd.f32 %v3182, %v3304
        %v3331 = vadd.f32 %v3183, %v3309
        %v3332 = vadd.f32 %v3184, %v3314
        %v3333 = vadd.f32 %v3185, %v3319
        %v3334 = vadd.f32 %v3186, %v3324
        %v3335 = vmul.f32 %v2444, %v1928
        %v3336 = vmul.f32 %v2443, %v1933
        %v3337 = vmul.f32 %v2442, %v1938
        %v3338 = vmul.f32 %v2441, %v1943
        %v3339 = vmul.f32 %v2440, %v1948
        %v3340 = vmul.f32 %v2439, %v1953
        %v3341 = vmul.f32 %v2446, %v1958
        %v3342 = vmul.f32 %v2445, %v1963
        %s3343 = scalar_lea.vmem %s4, 128
        %v3344 = vld [vmem:[%s3343] sm:$0xff]
        %v3345 = vld [vmem:[%s3343 + $0x8] sm:$0xff]
        %v3347 = vsel %vm2172, %v3335, 0
        %v3350 = vsel %vm2172, %v3336, 0
        %v3353 = vsel %vm2172, %v3337, 0
        %v3356 = vsel %vm2172, %v3338, 0
        %v3359 = vsel %vm2172, %v3339, 0
        %v3362 = vsel %vm2172, %v3340, 0
        %v3365 = vsel %vm2172, %v3341, 0
        %v3368 = vsel %vm2172, %v3342, 0
        %3370 = vmatprep.subr.mxu0 0.0
        %3371 = vmatpush1.msra.mxu0 0.0
        %3372 = vmatprep.subr.mxu0 0.0
        %3373 = vmatpush1.msra.mxu0 0.0
        %3374 = vmatprep.subr.mxu0 0.0
        %3375 = vmatpush1.msra.mxu0 0.0
        %3376 = vmatprep.subr.mxu0 0.0
        %3377 = vmatpush1.msra.mxu0 0.0
        %3378 = vmatprep.subr.mxu0 0.0
        %3379 = vmatpush1.msra.mxu0 0.0
        %3380 = vmatprep.subr.mxu0 0.0
        %3381 = vmatpush1.msra.mxu0 0.0
        %3382 = vmatprep.subr.mxu0 0.0
        %3383 = vmatpush1.msra.mxu0 0.0
        %3384 = vmatprep.subr.mxu0 0.0
        %3385 = vmatpush1.msra.mxu0 0.0
        %3386 = vmatprep.subr.mxu0 0.0
        %3387 = vmatpush1.msra.mxu0 0.0
        %3388 = vmatprep.subr.mxu0 0.0
        %3389 = vmatpush1.msra.mxu0 0.0
        %3390 = vmatprep.subr.mxu0 0.0
        %3391 = vmatpush1.msra.mxu0 0.0
        %3392 = vmatprep.subr.mxu0 0.0
        %3393 = vmatpush1.msra.mxu0 0.0
        %3394 = vmatprep.subr.mxu0 0.0
        %3395 = vmatpush1.msra.mxu0 0.0
        %3396 = vmatprep.subr.mxu0 0.0
        %3397 = vmatpush1.msra.mxu0 0.0
        %3398 = vmatprep.subr.mxu0 0.0
        %3399 = vmatpush1.msra.mxu0 %v3345
        %3400 = vmatprep.subr.mxu0 0.0
        %3401 = vmatpush1.msra.mxu0 %v3344
        %3402 = vmatprep.subr.mxu0 0.0
        %3403 = vmatpush2.msra.mxu0 0.0
        %3404 = vmatprep.subr.mxu0 0.0
        %3405 = vmatpush2.msra.mxu0 0.0
        %3406 = vmatprep.subr.mxu0 0.0
        %3407 = vmatpush2.msra.mxu0 0.0
        %3408 = vmatprep.subr.mxu0 0.0
        %3409 = vmatpush2.msra.mxu0 0.0
        %3410 = vmatprep.subr.mxu0 0.0
        %3411 = vmatpush2.msra.mxu0 0.0
        %3412 = vmatprep.subr.mxu0 0.0
        %3413 = vmatpush2.msra.mxu0 0.0
        %3414 = vmatprep.subr.mxu0 0.0
        %3415 = vmatpush2.msra.mxu0 0.0
        %3416 = vmatprep.subr.mxu0 0.0
        %3417 = vmatpush2.msra.mxu0 0.0
        %3418 = vmatprep.subr.mxu0 0.0
        %3419 = vmatpush2.msra.mxu0 0.0
        %3420 = vmatprep.subr.mxu0 0.0
        %3421 = vmatpush2.msra.mxu0 0.0
        %3422 = vmatprep.subr.mxu0 0.0
        %3423 = vmatpush2.msra.mxu0 0.0
        %3424 = vmatprep.subr.mxu0 0.0
        %3425 = vmatpush2.msra.mxu0 0.0
        %3426 = vmatprep.subr.mxu0 0.0
        %3427 = vmatpush2.msra.mxu0 0.0
        %3428 = vmatprep.subr.mxu0 0.0
        %3429 = vmatpush2.msra.mxu0 0.0
        %3430 = vmatprep.subr.mxu0 0.0
        %3431 = vmatpush2.msra.mxu0 0.0
        %3432 = vmatprep.subr.mxu0 0.0
        %3433 = vmatpush2.msra.mxu0 0.0
        %3434 = vmatprep.mubr.f32.mxu0 0.0
        %3435 = vmatmul.mubr.f32.gmra.mxu0 %v3347
        %v3436 = vpop.f32.mrf.mxu0
        %v3437 = vadd.f32 0.0, %v3436
        %v3438 = vpop.f32.mrf.mxu0
        %3439 = vmatprep.mubr.f32.mxu0 0.0
        %3440 = vmatmul.mubr.f32.gmra.mxu0 %v3350
        %v3441 = vpop.f32.mrf.mxu0
        %v3442 = vadd.f32 0.0, %v3441
        %v3443 = vpop.f32.mrf.mxu0
        %3444 = vmatprep.mubr.f32.mxu0 0.0
        %3445 = vmatmul.mubr.f32.gmra.mxu0 %v3353
        %v3446 = vpop.f32.mrf.mxu0
        %v3447 = vadd.f32 0.0, %v3446
        %v3448 = vpop.f32.mrf.mxu0
        %3449 = vmatprep.mubr.f32.mxu0 0.0
        %3450 = vmatmul.mubr.f32.gmra.mxu0 %v3356
        %v3451 = vpop.f32.mrf.mxu0
        %v3452 = vadd.f32 0.0, %v3451
        %v3453 = vpop.f32.mrf.mxu0
        %3454 = vmatprep.mubr.f32.mxu0 0.0
        %3455 = vmatmul.mubr.f32.gmra.mxu0 %v3359
        %v3456 = vpop.f32.mrf.mxu0
        %v3457 = vadd.f32 0.0, %v3456
        %v3458 = vpop.f32.mrf.mxu0
        %3459 = vmatprep.mubr.f32.mxu0 0.0
        %3460 = vmatmul.mubr.f32.gmra.mxu0 %v3362
        %v3461 = vpop.f32.mrf.mxu0
        %v3462 = vadd.f32 0.0, %v3461
        %v3463 = vpop.f32.mrf.mxu0
        %3464 = vmatprep.mubr.f32.mxu0 0.0
        %3465 = vmatmul.mubr.f32.gmra.mxu0 %v3365
        %v3466 = vpop.f32.mrf.mxu0
        %v3467 = vadd.f32 0.0, %v3466
        %v3468 = vpop.f32.mrf.mxu0
        %3469 = vmatprep.mubr.f32.mxu0 0.0
        %3470 = vmatmul.mubr.f32.gmra.mxu0 %v3368
        %v3471 = vpop.f32.mrf.mxu0
        %v3472 = vadd.f32 0.0, %v3471
        %v3473 = vpop.f32.mrf.mxu0
        %3474 = vdwg.mxu0
        %v3475 = vadd.f32 %v3327, %v3437
        %v3476 = vadd.f32 %v3328, %v3442
        %v3477 = vadd.f32 %v3329, %v3447
        %v3478 = vadd.f32 %v3330, %v3452
        %v3479 = vadd.f32 %v3331, %v3457
        %v3480 = vadd.f32 %v3332, %v3462
        %v3481 = vadd.f32 %v3333, %v3467
        %v3482 = vadd.f32 %v3334, %v3472
        %v3483 = vld [vmem:[%s5] sm:$0x1]
        %v3485 = vlaneseq
        %v3486 = vshrl.u32 %v3485, 7
        %v3487 = vsub.s32 0, %v3486
        %v3488 = vrot.slane %v3483, %v3487
        %v3490 = vadd.f32 %v3475, %v3488
        %v3491 = vadd.f32 %v3476, %v3488
        %v3492 = vadd.f32 %v3477, %v3488
        %v3493 = vadd.f32 %v3478, %v3488
        %v3494 = vadd.f32 %v3479, %v3488
        %v3495 = vadd.f32 %v3480, %v3488
        %v3496 = vadd.f32 %v3481, %v3488
        %v3497 = vadd.f32 %v3482, %v3488
        %v3498 = vmax.f32 %v3490, 0.0
        %v3499 = vmax.f32 %v3491, 0.0
        %v3500 = vmax.f32 %v3492, 0.0
        %v3501 = vmax.f32 %v3493, 0.0
        %v3502 = vmax.f32 %v3494, 0.0
        %v3503 = vmax.f32 %v3495, 0.0
        %v3504 = vmax.f32 %v3496, 0.0
        %v3505 = vmax.f32 %v3497, 0.0
        %v3506 = vld [vmem:[%s6] sm:$0xff]
        %v3507 = vld [vmem:[%s6 + $0x8] sm:$0xff]
        %v3508 = vld [vmem:[%s7] sm:$0x1]
        %v3510 = vlaneseq
        %v3511 = vshrl.u32 %v3510, 7
        %v3512 = vsub.s32 0, %v3511
        %v3513 = vrot.slane %v3508, %v3512
        %v3516 = vsel %vm2172, %v3498, 0
        %v3519 = vsel %vm2172, %v3499, 0
        %v3522 = vsel %vm2172, %v3500, 0
        %v3525 = vsel %vm2172, %v3501, 0
        %v3528 = vsel %vm2172, %v3502, 0
        %v3531 = vsel %vm2172, %v3503, 0
        %v3534 = vsel %vm2172, %v3504, 0
        %v3537 = vsel %vm2172, %v3505, 0
        %3539 = vmatprep.subr.mxu0 0.0
        %3540 = vmatpush1.msra.mxu0 0.0
        %3541 = vmatprep.subr.mxu0 0.0
        %3542 = vmatpush1.msra.mxu0 0.0
        %3543 = vmatprep.subr.mxu0 0.0
        %3544 = vmatpush1.msra.mxu0 0.0
        %3545 = vmatprep.subr.mxu0 0.0
        %3546 = vmatpush1.msra.mxu0 0.0
        %3547 = vmatprep.subr.mxu0 0.0
        %3548 = vmatpush1.msra.mxu0 0.0
        %3549 = vmatprep.subr.mxu0 0.0
        %3550 = vmatpush1.msra.mxu0 0.0
        %3551 = vmatprep.subr.mxu0 0.0
        %3552 = vmatpush1.msra.mxu0 0.0
        %3553 = vmatprep.subr.mxu0 0.0
        %3554 = vmatpush1.msra.mxu0 0.0
        %3555 = vmatprep.subr.mxu0 0.0
        %3556 = vmatpush1.msra.mxu0 0.0
        %3557 = vmatprep.subr.mxu0 0.0
        %3558 = vmatpush1.msra.mxu0 0.0
        %3559 = vmatprep.subr.mxu0 0.0
        %3560 = vmatpush1.msra.mxu0 0.0
        %3561 = vmatprep.subr.mxu0 0.0
        %3562 = vmatpush1.msra.mxu0 0.0
        %3563 = vmatprep.subr.mxu0 0.0
        %3564 = vmatpush1.msra.mxu0 0.0
        %3565 = vmatprep.subr.mxu0 0.0
        %3566 = vmatpush1.msra.mxu0 0.0
        %3567 = vmatprep.subr.mxu0 0.0
        %3568 = vmatpush1.msra.mxu0 %v3507
        %3569 = vmatprep.subr.mxu0 0.0
        %3570 = vmatpush1.msra.mxu0 %v3506
        %3571 = vmatprep.subr.mxu0 0.0
        %3572 = vmatpush2.msra.mxu0 0.0
        %3573 = vmatprep.subr.mxu0 0.0
        %3574 = vmatpush2.msra.mxu0 0.0
        %3575 = vmatprep.subr.mxu0 0.0
        %3576 = vmatpush2.msra.mxu0 0.0
        %3577 = vmatprep.subr.mxu0 0.0
        %3578 = vmatpush2.msra.mxu0 0.0
        %3579 = vmatprep.subr.mxu0 0.0
        %3580 = vmatpush2.msra.mxu0 0.0
        %3581 = vmatprep.subr.mxu0 0.0
        %3582 = vmatpush2.msra.mxu0 0.0
        %3583 = vmatprep.subr.mxu0 0.0
        %3584 = vmatpush2.msra.mxu0 0.0
        %3585 = vmatprep.subr.mxu0 0.0
        %3586 = vmatpush2.msra.mxu0 0.0
        %3587 = vmatprep.subr.mxu0 0.0
        %3588 = vmatpush2.msra.mxu0 0.0
        %3589 = vmatprep.subr.mxu0 0.0
        %3590 = vmatpush2.msra.mxu0 0.0
        %3591 = vmatprep.subr.mxu0 0.0
        %3592 = vmatpush2.msra.mxu0 0.0
        %3593 = vmatprep.subr.mxu0 0.0
        %3594 = vmatpush2.msra.mxu0 0.0
        %3595 = vmatprep.subr.mxu0 0.0
        %3596 = vmatpush2.msra.mxu0 0.0
        %3597 = vmatprep.subr.mxu0 0.0
        %3598 = vmatpush2.msra.mxu0 0.0
        %3599 = vmatprep.subr.mxu0 0.0
        %3600 = vmatpush2.msra.mxu0 0.0
        %3601 = vmatprep.subr.mxu0 0.0
        %3602 = vmatpush2.msra.mxu0 0.0
        %3603 = vmatprep.mubr.f32.mxu0 0.0
        %3604 = vmatmul.mubr.f32.gmra.mxu0 %v3516
        %v3605 = vpop.f32.mrf.mxu0
        %v3606 = vadd.f32 %v3513, %v3605
        %v3607 = vpop.f32.mrf.mxu0
        %3608 = vmatprep.mubr.f32.mxu0 0.0
        %3609 = vmatmul.mubr.f32.gmra.mxu0 %v3519
        %v3610 = vpop.f32.mrf.mxu0
        %v3611 = vadd.f32 %v3513, %v3610
        %v3612 = vpop.f32.mrf.mxu0
        %3613 = vmatprep.mubr.f32.mxu0 0.0
        %3614 = vmatmul.mubr.f32.gmra.mxu0 %v3522
        %v3615 = vpop.f32.mrf.mxu0
        %v3616 = vadd.f32 %v3513, %v3615
        %v3617 = vpop.f32.mrf.mxu0
        %3618 = vmatprep.mubr.f32.mxu0 0.0
        %3619 = vmatmul.mubr.f32.gmra.mxu0 %v3525
        %v3620 = vpop.f32.mrf.mxu0
        %v3621 = vadd.f32 %v3513, %v3620
        %v3622 = vpop.f32.mrf.mxu0
        %3623 = vmatprep.mubr.f32.mxu0 0.0
        %3624 = vmatmul.mubr.f32.gmra.mxu0 %v3528
        %v3625 = vpop.f32.mrf.mxu0
        %v3626 = vadd.f32 %v3513, %v3625
        %v3627 = vpop.f32.mrf.mxu0
        %3628 = vmatprep.mubr.f32.mxu0 0.0
        %3629 = vmatmul.mubr.f32.gmra.mxu0 %v3531
        %v3630 = vpop.f32.mrf.mxu0
        %v3631 = vadd.f32 %v3513, %v3630
        %v3632 = vpop.f32.mrf.mxu0
        %3633 = vmatprep.mubr.f32.mxu0 0.0
        %3634 = vmatmul.mubr.f32.gmra.mxu0 %v3534
        %v3635 = vpop.f32.mrf.mxu0
        %v3636 = vadd.f32 %v3513, %v3635
        %v3637 = vpop.f32.mrf.mxu0
        %3638 = vmatprep.mubr.f32.mxu0 0.0
        %3639 = vmatmul.mubr.f32.gmra.mxu0 %v3537
        %v3640 = vpop.f32.mrf.mxu0
        %v3641 = vadd.f32 %v3513, %v3640
        %v3642 = vpop.f32.mrf.mxu0
        %3643 = vdwg.mxu0
        %vm3644 = vcmask 261120
        %3645 = vst.msk [vmem:[%s320] sm:$0xff] %vm3644, %v3606
        %3646 = vst.msk [vmem:[%s320 + $0x8] sm:$0xff] %vm3644, %v3611
        %3647 = vst.msk [vmem:[%s320 + $0x10] sm:$0xff] %vm3644, %v3616
        %3648 = vst.msk [vmem:[%s320 + $0x18] sm:$0xff] %vm3644, %v3621
        %3649 = vst.msk [vmem:[%s320 + $0x20] sm:$0xff] %vm3644, %v3626
        %3650 = vst.msk [vmem:[%s320 + $0x28] sm:$0xff] %vm3644, %v3631
        %3651 = vst.msk [vmem:[%s320 + $0x30] sm:$0xff] %vm3644, %v3636
        %3652 = vst.msk [vmem:[%s320 + $0x38] sm:$0xff] %vm3644, %v3641
        %p3653 = scmp.lt.s32.totalorder %s20, 1
        %s3654 = scalar_select %p3653, %s20, 1
        %s3655 = smul.addr %s3654, 8
        %s3656 = smul.addr %s3655, 8
        %s3657 = scalar_lea.vmem %s8, %s3656
        // Predicated region
        $region57: #{forward.4} parent=51 // pred_check
          %p3658 = pneg %p211
        $region58: #{forward.4} parent=51 // pred_check_branch
          %3660 = sbr.rel (%p3658) target = $region60
        $region59: #{forward.4} parent=51 // pred_region
          _
        $region60: #{forward.4} parent=51 // pred_fallthru
          _
      $region52: #{forward.4} parent=5 // pred_fallthru
        _
      %p3661 = scmp.le.s32.totalorder 2, %s15
      // Predicated region
      $region61: #{forward.4} parent=5 // pred_check
        %p3662 = pneg %p3661
      $region62: #{forward.4} parent=5 // pred_check_branch
        %3664 = sbr.rel (%p3662) target = $region64
      $region63: #{forward.4} parent=5 // pred_region
        %s3665 = ssub.s32 %s15, 2
        // Predicated region
        $region65: #{forward.4} parent=63 // pred_check
          %p3666 = pneg %p217
        $region66: #{forward.4} parent=63 // pred_check_branch
          %3668 = sbr.rel (%p3666) target = $region68
        $region67: #{forward.4} parent=63 // pred_region
          %p3669 = scmp.lt.s32.totalorder %s21, 1
          %s3670 = scalar_select %p3669, %s21, 1
          %s3671 = smul.addr %s3670, 8
          %s3672 = smul.addr %s3671, 8
          %s3673 = scalar_lea.vmem %s8, %s3672
        $region68: #{forward.4} parent=63 // pred_fallthru
          _
      $region64: #{forward.4} parent=5 // pred_fallthru
        _
    $region6: #{forward.4} parent=1 // loop_footer
      %s19 = sadd.s32 1, %s15
    $region7: #{forward.4} parent=1 // loop_footer_branch
      %14 = sbr.rel target = $region3
    $region8: #{forward.4} parent=1 // loop_exit
      _
    %3674 = vsyncpa [#allocation3], 1
    %s3675 = scalar_lea.sflag [#allocation3], 1
    %3676 = vsyncpa %s3675, 1

// kernel: forward.3
$region0: #{forward.3}
  #allocation0 [shape = 'u32[]', space=smem, size = 0x4, offset = 0x4, fixed_abs, tag = 'smem constant byte address 0x4 - core index']
  #allocation1 [shape = 'u32[144,128]{1,0:T(1,128)}', space=vmem, size = 0x12000, scoped, tag = 'internal scratch']
  %s0 = inlined_call_operand.vmem [shape: f32[16,16], index: 0, kind: input, shape index: {}]
  %s1 = inlined_call_operand.vmem [shape: s32[2,1], index: 1, kind: input, shape index: {}]
  %s2 = inlined_call_operand.vmem [shape: f32[16,128], index: 2, kind: input, shape index: {}]
  %s3 = inlined_call_operand.vmem [shape: f32[32,128], index: 3, kind: input, shape index: {}]
  %s4 = inlined_call_operand.vmem [shape: f32[1,128], index: 4, kind: input, shape index: {}]
  %s5 = inlined_call_operand.vmem [shape: f32[32,128], index: 5, kind: input, shape index: {}]
  %s6 = inlined_call_operand.vmem [shape: f32[32,128], index: 6, kind: input, shape index: {}]
  %s7 = inlined_call_operand.vmem [shape: f32[1,128], index: 7, kind: input, shape index: {}]
  %s8 = inlined_call_operand.vmem [shape: f32[32,32], index: 8, kind: input, shape index: {}]
  %s9 = inlined_call_operand.vmem [shape: f32[1,32], index: 9, kind: input, shape index: {}]
  %s10 = inlined_call_operand.vmem [shape: f32[2,32], index: 10, kind: output, shape index: {}]
  %s11 = sld [smem:[#allocation0]]
  $region50: #{forward.3} parent=0
    _
  %s13 = ssub.s32 1, %s11
  %s14 = scalar_select 0, %s13, %s11
  // Predicated region
  $region2: #{forward.3} parent=0 // pred_check
    _
  $region3: #{forward.3} parent=0 // pred_check_branch
    %16 = sbr.rel (0) target = $region5
  $region4: #{forward.3} parent=0 // pred_region
    _
  $region5: #{forward.3} parent=0 // pred_fallthru
    _
  // Predicated region
  $region6: #{forward.3} parent=0 // pred_check
    _
  $region7: #{forward.3} parent=0 // pred_check_branch
    %18 = sbr.rel (0) target = $region9
  $region8: #{forward.3} parent=0 // pred_region
    _
  $region9: #{forward.3} parent=0 // pred_fallthru
    _
  // Predicated region
  $region10: #{forward.3} parent=0 // pred_check
    _
  $region11: #{forward.3} parent=0 // pred_check_branch
    %20 = sbr.rel (0) target = $region13
  $region12: #{forward.3} parent=0 // pred_region
    _
  $region13: #{forward.3} parent=0 // pred_fallthru
    _
  // Predicated region
  $region14: #{forward.3} parent=0 // pred_check
    _
  $region15: #{forward.3} parent=0 // pred_check_branch
    %22 = sbr.rel (0) target = $region17
  $region16: #{forward.3} parent=0 // pred_region
    _
  $region17: #{forward.3} parent=0 // pred_fallthru
    _
  // Predicated region
  $region18: #{forward.3} parent=0 // pred_check
    _
  $region19: #{forward.3} parent=0 // pred_check_branch
    %24 = sbr.rel (0) target = $region21
  $region20: #{forward.3} parent=0 // pred_region
    _
  $region21: #{forward.3} parent=0 // pred_fallthru
    _
  // Predicated region
  $region22: #{forward.3} parent=0 // pred_check
    _
  $region23: #{forward.3} parent=0 // pred_check_branch
    %26 = sbr.rel (0) target = $region25
  $region24: #{forward.3} parent=0 // pred_region
    _
  $region25: #{forward.3} parent=0 // pred_fallthru
    _
  // Predicated region
  $region26: #{forward.3} parent=0 // pred_check
    _
  $region27: #{forward.3} parent=0 // pred_check_branch
    %28 = sbr.rel (0) target = $region29
  $region28: #{forward.3} parent=0 // pred_region
    _
  $region29: #{forward.3} parent=0 // pred_fallthru
    _
  // Predicated region
  $region30: #{forward.3} parent=0 // pred_check
    _
  $region31: #{forward.3} parent=0 // pred_check_branch
    %30 = sbr.rel (0) target = $region33
  $region32: #{forward.3} parent=0 // pred_region
    _
  $region33: #{forward.3} parent=0 // pred_fallthru
    _
  // Predicated region
  $region34: #{forward.3} parent=0 // pred_check
    _
  $region35: #{forward.3} parent=0 // pred_check_branch
    %32 = sbr.rel (0) target = $region37
  $region36: #{forward.3} parent=0 // pred_region
    _
  $region37: #{forward.3} parent=0 // pred_fallthru
    _
  // Predicated region
  $region38: #{forward.3} parent=0 // pred_check
    _
  $region39: #{forward.3} parent=0 // pred_check_branch
    %34 = sbr.rel (0) target = $region41
  $region40: #{forward.3} parent=0 // pred_region
    _
  $region41: #{forward.3} parent=0 // pred_fallthru
    _
  %v35 = vld [vmem:[%s1] sm:$0x3]
  %v36 = vld [vmem:[%s3] sm:$0xff]
  %v37 = vld [vmem:[%s3 + $0x8] sm:$0xff]
  %v38 = vld [vmem:[%s3 + $0x10] sm:$0xff]
  %v39 = vld [vmem:[%s3 + $0x18] sm:$0xff]
  %v40 = vld [vmem:[%s5] sm:$0xff]
  %v41 = vld [vmem:[%s5 + $0x8] sm:$0xff]
  %v42 = vld [vmem:[%s5 + $0x10] sm:$0xff]
  %v43 = vld [vmem:[%s5 + $0x18] sm:$0xff]
  %v44 = vld [vmem:[%s6] sm:$0xff]
  %v45 = vld [vmem:[%s6 + $0x8] sm:$0xff]
  %v46 = vld [vmem:[%s6 + $0x10] sm:$0xff]
  %v47 = vld [vmem:[%s6 + $0x18] sm:$0xff]
  %v48 = vld [vmem:[%s7] sm:$0x1]
  %v49 = vld [vmem:[%s0] sm:$0xff]
  %v50 = vld [vmem:[%s0 + $0x8] sm:$0xff]
  %v51 = vld [vmem:[%s2] sm:$0xff]
  %v52 = vld [vmem:[%s2 + $0x8] sm:$0xff]
  %v53 = vld [vmem:[%s4] sm:$0x1]
  %v55 = vlaneseq
  %v56 = vshrl.u32 %v55, 7
  %v57 = vsub.s32 0, %v56
  %v58 = vrot.slane %v53, %v57
  %vm60 = vcmask 130048
  %v62 = vsel %vm60, %v49, 0
  %v65 = vsel %vm60, %v50, 0
  %67 = vmatprep.subr.mxu0 0.0
  %68 = vmatpush1.msra.mxu0 0.0
  %69 = vmatprep.subr.mxu0 0.0
  %70 = vmatpush1.msra.mxu0 0.0
  %71 = vmatprep.subr.mxu0 0.0
  %72 = vmatpush1.msra.mxu0 0.0
  %73 = vmatprep.subr.mxu0 0.0
  %74 = vmatpush1.msra.mxu0 0.0
  %75 = vmatprep.subr.mxu0 0.0
  %76 = vmatpush1.msra.mxu0 0.0
  %77 = vmatprep.subr.mxu0 0.0
  %78 = vmatpush1.msra.mxu0 0.0
  %79 = vmatprep.subr.mxu0 0.0
  %80 = vmatpush1.msra.mxu0 0.0
  %81 = vmatprep.subr.mxu0 0.0
  %82 = vmatpush1.msra.mxu0 0.0
  %83 = vmatprep.subr.mxu0 0.0
  %84 = vmatpush1.msra.mxu0 0.0
  %85 = vmatprep.subr.mxu0 0.0
  %86 = vmatpush1.msra.mxu0 0.0
  %87 = vmatprep.subr.mxu0 0.0
  %88 = vmatpush1.msra.mxu0 0.0
  %89 = vmatprep.subr.mxu0 0.0
  %90 = vmatpush1.msra.mxu0 0.0
  %91 = vmatprep.subr.mxu0 0.0
  %92 = vmatpush1.msra.mxu0 0.0
  %93 = vmatprep.subr.mxu0 0.0
  %94 = vmatpush1.msra.mxu0 0.0
  %95 = vmatprep.subr.mxu0 0.0
  %96 = vmatpush1.msra.mxu0 %v52
  %97 = vmatprep.subr.mxu0 0.0
  %98 = vmatpush1.msra.mxu0 %v51
  %99 = vmatprep.subr.mxu0 0.0
  %100 = vmatpush2.msra.mxu0 0.0
  %101 = vmatprep.subr.mxu0 0.0
  %102 = vmatpush2.msra.mxu0 0.0
  %103 = vmatprep.subr.mxu0 0.0
  %104 = vmatpush2.msra.mxu0 0.0
  %105 = vmatprep.subr.mxu0 0.0
  %106 = vmatpush2.msra.mxu0 0.0
  %107 = vmatprep.subr.mxu0 0.0
  %108 = vmatpush2.msra.mxu0 0.0
  %109 = vmatprep.subr.mxu0 0.0
  %110 = vmatpush2.msra.mxu0 0.0
  %111 = vmatprep.subr.mxu0 0.0
  %112 = vmatpush2.msra.mxu0 0.0
  %113 = vmatprep.subr.mxu0 0.0
  %114 = vmatpush2.msra.mxu0 0.0
  %115 = vmatprep.subr.mxu0 0.0
  %116 = vmatpush2.msra.mxu0 0.0
  %117 = vmatprep.subr.mxu0 0.0
  %118 = vmatpush2.msra.mxu0 0.0
  %119 = vmatprep.subr.mxu0 0.0
  %120 = vmatpush2.msra.mxu0 0.0
  %121 = vmatprep.subr.mxu0 0.0
  %122 = vmatpush2.msra.mxu0 0.0
  %123 = vmatprep.subr.mxu0 0.0
  %124 = vmatpush2.msra.mxu0 0.0
  %125 = vmatprep.subr.mxu0 0.0
  %126 = vmatpush2.msra.mxu0 0.0
  %127 = vmatprep.subr.mxu0 0.0
  %128 = vmatpush2.msra.mxu0 0.0
  %129 = vmatprep.subr.mxu0 0.0
  %130 = vmatpush2.msra.mxu0 0.0
  %131 = vmatprep.mubr.f32.mxu0 0.0
  %132 = vmatmul.mubr.f32.gmra.mxu0 %v62
  %v133 = vpop.f32.mrf.mxu0
  %v134 = vadd.f32 %v58, %v133
  %v135 = vpop.f32.mrf.mxu0
  %136 = vmatprep.mubr.f32.mxu0 0.0
  %137 = vmatmul.mubr.f32.gmra.mxu0 %v65
  %v138 = vpop.f32.mrf.mxu0
  %v139 = vadd.f32 %v58, %v138
  %v140 = vpop.f32.mrf.mxu0
  %141 = vdwg.mxu0
  %vm142 = vcmask 261120
  %v144 = vsel %vm142, 0.0, 0
  %146 = vmatprep.subr.mxu0 0.0
  %147 = vmatpush1.msra.mxu0 0.0
  %148 = vmatprep.subr.mxu0 0.0
  %149 = vmatpush1.msra.mxu0 0.0
  %150 = vmatprep.subr.mxu0 0.0
  %151 = vmatpush1.msra.mxu0 0.0
  %152 = vmatprep.subr.mxu0 0.0
  %153 = vmatpush1.msra.mxu0 0.0
  %154 = vmatprep.subr.mxu0 0.0
  %155 = vmatpush1.msra.mxu0 0.0
  %156 = vmatprep.subr.mxu0 0.0
  %157 = vmatpush1.msra.mxu0 0.0
  %158 = vmatprep.subr.mxu0 0.0
  %159 = vmatpush1.msra.mxu0 0.0
  %160 = vmatprep.subr.mxu0 0.0
  %161 = vmatpush1.msra.mxu0 0.0
  %162 = vmatprep.subr.mxu0 0.0
  %163 = vmatpush1.msra.mxu0 0.0
  %164 = vmatprep.subr.mxu0 0.0
  %165 = vmatpush1.msra.mxu0 0.0
  %166 = vmatprep.subr.mxu0 0.0
  %167 = vmatpush1.msra.mxu0 0.0
  %168 = vmatprep.subr.mxu0 0.0
  %169 = vmatpush1.msra.mxu0 0.0
  %170 = vmatprep.subr.mxu0 0.0
  %171 = vmatpush1.msra.mxu0 %v39
  %172 = vmatprep.subr.mxu0 0.0
  %173 = vmatpush1.msra.mxu0 %v38
  %174 = vmatprep.subr.mxu0 0.0
  %175 = vmatpush1.msra.mxu0 %v37
  %176 = vmatprep.subr.mxu0 0.0
  %177 = vmatpush1.msra.mxu0 %v36
  %178 = vmatprep.subr.mxu0 0.0
  %179 = vmatpush2.msra.mxu0 0.0
  %180 = vmatprep.subr.mxu0 0.0
  %181 = vmatpush2.msra.mxu0 0.0
  %182 = vmatprep.subr.mxu0 0.0
  %183 = vmatpush2.msra.mxu0 0.0
  %184 = vmatprep.subr.mxu0 0.0
  %185 = vmatpush2.msra.mxu0 0.0
  %186 = vmatprep.subr.mxu0 0.0
  %187 = vmatpush2.msra.mxu0 0.0
  %188 = vmatprep.subr.mxu0 0.0
  %189 = vmatpush2.msra.mxu0 0.0
  %190 = vmatprep.subr.mxu0 0.0
  %191 = vmatpush2.msra.mxu0 0.0
  %192 = vmatprep.subr.mxu0 0.0
  %193 = vmatpush2.msra.mxu0 0.0
  %194 = vmatprep.subr.mxu0 0.0
  %195 = vmatpush2.msra.mxu0 0.0
  %196 = vmatprep.subr.mxu0 0.0
  %197 = vmatpush2.msra.mxu0 0.0
  %198 = vmatprep.subr.mxu0 0.0
  %199 = vmatpush2.msra.mxu0 0.0
  %200 = vmatprep.subr.mxu0 0.0
  %201 = vmatpush2.msra.mxu0 0.0
  %202 = vmatprep.subr.mxu0 0.0
  %203 = vmatpush2.msra.mxu0 0.0
  %204 = vmatprep.subr.mxu0 0.0
  %205 = vmatpush2.msra.mxu0 0.0
  %206 = vmatprep.subr.mxu0 0.0
  %207 = vmatpush2.msra.mxu0 0.0
  %208 = vmatprep.subr.mxu0 0.0
  %209 = vmatpush2.msra.mxu0 0.0
  %210 = vmatprep.mubr.f32.mxu0 0.0
  %211 = vmatmul.mubr.f32.gmra.mxu0 %v144
  %v212 = vpop.f32.mrf.mxu0
  %v213 = vadd.f32 0.0, %v212
  %v214 = vpop.f32.mrf.mxu0
  %215 = vdwg.mxu0
  %v216 = vadd.f32 %v134, %v213
  %v217 = vxor.u32 %v216, 2147483648
  %v218 = vmul.f32 %v217, 1.442695
  %v219 = vpow.pop %v218
  %v220 = vadd.f32 %v219, 1.0
  %v221 = vrcp.pop %v220
  %v222 = vmul.f32 1.0, %v221
  %v223 = vtanh.pop %v216
  %v224 = vmul.f32 %v222, 0.0
  %226 = vrot.lane.b32.xlu0 %v223, 32
  %v227 = vpop.permute.xlu0 %226
  %v229 = vmul.f32 %v222, %v227
  %231 = vrot.lane.b32.xlu0 %v229, 32
  %v232 = vpop.permute.xlu0 %231
  %v234 = vadd.f32 %v224, %v232
  %v235 = vtanh.pop %v234
  %237 = vrot.lane.b32.xlu0 %v235, 32
  %v238 = vpop.permute.xlu0 %237
  %v240 = vmul.f32 %v222, %v238
  %241 = vmatprep.subr.mxu0 0.0
  %242 = vmatpush1.msra.mxu0 0.0
  %243 = vmatprep.subr.mxu0 0.0
  %244 = vmatpush1.msra.mxu0 0.0
  %245 = vmatprep.subr.mxu0 0.0
  %246 = vmatpush1.msra.mxu0 0.0
  %247 = vmatprep.subr.mxu0 0.0
  %248 = vmatpush1.msra.mxu0 0.0
  %249 = vmatprep.subr.mxu0 0.0
  %250 = vmatpush1.msra.mxu0 0.0
  %251 = vmatprep.subr.mxu0 0.0
  %252 = vmatpush1.msra.mxu0 0.0
  %253 = vmatprep.subr.mxu0 0.0
  %254 = vmatpush1.msra.mxu0 0.0
  %255 = vmatprep.subr.mxu0 0.0
  %256 = vmatpush1.msra.mxu0 0.0
  %257 = vmatprep.subr.mxu0 0.0
  %258 = vmatpush1.msra.mxu0 0.0
  %259 = vmatprep.subr.mxu0 0.0
  %260 = vmatpush1.msra.mxu0 0.0
  %261 = vmatprep.subr.mxu0 0.0
  %262 = vmatpush1.msra.mxu0 0.0
  %263 = vmatprep.subr.mxu0 0.0
  %264 = vmatpush1.msra.mxu0 0.0
  %265 = vmatprep.subr.mxu0 0.0
  %266 = vmatpush1.msra.mxu0 %v47
  %267 = vmatprep.subr.mxu0 0.0
  %268 = vmatpush1.msra.mxu0 %v46
  %269 = vmatprep.subr.mxu0 0.0
  %270 = vmatpush1.msra.mxu0 %v45
  %271 = vmatprep.subr.mxu0 0.0
  %272 = vmatpush1.msra.mxu0 %v44
  %273 = vmatprep.subr.mxu0 0.0
  %274 = vmatpush2.msra.mxu0 0.0
  %275 = vmatprep.subr.mxu0 0.0
  %276 = vmatpush2.msra.mxu0 0.0
  %277 = vmatprep.subr.mxu0 0.0
  %278 = vmatpush2.msra.mxu0 0.0
  %279 = vmatprep.subr.mxu0 0.0
  %280 = vmatpush2.msra.mxu0 0.0
  %281 = vmatprep.subr.mxu0 0.0
  %282 = vmatpush2.msra.mxu0 0.0
  %283 = vmatprep.subr.mxu0 0.0
  %284 = vmatpush2.msra.mxu0 0.0
  %285 = vmatprep.subr.mxu0 0.0
  %286 = vmatpush2.msra.mxu0 0.0
  %287 = vmatprep.subr.mxu0 0.0
  %288 = vmatpush2.msra.mxu0 0.0
  %289 = vmatprep.subr.mxu0 0.0
  %290 = vmatpush2.msra.mxu0 0.0
  %291 = vmatprep.subr.mxu0 0.0
  %292 = vmatpush2.msra.mxu0 0.0
  %293 = vmatprep.subr.mxu0 0.0
  %294 = vmatpush2.msra.mxu0 0.0
  %295 = vmatprep.subr.mxu0 0.0
  %296 = vmatpush2.msra.mxu0 0.0
  %297 = vmatprep.subr.mxu0 0.0
  %298 = vmatpush2.msra.mxu0 0.0
  %299 = vmatprep.subr.mxu0 0.0
  %300 = vmatpush2.msra.mxu0 0.0
  %301 = vmatprep.subr.mxu0 0.0
  %302 = vmatpush2.msra.mxu0 0.0
  %303 = vmatprep.subr.mxu0 0.0
  %304 = vmatpush2.msra.mxu0 0.0
  %305 = vmatprep.mubr.f32.mxu0 0.0
  %306 = vmatmul.mubr.f32.gmra.mxu0 %v144
  %v307 = vpop.f32.mrf.mxu0
  %v308 = vadd.f32 0.0, %v307
  %v309 = vpop.f32.mrf.mxu0
  %310 = vdwg.mxu0
  %312 = vrot.lane.b32.xlu0 %v240, 64
  %v313 = vpop.permute.xlu0 %312
  %v314 = vsel %vm142, %v313, 0
  %316 = vmatprep.subr.mxu0 0.0
  %317 = vmatpush1.msra.mxu0 0.0
  %318 = vmatprep.subr.mxu0 0.0
  %319 = vmatpush1.msra.mxu0 0.0
  %320 = vmatprep.subr.mxu0 0.0
  %321 = vmatpush1.msra.mxu0 0.0
  %322 = vmatprep.subr.mxu0 0.0
  %323 = vmatpush1.msra.mxu0 0.0
  %324 = vmatprep.subr.mxu0 0.0
  %325 = vmatpush1.msra.mxu0 0.0
  %326 = vmatprep.subr.mxu0 0.0
  %327 = vmatpush1.msra.mxu0 0.0
  %328 = vmatprep.subr.mxu0 0.0
  %329 = vmatpush1.msra.mxu0 0.0
  %330 = vmatprep.subr.mxu0 0.0
  %331 = vmatpush1.msra.mxu0 0.0
  %332 = vmatprep.subr.mxu0 0.0
  %333 = vmatpush1.msra.mxu0 0.0
  %334 = vmatprep.subr.mxu0 0.0
  %335 = vmatpush1.msra.mxu0 0.0
  %336 = vmatprep.subr.mxu0 0.0
  %337 = vmatpush1.msra.mxu0 0.0
  %338 = vmatprep.subr.mxu0 0.0
  %339 = vmatpush1.msra.mxu0 0.0
  %340 = vmatprep.subr.mxu0 0.0
  %341 = vmatpush1.msra.mxu0 %v43
  %342 = vmatprep.subr.mxu0 0.0
  %343 = vmatpush1.msra.mxu0 %v42
  %344 = vmatprep.subr.mxu0 0.0
  %345 = vmatpush1.msra.mxu0 %v41
  %346 = vmatprep.subr.mxu0 0.0
  %347 = vmatpush1.msra.mxu0 %v40
  %348 = vmatprep.subr.mxu0 0.0
  %349 = vmatpush2.msra.mxu0 0.0
  %350 = vmatprep.subr.mxu0 0.0
  %351 = vmatpush2.msra.mxu0 0.0
  %352 = vmatprep.subr.mxu0 0.0
  %353 = vmatpush2.msra.mxu0 0.0
  %354 = vmatprep.subr.mxu0 0.0
  %355 = vmatpush2.msra.mxu0 0.0
  %356 = vmatprep.subr.mxu0 0.0
  %357 = vmatpush2.msra.mxu0 0.0
  %358 = vmatprep.subr.mxu0 0.0
  %359 = vmatpush2.msra.mxu0 0.0
  %360 = vmatprep.subr.mxu0 0.0
  %361 = vmatpush2.msra.mxu0 0.0
  %362 = vmatprep.subr.mxu0 0.0
  %363 = vmatpush2.msra.mxu0 0.0
  %364 = vmatprep.subr.mxu0 0.0
  %365 = vmatpush2.msra.mxu0 0.0
  %366 = vmatprep.subr.mxu0 0.0
  %367 = vmatpush2.msra.mxu0 0.0
  %368 = vmatprep.subr.mxu0 0.0
  %369 = vmatpush2.msra.mxu0 0.0
  %370 = vmatprep.subr.mxu0 0.0
  %371 = vmatpush2.msra.mxu0 0.0
  %372 = vmatprep.subr.mxu0 0.0
  %373 = vmatpush2.msra.mxu0 0.0
  %374 = vmatprep.subr.mxu0 0.0
  %375 = vmatpush2.msra.mxu0 0.0
  %376 = vmatprep.subr.mxu0 0.0
  %377 = vmatpush2.msra.mxu0 0.0
  %378 = vmatprep.subr.mxu0 0.0
  %379 = vmatpush2.msra.mxu0 0.0
  %380 = vmatprep.mubr.f32.mxu0 0.0
  %381 = vmatmul.mubr.f32.gmra.mxu0 %v314
  %v382 = vpop.f32.mrf.mxu0
  %v383 = vadd.f32 %v308, %v382
  %v384 = vpop.f32.mrf.mxu0
  %385 = vdwg.mxu0
  %v387 = vlaneseq
  %v388 = vshrl.u32 %v387, 7
  %v389 = vsub.s32 0, %v388
  %v390 = vrot.slane %v48, %v389
  %v392 = vadd.f32 %v383, %v390
  %v393 = vxor.u32 %v392, 2147483648
  %v394 = vmul.f32 %v393, 1.442695
  %v395 = vpow.pop %v394
  %v396 = vadd.f32 %v395, 1.0
  %v397 = vrcp.pop %v396
  %v398 = vmul.f32 1.0, %v397
  %v399 = vtanh.pop %v392
  %v400 = vmul.f32 %v398, 0.0
  %402 = vrot.lane.b32.xlu0 %v399, 32
  %v403 = vpop.permute.xlu0 %402
  %v405 = vmul.f32 %v398, %v403
  %407 = vrot.lane.b32.xlu0 %v405, 32
  %v408 = vpop.permute.xlu0 %407
  %v410 = vadd.f32 %v400, %v408
  %v411 = vtanh.pop %v410
  %413 = vrot.lane.b32.xlu0 %v411, 32
  %v414 = vpop.permute.xlu0 %413
  %v416 = vmul.f32 %v398, %v414
  %vm417 = vcmp.eq.s32.totalorder %v35, 0
  %v418 = vsel %vm417, 1, 0
  %419 = vset.pattern.permute.xlu0 0
  %420 = vperm.xlu0 %419, %v418
  %v421 = vpop.permute.xlu0 %420
  %vm422 = vcmp.eq.s32.totalorder %v421, 1
  %v423 = vsel %vm422, %v416, 0.0
  %424 = vmatprep.subr.mxu0 0.0
  %425 = vmatpush1.msra.mxu0 0.0
  %426 = vmatprep.subr.mxu0 0.0
  %427 = vmatpush1.msra.mxu0 0.0
  %428 = vmatprep.subr.mxu0 0.0
  %429 = vmatpush1.msra.mxu0 0.0
  %430 = vmatprep.subr.mxu0 0.0
  %431 = vmatpush1.msra.mxu0 0.0
  %432 = vmatprep.subr.mxu0 0.0
  %433 = vmatpush1.msra.mxu0 0.0
  %434 = vmatprep.subr.mxu0 0.0
  %435 = vmatpush1.msra.mxu0 0.0
  %436 = vmatprep.subr.mxu0 0.0
  %437 = vmatpush1.msra.mxu0 0.0
  %438 = vmatprep.subr.mxu0 0.0
  %439 = vmatpush1.msra.mxu0 0.0
  %440 = vmatprep.subr.mxu0 0.0
  %441 = vmatpush1.msra.mxu0 0.0
  %442 = vmatprep.subr.mxu0 0.0
  %443 = vmatpush1.msra.mxu0 0.0
  %444 = vmatprep.subr.mxu0 0.0
  %445 = vmatpush1.msra.mxu0 0.0
  %446 = vmatprep.subr.mxu0 0.0
  %447 = vmatpush1.msra.mxu0 0.0
  %448 = vmatprep.subr.mxu0 0.0
  %449 = vmatpush1.msra.mxu0 %v39
  %450 = vmatprep.subr.mxu0 0.0
  %451 = vmatpush1.msra.mxu0 %v38
  %452 = vmatprep.subr.mxu0 0.0
  %453 = vmatpush1.msra.mxu0 %v37
  %454 = vmatprep.subr.mxu0 0.0
  %455 = vmatpush1.msra.mxu0 %v36
  %456 = vmatprep.subr.mxu0 0.0
  %457 = vmatpush2.msra.mxu0 0.0
  %458 = vmatprep.subr.mxu0 0.0
  %459 = vmatpush2.msra.mxu0 0.0
  %460 = vmatprep.subr.mxu0 0.0
  %461 = vmatpush2.msra.mxu0 0.0
  %462 = vmatprep.subr.mxu0 0.0
  %463 = vmatpush2.msra.mxu0 0.0
  %464 = vmatprep.subr.mxu0 0.0
  %465 = vmatpush2.msra.mxu0 0.0
  %466 = vmatprep.subr.mxu0 0.0
  %467 = vmatpush2.msra.mxu0 0.0
  %468 = vmatprep.subr.mxu0 0.0
  %469 = vmatpush2.msra.mxu0 0.0
  %470 = vmatprep.subr.mxu0 0.0
  %471 = vmatpush2.msra.mxu0 0.0
  %472 = vmatprep.subr.mxu0 0.0
  %473 = vmatpush2.msra.mxu0 0.0
  %474 = vmatprep.subr.mxu0 0.0
  %475 = vmatpush2.msra.mxu0 0.0
  %476 = vmatprep.subr.mxu0 0.0
  %477 = vmatpush2.msra.mxu0 0.0
  %478 = vmatprep.subr.mxu0 0.0
  %479 = vmatpush2.msra.mxu0 0.0
  %480 = vmatprep.subr.mxu0 0.0
  %481 = vmatpush2.msra.mxu0 0.0
  %482 = vmatprep.subr.mxu0 0.0
  %483 = vmatpush2.msra.mxu0 0.0
  %484 = vmatprep.subr.mxu0 0.0
  %485 = vmatpush2.msra.mxu0 0.0
  %486 = vmatprep.subr.mxu0 0.0
  %487 = vmatpush2.msra.mxu0 0.0
  %488 = vmatprep.mubr.f32.mxu0 0.0
  %489 = vmatmul.mubr.f32.gmra.mxu0 %v314
  %v490 = vpop.f32.mrf.mxu0
  %v491 = vadd.f32 0.0, %v490
  %v492 = vpop.f32.mrf.mxu0
  %493 = vdwg.mxu0
  %v495 = vrot.slane %v491, 6
  %v497 = vadd.f32 %v134, %v495
  %v498 = vxor.u32 %v497, 2147483648
  %v499 = vmul.f32 %v498, 1.442695
  %v500 = vpow.pop %v499
  %v501 = vadd.f32 %v500, 1.0
  %v502 = vrcp.pop %v501
  %v503 = vmul.f32 1.0, %v502
  %v504 = vtanh.pop %v497
  %v506 = vrot.slane %v234, 6
  %v508 = vmul.f32 %v503, %v506
  %510 = vrot.lane.b32.xlu0 %v504, 32
  %v511 = vpop.permute.xlu0 %510
  %v513 = vmul.f32 %v503, %v511
  %515 = vrot.lane.b32.xlu0 %v513, 32
  %v516 = vpop.permute.xlu0 %515
  %v518 = vadd.f32 %v508, %v516
  %v519 = vtanh.pop %v518
  %521 = vrot.lane.b32.xlu0 %v519, 32
  %v522 = vpop.permute.xlu0 %521
  %v524 = vmul.f32 %v503, %v522
  %526 = vrot.lane.b32.xlu0 %v416, 64
  %v527 = vpop.permute.xlu0 %526
  %v528 = vsel %vm142, %v527, 0
  %530 = vmatprep.subr.mxu0 0.0
  %531 = vmatpush1.msra.mxu0 0.0
  %532 = vmatprep.subr.mxu0 0.0
  %533 = vmatpush1.msra.mxu0 0.0
  %534 = vmatprep.subr.mxu0 0.0
  %535 = vmatpush1.msra.mxu0 0.0
  %536 = vmatprep.subr.mxu0 0.0
  %537 = vmatpush1.msra.mxu0 0.0
  %538 = vmatprep.subr.mxu0 0.0
  %539 = vmatpush1.msra.mxu0 0.0
  %540 = vmatprep.subr.mxu0 0.0
  %541 = vmatpush1.msra.mxu0 0.0
  %542 = vmatprep.subr.mxu0 0.0
  %543 = vmatpush1.msra.mxu0 0.0
  %544 = vmatprep.subr.mxu0 0.0
  %545 = vmatpush1.msra.mxu0 0.0
  %546 = vmatprep.subr.mxu0 0.0
  %547 = vmatpush1.msra.mxu0 0.0
  %548 = vmatprep.subr.mxu0 0.0
  %549 = vmatpush1.msra.mxu0 0.0
  %550 = vmatprep.subr.mxu0 0.0
  %551 = vmatpush1.msra.mxu0 0.0
  %552 = vmatprep.subr.mxu0 0.0
  %553 = vmatpush1.msra.mxu0 0.0
  %554 = vmatprep.subr.mxu0 0.0
  %555 = vmatpush1.msra.mxu0 %v47
  %556 = vmatprep.subr.mxu0 0.0
  %557 = vmatpush1.msra.mxu0 %v46
  %558 = vmatprep.subr.mxu0 0.0
  %559 = vmatpush1.msra.mxu0 %v45
  %560 = vmatprep.subr.mxu0 0.0
  %561 = vmatpush1.msra.mxu0 %v44
  %562 = vmatprep.subr.mxu0 0.0
  %563 = vmatpush2.msra.mxu0 0.0
  %564 = vmatprep.subr.mxu0 0.0
  %565 = vmatpush2.msra.mxu0 0.0
  %566 = vmatprep.subr.mxu0 0.0
  %567 = vmatpush2.msra.mxu0 0.0
  %568 = vmatprep.subr.mxu0 0.0
  %569 = vmatpush2.msra.mxu0 0.0
  %570 = vmatprep.subr.mxu0 0.0
  %571 = vmatpush2.msra.mxu0 0.0
  %572 = vmatprep.subr.mxu0 0.0
  %573 = vmatpush2.msra.mxu0 0.0
  %574 = vmatprep.subr.mxu0 0.0
  %575 = vmatpush2.msra.mxu0 0.0
  %576 = vmatprep.subr.mxu0 0.0
  %577 = vmatpush2.msra.mxu0 0.0
  %578 = vmatprep.subr.mxu0 0.0
  %579 = vmatpush2.msra.mxu0 0.0
  %580 = vmatprep.subr.mxu0 0.0
  %581 = vmatpush2.msra.mxu0 0.0
  %582 = vmatprep.subr.mxu0 0.0
  %583 = vmatpush2.msra.mxu0 0.0
  %584 = vmatprep.subr.mxu0 0.0
  %585 = vmatpush2.msra.mxu0 0.0
  %586 = vmatprep.subr.mxu0 0.0
  %587 = vmatpush2.msra.mxu0 0.0
  %588 = vmatprep.subr.mxu0 0.0
  %589 = vmatpush2.msra.mxu0 0.0
  %590 = vmatprep.subr.mxu0 0.0
  %591 = vmatpush2.msra.mxu0 0.0
  %592 = vmatprep.subr.mxu0 0.0
  %593 = vmatpush2.msra.mxu0 0.0
  %594 = vmatprep.mubr.f32.mxu0 0.0
  %595 = vmatmul.mubr.f32.gmra.mxu0 %v528
  %v596 = vpop.f32.mrf.mxu0
  %v597 = vadd.f32 0.0, %v596
  %v598 = vpop.f32.mrf.mxu0
  %599 = vdwg.mxu0
  %v601 = vrot.slane %v524, 2
  %602 = vrot.lane.b32.xlu0 %v601, 64
  %v603 = vpop.permute.xlu0 %602
  %v604 = vsel %vm142, %v603, 0
  %606 = vmatprep.subr.mxu0 0.0
  %607 = vmatpush1.msra.mxu0 0.0
  %608 = vmatprep.subr.mxu0 0.0
  %609 = vmatpush1.msra.mxu0 0.0
  %610 = vmatprep.subr.mxu0 0.0
  %611 = vmatpush1.msra.mxu0 0.0
  %612 = vmatprep.subr.mxu0 0.0
  %613 = vmatpush1.msra.mxu0 0.0
  %614 = vmatprep.subr.mxu0 0.0
  %615 = vmatpush1.msra.mxu0 0.0
  %616 = vmatprep.subr.mxu0 0.0
  %617 = vmatpush1.msra.mxu0 0.0
  %618 = vmatprep.subr.mxu0 0.0
  %619 = vmatpush1.msra.mxu0 0.0
  %620 = vmatprep.subr.mxu0 0.0
  %621 = vmatpush1.msra.mxu0 0.0
  %622 = vmatprep.subr.mxu0 0.0
  %623 = vmatpush1.msra.mxu0 0.0
  %624 = vmatprep.subr.mxu0 0.0
  %625 = vmatpush1.msra.mxu0 0.0
  %626 = vmatprep.subr.mxu0 0.0
  %627 = vmatpush1.msra.mxu0 0.0
  %628 = vmatprep.subr.mxu0 0.0
  %629 = vmatpush1.msra.mxu0 0.0
  %630 = vmatprep.subr.mxu0 0.0
  %631 = vmatpush1.msra.mxu0 %v43
  %632 = vmatprep.subr.mxu0 0.0
  %633 = vmatpush1.msra.mxu0 %v42
  %634 = vmatprep.subr.mxu0 0.0
  %635 = vmatpush1.msra.mxu0 %v41
  %636 = vmatprep.subr.mxu0 0.0
  %637 = vmatpush1.msra.mxu0 %v40
  %638 = vmatprep.subr.mxu0 0.0
  %639 = vmatpush2.msra.mxu0 0.0
  %640 = vmatprep.subr.mxu0 0.0
  %641 = vmatpush2.msra.mxu0 0.0
  %642 = vmatprep.subr.mxu0 0.0
  %643 = vmatpush2.msra.mxu0 0.0
  %644 = vmatprep.subr.mxu0 0.0
  %645 = vmatpush2.msra.mxu0 0.0
  %646 = vmatprep.subr.mxu0 0.0
  %647 = vmatpush2.msra.mxu0 0.0
  %648 = vmatprep.subr.mxu0 0.0
  %649 = vmatpush2.msra.mxu0 0.0
  %650 = vmatprep.subr.mxu0 0.0
  %651 = vmatpush2.msra.mxu0 0.0
  %652 = vmatprep.subr.mxu0 0.0
  %653 = vmatpush2.msra.mxu0 0.0
  %654 = vmatprep.subr.mxu0 0.0
  %655 = vmatpush2.msra.mxu0 0.0
  %656 = vmatprep.subr.mxu0 0.0
  %657 = vmatpush2.msra.mxu0 0.0
  %658 = vmatprep.subr.mxu0 0.0
  %659 = vmatpush2.msra.mxu0 0.0
  %660 = vmatprep.subr.mxu0 0.0
  %661 = vmatpush2.msra.mxu0 0.0
  %662 = vmatprep.subr.mxu0 0.0
  %663 = vmatpush2.msra.mxu0 0.0
  %664 = vmatprep.subr.mxu0 0.0
  %665 = vmatpush2.msra.mxu0 0.0
  %666 = vmatprep.subr.mxu0 0.0
  %667 = vmatpush2.msra.mxu0 0.0
  %668 = vmatprep.subr.mxu0 0.0
  %669 = vmatpush2.msra.mxu0 0.0
  %670 = vmatprep.mubr.f32.mxu0 0.0
  %671 = vmatmul.mubr.f32.gmra.mxu0 %v604
  %v672 = vpop.f32.mrf.mxu0
  %v673 = vadd.f32 %v597, %v672
  %v674 = vpop.f32.mrf.mxu0
  %675 = vdwg.mxu0
  %v676 = vadd.f32 %v673, %v390
  %v677 = vxor.u32 %v676, 2147483648
  %v678 = vmul.f32 %v677, 1.442695
  %v679 = vpow.pop %v678
  %v680 = vadd.f32 %v679, 1.0
  %v681 = vrcp.pop %v680
  %v682 = vmul.f32 1.0, %v681
  %v683 = vtanh.pop %v676
  %v684 = vmul.f32 %v682, %v410
  %686 = vrot.lane.b32.xlu0 %v683, 32
  %v687 = vpop.permute.xlu0 %686
  %v689 = vmul.f32 %v682, %v687
  %691 = vrot.lane.b32.xlu0 %v689, 32
  %v692 = vpop.permute.xlu0 %691
  %v694 = vadd.f32 %v684, %v692
  %v695 = vtanh.pop %v694
  %697 = vrot.lane.b32.xlu0 %v695, 32
  %v698 = vpop.permute.xlu0 %697
  %v700 = vmul.f32 %v682, %v698
  %vm701 = vcmp.eq.s32.totalorder %v35, 1
  %v702 = vsel %vm701, 1, 0
  %703 = vset.pattern.permute.xlu0 0
  %704 = vperm.xlu0 %703, %v702
  %v705 = vpop.permute.xlu0 %704
  %vm706 = vcmp.eq.s32.totalorder %v705, 1
  %v707 = vsel %vm706, %v700, %v423
  %708 = vmatprep.subr.mxu0 0.0
  %709 = vmatpush1.msra.mxu0 0.0
  %710 = vmatprep.subr.mxu0 0.0
  %711 = vmatpush1.msra.mxu0 0.0
  %712 = vmatprep.subr.mxu0 0.0
  %713 = vmatpush1.msra.mxu0 0.0
  %714 = vmatprep.subr.mxu0 0.0
  %715 = vmatpush1.msra.mxu0 0.0
  %716 = vmatprep.subr.mxu0 0.0
  %717 = vmatpush1.msra.mxu0 0.0
  %718 = vmatprep.subr.mxu0 0.0
  %719 = vmatpush1.msra.mxu0 0.0
  %720 = vmatprep.subr.mxu0 0.0
  %721 = vmatpush1.msra.mxu0 0.0
  %722 = vmatprep.subr.mxu0 0.0
  %723 = vmatpush1.msra.mxu0 0.0
  %724 = vmatprep.subr.mxu0 0.0
  %725 = vmatpush1.msra.mxu0 0.0
  %726 = vmatprep.subr.mxu0 0.0
  %727 = vmatpush1.msra.mxu0 0.0
  %728 = vmatprep.subr.mxu0 0.0
  %729 = vmatpush1.msra.mxu0 0.0
  %730 = vmatprep.subr.mxu0 0.0
  %731 = vmatpush1.msra.mxu0 0.0
  %732 = vmatprep.subr.mxu0 0.0
  %733 = vmatpush1.msra.mxu0 %v39
  %734 = vmatprep.subr.mxu0 0.0
  %735 = vmatpush1.msra.mxu0 %v38
  %736 = vmatprep.subr.mxu0 0.0
  %737 = vmatpush1.msra.mxu0 %v37
  %738 = vmatprep.subr.mxu0 0.0
  %739 = vmatpush1.msra.mxu0 %v36
  %740 = vmatprep.subr.mxu0 0.0
  %741 = vmatpush2.msra.mxu0 0.0
  %742 = vmatprep.subr.mxu0 0.0
  %743 = vmatpush2.msra.mxu0 0.0
  %744 = vmatprep.subr.mxu0 0.0
  %745 = vmatpush2.msra.mxu0 0.0
  %746 = vmatprep.subr.mxu0 0.0
  %747 = vmatpush2.msra.mxu0 0.0
  %748 = vmatprep.subr.mxu0 0.0
  %749 = vmatpush2.msra.mxu0 0.0
  %750 = vmatprep.subr.mxu0 0.0
  %751 = vmatpush2.msra.mxu0 0.0
  %752 = vmatprep.subr.mxu0 0.0
  %753 = vmatpush2.msra.mxu0 0.0
  %754 = vmatprep.subr.mxu0 0.0
  %755 = vmatpush2.msra.mxu0 0.0
  %756 = vmatprep.subr.mxu0 0.0
  %757 = vmatpush2.msra.mxu0 0.0
  %758 = vmatprep.subr.mxu0 0.0
  %759 = vmatpush2.msra.mxu0 0.0
  %760 = vmatprep.subr.mxu0 0.0
  %761 = vmatpush2.msra.mxu0 0.0
  %762 = vmatprep.subr.mxu0 0.0
  %763 = vmatpush2.msra.mxu0 0.0
  %764 = vmatprep.subr.mxu0 0.0
  %765 = vmatpush2.msra.mxu0 0.0
  %766 = vmatprep.subr.mxu0 0.0
  %767 = vmatpush2.msra.mxu0 0.0
  %768 = vmatprep.subr.mxu0 0.0
  %769 = vmatpush2.msra.mxu0 0.0
  %770 = vmatprep.subr.mxu0 0.0
  %771 = vmatpush2.msra.mxu0 0.0
  %772 = vmatprep.mubr.f32.mxu0 0.0
  %773 = vmatmul.mubr.f32.gmra.mxu0 %v604
  %v774 = vpop.f32.mrf.mxu0
  %v775 = vadd.f32 0.0, %v774
  %v776 = vpop.f32.mrf.mxu0
  %777 = vdwg.mxu0
  %v779 = vrot.slane %v775, 4
  %v781 = vadd.f32 %v134, %v779
  %v782 = vxor.u32 %v781, 2147483648
  %v783 = vmul.f32 %v782, 1.442695
  %v784 = vpow.pop %v783
  %v785 = vadd.f32 %v784, 1.0
  %v786 = vrcp.pop %v785
  %v787 = vmul.f32 1.0, %v786
  %v788 = vtanh.pop %v781
  %v790 = vrot.slane %v518, 6
  %v792 = vmul.f32 %v787, %v790
  %794 = vrot.lane.b32.xlu0 %v788, 32
  %v795 = vpop.permute.xlu0 %794
  %v797 = vmul.f32 %v787, %v795
  %799 = vrot.lane.b32.xlu0 %v797, 32
  %v800 = vpop.permute.xlu0 %799
  %v802 = vadd.f32 %v792, %v800
  %v803 = vtanh.pop %v802
  %805 = vrot.lane.b32.xlu0 %v803, 32
  %v806 = vpop.permute.xlu0 %805
  %v808 = vmul.f32 %v787, %v806
  %810 = vrot.lane.b32.xlu0 %v700, 64
  %v811 = vpop.permute.xlu0 %810
  %v812 = vsel %vm142, %v811, 0
  %814 = vmatprep.subr.mxu0 0.0
  %815 = vmatpush1.msra.mxu0 0.0
  %816 = vmatprep.subr.mxu0 0.0
  %817 = vmatpush1.msra.mxu0 0.0
  %818 = vmatprep.subr.mxu0 0.0
  %819 = vmatpush1.msra.mxu0 0.0
  %820 = vmatprep.subr.mxu0 0.0
  %821 = vmatpush1.msra.mxu0 0.0
  %822 = vmatprep.subr.mxu0 0.0
  %823 = vmatpush1.msra.mxu0 0.0
  %824 = vmatprep.subr.mxu0 0.0
  %825 = vmatpush1.msra.mxu0 0.0
  %826 = vmatprep.subr.mxu0 0.0
  %827 = vmatpush1.msra.mxu0 0.0
  %828 = vmatprep.subr.mxu0 0.0
  %829 = vmatpush1.msra.mxu0 0.0
  %830 = vmatprep.subr.mxu0 0.0
  %831 = vmatpush1.msra.mxu0 0.0
  %832 = vmatprep.subr.mxu0 0.0
  %833 = vmatpush1.msra.mxu0 0.0
  %834 = vmatprep.subr.mxu0 0.0
  %835 = vmatpush1.msra.mxu0 0.0
  %836 = vmatprep.subr.mxu0 0.0
  %837 = vmatpush1.msra.mxu0 0.0
  %838 = vmatprep.subr.mxu0 0.0
  %839 = vmatpush1.msra.mxu0 %v47
  %840 = vmatprep.subr.mxu0 0.0
  %841 = vmatpush1.msra.mxu0 %v46
  %842 = vmatprep.subr.mxu0 0.0
  %843 = vmatpush1.msra.mxu0 %v45
  %844 = vmatprep.subr.mxu0 0.0
  %845 = vmatpush1.msra.mxu0 %v44
  %846 = vmatprep.subr.mxu0 0.0
  %847 = vmatpush2.msra.mxu0 0.0
  %848 = vmatprep.subr.mxu0 0.0
  %849 = vmatpush2.msra.mxu0 0.0
  %850 = vmatprep.subr.mxu0 0.0
  %851 = vmatpush2.msra.mxu0 0.0
  %852 = vmatprep.subr.mxu0 0.0
  %853 = vmatpush2.msra.mxu0 0.0
  %854 = vmatprep.subr.mxu0 0.0
  %855 = vmatpush2.msra.mxu0 0.0
  %856 = vmatprep.subr.mxu0 0.0
  %857 = vmatpush2.msra.mxu0 0.0
  %858 = vmatprep.subr.mxu0 0.0
  %859 = vmatpush2.msra.mxu0 0.0
  %860 = vmatprep.subr.mxu0 0.0
  %861 = vmatpush2.msra.mxu0 0.0
  %862 = vmatprep.subr.mxu0 0.0
  %863 = vmatpush2.msra.mxu0 0.0
  %864 = vmatprep.subr.mxu0 0.0
  %865 = vmatpush2.msra.mxu0 0.0
  %866 = vmatprep.subr.mxu0 0.0
  %867 = vmatpush2.msra.mxu0 0.0
  %868 = vmatprep.subr.mxu0 0.0
  %869 = vmatpush2.msra.mxu0 0.0
  %870 = vmatprep.subr.mxu0 0.0
  %871 = vmatpush2.msra.mxu0 0.0
  %872 = vmatprep.subr.mxu0 0.0
  %873 = vmatpush2.msra.mxu0 0.0
  %874 = vmatprep.subr.mxu0 0.0
  %875 = vmatpush2.msra.mxu0 0.0
  %876 = vmatprep.subr.mxu0 0.0
  %877 = vmatpush2.msra.mxu0 0.0
  %878 = vmatprep.mubr.f32.mxu0 0.0
  %879 = vmatmul.mubr.f32.gmra.mxu0 %v812
  %v880 = vpop.f32.mrf.mxu0
  %v881 = vadd.f32 0.0, %v880
  %v882 = vpop.f32.mrf.mxu0
  %883 = vdwg.mxu0
  %v885 = vrot.slane %v808, 4
  %886 = vrot.lane.b32.xlu0 %v885, 64
  %v887 = vpop.permute.xlu0 %886
  %v888 = vsel %vm142, %v887, 0
  %890 = vmatprep.subr.mxu0 0.0
  %891 = vmatpush1.msra.mxu0 0.0
  %892 = vmatprep.subr.mxu0 0.0
  %893 = vmatpush1.msra.mxu0 0.0
  %894 = vmatprep.subr.mxu0 0.0
  %895 = vmatpush1.msra.mxu0 0.0
  %896 = vmatprep.subr.mxu0 0.0
  %897 = vmatpush1.msra.mxu0 0.0
  %898 = vmatprep.subr.mxu0 0.0
  %899 = vmatpush1.msra.mxu0 0.0
  %900 = vmatprep.subr.mxu0 0.0
  %901 = vmatpush1.msra.mxu0 0.0
  %902 = vmatprep.subr.mxu0 0.0
  %903 = vmatpush1.msra.mxu0 0.0
  %904 = vmatprep.subr.mxu0 0.0
  %905 = vmatpush1.msra.mxu0 0.0
  %906 = vmatprep.subr.mxu0 0.0
  %907 = vmatpush1.msra.mxu0 0.0
  %908 = vmatprep.subr.mxu0 0.0
  %909 = vmatpush1.msra.mxu0 0.0
  %910 = vmatprep.subr.mxu0 0.0
  %911 = vmatpush1.msra.mxu0 0.0
  %912 = vmatprep.subr.mxu0 0.0
  %913 = vmatpush1.msra.mxu0 0.0
  %914 = vmatprep.subr.mxu0 0.0
  %915 = vmatpush1.msra.mxu0 %v43
  %916 = vmatprep.subr.mxu0 0.0
  %917 = vmatpush1.msra.mxu0 %v42
  %918 = vmatprep.subr.mxu0 0.0
  %919 = vmatpush1.msra.mxu0 %v41
  %920 = vmatprep.subr.mxu0 0.0
  %921 = vmatpush1.msra.mxu0 %v40
  %922 = vmatprep.subr.mxu0 0.0
  %923 = vmatpush2.msra.mxu0 0.0
  %924 = vmatprep.subr.mxu0 0.0
  %925 = vmatpush2.msra.mxu0 0.0
  %926 = vmatprep.subr.mxu0 0.0
  %927 = vmatpush2.msra.mxu0 0.0
  %928 = vmatprep.subr.mxu0 0.0
  %929 = vmatpush2.msra.mxu0 0.0
  %930 = vmatprep.subr.mxu0 0.0
  %931 = vmatpush2.msra.mxu0 0.0
  %932 = vmatprep.subr.mxu0 0.0
  %933 = vmatpush2.msra.mxu0 0.0
  %934 = vmatprep.subr.mxu0 0.0
  %935 = vmatpush2.msra.mxu0 0.0
  %936 = vmatprep.subr.mxu0 0.0
  %937 = vmatpush2.msra.mxu0 0.0
  %938 = vmatprep.subr.mxu0 0.0
  %939 = vmatpush2.msra.mxu0 0.0
  %940 = vmatprep.subr.mxu0 0.0
  %941 = vmatpush2.msra.mxu0 0.0
  %942 = vmatprep.subr.mxu0 0.0
  %943 = vmatpush2.msra.mxu0 0.0
  %944 = vmatprep.subr.mxu0 0.0
  %945 = vmatpush2.msra.mxu0 0.0
  %946 = vmatprep.subr.mxu0 0.0
  %947 = vmatpush2.msra.mxu0 0.0
  %948 = vmatprep.subr.mxu0 0.0
  %949 = vmatpush2.msra.mxu0 0.0
  %950 = vmatprep.subr.mxu0 0.0
  %951 = vmatpush2.msra.mxu0 0.0
  %952 = vmatprep.subr.mxu0 0.0
  %953 = vmatpush2.msra.mxu0 0.0
  %954 = vmatprep.mubr.f32.mxu0 0.0
  %955 = vmatmul.mubr.f32.gmra.mxu0 %v888
  %v956 = vpop.f32.mrf.mxu0
  %v957 = vadd.f32 %v881, %v956
  %v958 = vpop.f32.mrf.mxu0
  %959 = vdwg.mxu0
  %v960 = vadd.f32 %v957, %v390
  %v961 = vxor.u32 %v960, 2147483648
  %v962 = vmul.f32 %v961, 1.442695
  %v963 = vpow.pop %v962
  %v964 = vadd.f32 %v963, 1.0
  %v965 = vrcp.pop %v964
  %v966 = vmul.f32 1.0, %v965
  %v967 = vtanh.pop %v960
  %v968 = vmul.f32 %v966, %v694
  %970 = vrot.lane.b32.xlu0 %v967, 32
  %v971 = vpop.permute.xlu0 %970
  %v973 = vmul.f32 %v966, %v971
  %975 = vrot.lane.b32.xlu0 %v973, 32
  %v976 = vpop.permute.xlu0 %975
  %v978 = vadd.f32 %v968, %v976
  %v979 = vtanh.pop %v978
  %981 = vrot.lane.b32.xlu0 %v979, 32
  %v982 = vpop.permute.xlu0 %981
  %v984 = vmul.f32 %v966, %v982
  %vm985 = vcmp.eq.s32.totalorder %v35, 2
  %v986 = vsel %vm985, 1, 0
  %987 = vset.pattern.permute.xlu0 0
  %988 = vperm.xlu0 %987, %v986
  %v989 = vpop.permute.xlu0 %988
  %vm990 = vcmp.eq.s32.totalorder %v989, 1
  %v991 = vsel %vm990, %v984, %v707
  %992 = vmatprep.subr.mxu0 0.0
  %993 = vmatpush1.msra.mxu0 0.0
  %994 = vmatprep.subr.mxu0 0.0
  %995 = vmatpush1.msra.mxu0 0.0
  %996 = vmatprep.subr.mxu0 0.0
  %997 = vmatpush1.msra.mxu0 0.0
  %998 = vmatprep.subr.mxu0 0.0
  %999 = vmatpush1.msra.mxu0 0.0
  %1000 = vmatprep.subr.mxu0 0.0
  %1001 = vmatpush1.msra.mxu0 0.0
  %1002 = vmatprep.subr.mxu0 0.0
  %1003 = vmatpush1.msra.mxu0 0.0
  %1004 = vmatprep.subr.mxu0 0.0
  %1005 = vmatpush1.msra.mxu0 0.0
  %1006 = vmatprep.subr.mxu0 0.0
  %1007 = vmatpush1.msra.mxu0 0.0
  %1008 = vmatprep.subr.mxu0 0.0
  %1009 = vmatpush1.msra.mxu0 0.0
  %1010 = vmatprep.subr.mxu0 0.0
  %1011 = vmatpush1.msra.mxu0 0.0
  %1012 = vmatprep.subr.mxu0 0.0
  %1013 = vmatpush1.msra.mxu0 0.0
  %1014 = vmatprep.subr.mxu0 0.0
  %1015 = vmatpush1.msra.mxu0 0.0
  %1016 = vmatprep.subr.mxu0 0.0
  %1017 = vmatpush1.msra.mxu0 %v39
  %1018 = vmatprep.subr.mxu0 0.0
  %1019 = vmatpush1.msra.mxu0 %v38
  %1020 = vmatprep.subr.mxu0 0.0
  %1021 = vmatpush1.msra.mxu0 %v37
  %1022 = vmatprep.subr.mxu0 0.0
  %1023 = vmatpush1.msra.mxu0 %v36
  %1024 = vmatprep.subr.mxu0 0.0
  %1025 = vmatpush2.msra.mxu0 0.0
  %1026 = vmatprep.subr.mxu0 0.0
  %1027 = vmatpush2.msra.mxu0 0.0
  %1028 = vmatprep.subr.mxu0 0.0
  %1029 = vmatpush2.msra.mxu0 0.0
  %1030 = vmatprep.subr.mxu0 0.0
  %1031 = vmatpush2.msra.mxu0 0.0
  %1032 = vmatprep.subr.mxu0 0.0
  %1033 = vmatpush2.msra.mxu0 0.0
  %1034 = vmatprep.subr.mxu0 0.0
  %1035 = vmatpush2.msra.mxu0 0.0
  %1036 = vmatprep.subr.mxu0 0.0
  %1037 = vmatpush2.msra.mxu0 0.0
  %1038 = vmatprep.subr.mxu0 0.0
  %1039 = vmatpush2.msra.mxu0 0.0
  %1040 = vmatprep.subr.mxu0 0.0
  %1041 = vmatpush2.msra.mxu0 0.0
  %1042 = vmatprep.subr.mxu0 0.0
  %1043 = vmatpush2.msra.mxu0 0.0
  %1044 = vmatprep.subr.mxu0 0.0
  %1045 = vmatpush2.msra.mxu0 0.0
  %1046 = vmatprep.subr.mxu0 0.0
  %1047 = vmatpush2.msra.mxu0 0.0
  %1048 = vmatprep.subr.mxu0 0.0
  %1049 = vmatpush2.msra.mxu0 0.0
  %1050 = vmatprep.subr.mxu0 0.0
  %1051 = vmatpush2.msra.mxu0 0.0
  %1052 = vmatprep.subr.mxu0 0.0
  %1053 = vmatpush2.msra.mxu0 0.0
  %1054 = vmatprep.subr.mxu0 0.0
  %1055 = vmatpush2.msra.mxu0 0.0
  %1056 = vmatprep.mubr.f32.mxu0 0.0
  %1057 = vmatmul.mubr.f32.gmra.mxu0 %v888
  %v1058 = vpop.f32.mrf.mxu0
  %v1059 = vadd.f32 0.0, %v1058
  %v1060 = vpop.f32.mrf.mxu0
  %1061 = vdwg.mxu0
  %v1063 = vrot.slane %v1059, 2
  %v1065 = vadd.f32 %v134, %v1063
  %v1066 = vxor.u32 %v1065, 2147483648
  %v1067 = vmul.f32 %v1066, 1.442695
  %v1068 = vpow.pop %v1067
  %v1069 = vadd.f32 %v1068, 1.0
  %v1070 = vrcp.pop %v1069
  %v1071 = vmul.f32 1.0, %v1070
  %v1072 = vtanh.pop %v1065
  %v1074 = vrot.slane %v802, 6
  %v1076 = vmul.f32 %v1071, %v1074
  %1078 = vrot.lane.b32.xlu0 %v1072, 32
  %v1079 = vpop.permute.xlu0 %1078
  %v1081 = vmul.f32 %v1071, %v1079
  %1083 = vrot.lane.b32.xlu0 %v1081, 32
  %v1084 = vpop.permute.xlu0 %1083
  %v1086 = vadd.f32 %v1076, %v1084
  %v1087 = vtanh.pop %v1086
  %1089 = vrot.lane.b32.xlu0 %v1087, 32
  %v1090 = vpop.permute.xlu0 %1089
  %v1092 = vmul.f32 %v1071, %v1090
  %1094 = vrot.lane.b32.xlu0 %v984, 64
  %v1095 = vpop.permute.xlu0 %1094
  %v1096 = vsel %vm142, %v1095, 0
  %1098 = vmatprep.subr.mxu0 0.0
  %1099 = vmatpush1.msra.mxu0 0.0
  %1100 = vmatprep.subr.mxu0 0.0
  %1101 = vmatpush1.msra.mxu0 0.0
  %1102 = vmatprep.subr.mxu0 0.0
  %1103 = vmatpush1.msra.mxu0 0.0
  %1104 = vmatprep.subr.mxu0 0.0
  %1105 = vmatpush1.msra.mxu0 0.0
  %1106 = vmatprep.subr.mxu0 0.0
  %1107 = vmatpush1.msra.mxu0 0.0
  %1108 = vmatprep.subr.mxu0 0.0
  %1109 = vmatpush1.msra.mxu0 0.0
  %1110 = vmatprep.subr.mxu0 0.0
  %1111 = vmatpush1.msra.mxu0 0.0
  %1112 = vmatprep.subr.mxu0 0.0
  %1113 = vmatpush1.msra.mxu0 0.0
  %1114 = vmatprep.subr.mxu0 0.0
  %1115 = vmatpush1.msra.mxu0 0.0
  %1116 = vmatprep.subr.mxu0 0.0
  %1117 = vmatpush1.msra.mxu0 0.0
  %1118 = vmatprep.subr.mxu0 0.0
  %1119 = vmatpush1.msra.mxu0 0.0
  %1120 = vmatprep.subr.mxu0 0.0
  %1121 = vmatpush1.msra.mxu0 0.0
  %1122 = vmatprep.subr.mxu0 0.0
  %1123 = vmatpush1.msra.mxu0 %v47
  %1124 = vmatprep.subr.mxu0 0.0
  %1125 = vmatpush1.msra.mxu0 %v46
  %1126 = vmatprep.subr.mxu0 0.0
  %1127 = vmatpush1.msra.mxu0 %v45
  %1128 = vmatprep.subr.mxu0 0.0
  %1129 = vmatpush1.msra.mxu0 %v44
  %1130 = vmatprep.subr.mxu0 0.0
  %1131 = vmatpush2.msra.mxu0 0.0
  %1132 = vmatprep.subr.mxu0 0.0
  %1133 = vmatpush2.msra.mxu0 0.0
  %1134 = vmatprep.subr.mxu0 0.0
  %1135 = vmatpush2.msra.mxu0 0.0
  %1136 = vmatprep.subr.mxu0 0.0
  %1137 = vmatpush2.msra.mxu0 0.0
  %1138 = vmatprep.subr.mxu0 0.0
  %1139 = vmatpush2.msra.mxu0 0.0
  %1140 = vmatprep.subr.mxu0 0.0
  %1141 = vmatpush2.msra.mxu0 0.0
  %1142 = vmatprep.subr.mxu0 0.0
  %1143 = vmatpush2.msra.mxu0 0.0
  %1144 = vmatprep.subr.mxu0 0.0
  %1145 = vmatpush2.msra.mxu0 0.0
  %1146 = vmatprep.subr.mxu0 0.0
  %1147 = vmatpush2.msra.mxu0 0.0
  %1148 = vmatprep.subr.mxu0 0.0
  %1149 = vmatpush2.msra.mxu0 0.0
  %1150 = vmatprep.subr.mxu0 0.0
  %1151 = vmatpush2.msra.mxu0 0.0
  %1152 = vmatprep.subr.mxu0 0.0
  %1153 = vmatpush2.msra.mxu0 0.0
  %1154 = vmatprep.subr.mxu0 0.0
  %1155 = vmatpush2.msra.mxu0 0.0
  %1156 = vmatprep.subr.mxu0 0.0
  %1157 = vmatpush2.msra.mxu0 0.0
  %1158 = vmatprep.subr.mxu0 0.0
  %1159 = vmatpush2.msra.mxu0 0.0
  %1160 = vmatprep.subr.mxu0 0.0
  %1161 = vmatpush2.msra.mxu0 0.0
  %1162 = vmatprep.mubr.f32.mxu0 0.0
  %1163 = vmatmul.mubr.f32.gmra.mxu0 %v1096
  %v1164 = vpop.f32.mrf.mxu0
  %v1165 = vadd.f32 0.0, %v1164
  %v1166 = vpop.f32.mrf.mxu0
  %1167 = vdwg.mxu0
  %v1169 = vrot.slane %v1092, 6
  %1170 = vrot.lane.b32.xlu0 %v1169, 64
  %v1171 = vpop.permute.xlu0 %1170
  %v1172 = vsel %vm142, %v1171, 0
  %1174 = vmatprep.subr.mxu0 0.0
  %1175 = vmatpush1.msra.mxu0 0.0
  %1176 = vmatprep.subr.mxu0 0.0
  %1177 = vmatpush1.msra.mxu0 0.0
  %1178 = vmatprep.subr.mxu0 0.0
  %1179 = vmatpush1.msra.mxu0 0.0
  %1180 = vmatprep.subr.mxu0 0.0
  %1181 = vmatpush1.msra.mxu0 0.0
  %1182 = vmatprep.subr.mxu0 0.0
  %1183 = vmatpush1.msra.mxu0 0.0
  %1184 = vmatprep.subr.mxu0 0.0
  %1185 = vmatpush1.msra.mxu0 0.0
  %1186 = vmatprep.subr.mxu0 0.0
  %1187 = vmatpush1.msra.mxu0 0.0
  %1188 = vmatprep.subr.mxu0 0.0
  %1189 = vmatpush1.msra.mxu0 0.0
  %1190 = vmatprep.subr.mxu0 0.0
  %1191 = vmatpush1.msra.mxu0 0.0
  %1192 = vmatprep.subr.mxu0 0.0
  %1193 = vmatpush1.msra.mxu0 0.0
  %1194 = vmatprep.subr.mxu0 0.0
  %1195 = vmatpush1.msra.mxu0 0.0
  %1196 = vmatprep.subr.mxu0 0.0
  %1197 = vmatpush1.msra.mxu0 0.0
  %1198 = vmatprep.subr.mxu0 0.0
  %1199 = vmatpush1.msra.mxu0 %v43
  %1200 = vmatprep.subr.mxu0 0.0
  %1201 = vmatpush1.msra.mxu0 %v42
  %1202 = vmatprep.subr.mxu0 0.0
  %1203 = vmatpush1.msra.mxu0 %v41
  %1204 = vmatprep.subr.mxu0 0.0
  %1205 = vmatpush1.msra.mxu0 %v40
  %1206 = vmatprep.subr.mxu0 0.0
  %1207 = vmatpush2.msra.mxu0 0.0
  %1208 = vmatprep.subr.mxu0 0.0
  %1209 = vmatpush2.msra.mxu0 0.0
  %1210 = vmatprep.subr.mxu0 0.0
  %1211 = vmatpush2.msra.mxu0 0.0
  %1212 = vmatprep.subr.mxu0 0.0
  %1213 = vmatpush2.msra.mxu0 0.0
  %1214 = vmatprep.subr.mxu0 0.0
  %1215 = vmatpush2.msra.mxu0 0.0
  %1216 = vmatprep.subr.mxu0 0.0
  %1217 = vmatpush2.msra.mxu0 0.0
  %1218 = vmatprep.subr.mxu0 0.0
  %1219 = vmatpush2.msra.mxu0 0.0
  %1220 = vmatprep.subr.mxu0 0.0
  %1221 = vmatpush2.msra.mxu0 0.0
  %1222 = vmatprep.subr.mxu0 0.0
  %1223 = vmatpush2.msra.mxu0 0.0
  %1224 = vmatprep.subr.mxu0 0.0
  %1225 = vmatpush2.msra.mxu0 0.0
  %1226 = vmatprep.subr.mxu0 0.0
  %1227 = vmatpush2.msra.mxu0 0.0
  %1228 = vmatprep.subr.mxu0 0.0
  %1229 = vmatpush2.msra.mxu0 0.0
  %1230 = vmatprep.subr.mxu0 0.0
  %1231 = vmatpush2.msra.mxu0 0.0
  %1232 = vmatprep.subr.mxu0 0.0
  %1233 = vmatpush2.msra.mxu0 0.0
  %1234 = vmatprep.subr.mxu0 0.0
  %1235 = vmatpush2.msra.mxu0 0.0
  %1236 = vmatprep.subr.mxu0 0.0
  %1237 = vmatpush2.msra.mxu0 0.0
  %1238 = vmatprep.mubr.f32.mxu0 0.0
  %1239 = vmatmul.mubr.f32.gmra.mxu0 %v1172
  %v1240 = vpop.f32.mrf.mxu0
  %v1241 = vadd.f32 %v1165, %v1240
  %v1242 = vpop.f32.mrf.mxu0
  %1243 = vdwg.mxu0
  %v1244 = vadd.f32 %v1241, %v390
  %v1245 = vxor.u32 %v1244, 2147483648
  %v1246 = vmul.f32 %v1245, 1.442695
  %v1247 = vpow.pop %v1246
  %v1248 = vadd.f32 %v1247, 1.0
  %v1249 = vrcp.pop %v1248
  %v1250 = vmul.f32 1.0, %v1249
  %v1251 = vtanh.pop %v1244
  %v1252 = vmul.f32 %v1250, %v978
  %1254 = vrot.lane.b32.xlu0 %v1251, 32
  %v1255 = vpop.permute.xlu0 %1254
  %v1257 = vmul.f32 %v1250, %v1255
  %1259 = vrot.lane.b32.xlu0 %v1257, 32
  %v1260 = vpop.permute.xlu0 %1259
  %v1262 = vadd.f32 %v1252, %v1260
  %v1263 = vtanh.pop %v1262
  %1265 = vrot.lane.b32.xlu0 %v1263, 32
  %v1266 = vpop.permute.xlu0 %1265
  %v1268 = vmul.f32 %v1250, %v1266
  %vm1269 = vcmp.eq.s32.totalorder %v35, 3
  %v1270 = vsel %vm1269, 1, 0
  %1271 = vset.pattern.permute.xlu0 0
  %1272 = vperm.xlu0 %1271, %v1270
  %v1273 = vpop.permute.xlu0 %1272
  %vm1274 = vcmp.eq.s32.totalorder %v1273, 1
  %v1275 = vsel %vm1274, %v1268, %v991
  %1276 = vmatprep.subr.mxu0 0.0
  %1277 = vmatpush1.msra.mxu0 0.0
  %1278 = vmatprep.subr.mxu0 0.0
  %1279 = vmatpush1.msra.mxu0 0.0
  %1280 = vmatprep.subr.mxu0 0.0
  %1281 = vmatpush1.msra.mxu0 0.0
  %1282 = vmatprep.subr.mxu0 0.0
  %1283 = vmatpush1.msra.mxu0 0.0
  %1284 = vmatprep.subr.mxu0 0.0
  %1285 = vmatpush1.msra.mxu0 0.0
  %1286 = vmatprep.subr.mxu0 0.0
  %1287 = vmatpush1.msra.mxu0 0.0
  %1288 = vmatprep.subr.mxu0 0.0
  %1289 = vmatpush1.msra.mxu0 0.0
  %1290 = vmatprep.subr.mxu0 0.0
  %1291 = vmatpush1.msra.mxu0 0.0
  %1292 = vmatprep.subr.mxu0 0.0
  %1293 = vmatpush1.msra.mxu0 0.0
  %1294 = vmatprep.subr.mxu0 0.0
  %1295 = vmatpush1.msra.mxu0 0.0
  %1296 = vmatprep.subr.mxu0 0.0
  %1297 = vmatpush1.msra.mxu0 0.0
  %1298 = vmatprep.subr.mxu0 0.0
  %1299 = vmatpush1.msra.mxu0 0.0
  %1300 = vmatprep.subr.mxu0 0.0
  %1301 = vmatpush1.msra.mxu0 %v39
  %1302 = vmatprep.subr.mxu0 0.0
  %1303 = vmatpush1.msra.mxu0 %v38
  %1304 = vmatprep.subr.mxu0 0.0
  %1305 = vmatpush1.msra.mxu0 %v37
  %1306 = vmatprep.subr.mxu0 0.0
  %1307 = vmatpush1.msra.mxu0 %v36
  %1308 = vmatprep.subr.mxu0 0.0
  %1309 = vmatpush2.msra.mxu0 0.0
  %1310 = vmatprep.subr.mxu0 0.0
  %1311 = vmatpush2.msra.mxu0 0.0
  %1312 = vmatprep.subr.mxu0 0.0
  %1313 = vmatpush2.msra.mxu0 0.0
  %1314 = vmatprep.subr.mxu0 0.0
  %1315 = vmatpush2.msra.mxu0 0.0
  %1316 = vmatprep.subr.mxu0 0.0
  %1317 = vmatpush2.msra.mxu0 0.0
  %1318 = vmatprep.subr.mxu0 0.0
  %1319 = vmatpush2.msra.mxu0 0.0
  %1320 = vmatprep.subr.mxu0 0.0
  %1321 = vmatpush2.msra.mxu0 0.0
  %1322 = vmatprep.subr.mxu0 0.0
  %1323 = vmatpush2.msra.mxu0 0.0
  %1324 = vmatprep.subr.mxu0 0.0
  %1325 = vmatpush2.msra.mxu0 0.0
  %1326 = vmatprep.subr.mxu0 0.0
  %1327 = vmatpush2.msra.mxu0 0.0
  %1328 = vmatprep.subr.mxu0 0.0
  %1329 = vmatpush2.msra.mxu0 0.0
  %1330 = vmatprep.subr.mxu0 0.0
  %1331 = vmatpush2.msra.mxu0 0.0
  %1332 = vmatprep.subr.mxu0 0.0
  %1333 = vmatpush2.msra.mxu0 0.0
  %1334 = vmatprep.subr.mxu0 0.0
  %1335 = vmatpush2.msra.mxu0 0.0
  %1336 = vmatprep.subr.mxu0 0.0
  %1337 = vmatpush2.msra.mxu0 0.0
  %1338 = vmatprep.subr.mxu0 0.0
  %1339 = vmatpush2.msra.mxu0 0.0
  %1340 = vmatprep.mubr.f32.mxu0 0.0
  %1341 = vmatmul.mubr.f32.gmra.mxu0 %v1172
  %v1342 = vpop.f32.mrf.mxu0
  %v1343 = vadd.f32 0.0, %v1342
  %v1344 = vpop.f32.mrf.mxu0
  %1345 = vdwg.mxu0
  %v1346 = vadd.f32 %v139, %v1343
  %v1347 = vxor.u32 %v1346, 2147483648
  %v1348 = vmul.f32 %v1347, 1.442695
  %v1349 = vpow.pop %v1348
  %v1350 = vadd.f32 %v1349, 1.0
  %v1351 = vrcp.pop %v1350
  %v1352 = vmul.f32 1.0, %v1351
  %v1353 = vtanh.pop %v1346
  %v1355 = vrot.slane %v1086, 6
  %v1357 = vmul.f32 %v1352, %v1355
  %1359 = vrot.lane.b32.xlu0 %v1353, 32
  %v1360 = vpop.permute.xlu0 %1359
  %v1362 = vmul.f32 %v1352, %v1360
  %1364 = vrot.lane.b32.xlu0 %v1362, 32
  %v1365 = vpop.permute.xlu0 %1364
  %v1367 = vadd.f32 %v1357, %v1365
  %v1368 = vtanh.pop %v1367
  %1370 = vrot.lane.b32.xlu0 %v1368, 32
  %v1371 = vpop.permute.xlu0 %1370
  %v1373 = vmul.f32 %v1352, %v1371
  %1375 = vrot.lane.b32.xlu0 %v1268, 64
  %v1376 = vpop.permute.xlu0 %1375
  %v1377 = vsel %vm142, %v1376, 0
  %1379 = vmatprep.subr.mxu0 0.0
  %1380 = vmatpush1.msra.mxu0 0.0
  %1381 = vmatprep.subr.mxu0 0.0
  %1382 = vmatpush1.msra.mxu0 0.0
  %1383 = vmatprep.subr.mxu0 0.0
  %1384 = vmatpush1.msra.mxu0 0.0
  %1385 = vmatprep.subr.mxu0 0.0
  %1386 = vmatpush1.msra.mxu0 0.0
  %1387 = vmatprep.subr.mxu0 0.0
  %1388 = vmatpush1.msra.mxu0 0.0
  %1389 = vmatprep.subr.mxu0 0.0
  %1390 = vmatpush1.msra.mxu0 0.0
  %1391 = vmatprep.subr.mxu0 0.0
  %1392 = vmatpush1.msra.mxu0 0.0
  %1393 = vmatprep.subr.mxu0 0.0
  %1394 = vmatpush1.msra.mxu0 0.0
  %1395 = vmatprep.subr.mxu0 0.0
  %1396 = vmatpush1.msra.mxu0 0.0
  %1397 = vmatprep.subr.mxu0 0.0
  %1398 = vmatpush1.msra.mxu0 0.0
  %1399 = vmatprep.subr.mxu0 0.0
  %1400 = vmatpush1.msra.mxu0 0.0
  %1401 = vmatprep.subr.mxu0 0.0
  %1402 = vmatpush1.msra.mxu0 0.0
  %1403 = vmatprep.subr.mxu0 0.0
  %1404 = vmatpush1.msra.mxu0 %v47
  %1405 = vmatprep.subr.mxu0 0.0
  %1406 = vmatpush1.msra.mxu0 %v46
  %1407 = vmatprep.subr.mxu0 0.0
  %1408 = vmatpush1.msra.mxu0 %v45
  %1409 = vmatprep.subr.mxu0 0.0
  %1410 = vmatpush1.msra.mxu0 %v44
  %1411 = vmatprep.subr.mxu0 0.0
  %1412 = vmatpush2.msra.mxu0 0.0
  %1413 = vmatprep.subr.mxu0 0.0
  %1414 = vmatpush2.msra.mxu0 0.0
  %1415 = vmatprep.subr.mxu0 0.0
  %1416 = vmatpush2.msra.mxu0 0.0
  %1417 = vmatprep.subr.mxu0 0.0
  %1418 = vmatpush2.msra.mxu0 0.0
  %1419 = vmatprep.subr.mxu0 0.0
  %1420 = vmatpush2.msra.mxu0 0.0
  %1421 = vmatprep.subr.mxu0 0.0
  %1422 = vmatpush2.msra.mxu0 0.0
  %1423 = vmatprep.subr.mxu0 0.0
  %1424 = vmatpush2.msra.mxu0 0.0
  %1425 = vmatprep.subr.mxu0 0.0
  %1426 = vmatpush2.msra.mxu0 0.0
  %1427 = vmatprep.subr.mxu0 0.0
  %1428 = vmatpush2.msra.mxu0 0.0
  %1429 = vmatprep.subr.mxu0 0.0
  %1430 = vmatpush2.msra.mxu0 0.0
  %1431 = vmatprep.subr.mxu0 0.0
  %1432 = vmatpush2.msra.mxu0 0.0
  %1433 = vmatprep.subr.mxu0 0.0
  %1434 = vmatpush2.msra.mxu0 0.0
  %1435 = vmatprep.subr.mxu0 0.0
  %1436 = vmatpush2.msra.mxu0 0.0
  %1437 = vmatprep.subr.mxu0 0.0
  %1438 = vmatpush2.msra.mxu0 0.0
  %1439 = vmatprep.subr.mxu0 0.0
  %1440 = vmatpush2.msra.mxu0 0.0
  %1441 = vmatprep.subr.mxu0 0.0
  %1442 = vmatpush2.msra.mxu0 0.0
  %1443 = vmatprep.mubr.f32.mxu0 0.0
  %1444 = vmatmul.mubr.f32.gmra.mxu0 %v1377
  %v1445 = vpop.f32.mrf.mxu0
  %v1446 = vadd.f32 0.0, %v1445
  %v1447 = vpop.f32.mrf.mxu0
  %1448 = vdwg.mxu0
  %1450 = vrot.lane.b32.xlu0 %v1373, 64
  %v1451 = vpop.permute.xlu0 %1450
  %v1452 = vsel %vm142, %v1451, 0
  %1454 = vmatprep.subr.mxu0 0.0
  %1455 = vmatpush1.msra.mxu0 0.0
  %1456 = vmatprep.subr.mxu0 0.0
  %1457 = vmatpush1.msra.mxu0 0.0
  %1458 = vmatprep.subr.mxu0 0.0
  %1459 = vmatpush1.msra.mxu0 0.0
  %1460 = vmatprep.subr.mxu0 0.0
  %1461 = vmatpush1.msra.mxu0 0.0
  %1462 = vmatprep.subr.mxu0 0.0
  %1463 = vmatpush1.msra.mxu0 0.0
  %1464 = vmatprep.subr.mxu0 0.0
  %1465 = vmatpush1.msra.mxu0 0.0
  %1466 = vmatprep.subr.mxu0 0.0
  %1467 = vmatpush1.msra.mxu0 0.0
  %1468 = vmatprep.subr.mxu0 0.0
  %1469 = vmatpush1.msra.mxu0 0.0
  %1470 = vmatprep.subr.mxu0 0.0
  %1471 = vmatpush1.msra.mxu0 0.0
  %1472 = vmatprep.subr.mxu0 0.0
  %1473 = vmatpush1.msra.mxu0 0.0
  %1474 = vmatprep.subr.mxu0 0.0
  %1475 = vmatpush1.msra.mxu0 0.0
  %1476 = vmatprep.subr.mxu0 0.0
  %1477 = vmatpush1.msra.mxu0 0.0
  %1478 = vmatprep.subr.mxu0 0.0
  %1479 = vmatpush1.msra.mxu0 %v43
  %1480 = vmatprep.subr.mxu0 0.0
  %1481 = vmatpush1.msra.mxu0 %v42
  %1482 = vmatprep.subr.mxu0 0.0
  %1483 = vmatpush1.msra.mxu0 %v41
  %1484 = vmatprep.subr.mxu0 0.0
  %1485 = vmatpush1.msra.mxu0 %v40
  %1486 = vmatprep.subr.mxu0 0.0
  %1487 = vmatpush2.msra.mxu0 0.0
  %1488 = vmatprep.subr.mxu0 0.0
  %1489 = vmatpush2.msra.mxu0 0.0
  %1490 = vmatprep.subr.mxu0 0.0
  %1491 = vmatpush2.msra.mxu0 0.0
  %1492 = vmatprep.subr.mxu0 0.0
  %1493 = vmatpush2.msra.mxu0 0.0
  %1494 = vmatprep.subr.mxu0 0.0
  %1495 = vmatpush2.msra.mxu0 0.0
  %1496 = vmatprep.subr.mxu0 0.0
  %1497 = vmatpush2.msra.mxu0 0.0
  %1498 = vmatprep.subr.mxu0 0.0
  %1499 = vmatpush2.msra.mxu0 0.0
  %1500 = vmatprep.subr.mxu0 0.0
  %1501 = vmatpush2.msra.mxu0 0.0
  %1502 = vmatprep.subr.mxu0 0.0
  %1503 = vmatpush2.msra.mxu0 0.0
  %1504 = vmatprep.subr.mxu0 0.0
  %1505 = vmatpush2.msra.mxu0 0.0
  %1506 = vmatprep.subr.mxu0 0.0
  %1507 = vmatpush2.msra.mxu0 0.0
  %1508 = vmatprep.subr.mxu0 0.0
  %1509 = vmatpush2.msra.mxu0 0.0
  %1510 = vmatprep.subr.mxu0 0.0
  %1511 = vmatpush2.msra.mxu0 0.0
  %1512 = vmatprep.subr.mxu0 0.0
  %1513 = vmatpush2.msra.mxu0 0.0
  %1514 = vmatprep.subr.mxu0 0.0
  %1515 = vmatpush2.msra.mxu0 0.0
  %1516 = vmatprep.subr.mxu0 0.0
  %1517 = vmatpush2.msra.mxu0 0.0
  %1518 = vmatprep.mubr.f32.mxu0 0.0
  %1519 = vmatmul.mubr.f32.gmra.mxu0 %v1452
  %v1520 = vpop.f32.mrf.mxu0
  %v1521 = vadd.f32 %v1446, %v1520
  %v1522 = vpop.f32.mrf.mxu0
  %1523 = vdwg.mxu0
  %v1524 = vadd.f32 %v1521, %v390
  %v1525 = vxor.u32 %v1524, 2147483648
  %v1526 = vmul.f32 %v1525, 1.442695
  %v1527 = vpow.pop %v1526
  %v1528 = vadd.f32 %v1527, 1.0
  %v1529 = vrcp.pop %v1528
  %v1530 = vmul.f32 1.0, %v1529
  %v1531 = vtanh.pop %v1524
  %v1532 = vmul.f32 %v1530, %v1262
  %1534 = vrot.lane.b32.xlu0 %v1531, 32
  %v1535 = vpop.permute.xlu0 %1534
  %v1537 = vmul.f32 %v1530, %v1535
  %1539 = vrot.lane.b32.xlu0 %v1537, 32
  %v1540 = vpop.permute.xlu0 %1539
  %v1542 = vadd.f32 %v1532, %v1540
  %v1543 = vtanh.pop %v1542
  %1545 = vrot.lane.b32.xlu0 %v1543, 32
  %v1546 = vpop.permute.xlu0 %1545
  %v1548 = vmul.f32 %v1530, %v1546
  %vm1549 = vcmp.eq.s32.totalorder %v35, 4
  %v1550 = vsel %vm1549, 1, 0
  %1551 = vset.pattern.permute.xlu0 0
  %1552 = vperm.xlu0 %1551, %v1550
  %v1553 = vpop.permute.xlu0 %1552
  %vm1554 = vcmp.eq.s32.totalorder %v1553, 1
  %v1555 = vsel %vm1554, %v1548, %v1275
  %1556 = vmatprep.subr.mxu0 0.0
  %1557 = vmatpush1.msra.mxu0 0.0
  %1558 = vmatprep.subr.mxu0 0.0
  %1559 = vmatpush1.msra.mxu0 0.0
  %1560 = vmatprep.subr.mxu0 0.0
  %1561 = vmatpush1.msra.mxu0 0.0
  %1562 = vmatprep.subr.mxu0 0.0
  %1563 = vmatpush1.msra.mxu0 0.0
  %1564 = vmatprep.subr.mxu0 0.0
  %1565 = vmatpush1.msra.mxu0 0.0
  %1566 = vmatprep.subr.mxu0 0.0
  %1567 = vmatpush1.msra.mxu0 0.0
  %1568 = vmatprep.subr.mxu0 0.0
  %1569 = vmatpush1.msra.mxu0 0.0
  %1570 = vmatprep.subr.mxu0 0.0
  %1571 = vmatpush1.msra.mxu0 0.0
  %1572 = vmatprep.subr.mxu0 0.0
  %1573 = vmatpush1.msra.mxu0 0.0
  %1574 = vmatprep.subr.mxu0 0.0
  %1575 = vmatpush1.msra.mxu0 0.0
  %1576 = vmatprep.subr.mxu0 0.0
  %1577 = vmatpush1.msra.mxu0 0.0
  %1578 = vmatprep.subr.mxu0 0.0
  %1579 = vmatpush1.msra.mxu0 0.0
  %1580 = vmatprep.subr.mxu0 0.0
  %1581 = vmatpush1.msra.mxu0 %v39
  %1582 = vmatprep.subr.mxu0 0.0
  %1583 = vmatpush1.msra.mxu0 %v38
  %1584 = vmatprep.subr.mxu0 0.0
  %1585 = vmatpush1.msra.mxu0 %v37
  %1586 = vmatprep.subr.mxu0 0.0
  %1587 = vmatpush1.msra.mxu0 %v36
  %1588 = vmatprep.subr.mxu0 0.0
  %1589 = vmatpush2.msra.mxu0 0.0
  %1590 = vmatprep.subr.mxu0 0.0
  %1591 = vmatpush2.msra.mxu0 0.0
  %1592 = vmatprep.subr.mxu0 0.0
  %1593 = vmatpush2.msra.mxu0 0.0
  %1594 = vmatprep.subr.mxu0 0.0
  %1595 = vmatpush2.msra.mxu0 0.0
  %1596 = vmatprep.subr.mxu0 0.0
  %1597 = vmatpush2.msra.mxu0 0.0
  %1598 = vmatprep.subr.mxu0 0.0
  %1599 = vmatpush2.msra.mxu0 0.0
  %1600 = vmatprep.subr.mxu0 0.0
  %1601 = vmatpush2.msra.mxu0 0.0
  %1602 = vmatprep.subr.mxu0 0.0
  %1603 = vmatpush2.msra.mxu0 0.0
  %1604 = vmatprep.subr.mxu0 0.0
  %1605 = vmatpush2.msra.mxu0 0.0
  %1606 = vmatprep.subr.mxu0 0.0
  %1607 = vmatpush2.msra.mxu0 0.0
  %1608 = vmatprep.subr.mxu0 0.0
  %1609 = vmatpush2.msra.mxu0 0.0
  %1610 = vmatprep.subr.mxu0 0.0
  %1611 = vmatpush2.msra.mxu0 0.0
  %1612 = vmatprep.subr.mxu0 0.0
  %1613 = vmatpush2.msra.mxu0 0.0
  %1614 = vmatprep.subr.mxu0 0.0
  %1615 = vmatpush2.msra.mxu0 0.0
  %1616 = vmatprep.subr.mxu0 0.0
  %1617 = vmatpush2.msra.mxu0 0.0
  %1618 = vmatprep.subr.mxu0 0.0
  %1619 = vmatpush2.msra.mxu0 0.0
  %1620 = vmatprep.mubr.f32.mxu0 0.0
  %1621 = vmatmul.mubr.f32.gmra.mxu0 %v1452
  %v1622 = vpop.f32.mrf.mxu0
  %v1623 = vadd.f32 0.0, %v1622
  %v1624 = vpop.f32.mrf.mxu0
  %1625 = vdwg.mxu0
  %v1627 = vrot.slane %v1623, 6
  %v1629 = vadd.f32 %v139, %v1627
  %v1630 = vxor.u32 %v1629, 2147483648
  %v1631 = vmul.f32 %v1630, 1.442695
  %v1632 = vpow.pop %v1631
  %v1633 = vadd.f32 %v1632, 1.0
  %v1634 = vrcp.pop %v1633
  %v1635 = vmul.f32 1.0, %v1634
  %v1636 = vtanh.pop %v1629
  %v1638 = vrot.slane %v1367, 6
  %v1640 = vmul.f32 %v1635, %v1638
  %1642 = vrot.lane.b32.xlu0 %v1636, 32
  %v1643 = vpop.permute.xlu0 %1642
  %v1645 = vmul.f32 %v1635, %v1643
  %1647 = vrot.lane.b32.xlu0 %v1645, 32
  %v1648 = vpop.permute.xlu0 %1647
  %v1650 = vadd.f32 %v1640, %v1648
  %v1651 = vtanh.pop %v1650
  %1653 = vrot.lane.b32.xlu0 %v1651, 32
  %v1654 = vpop.permute.xlu0 %1653
  %v1656 = vmul.f32 %v1635, %v1654
  %1658 = vrot.lane.b32.xlu0 %v1548, 64
  %v1659 = vpop.permute.xlu0 %1658
  %v1660 = vsel %vm142, %v1659, 0
  %1662 = vmatprep.subr.mxu0 0.0
  %1663 = vmatpush1.msra.mxu0 0.0
  %1664 = vmatprep.subr.mxu0 0.0
  %1665 = vmatpush1.msra.mxu0 0.0
  %1666 = vmatprep.subr.mxu0 0.0
  %1667 = vmatpush1.msra.mxu0 0.0
  %1668 = vmatprep.subr.mxu0 0.0
  %1669 = vmatpush1.msra.mxu0 0.0
  %1670 = vmatprep.subr.mxu0 0.0
  %1671 = vmatpush1.msra.mxu0 0.0
  %1672 = vmatprep.subr.mxu0 0.0
  %1673 = vmatpush1.msra.mxu0 0.0
  %1674 = vmatprep.subr.mxu0 0.0
  %1675 = vmatpush1.msra.mxu0 0.0
  %1676 = vmatprep.subr.mxu0 0.0
  %1677 = vmatpush1.msra.mxu0 0.0
  %1678 = vmatprep.subr.mxu0 0.0
  %1679 = vmatpush1.msra.mxu0 0.0
  %1680 = vmatprep.subr.mxu0 0.0
  %1681 = vmatpush1.msra.mxu0 0.0
  %1682 = vmatprep.subr.mxu0 0.0
  %1683 = vmatpush1.msra.mxu0 0.0
  %1684 = vmatprep.subr.mxu0 0.0
  %1685 = vmatpush1.msra.mxu0 0.0
  %1686 = vmatprep.subr.mxu0 0.0
  %1687 = vmatpush1.msra.mxu0 %v47
  %1688 = vmatprep.subr.mxu0 0.0
  %1689 = vmatpush1.msra.mxu0 %v46
  %1690 = vmatprep.subr.mxu0 0.0
  %1691 = vmatpush1.msra.mxu0 %v45
  %1692 = vmatprep.subr.mxu0 0.0
  %1693 = vmatpush1.msra.mxu0 %v44
  %1694 = vmatprep.subr.mxu0 0.0
  %1695 = vmatpush2.msra.mxu0 0.0
  %1696 = vmatprep.subr.mxu0 0.0
  %1697 = vmatpush2.msra.mxu0 0.0
  %1698 = vmatprep.subr.mxu0 0.0
  %1699 = vmatpush2.msra.mxu0 0.0
  %1700 = vmatprep.subr.mxu0 0.0
  %1701 = vmatpush2.msra.mxu0 0.0
  %1702 = vmatprep.subr.mxu0 0.0
  %1703 = vmatpush2.msra.mxu0 0.0
  %1704 = vmatprep.subr.mxu0 0.0
  %1705 = vmatpush2.msra.mxu0 0.0
  %1706 = vmatprep.subr.mxu0 0.0
  %1707 = vmatpush2.msra.mxu0 0.0
  %1708 = vmatprep.subr.mxu0 0.0
  %1709 = vmatpush2.msra.mxu0 0.0
  %1710 = vmatprep.subr.mxu0 0.0
  %1711 = vmatpush2.msra.mxu0 0.0
  %1712 = vmatprep.subr.mxu0 0.0
  %1713 = vmatpush2.msra.mxu0 0.0
  %1714 = vmatprep.subr.mxu0 0.0
  %1715 = vmatpush2.msra.mxu0 0.0
  %1716 = vmatprep.subr.mxu0 0.0
  %1717 = vmatpush2.msra.mxu0 0.0
  %1718 = vmatprep.subr.mxu0 0.0
  %1719 = vmatpush2.msra.mxu0 0.0
  %1720 = vmatprep.subr.mxu0 0.0
  %1721 = vmatpush2.msra.mxu0 0.0
  %1722 = vmatprep.subr.mxu0 0.0
  %1723 = vmatpush2.msra.mxu0 0.0
  %1724 = vmatprep.subr.mxu0 0.0
  %1725 = vmatpush2.msra.mxu0 0.0
  %1726 = vmatprep.mubr.f32.mxu0 0.0
  %1727 = vmatmul.mubr.f32.gmra.mxu0 %v1660
  %v1728 = vpop.f32.mrf.mxu0
  %v1729 = vadd.f32 0.0, %v1728
  %v1730 = vpop.f32.mrf.mxu0
  %1731 = vdwg.mxu0
  %v1733 = vrot.slane %v1656, 2
  %1734 = vrot.lane.b32.xlu0 %v1733, 64
  %v1735 = vpop.permute.xlu0 %1734
  %v1736 = vsel %vm142, %v1735, 0
  %1738 = vmatprep.subr.mxu0 0.0
  %1739 = vmatpush1.msra.mxu0 0.0
  %1740 = vmatprep.subr.mxu0 0.0
  %1741 = vmatpush1.msra.mxu0 0.0
  %1742 = vmatprep.subr.mxu0 0.0
  %1743 = vmatpush1.msra.mxu0 0.0
  %1744 = vmatprep.subr.mxu0 0.0
  %1745 = vmatpush1.msra.mxu0 0.0
  %1746 = vmatprep.subr.mxu0 0.0
  %1747 = vmatpush1.msra.mxu0 0.0
  %1748 = vmatprep.subr.mxu0 0.0
  %1749 = vmatpush1.msra.mxu0 0.0
  %1750 = vmatprep.subr.mxu0 0.0
  %1751 = vmatpush1.msra.mxu0 0.0
  %1752 = vmatprep.subr.mxu0 0.0
  %1753 = vmatpush1.msra.mxu0 0.0
  %1754 = vmatprep.subr.mxu0 0.0
  %1755 = vmatpush1.msra.mxu0 0.0
  %1756 = vmatprep.subr.mxu0 0.0
  %1757 = vmatpush1.msra.mxu0 0.0
  %1758 = vmatprep.subr.mxu0 0.0
  %1759 = vmatpush1.msra.mxu0 0.0
  %1760 = vmatprep.subr.mxu0 0.0
  %1761 = vmatpush1.msra.mxu0 0.0
  %1762 = vmatprep.subr.mxu0 0.0
  %1763 = vmatpush1.msra.mxu0 %v43
  %1764 = vmatprep.subr.mxu0 0.0
  %1765 = vmatpush1.msra.mxu0 %v42
  %1766 = vmatprep.subr.mxu0 0.0
  %1767 = vmatpush1.msra.mxu0 %v41
  %1768 = vmatprep.subr.mxu0 0.0
  %1769 = vmatpush1.msra.mxu0 %v40
  %1770 = vmatprep.subr.mxu0 0.0
  %1771 = vmatpush2.msra.mxu0 0.0
  %1772 = vmatprep.subr.mxu0 0.0
  %1773 = vmatpush2.msra.mxu0 0.0
  %1774 = vmatprep.subr.mxu0 0.0
  %1775 = vmatpush2.msra.mxu0 0.0
  %1776 = vmatprep.subr.mxu0 0.0
  %1777 = vmatpush2.msra.mxu0 0.0
  %1778 = vmatprep.subr.mxu0 0.0
  %1779 = vmatpush2.msra.mxu0 0.0
  %1780 = vmatprep.subr.mxu0 0.0
  %1781 = vmatpush2.msra.mxu0 0.0
  %1782 = vmatprep.subr.mxu0 0.0
  %1783 = vmatpush2.msra.mxu0 0.0
  %1784 = vmatprep.subr.mxu0 0.0
  %1785 = vmatpush2.msra.mxu0 0.0
  %1786 = vmatprep.subr.mxu0 0.0
  %1787 = vmatpush2.msra.mxu0 0.0
  %1788 = vmatprep.subr.mxu0 0.0
  %1789 = vmatpush2.msra.mxu0 0.0
  %1790 = vmatprep.subr.mxu0 0.0
  %1791 = vmatpush2.msra.mxu0 0.0
  %1792 = vmatprep.subr.mxu0 0.0
  %1793 = vmatpush2.msra.mxu0 0.0
  %1794 = vmatprep.subr.mxu0 0.0
  %1795 = vmatpush2.msra.mxu0 0.0
  %1796 = vmatprep.subr.mxu0 0.0
  %1797 = vmatpush2.msra.mxu0 0.0
  %1798 = vmatprep.subr.mxu0 0.0
  %1799 = vmatpush2.msra.mxu0 0.0
  %1800 = vmatprep.subr.mxu0 0.0
  %1801 = vmatpush2.msra.mxu0 0.0
  %1802 = vmatprep.mubr.f32.mxu0 0.0
  %1803 = vmatmul.mubr.f32.gmra.mxu0 %v1736
  %v1804 = vpop.f32.mrf.mxu0
  %v1805 = vadd.f32 %v1729, %v1804
  %v1806 = vpop.f32.mrf.mxu0
  %1807 = vdwg.mxu0
  %v1808 = vadd.f32 %v1805, %v390
  %v1809 = vxor.u32 %v1808, 2147483648
  %v1810 = vmul.f32 %v1809, 1.442695
  %v1811 = vpow.pop %v1810
  %v1812 = vadd.f32 %v1811, 1.0
  %v1813 = vrcp.pop %v1812
  %v1814 = vmul.f32 1.0, %v1813
  %v1815 = vtanh.pop %v1808
  %v1816 = vmul.f32 %v1814, %v1542
  %1818 = vrot.lane.b32.xlu0 %v1815, 32
  %v1819 = vpop.permute.xlu0 %1818
  %v1821 = vmul.f32 %v1814, %v1819
  %1823 = vrot.lane.b32.xlu0 %v1821, 32
  %v1824 = vpop.permute.xlu0 %1823
  %v1826 = vadd.f32 %v1816, %v1824
  %v1827 = vtanh.pop %v1826
  %1829 = vrot.lane.b32.xlu0 %v1827, 32
  %v1830 = vpop.permute.xlu0 %1829
  %v1832 = vmul.f32 %v1814, %v1830
  %vm1833 = vcmp.eq.s32.totalorder %v35, 5
  %v1834 = vsel %vm1833, 1, 0
  %1835 = vset.pattern.permute.xlu0 0
  %1836 = vperm.xlu0 %1835, %v1834
  %v1837 = vpop.permute.xlu0 %1836
  %vm1838 = vcmp.eq.s32.totalorder %v1837, 1
  %v1839 = vsel %vm1838, %v1832, %v1555
  %1840 = vmatprep.subr.mxu0 0.0
  %1841 = vmatpush1.msra.mxu0 0.0
  %1842 = vmatprep.subr.mxu0 0.0
  %1843 = vmatpush1.msra.mxu0 0.0
  %1844 = vmatprep.subr.mxu0 0.0
  %1845 = vmatpush1.msra.mxu0 0.0
  %1846 = vmatprep.subr.mxu0 0.0
  %1847 = vmatpush1.msra.mxu0 0.0
  %1848 = vmatprep.subr.mxu0 0.0
  %1849 = vmatpush1.msra.mxu0 0.0
  %1850 = vmatprep.subr.mxu0 0.0
  %1851 = vmatpush1.msra.mxu0 0.0
  %1852 = vmatprep.subr.mxu0 0.0
  %1853 = vmatpush1.msra.mxu0 0.0
  %1854 = vmatprep.subr.mxu0 0.0
  %1855 = vmatpush1.msra.mxu0 0.0
  %1856 = vmatprep.subr.mxu0 0.0
  %1857 = vmatpush1.msra.mxu0 0.0
  %1858 = vmatprep.subr.mxu0 0.0
  %1859 = vmatpush1.msra.mxu0 0.0
  %1860 = vmatprep.subr.mxu0 0.0
  %1861 = vmatpush1.msra.mxu0 0.0
  %1862 = vmatprep.subr.mxu0 0.0
  %1863 = vmatpush1.msra.mxu0 0.0
  %1864 = vmatprep.subr.mxu0 0.0
  %1865 = vmatpush1.msra.mxu0 %v39
  %1866 = vmatprep.subr.mxu0 0.0
  %1867 = vmatpush1.msra.mxu0 %v38
  %1868 = vmatprep.subr.mxu0 0.0
  %1869 = vmatpush1.msra.mxu0 %v37
  %1870 = vmatprep.subr.mxu0 0.0
  %1871 = vmatpush1.msra.mxu0 %v36
  %1872 = vmatprep.subr.mxu0 0.0
  %1873 = vmatpush2.msra.mxu0 0.0
  %1874 = vmatprep.subr.mxu0 0.0
  %1875 = vmatpush2.msra.mxu0 0.0
  %1876 = vmatprep.subr.mxu0 0.0
  %1877 = vmatpush2.msra.mxu0 0.0
  %1878 = vmatprep.subr.mxu0 0.0
  %1879 = vmatpush2.msra.mxu0 0.0
  %1880 = vmatprep.subr.mxu0 0.0
  %1881 = vmatpush2.msra.mxu0 0.0
  %1882 = vmatprep.subr.mxu0 0.0
  %1883 = vmatpush2.msra.mxu0 0.0
  %1884 = vmatprep.subr.mxu0 0.0
  %1885 = vmatpush2.msra.mxu0 0.0
  %1886 = vmatprep.subr.mxu0 0.0
  %1887 = vmatpush2.msra.mxu0 0.0
  %1888 = vmatprep.subr.mxu0 0.0
  %1889 = vmatpush2.msra.mxu0 0.0
  %1890 = vmatprep.subr.mxu0 0.0
  %1891 = vmatpush2.msra.mxu0 0.0
  %1892 = vmatprep.subr.mxu0 0.0
  %1893 = vmatpush2.msra.mxu0 0.0
  %1894 = vmatprep.subr.mxu0 0.0
  %1895 = vmatpush2.msra.mxu0 0.0
  %1896 = vmatprep.subr.mxu0 0.0
  %1897 = vmatpush2.msra.mxu0 0.0
  %1898 = vmatprep.subr.mxu0 0.0
  %1899 = vmatpush2.msra.mxu0 0.0
  %1900 = vmatprep.subr.mxu0 0.0
  %1901 = vmatpush2.msra.mxu0 0.0
  %1902 = vmatprep.subr.mxu0 0.0
  %1903 = vmatpush2.msra.mxu0 0.0
  %1904 = vmatprep.mubr.f32.mxu0 0.0
  %1905 = vmatmul.mubr.f32.gmra.mxu0 %v1736
  %v1906 = vpop.f32.mrf.mxu0
  %v1907 = vadd.f32 0.0, %v1906
  %v1908 = vpop.f32.mrf.mxu0
  %1909 = vdwg.mxu0
  %v1911 = vrot.slane %v1907, 4
  %v1913 = vadd.f32 %v139, %v1911
  %v1914 = vxor.u32 %v1913, 2147483648
  %v1915 = vmul.f32 %v1914, 1.442695
  %v1916 = vpow.pop %v1915
  %v1917 = vadd.f32 %v1916, 1.0
  %v1918 = vrcp.pop %v1917
  %v1919 = vmul.f32 1.0, %v1918
  %v1920 = vtanh.pop %v1913
  %v1922 = vrot.slane %v1650, 6
  %v1924 = vmul.f32 %v1919, %v1922
  %1926 = vrot.lane.b32.xlu0 %v1920, 32
  %v1927 = vpop.permute.xlu0 %1926
  %v1929 = vmul.f32 %v1919, %v1927
  %1931 = vrot.lane.b32.xlu0 %v1929, 32
  %v1932 = vpop.permute.xlu0 %1931
  %v1934 = vadd.f32 %v1924, %v1932
  %v1935 = vtanh.pop %v1934
  %1937 = vrot.lane.b32.xlu0 %v1935, 32
  %v1938 = vpop.permute.xlu0 %1937
  %v1940 = vmul.f32 %v1919, %v1938
  %1942 = vrot.lane.b32.xlu0 %v1832, 64
  %v1943 = vpop.permute.xlu0 %1942
  %v1944 = vsel %vm142, %v1943, 0
  %1946 = vmatprep.subr.mxu0 0.0
  %1947 = vmatpush1.msra.mxu0 0.0
  %1948 = vmatprep.subr.mxu0 0.0
  %1949 = vmatpush1.msra.mxu0 0.0
  %1950 = vmatprep.subr.mxu0 0.0
  %1951 = vmatpush1.msra.mxu0 0.0
  %1952 = vmatprep.subr.mxu0 0.0
  %1953 = vmatpush1.msra.mxu0 0.0
  %1954 = vmatprep.subr.mxu0 0.0
  %1955 = vmatpush1.msra.mxu0 0.0
  %1956 = vmatprep.subr.mxu0 0.0
  %1957 = vmatpush1.msra.mxu0 0.0
  %1958 = vmatprep.subr.mxu0 0.0
  %1959 = vmatpush1.msra.mxu0 0.0
  %1960 = vmatprep.subr.mxu0 0.0
  %1961 = vmatpush1.msra.mxu0 0.0
  %1962 = vmatprep.subr.mxu0 0.0
  %1963 = vmatpush1.msra.mxu0 0.0
  %1964 = vmatprep.subr.mxu0 0.0
  %1965 = vmatpush1.msra.mxu0 0.0
  %1966 = vmatprep.subr.mxu0 0.0
  %1967 = vmatpush1.msra.mxu0 0.0
  %1968 = vmatprep.subr.mxu0 0.0
  %1969 = vmatpush1.msra.mxu0 0.0
  %1970 = vmatprep.subr.mxu0 0.0
  %1971 = vmatpush1.msra.mxu0 %v47
  %1972 = vmatprep.subr.mxu0 0.0
  %1973 = vmatpush1.msra.mxu0 %v46
  %1974 = vmatprep.subr.mxu0 0.0
  %1975 = vmatpush1.msra.mxu0 %v45
  %1976 = vmatprep.subr.mxu0 0.0
  %1977 = vmatpush1.msra.mxu0 %v44
  %1978 = vmatprep.subr.mxu0 0.0
  %1979 = vmatpush2.msra.mxu0 0.0
  %1980 = vmatprep.subr.mxu0 0.0
  %1981 = vmatpush2.msra.mxu0 0.0
  %1982 = vmatprep.subr.mxu0 0.0
  %1983 = vmatpush2.msra.mxu0 0.0
  %1984 = vmatprep.subr.mxu0 0.0
  %1985 = vmatpush2.msra.mxu0 0.0
  %1986 = vmatprep.subr.mxu0 0.0
  %1987 = vmatpush2.msra.mxu0 0.0
  %1988 = vmatprep.subr.mxu0 0.0
  %1989 = vmatpush2.msra.mxu0 0.0
  %1990 = vmatprep.subr.mxu0 0.0
  %1991 = vmatpush2.msra.mxu0 0.0
  %1992 = vmatprep.subr.mxu0 0.0
  %1993 = vmatpush2.msra.mxu0 0.0
  %1994 = vmatprep.subr.mxu0 0.0
  %1995 = vmatpush2.msra.mxu0 0.0
  %1996 = vmatprep.subr.mxu0 0.0
  %1997 = vmatpush2.msra.mxu0 0.0
  %1998 = vmatprep.subr.mxu0 0.0
  %1999 = vmatpush2.msra.mxu0 0.0
  %2000 = vmatprep.subr.mxu0 0.0
  %2001 = vmatpush2.msra.mxu0 0.0
  %2002 = vmatprep.subr.mxu0 0.0
  %2003 = vmatpush2.msra.mxu0 0.0
  %2004 = vmatprep.subr.mxu0 0.0
  %2005 = vmatpush2.msra.mxu0 0.0
  %2006 = vmatprep.subr.mxu0 0.0
  %2007 = vmatpush2.msra.mxu0 0.0
  %2008 = vmatprep.subr.mxu0 0.0
  %2009 = vmatpush2.msra.mxu0 0.0
  %2010 = vmatprep.mubr.f32.mxu0 0.0
  %2011 = vmatmul.mubr.f32.gmra.mxu0 %v1944
  %v2012 = vpop.f32.mrf.mxu0
  %v2013 = vadd.f32 0.0, %v2012
  %v2014 = vpop.f32.mrf.mxu0
  %2015 = vdwg.mxu0
  %v2017 = vrot.slane %v1940, 4
  %2018 = vrot.lane.b32.xlu0 %v2017, 64
  %v2019 = vpop.permute.xlu0 %2018
  %v2020 = vsel %vm142, %v2019, 0
  %2022 = vmatprep.subr.mxu0 0.0
  %2023 = vmatpush1.msra.mxu0 0.0
  %2024 = vmatprep.subr.mxu0 0.0
  %2025 = vmatpush1.msra.mxu0 0.0
  %2026 = vmatprep.subr.mxu0 0.0
  %2027 = vmatpush1.msra.mxu0 0.0
  %2028 = vmatprep.subr.mxu0 0.0
  %2029 = vmatpush1.msra.mxu0 0.0
  %2030 = vmatprep.subr.mxu0 0.0
  %2031 = vmatpush1.msra.mxu0 0.0
  %2032 = vmatprep.subr.mxu0 0.0
  %2033 = vmatpush1.msra.mxu0 0.0
  %2034 = vmatprep.subr.mxu0 0.0
  %2035 = vmatpush1.msra.mxu0 0.0
  %2036 = vmatprep.subr.mxu0 0.0
  %2037 = vmatpush1.msra.mxu0 0.0
  %2038 = vmatprep.subr.mxu0 0.0
  %2039 = vmatpush1.msra.mxu0 0.0
  %2040 = vmatprep.subr.mxu0 0.0
  %2041 = vmatpush1.msra.mxu0 0.0
  %2042 = vmatprep.subr.mxu0 0.0
  %2043 = vmatpush1.msra.mxu0 0.0
  %2044 = vmatprep.subr.mxu0 0.0
  %2045 = vmatpush1.msra.mxu0 0.0
  %2046 = vmatprep.subr.mxu0 0.0
  %2047 = vmatpush1.msra.mxu0 %v43
  %2048 = vmatprep.subr.mxu0 0.0
  %2049 = vmatpush1.msra.mxu0 %v42
  %2050 = vmatprep.subr.mxu0 0.0
  %2051 = vmatpush1.msra.mxu0 %v41
  %2052 = vmatprep.subr.mxu0 0.0
  %2053 = vmatpush1.msra.mxu0 %v40
  %2054 = vmatprep.subr.mxu0 0.0
  %2055 = vmatpush2.msra.mxu0 0.0
  %2056 = vmatprep.subr.mxu0 0.0
  %2057 = vmatpush2.msra.mxu0 0.0
  %2058 = vmatprep.subr.mxu0 0.0
  %2059 = vmatpush2.msra.mxu0 0.0
  %2060 = vmatprep.subr.mxu0 0.0
  %2061 = vmatpush2.msra.mxu0 0.0
  %2062 = vmatprep.subr.mxu0 0.0
  %2063 = vmatpush2.msra.mxu0 0.0
  %2064 = vmatprep.subr.mxu0 0.0
  %2065 = vmatpush2.msra.mxu0 0.0
  %2066 = vmatprep.subr.mxu0 0.0
  %2067 = vmatpush2.msra.mxu0 0.0
  %2068 = vmatprep.subr.mxu0 0.0
  %2069 = vmatpush2.msra.mxu0 0.0
  %2070 = vmatprep.subr.mxu0 0.0
  %2071 = vmatpush2.msra.mxu0 0.0
  %2072 = vmatprep.subr.mxu0 0.0
  %2073 = vmatpush2.msra.mxu0 0.0
  %2074 = vmatprep.subr.mxu0 0.0
  %2075 = vmatpush2.msra.mxu0 0.0
  %2076 = vmatprep.subr.mxu0 0.0
  %2077 = vmatpush2.msra.mxu0 0.0
  %2078 = vmatprep.subr.mxu0 0.0
  %2079 = vmatpush2.msra.mxu0 0.0
  %2080 = vmatprep.subr.mxu0 0.0
  %2081 = vmatpush2.msra.mxu0 0.0
  %2082 = vmatprep.subr.mxu0 0.0
  %2083 = vmatpush2.msra.mxu0 0.0
  %2084 = vmatprep.subr.mxu0 0.0
  %2085 = vmatpush2.msra.mxu0 0.0
  %2086 = vmatprep.mubr.f32.mxu0 0.0
  %2087 = vmatmul.mubr.f32.gmra.mxu0 %v2020
  %v2088 = vpop.f32.mrf.mxu0
  %v2089 = vadd.f32 %v2013, %v2088
  %v2090 = vpop.f32.mrf.mxu0
  %2091 = vdwg.mxu0
  %v2092 = vadd.f32 %v2089, %v390
  %v2093 = vxor.u32 %v2092, 2147483648
  %v2094 = vmul.f32 %v2093, 1.442695
  %v2095 = vpow.pop %v2094
  %v2096 = vadd.f32 %v2095, 1.0
  %v2097 = vrcp.pop %v2096
  %v2098 = vmul.f32 1.0, %v2097
  %v2099 = vtanh.pop %v2092
  %v2100 = vmul.f32 %v2098, %v1826
  %2102 = vrot.lane.b32.xlu0 %v2099, 32
  %v2103 = vpop.permute.xlu0 %2102
  %v2105 = vmul.f32 %v2098, %v2103
  %2107 = vrot.lane.b32.xlu0 %v2105, 32
  %v2108 = vpop.permute.xlu0 %2107
  %v2110 = vadd.f32 %v2100, %v2108
  %v2111 = vtanh.pop %v2110
  %2113 = vrot.lane.b32.xlu0 %v2111, 32
  %v2114 = vpop.permute.xlu0 %2113
  %v2116 = vmul.f32 %v2098, %v2114
  %vm2117 = vcmp.eq.s32.totalorder %v35, 6
  %v2118 = vsel %vm2117, 1, 0
  %2119 = vset.pattern.permute.xlu0 0
  %2120 = vperm.xlu0 %2119, %v2118
  %v2121 = vpop.permute.xlu0 %2120
  %vm2122 = vcmp.eq.s32.totalorder %v2121, 1
  %v2123 = vsel %vm2122, %v2116, %v1839
  %2124 = vmatprep.subr.mxu0 0.0
  %2125 = vmatpush1.msra.mxu0 0.0
  %2126 = vmatprep.subr.mxu0 0.0
  %2127 = vmatpush1.msra.mxu0 0.0
  %2128 = vmatprep.subr.mxu0 0.0
  %2129 = vmatpush1.msra.mxu0 0.0
  %2130 = vmatprep.subr.mxu0 0.0
  %2131 = vmatpush1.msra.mxu0 0.0
  %2132 = vmatprep.subr.mxu0 0.0
  %2133 = vmatpush1.msra.mxu0 0.0
  %2134 = vmatprep.subr.mxu0 0.0
  %2135 = vmatpush1.msra.mxu0 0.0
  %2136 = vmatprep.subr.mxu0 0.0
  %2137 = vmatpush1.msra.mxu0 0.0
  %2138 = vmatprep.subr.mxu0 0.0
  %2139 = vmatpush1.msra.mxu0 0.0
  %2140 = vmatprep.subr.mxu0 0.0
  %2141 = vmatpush1.msra.mxu0 0.0
  %2142 = vmatprep.subr.mxu0 0.0
  %2143 = vmatpush1.msra.mxu0 0.0
  %2144 = vmatprep.subr.mxu0 0.0
  %2145 = vmatpush1.msra.mxu0 0.0
  %2146 = vmatprep.subr.mxu0 0.0
  %2147 = vmatpush1.msra.mxu0 0.0
  %2148 = vmatprep.subr.mxu0 0.0
  %2149 = vmatpush1.msra.mxu0 %v39
  %2150 = vmatprep.subr.mxu0 0.0
  %2151 = vmatpush1.msra.mxu0 %v38
  %2152 = vmatprep.subr.mxu0 0.0
  %2153 = vmatpush1.msra.mxu0 %v37
  %2154 = vmatprep.subr.mxu0 0.0
  %2155 = vmatpush1.msra.mxu0 %v36
  %2156 = vmatprep.subr.mxu0 0.0
  %2157 = vmatpush2.msra.mxu0 0.0
  %2158 = vmatprep.subr.mxu0 0.0
  %2159 = vmatpush2.msra.mxu0 0.0
  %2160 = vmatprep.subr.mxu0 0.0
  %2161 = vmatpush2.msra.mxu0 0.0
  %2162 = vmatprep.subr.mxu0 0.0
  %2163 = vmatpush2.msra.mxu0 0.0
  %2164 = vmatprep.subr.mxu0 0.0
  %2165 = vmatpush2.msra.mxu0 0.0
  %2166 = vmatprep.subr.mxu0 0.0
  %2167 = vmatpush2.msra.mxu0 0.0
  %2168 = vmatprep.subr.mxu0 0.0
  %2169 = vmatpush2.msra.mxu0 0.0
  %2170 = vmatprep.subr.mxu0 0.0
  %2171 = vmatpush2.msra.mxu0 0.0
  %2172 = vmatprep.subr.mxu0 0.0
  %2173 = vmatpush2.msra.mxu0 0.0
  %2174 = vmatprep.subr.mxu0 0.0
  %2175 = vmatpush2.msra.mxu0 0.0
  %2176 = vmatprep.subr.mxu0 0.0
  %2177 = vmatpush2.msra.mxu0 0.0
  %2178 = vmatprep.subr.mxu0 0.0
  %2179 = vmatpush2.msra.mxu0 0.0
  %2180 = vmatprep.subr.mxu0 0.0
  %2181 = vmatpush2.msra.mxu0 0.0
  %2182 = vmatprep.subr.mxu0 0.0
  %2183 = vmatpush2.msra.mxu0 0.0
  %2184 = vmatprep.subr.mxu0 0.0
  %2185 = vmatpush2.msra.mxu0 0.0
  %2186 = vmatprep.subr.mxu0 0.0
  %2187 = vmatpush2.msra.mxu0 0.0
  %2188 = vmatprep.mubr.f32.mxu0 0.0
  %2189 = vmatmul.mubr.f32.gmra.mxu0 %v2020
  %v2190 = vpop.f32.mrf.mxu0
  %v2191 = vadd.f32 0.0, %v2190
  %v2192 = vpop.f32.mrf.mxu0
  %2193 = vdwg.mxu0
  %v2195 = vrot.slane %v2191, 2
  %v2197 = vadd.f32 %v139, %v2195
  %v2198 = vxor.u32 %v2197, 2147483648
  %v2199 = vmul.f32 %v2198, 1.442695
  %v2200 = vpow.pop %v2199
  %v2201 = vadd.f32 %v2200, 1.0
  %v2202 = vrcp.pop %v2201
  %v2203 = vmul.f32 1.0, %v2202
  %v2204 = vtanh.pop %v2197
  %v2206 = vrot.slane %v1934, 6
  %v2208 = vmul.f32 %v2203, %v2206
  %2210 = vrot.lane.b32.xlu0 %v2204, 32
  %v2211 = vpop.permute.xlu0 %2210
  %v2213 = vmul.f32 %v2203, %v2211
  %2215 = vrot.lane.b32.xlu0 %v2213, 32
  %v2216 = vpop.permute.xlu0 %2215
  %v2218 = vadd.f32 %v2208, %v2216
  %v2219 = vtanh.pop %v2218
  %2221 = vrot.lane.b32.xlu0 %v2219, 32
  %v2222 = vpop.permute.xlu0 %2221
  %v2224 = vmul.f32 %v2203, %v2222
  %2226 = vrot.lane.b32.xlu0 %v2116, 64
  %v2227 = vpop.permute.xlu0 %2226
  %v2228 = vsel %vm142, %v2227, 0
  %2230 = vmatprep.subr.mxu0 0.0
  %2231 = vmatpush1.msra.mxu0 0.0
  %2232 = vmatprep.subr.mxu0 0.0
  %2233 = vmatpush1.msra.mxu0 0.0
  %2234 = vmatprep.subr.mxu0 0.0
  %2235 = vmatpush1.msra.mxu0 0.0
  %2236 = vmatprep.subr.mxu0 0.0
  %2237 = vmatpush1.msra.mxu0 0.0
  %2238 = vmatprep.subr.mxu0 0.0
  %2239 = vmatpush1.msra.mxu0 0.0
  %2240 = vmatprep.subr.mxu0 0.0
  %2241 = vmatpush1.msra.mxu0 0.0
  %2242 = vmatprep.subr.mxu0 0.0
  %2243 = vmatpush1.msra.mxu0 0.0
  %2244 = vmatprep.subr.mxu0 0.0
  %2245 = vmatpush1.msra.mxu0 0.0
  %2246 = vmatprep.subr.mxu0 0.0
  %2247 = vmatpush1.msra.mxu0 0.0
  %2248 = vmatprep.subr.mxu0 0.0
  %2249 = vmatpush1.msra.mxu0 0.0
  %2250 = vmatprep.subr.mxu0 0.0
  %2251 = vmatpush1.msra.mxu0 0.0
  %2252 = vmatprep.subr.mxu0 0.0
  %2253 = vmatpush1.msra.mxu0 0.0
  %2254 = vmatprep.subr.mxu0 0.0
  %2255 = vmatpush1.msra.mxu0 %v47
  %2256 = vmatprep.subr.mxu0 0.0
  %2257 = vmatpush1.msra.mxu0 %v46
  %2258 = vmatprep.subr.mxu0 0.0
  %2259 = vmatpush1.msra.mxu0 %v45
  %2260 = vmatprep.subr.mxu0 0.0
  %2261 = vmatpush1.msra.mxu0 %v44
  %2262 = vmatprep.subr.mxu0 0.0
  %2263 = vmatpush2.msra.mxu0 0.0
  %2264 = vmatprep.subr.mxu0 0.0
  %2265 = vmatpush2.msra.mxu0 0.0
  %2266 = vmatprep.subr.mxu0 0.0
  %2267 = vmatpush2.msra.mxu0 0.0
  %2268 = vmatprep.subr.mxu0 0.0
  %2269 = vmatpush2.msra.mxu0 0.0
  %2270 = vmatprep.subr.mxu0 0.0
  %2271 = vmatpush2.msra.mxu0 0.0
  %2272 = vmatprep.subr.mxu0 0.0
  %2273 = vmatpush2.msra.mxu0 0.0
  %2274 = vmatprep.subr.mxu0 0.0
  %2275 = vmatpush2.msra.mxu0 0.0
  %2276 = vmatprep.subr.mxu0 0.0
  %2277 = vmatpush2.msra.mxu0 0.0
  %2278 = vmatprep.subr.mxu0 0.0
  %2279 = vmatpush2.msra.mxu0 0.0
  %2280 = vmatprep.subr.mxu0 0.0
  %2281 = vmatpush2.msra.mxu0 0.0
  %2282 = vmatprep.subr.mxu0 0.0
  %2283 = vmatpush2.msra.mxu0 0.0
  %2284 = vmatprep.subr.mxu0 0.0
  %2285 = vmatpush2.msra.mxu0 0.0
  %2286 = vmatprep.subr.mxu0 0.0
  %2287 = vmatpush2.msra.mxu0 0.0
  %2288 = vmatprep.subr.mxu0 0.0
  %2289 = vmatpush2.msra.mxu0 0.0
  %2290 = vmatprep.subr.mxu0 0.0
  %2291 = vmatpush2.msra.mxu0 0.0
  %2292 = vmatprep.subr.mxu0 0.0
  %2293 = vmatpush2.msra.mxu0 0.0
  %2294 = vmatprep.mubr.f32.mxu0 0.0
  %2295 = vmatmul.mubr.f32.gmra.mxu0 %v2228
  %v2296 = vpop.f32.mrf.mxu0
  %v2297 = vadd.f32 0.0, %v2296
  %v2298 = vpop.f32.mrf.mxu0
  %2299 = vdwg.mxu0
  %v2301 = vrot.slane %v2224, 6
  %2302 = vrot.lane.b32.xlu0 %v2301, 64
  %v2303 = vpop.permute.xlu0 %2302
  %v2304 = vsel %vm142, %v2303, 0
  %2306 = vmatprep.subr.mxu0 0.0
  %2307 = vmatpush1.msra.mxu0 0.0
  %2308 = vmatprep.subr.mxu0 0.0
  %2309 = vmatpush1.msra.mxu0 0.0
  %2310 = vmatprep.subr.mxu0 0.0
  %2311 = vmatpush1.msra.mxu0 0.0
  %2312 = vmatprep.subr.mxu0 0.0
  %2313 = vmatpush1.msra.mxu0 0.0
  %2314 = vmatprep.subr.mxu0 0.0
  %2315 = vmatpush1.msra.mxu0 0.0
  %2316 = vmatprep.subr.mxu0 0.0
  %2317 = vmatpush1.msra.mxu0 0.0
  %2318 = vmatprep.subr.mxu0 0.0
  %2319 = vmatpush1.msra.mxu0 0.0
  %2320 = vmatprep.subr.mxu0 0.0
  %2321 = vmatpush1.msra.mxu0 0.0
  %2322 = vmatprep.subr.mxu0 0.0
  %2323 = vmatpush1.msra.mxu0 0.0
  %2324 = vmatprep.subr.mxu0 0.0
  %2325 = vmatpush1.msra.mxu0 0.0
  %2326 = vmatprep.subr.mxu0 0.0
  %2327 = vmatpush1.msra.mxu0 0.0
  %2328 = vmatprep.subr.mxu0 0.0
  %2329 = vmatpush1.msra.mxu0 0.0
  %2330 = vmatprep.subr.mxu0 0.0
  %2331 = vmatpush1.msra.mxu0 %v43
  %2332 = vmatprep.subr.mxu0 0.0
  %2333 = vmatpush1.msra.mxu0 %v42
  %2334 = vmatprep.subr.mxu0 0.0
  %2335 = vmatpush1.msra.mxu0 %v41
  %2336 = vmatprep.subr.mxu0 0.0
  %2337 = vmatpush1.msra.mxu0 %v40
  %2338 = vmatprep.subr.mxu0 0.0
  %2339 = vmatpush2.msra.mxu0 0.0
  %2340 = vmatprep.subr.mxu0 0.0
  %2341 = vmatpush2.msra.mxu0 0.0
  %2342 = vmatprep.subr.mxu0 0.0
  %2343 = vmatpush2.msra.mxu0 0.0
  %2344 = vmatprep.subr.mxu0 0.0
  %2345 = vmatpush2.msra.mxu0 0.0
  %2346 = vmatprep.subr.mxu0 0.0
  %2347 = vmatpush2.msra.mxu0 0.0
  %2348 = vmatprep.subr.mxu0 0.0
  %2349 = vmatpush2.msra.mxu0 0.0
  %2350 = vmatprep.subr.mxu0 0.0
  %2351 = vmatpush2.msra.mxu0 0.0
  %2352 = vmatprep.subr.mxu0 0.0
  %2353 = vmatpush2.msra.mxu0 0.0
  %2354 = vmatprep.subr.mxu0 0.0
  %2355 = vmatpush2.msra.mxu0 0.0
  %2356 = vmatprep.subr.mxu0 0.0
  %2357 = vmatpush2.msra.mxu0 0.0
  %2358 = vmatprep.subr.mxu0 0.0
  %2359 = vmatpush2.msra.mxu0 0.0
  %2360 = vmatprep.subr.mxu0 0.0
  %2361 = vmatpush2.msra.mxu0 0.0
  %2362 = vmatprep.subr.mxu0 0.0
  %2363 = vmatpush2.msra.mxu0 0.0
  %2364 = vmatprep.subr.mxu0 0.0
  %2365 = vmatpush2.msra.mxu0 0.0
  %2366 = vmatprep.subr.mxu0 0.0
  %2367 = vmatpush2.msra.mxu0 0.0
  %2368 = vmatprep.subr.mxu0 0.0
  %2369 = vmatpush2.msra.mxu0 0.0
  %2370 = vmatprep.mubr.f32.mxu0 0.0
  %2371 = vmatmul.mubr.f32.gmra.mxu0 %v2304
  %v2372 = vpop.f32.mrf.mxu0
  %v2373 = vadd.f32 %v2297, %v2372
  %v2374 = vpop.f32.mrf.mxu0
  %2375 = vdwg.mxu0
  %v2376 = vadd.f32 %v2373, %v390
  %v2377 = vxor.u32 %v2376, 2147483648
  %v2378 = vmul.f32 %v2377, 1.442695
  %v2379 = vpow.pop %v2378
  %v2380 = vadd.f32 %v2379, 1.0
  %v2381 = vrcp.pop %v2380
  %v2382 = vmul.f32 1.0, %v2381
  %v2383 = vtanh.pop %v2376
  %v2384 = vmul.f32 %v2382, %v2110
  %2386 = vrot.lane.b32.xlu0 %v2383, 32
  %v2387 = vpop.permute.xlu0 %2386
  %v2389 = vmul.f32 %v2382, %v2387
  %2391 = vrot.lane.b32.xlu0 %v2389, 32
  %v2392 = vpop.permute.xlu0 %2391
  %v2394 = vadd.f32 %v2384, %v2392
  %v2395 = vtanh.pop %v2394
  %2397 = vrot.lane.b32.xlu0 %v2395, 32
  %v2398 = vpop.permute.xlu0 %2397
  %v2400 = vmul.f32 %v2382, %v2398
  %vm2401 = vcmp.eq.s32.totalorder %v35, 7
  %v2402 = vsel %vm2401, 1, 0
  %2403 = vset.pattern.permute.xlu0 0
  %2404 = vperm.xlu0 %2403, %v2402
  %v2405 = vpop.permute.xlu0 %2404
  %vm2406 = vcmp.eq.s32.totalorder %v2405, 1
  %v2407 = vsel %vm2406, %v2400, %v2123
  %v2408 = vld [vmem:[%s8] sm:$0xff]
  %v2409 = vld [vmem:[%s8 + $0x8] sm:$0xff]
  %v2410 = vld [vmem:[%s8 + $0x10] sm:$0xff]
  %v2411 = vld [vmem:[%s8 + $0x18] sm:$0xff]
  %v2412 = vld [vmem:[%s9] sm:$0x1]
  %v2414 = vlaneseq
  %v2415 = vshrl.u32 %v2414, 7
  %v2416 = vsub.s32 0, %v2415
  %v2417 = vrot.slane %v2412, %v2416
  %2420 = vrot.lane.b32.xlu0 %v2407, 64
  %v2421 = vpop.permute.xlu0 %2420
  %v2422 = vsel %vm142, %v2421, 0
  %2424 = vmatprep.subr.mxu0 0.0
  %2425 = vmatpush1.msra.mxu0 0.0
  %2426 = vmatprep.subr.mxu0 0.0
  %2427 = vmatpush1.msra.mxu0 0.0
  %2428 = vmatprep.subr.mxu0 0.0
  %2429 = vmatpush1.msra.mxu0 0.0
  %2430 = vmatprep.subr.mxu0 0.0
  %2431 = vmatpush1.msra.mxu0 0.0
  %2432 = vmatprep.subr.mxu0 0.0
  %2433 = vmatpush1.msra.mxu0 0.0
  %2434 = vmatprep.subr.mxu0 0.0
  %2435 = vmatpush1.msra.mxu0 0.0
  %2436 = vmatprep.subr.mxu0 0.0
  %2437 = vmatpush1.msra.mxu0 0.0
  %2438 = vmatprep.subr.mxu0 0.0
  %2439 = vmatpush1.msra.mxu0 0.0
  %2440 = vmatprep.subr.mxu0 0.0
  %2441 = vmatpush1.msra.mxu0 0.0
  %2442 = vmatprep.subr.mxu0 0.0
  %2443 = vmatpush1.msra.mxu0 0.0
  %2444 = vmatprep.subr.mxu0 0.0
  %2445 = vmatpush1.msra.mxu0 0.0
  %2446 = vmatprep.subr.mxu0 0.0
  %2447 = vmatpush1.msra.mxu0 0.0
  %2448 = vmatprep.subr.mxu0 0.0
  %2449 = vmatpush1.msra.mxu0 %v2411
  %2450 = vmatprep.subr.mxu0 0.0
  %2451 = vmatpush1.msra.mxu0 %v2410
  %2452 = vmatprep.subr.mxu0 0.0
  %2453 = vmatpush1.msra.mxu0 %v2409
  %2454 = vmatprep.subr.mxu0 0.0
  %2455 = vmatpush1.msra.mxu0 %v2408
  %2456 = vmatprep.subr.mxu0 0.0
  %2457 = vmatpush2.msra.mxu0 0.0
  %2458 = vmatprep.subr.mxu0 0.0
  %2459 = vmatpush2.msra.mxu0 0.0
  %2460 = vmatprep.subr.mxu0 0.0
  %2461 = vmatpush2.msra.mxu0 0.0
  %2462 = vmatprep.subr.mxu0 0.0
  %2463 = vmatpush2.msra.mxu0 0.0
  %2464 = vmatprep.subr.mxu0 0.0
  %2465 = vmatpush2.msra.mxu0 0.0
  %2466 = vmatprep.subr.mxu0 0.0
  %2467 = vmatpush2.msra.mxu0 0.0
  %2468 = vmatprep.subr.mxu0 0.0
  %2469 = vmatpush2.msra.mxu0 0.0
  %2470 = vmatprep.subr.mxu0 0.0
  %2471 = vmatpush2.msra.mxu0 0.0
  %2472 = vmatprep.subr.mxu0 0.0
  %2473 = vmatpush2.msra.mxu0 0.0
  %2474 = vmatprep.subr.mxu0 0.0
  %2475 = vmatpush2.msra.mxu0 0.0
  %2476 = vmatprep.subr.mxu0 0.0
  %2477 = vmatpush2.msra.mxu0 0.0
  %2478 = vmatprep.subr.mxu0 0.0
  %2479 = vmatpush2.msra.mxu0 0.0
  %2480 = vmatprep.subr.mxu0 0.0
  %2481 = vmatpush2.msra.mxu0 0.0
  %2482 = vmatprep.subr.mxu0 0.0
  %2483 = vmatpush2.msra.mxu0 0.0
  %2484 = vmatprep.subr.mxu0 0.0
  %2485 = vmatpush2.msra.mxu0 0.0
  %2486 = vmatprep.subr.mxu0 0.0
  %2487 = vmatpush2.msra.mxu0 0.0
  %2488 = vmatprep.mubr.f32.mxu0 0.0
  %2489 = vmatmul.mubr.f32.gmra.mxu0 %v2422
  %v2490 = vpop.f32.mrf.mxu0
  %v2491 = vadd.f32 %v2417, %v2490
  %v2492 = vpop.f32.mrf.mxu0
  %2493 = vdwg.mxu0
  %vm2494 = vcmask 254976
  %2495 = vst.msk [vmem:[%s10] sm:$0x3] %vm2494, %v2491
  // Predicated region
  $region42: #{forward.3} parent=0 // pred_check
    _
  $region43: #{forward.3} parent=0 // pred_check_branch
    %2497 = sbr.rel (0) target = $region45
  $region44: #{forward.3} parent=0 // pred_region
    _
  $region45: #{forward.3} parent=0 // pred_fallthru
    _
  // Predicated region
  $region46: #{forward.3} parent=0 // pred_check
    _
  $region47: #{forward.3} parent=0 // pred_check_branch
    %2499 = sbr.rel (0) target = $region49
  $region48: #{forward.3} parent=0 // pred_region
    _
  $region49: #{forward.3} parent=0 // pred_fallthru
    _

</llo_original>
